<compile_context>
chip_gen: v6e
topology: v6e:2x2x1
jax: 0.10.0
libtpu: 0.0.40
codegen_flags: <defaults>
</compile_context>

<pallas_src>
import jax
import jax.numpy as jnp
import numpy as np
from jax.experimental import pallas as pl
from jax.experimental.pallas import tpu as pltpu


# ---------------------------------------------------------------------------
# Host-side helpers (separable upsample matrices/taps + BatchNorm folding)
# ---------------------------------------------------------------------------

def _round_up(x, m):
    return ((x + m - 1) // m) * m


def _upsample_pad_rows(n_in, n_out):
    """(n_out, n_in) = 2x bilinear upsample (align_corners=True) + centering pad."""
    n_up = 2 * n_in
    assert n_out >= n_up
    A = np.zeros((n_up, n_in), np.float64)
    if n_in == 1:
        A[:, 0] = 1.0
    else:
        src = np.arange(n_up) * (n_in - 1) / (n_up - 1)
        i0 = np.floor(src).astype(np.int64)
        i1 = np.minimum(i0 + 1, n_in - 1)
        w = src - i0
        A[np.arange(n_up), i0] += 1.0 - w
        A[np.arange(n_up), i1] += w
    diff = n_out - n_up
    M = np.zeros((n_out, n_in), np.float64)
    M[diff // 2: diff // 2 + n_up, :] = A
    return M


def _width_taps(n_in, n_out):
    """Per output column: None (pad column) or (j0, j1, w) two-tap bilinear lerp."""
    n_up = 2 * n_in
    lo = (n_out - n_up) // 2
    taps = []
    for x in range(n_out):
        xx = x - lo
        if 0 <= xx < n_up:
            if n_in == 1:
                taps.append((0, 0, 0.0))
            else:
                src = xx * (n_in - 1) / (n_up - 1)
                j0 = int(np.floor(src))
                j1 = min(j0 + 1, n_in - 1)
                taps.append((j0, j1, float(src - j0)))
        else:
            taps.append(None)
    return taps


def _fold_bn(w_oihw, b, gamma, beta, mean, var, eps=1e-5):
    """Fold inference-mode BatchNorm into a conv. Returns numpy (ky,kx,ci,co), bias."""
    w_oihw = np.asarray(w_oihw, np.float64)
    b = np.asarray(b, np.float64)
    gamma = np.asarray(gamma, np.float64)
    beta = np.asarray(beta, np.float64)
    mean = np.asarray(mean, np.float64)
    var = np.asarray(var, np.float64)
    s = gamma / np.sqrt(var + eps)
    w = np.transpose(w_oihw, (2, 3, 1, 0)) * s[None, None, None, :]
    bf = (b - mean) * s + beta
    return w, bf


# ---------------------------------------------------------------------------
# Pallas kernel factory: upsample + pad + (implicit) concat + DoubleConv, fused
# ---------------------------------------------------------------------------

def _make_kernel(H1, W1, C1, H2, W2, C2, Cop, wtaps):
    f32 = jnp.float32
    bf16 = jnp.bfloat16
    Ccat = C1 + C2
    HW = H2 * W2

    def kernel(x1r_ref, x2_ref, uh_ref,
               w1_ref, b1_ref, w2_ref, b2_ref, wid_ref, bid_ref,
               o_ref, cat_pad, mid_pad):
        # -- 0. zero ONLY the 1-px conv halo border, every step (cheap, and safe
        #       under megacore sharding; interiors are fully overwritten below).
        cat_pad[0:1, :, :] = jnp.zeros((1, W2 + 2, Ccat), f32)
        cat_pad[H2 + 1:H2 + 2, :, :] = jnp.zeros((1, W2 + 2, Ccat), f32)
        cat_pad[:, 0:1, :] = jnp.zeros((H2 + 2, 1, Ccat), f32)
        cat_pad[:, W2 + 1:W2 + 2, :] = jnp.zeros((H2 + 2, 1, Ccat), f32)
        mid_pad[0:1, :, :] = jnp.zeros((1, W2 + 2, Cop), f32)
        mid_pad[H2 + 1:H2 + 2, :, :] = jnp.zeros((1, W2 + 2, Cop), f32)
        mid_pad[:, 0:1, :] = jnp.zeros((H2 + 2, 1, Cop), f32)
        mid_pad[:, W2 + 1:W2 + 2, :] = jnp.zeros((H2 + 2, 1, Cop), f32)

        # -- 1. x2 skip connection -> first C2 channels of the concat slab.
        cat_pad[1:H2 + 1, 1:W2 + 1, 0:C2] = x2_ref[0]

        # -- 2. separable bilinear 2x upsample (align_corners=True) + F.pad of x1.
        #       Height pass (pad rows folded into Uh): one small MXU matmul.
        th = jnp.dot(uh_ref[...], x1r_ref[0], preferred_element_type=f32)  # (H2, W1*C1)
        #       Width pass: <=2 static taps per output column, written straight
        #       into channels [C2, C2+C1) of the slab (pad columns -> zeros).
        for xcol, tap in enumerate(wtaps):
            if tap is None:
                col = jnp.zeros((H2, C1), f32)
            else:
                j0, j1, w = tap
                c0 = th[:, j0 * C1:(j0 + 1) * C1]
                if j1 == j0 or w == 0.0:
                    col = c0
                else:
                    col = (1.0 - w) * c0 + w * th[:, j1 * C1:(j1 + 1) * C1]
            cat_pad[1:H2 + 1, 1 + xcol, C2:Ccat] = col

        # -- 3. conv1 (3x3, BN folded, K=C1+C2) + ReLU. Accumulator starts from
        #       the bias; dx-shifted slabs hoisted out of the dy loop; bf16 dots.
        acc1 = jnp.broadcast_to(b1_ref[0], (HW, Cop))
        for dx in range(3):
            slab = cat_pad[:, dx:dx + W2, :].astype(bf16)          # (H2+2, W2, Ccat)
            for dy in range(3):
                t = slab[dy:dy + H2].reshape(HW, Ccat)
                acc1 = acc1 + jnp.dot(t, w1_ref[dy, dx], preferred_element_type=f32)
        mid = jnp.maximum(acc1, 0.0)
        mid_pad[1:H2 + 1, 1:W2 + 1, :] = mid.reshape(H2, W2, Cop)

        # -- 4. conv2 (3x3, BN folded) on the zero-padded ReLU activations.
        acc2 = jnp.broadcast_to(b2_ref[0], (HW, Cop))
        for dx in range(3):
            slab = mid_pad[:, dx:dx + W2, :].astype(bf16)
            for dy in range(3):
                t = slab[dy:dy + H2].reshape(HW, Cop)
                acc2 = acc2 + jnp.dot(t, w2_ref[dy, dx], preferred_element_type=f32)

        # -- 5. identity branch: single 1x1 conv (BN folded) on the implicit concat.
        cat = cat_pad[1:H2 + 1, 1:W2 + 1, :].astype(bf16).reshape(HW, Ccat)
        ident = jnp.dot(cat, wid_ref[...], preferred_element_type=f32) \
            + jnp.broadcast_to(bid_ref[0], (HW, Cop))

        # -- 6. residual add + final ReLU; lane-dense (HW, Cop) store (Cop % 128 == 0).
        o_ref[0] = jnp.maximum(acc2 + ident, 0.0).astype(o_ref.dtype)

    return kernel


def up_forward(x1_nchw, x2_nchw, params, Co):
    """Forward of `Up` (attn=False): upsample+pad x1, concat with x2, DoubleConv.
    x1_nchw: (B, C1, H1, W1); x2_nchw: (B, C2, H2, W2). Returns (B, Co, H2, W2)."""
    B, C1, H1, W1 = x1_nchw.shape
    B2, C2, H2, W2 = x2_nchw.shape
    assert B == B2 and H2 >= 2 * H1 and W2 >= 2 * W1
    # Keeps the in-kernel (H, W, C) <-> (H*W, C) reshapes layout-preserving.
    assert H2 % 8 == 0 and W2 % 8 == 0, "spatial dims should be multiples of 8"

    Cop = params["Cop"]
    Ccat = C1 + C2
    HW = H2 * W2

    uh = jnp.asarray(_upsample_pad_rows(H1, H2), jnp.float32)    # (H2, H1), tiny
    wtaps = _width_taps(W1, W2)

    # NCHW -> NHWC glue (channels onto the lane dim); x1 additionally flattened
    # to (B, H1, W1*C1) so the height pass of the upsample is one 2-D matmul.
    # TODO(synk): if the surrounding network keeps NHWC these transposes vanish.
    x1r = jnp.transpose(x1_nchw, (0, 2, 3, 1)).reshape(B, H1, W1 * C1)
    x2t = jnp.transpose(x2_nchw, (0, 2, 3, 1))

    kernel = _make_kernel(H1, W1, C1, H2, W2, C2, Cop, wtaps)

    out_flat = pl.pallas_call(
        kernel,
        out_shape=jax.ShapeDtypeStruct((B, HW, Cop), x1_nchw.dtype),
        grid_spec=pltpu.PrefetchScalarGridSpec(
            num_scalar_prefetch=0,
            grid=(B,),
            in_specs=[
                pl.BlockSpec((1, H1, W1 * C1), lambda b: (b, 0, 0)),
                pl.BlockSpec((1, H2, W2, C2), lambda b: (b, 0, 0, 0)),
                pl.BlockSpec((H2, H1), lambda b: (0, 0)),
                pl.BlockSpec((3, 3, Ccat, Cop), lambda b: (0, 0, 0, 0)),
                pl.BlockSpec((1, Cop), lambda b: (0, 0)),
                pl.BlockSpec((3, 3, Cop, Cop), lambda b: (0, 0, 0, 0)),
                pl.BlockSpec((1, Cop), lambda b: (0, 0)),
                pl.BlockSpec((Ccat, Cop), lambda b: (0, 0)),
                pl.BlockSpec((1, Cop), lambda b: (0, 0)),
            ],
            out_specs=pl.BlockSpec((1, HW, Cop), lambda b: (b, 0, 0)),
            scratch_shapes=[
                pltpu.VMEM((H2 + 2, W2 + 2, Ccat), jnp.float32),
                pltpu.VMEM((H2 + 2, W2 + 2, Cop), jnp.float32),
            ]),
        compiler_params=pltpu.CompilerParams(
            dimension_semantics=("parallel",),
            vmem_limit_bytes=48 * 1024 * 1024),
    )(x1r, x2t, uh, params["w1"], params["b1"], params["w2"], params["b2"],
      params["wid"], params["bid"])

    # (B, H*W, Cop) -> (B, Co, H, W): drop zero-padded channels, back to NCHW.
    out = out_flat.reshape(B, H2, W2, Cop)[..., :Co]
    return jnp.transpose(out, (0, 3, 1, 2))


# ---------------------------------------------------------------------------
# Parameter construction + pure-JAX reference (mirrors the torch module)
# ---------------------------------------------------------------------------

def pack_params(raw, C1, C2, Co, eps=1e-5):
    """Fold BN, concat conv1/identity weights along input channels, pad mid/out
    channels to a multiple of 128 (lane-dense), cast matmul weights to bf16."""
    Cin = C1 + C2
    Cop = max(128, _round_up(Co, 128))

    w1, b1 = _fold_bn(raw["w1"], raw["bc1"], raw["g1"], raw["be1"], raw["m1"], raw["v1"], eps)
    w2, b2 = _fold_bn(raw["w2"], raw["bc2"], raw["g2"], raw["be2"], raw["m2"], raw["v2"], eps)
    wi, bi = _fold_bn(raw["wid"], raw["bcid"], raw["gid"], raw["beid"], raw["mid"], raw["vid"], eps)

    w1p = np.zeros((3, 3, Cin, Cop)); w1p[..., :Co] = w1
    w2p = np.zeros((3, 3, Cop, Cop)); w2p[:, :, :Co, :Co] = w2
    wip = np.zeros((Cin, Cop)); wip[:, :Co] = wi[0, 0]
    b1p = np.zeros((1, Cop)); b1p[0, :Co] = b1
    b2p = np.zeros((1, Cop)); b2p[0, :Co] = b2
    bip = np.zeros((1, Cop)); bip[0, :Co] = bi
    return {
        "w1": jnp.asarray(w1p, jnp.bfloat16), "b1": jnp.asarray(b1p, jnp.float32),
        "w2": jnp.asarray(w2p, jnp.bfloat16), "b2": jnp.asarray(b2p, jnp.float32),
        "wid": jnp.asarray(wip, jnp.bfloat16), "bid": jnp.asarray(bip, jnp.float32),
        "Cop": Cop,
    }


def make_params(key, C1, C2, Co):
    Cin = C1 + C2
    ks = jax.random.split(key, 18)

    def conv_w(k, co, ci, kh, kw):
        bound = 1.0 / np.sqrt(ci * kh * kw)
        return jax.random.uniform(k, (co, ci, kh, kw), jnp.float32, -bound, bound)

    def conv_b(k, co, ci, kh, kw):
        bound = 1.0 / np.sqrt(ci * kh * kw)
        return jax.random.uniform(k, (co,), jnp.float32, -bound, bound)

    def bn(k1, k2, k3, k4, c):
        return (jax.random.uniform(k1, (c,), jnp.float32, 0.5, 1.5),
                0.1 * jax.random.normal(k2, (c,), jnp.float32),
                0.1 * jax.random.normal(k3, (c,), jnp.float32),
                jax.random.uniform(k4, (c,), jnp.float32, 0.5, 1.5))

    raw = {}
    raw["w1"], raw["bc1"] = conv_w(ks[0], Co, Cin, 3, 3), conv_b(ks[1], Co, Cin, 3, 3)
    raw["g1"], raw["be1"], raw["m1"], raw["v1"] = bn(ks[2], ks[3], ks[4], ks[5], Co)
    raw["w2"], raw["bc2"] = conv_w(ks[6], Co, Co, 3, 3), conv_b(ks[7], Co, Co, 3, 3)
    raw["g2"], raw["be2"], raw["m2"], raw["v2"] = bn(ks[8], ks[9], ks[10], ks[11], Co)
    raw["wid"], raw["bcid"] = conv_w(ks[12], Co, Cin, 1, 1), conv_b(ks[13], Co, Cin, 1, 1)
    raw["gid"], raw["beid"], raw["mid"], raw["vid"] = bn(ks[14], ks[15], ks[16], ks[17], Co)

    return raw, pack_params(raw, C1, C2, Co)


def _bilinear_up2_ref(x):
    """2x bilinear upsample, align_corners=True, NCHW (independent of the kernel path)."""
    B, C, H, W = x.shape
    H2, W2 = 2 * H, 2 * W

    def grid(n_in, n_out):
        src = jnp.arange(n_out, dtype=jnp.float32) * (n_in - 1) / (n_out - 1)
        i0 = jnp.floor(src).astype(jnp.int32)
        i1 = jnp.minimum(i0 + 1, n_in - 1)
        return i0, i1, src - i0

    y0, y1, wy = grid(H, H2)
    x0, x1i, wx = grid(W, W2)
    rows = x[:, :, y0, :] * (1.0 - wy)[None, None, :, None] + x[:, :, y1, :] * wy[None, None, :, None]
    return rows[:, :, :, x0] * (1.0 - wx)[None, None, None, :] + rows[:, :, :, x1i] * wx[None, None, None, :]


def up_reference(x1, x2, raw, eps=1e-5):
    x1u = _bilinear_up2_ref(x1)
    dY, dX = x2.shape[2] - x1u.shape[2], x2.shape[3] - x1u.shape[3]
    x1u = jnp.pad(x1u, ((0, 0), (0, 0), (dY // 2, dY - dY // 2), (dX // 2, dX - dX // 2)))
    x = jnp.concatenate([x2, x1u], axis=1)

    def conv(z, w, b, pad):
        y = jax.lax.conv_general_dilated(z, w, (1, 1), [(pad, pad), (pad, pad)],
                                         dimension_numbers=("NCHW", "OIHW", "NCHW"))
        return y + b[None, :, None, None]

    def bn(z, g, be, m, v):
        return (z - m[None, :, None, None]) * (g / jnp.sqrt(v + eps))[None, :, None, None] + be[None, :, None, None]

    h = jnp.maximum(bn(conv(x, raw["w1"], raw["bc1"], 1), raw["g1"], raw["be1"], raw["m1"], raw["v1"]), 0.0)
    h = bn(conv(h, raw["w2"], raw["bc2"], 1), raw["g2"], raw["be2"], raw["m2"], raw["v2"])
    idt = bn(conv(x, raw["wid"], raw["bcid"], 0), raw["gid"], raw["beid"], raw["mid"], raw["vid"])
    return jnp.maximum(h + idt, 0.0)


if __name__ == "__main__":
    B = 2
    C1, H1, W1 = 64, 8, 8          # x1: low-res decoder features
    C2, H2, W2 = 64, 16, 16        # x2: skip connection at 2x resolution
    Co = 64                        # DoubleConv out_ch

    key = jax.random.PRNGKey(0)
    kx1, kx2, kp = jax.random.split(key, 3)
    x1 = jax.random.normal(kx1, (B, C1, H1, W1), jnp.float32)
    x2 = jax.random.normal(kx2, (B, C2, H2, W2), jnp.float32)
    raw, packed = make_params(kp, C1, C2, Co)

    out = jax.block_until_ready(up_forward(x1, x2, packed, Co))
    assert out.shape == (B, Co, H2, W2)

    ref = up_reference(x1, x2, raw)
    # bf16 matmul operands (f32 accumulation) -> looser tolerance than the f32 run.
    np.testing.assert_allclose(np.asarray(out), np.asarray(ref), atol=5e-2, rtol=5e-2)

    print("KERNEL_OK")
</pallas_src>

<mosaic_0001>
module attributes {stable_mosaic.version = 11 : i64} {
  func.func @kernel(%arg0: i32, %arg1: memref<1x8x512xf32, #tpu.memory_space<vmem>>, %arg2: memref<1x16x16x64xf32, #tpu.memory_space<vmem>>, %arg3: memref<16x8xf32, #tpu.memory_space<vmem>>, %arg4: memref<3x3x128x128xbf16, #tpu.memory_space<vmem>>, %arg5: memref<1x128xf32, #tpu.memory_space<vmem>>, %arg6: memref<3x3x128x128xbf16, #tpu.memory_space<vmem>>, %arg7: memref<1x128xf32, #tpu.memory_space<vmem>>, %arg8: memref<128x128xbf16, #tpu.memory_space<vmem>>, %arg9: memref<1x128xf32, #tpu.memory_space<vmem>>, %arg10: memref<1x256x128xf32, #tpu.memory_space<vmem>>, %arg11: memref<18x18x128xf32, #tpu.memory_space<vmem>>, %arg12: memref<18x18x128xf32, #tpu.memory_space<vmem>>) attributes {dimension_semantics = [#tpu.dimension_semantics<parallel>], iteration_bounds = array<i64: 2>, scalar_prefetch = 0 : i64, scratch_operands = 2 : i64, tpu.core_type = #tpu.core_type<tc>, window_params = [{transform_indices = @transform_0, window_bounds = array<i64: 1, 8, 512>}, {transform_indices = @transform_1, window_bounds = array<i64: 1, 16, 16, 64>}, {pipeline_mode = #tpu.pipeline_mode<synchronous>, transform_indices = @transform_2, window_bounds = array<i64: 16, 8>}, {pipeline_mode = #tpu.pipeline_mode<synchronous>, transform_indices = @transform_3, window_bounds = array<i64: 3, 3, 128, 128>}, {pipeline_mode = #tpu.pipeline_mode<synchronous>, transform_indices = @transform_4, window_bounds = array<i64: 1, 128>}, {pipeline_mode = #tpu.pipeline_mode<synchronous>, transform_indices = @transform_5, window_bounds = array<i64: 3, 3, 128, 128>}, {pipeline_mode = #tpu.pipeline_mode<synchronous>, transform_indices = @transform_6, window_bounds = array<i64: 1, 128>}, {pipeline_mode = #tpu.pipeline_mode<synchronous>, transform_indices = @transform_7, window_bounds = array<i64: 128, 128>}, {pipeline_mode = #tpu.pipeline_mode<synchronous>, transform_indices = @transform_8, window_bounds = array<i64: 1, 128>}, {transform_indices = @transform_9, window_bounds = array<i64: 1, 256, 128>}]} {
    %cst = arith.constant 0.000000e+00 : f32
    %0 = vector.broadcast %cst : f32 to vector<1x18x128xf32>
    %c0 = arith.constant 0 : index
    %c0_0 = arith.constant 0 : index
    %c0_1 = arith.constant 0 : index
    %1 = vector.load %arg11[%c0, %c0_0, %c0_1] : memref<18x18x128xf32, #tpu.memory_space<vmem>>, vector<1x18x128xf32>
    tpu.vector_store %arg11[%c0, %c0_0, %c0_1], %0 {strides = array<i32>} : memref<18x18x128xf32, #tpu.memory_space<vmem>>, vector<1x18x128xf32>,
    %cst_2 = arith.constant 0.000000e+00 : f32
    %2 = vector.broadcast %cst_2 : f32 to vector<1x18x128xf32>
    %c17 = arith.constant 17 : index
    %c0_3 = arith.constant 0 : index
    %c0_4 = arith.constant 0 : index
    %3 = vector.load %arg11[%c17, %c0_3, %c0_4] : memref<18x18x128xf32, #tpu.memory_space<vmem>>, vector<1x18x128xf32>
    tpu.vector_store %arg11[%c17, %c0_3, %c0_4], %2 {strides = array<i32>} : memref<18x18x128xf32, #tpu.memory_space<vmem>>, vector<1x18x128xf32>,
    %cst_5 = arith.constant 0.000000e+00 : f32
    %4 = vector.broadcast %cst_5 : f32 to vector<18x1x128xf32>
    %c0_6 = arith.constant 0 : index
    %c0_7 = arith.constant 0 : index
    %c0_8 = arith.constant 0 : index
    %5 = vector.load %arg11[%c0_6, %c0_7, %c0_8] : memref<18x18x128xf32, #tpu.memory_space<vmem>>, vector<18x1x128xf32>
    tpu.vector_store %arg11[%c0_6, %c0_7, %c0_8], %4 {strides = array<i32>} : memref<18x18x128xf32, #tpu.memory_space<vmem>>, vector<18x1x128xf32>,
    %cst_9 = arith.constant 0.000000e+00 : f32
    %6 = vector.broadcast %cst_9 : f32 to vector<18x1x128xf32>
    %c0_10 = arith.constant 0 : index
    %c17_11 = arith.constant 17 : index
    %c0_12 = arith.constant 0 : index
    %7 = vector.load %arg11[%c0_10, %c17_11, %c0_12] : memref<18x18x128xf32, #tpu.memory_space<vmem>>, vector<18x1x128xf32>
    tpu.vector_store %arg11[%c0_10, %c17_11, %c0_12], %6 {strides = array<i32>} : memref<18x18x128xf32, #tpu.memory_space<vmem>>, vector<18x1x128xf32>,
    %cst_13 = arith.constant 0.000000e+00 : f32
    %8 = vector.broadcast %cst_13 : f32 to vector<1x18x128xf32>
    %c0_14 = arith.constant 0 : index
    %c0_15 = arith.constant 0 : index
    %c0_16 = arith.constant 0 : index
    %9 = vector.load %arg12[%c0_14, %c0_15, %c0_16] : memref<18x18x128xf32, #tpu.memory_space<vmem>>, vector<1x18x128xf32>
    tpu.vector_store %arg12[%c0_14, %c0_15, %c0_16], %8 {strides = array<i32>} : memref<18x18x128xf32, #tpu.memory_space<vmem>>, vector<1x18x128xf32>,
    %cst_17 = arith.constant 0.000000e+00 : f32
    %10 = vector.broadcast %cst_17 : f32 to vector<1x18x128xf32>
    %c17_18 = arith.constant 17 : index
    %c0_19 = arith.constant 0 : index
    %c0_20 = arith.constant 0 : index
    %11 = vector.load %arg12[%c17_18, %c0_19, %c0_20] : memref<18x18x128xf32, #tpu.memory_space<vmem>>, vector<1x18x128xf32>
    tpu.vector_store %arg12[%c17_18, %c0_19, %c0_20], %10 {strides = array<i32>} : memref<18x18x128xf32, #tpu.memory_space<vmem>>, vector<1x18x128xf32>,
    %cst_21 = arith.constant 0.000000e+00 : f32
    %12 = vector.broadcast %cst_21 : f32 to vector<18x1x128xf32>
    %c0_22 = arith.constant 0 : index
    %c0_23 = arith.constant 0 : index
    %c0_24 = arith.constant 0 : index
    %13 = vector.load %arg12[%c0_22, %c0_23, %c0_24] : memref<18x18x128xf32, #tpu.memory_space<vmem>>, vector<18x1x128xf32>
    tpu.vector_store %arg12[%c0_22, %c0_23, %c0_24], %12 {strides = array<i32>} : memref<18x18x128xf32, #tpu.memory_space<vmem>>, vector<18x1x128xf32>,
    %cst_25 = arith.constant 0.000000e+00 : f32
    %14 = vector.broadcast %cst_25 : f32 to vector<18x1x128xf32>
    %c0_26 = arith.constant 0 : index
    %c17_27 = arith.constant 17 : index
    %c0_28 = arith.constant 0 : index
    %15 = vector.load %arg12[%c0_26, %c17_27, %c0_28] : memref<18x18x128xf32, #tpu.memory_space<vmem>>, vector<18x1x128xf32>
    tpu.vector_store %arg12[%c0_26, %c17_27, %c0_28], %14 {strides = array<i32>} : memref<18x18x128xf32, #tpu.memory_space<vmem>>, vector<18x1x128xf32>,
    %c0_29 = arith.constant 0 : index
    %c0_30 = arith.constant 0 : index
    %c0_31 = arith.constant 0 : index
    %c0_32 = arith.constant 0 : index
    %16 = vector.load %arg2[%c0_29, %c0_30, %c0_31, %c0_32] : memref<1x16x16x64xf32, #tpu.memory_space<vmem>>, vector<1x16x16x64xf32>
    %17 = vector.shape_cast %16 : vector<1x16x16x64xf32> to vector<16x16x64xf32>
    %c1 = arith.constant 1 : index
    %c1_33 = arith.constant 1 : index
    %c0_34 = arith.constant 0 : index
    %18 = vector.load %arg11[%c1, %c1_33, %c0_34] : memref<18x18x128xf32, #tpu.memory_space<vmem>>, vector<16x16x64xf32>
    tpu.vector_store %arg11[%c1, %c1_33, %c0_34], %17 {strides = array<i32>} : memref<18x18x128xf32, #tpu.memory_space<vmem>>, vector<16x16x64xf32>,
    %c0_35 = arith.constant 0 : index
    %c0_36 = arith.constant 0 : index
    %19 = vector.load %arg3[%c0_35, %c0_36] : memref<16x8xf32, #tpu.memory_space<vmem>>, vector<16x8xf32>
    %c0_37 = arith.constant 0 : index
    %c0_38 = arith.constant 0 : index
    %c0_39 = arith.constant 0 : index
    %20 = vector.load %arg1[%c0_37, %c0_38, %c0_39] : memref<1x8x512xf32, #tpu.memory_space<vmem>>, vector<1x8x512xf32>
    %21 = vector.shape_cast %20 : vector<1x8x512xf32> to vector<8x512xf32>
    %cst_40 = arith.constant dense<0.000000e+00> : vector<16x512xf32>
    %22 = tpu.matmul %19, %21, %cst_40 {dimension_numbers = #tpu.dot_dimension_numbers<[1], [0], [0], [1], [0, 0, 1, 1], [], []>} : vector<16x8xf32>, vector<8x512xf32>, vector<16x512xf32> -> vector<16x512xf32>
    %23 = vector.extract_strided_slice %22 {offsets = [0, 0], sizes = [16, 64], strides = [1, 1]} : vector<16x512xf32> to vector<16x64xf32>
    %c1_41 = arith.constant 1 : index
    %c1_42 = arith.constant 1 : index
    %c64 = arith.constant 64 : index
    %24 = vector.load %arg11[%c1_41, %c1_42, %c64] : memref<18x18x128xf32, #tpu.memory_space<vmem>>, vector<16x1x64xf32>
    %25 = vector.shape_cast %24 : vector<16x1x64xf32> to vector<16x64xf32>
    %26 = vector.shape_cast %23 : vector<16x64xf32> to vector<16x1x64xf32>
    tpu.vector_store %arg11[%c1_41, %c1_42, %c64], %26 {strides = array<i32>} : memref<18x18x128xf32, #tpu.memory_space<vmem>>, vector<16x1x64xf32>,
    %27 = vector.extract_strided_slice %22 {offsets = [0, 0], sizes = [16, 64], strides = [1, 1]} : vector<16x512xf32> to vector<16x64xf32>
    %cst_43 = arith.constant 0.533333361 : f32
    %28 = vector.broadcast %cst_43 : f32 to vector<16x64xf32>
    %29 = arith.mulf %28, %27 : vector<16x64xf32>
    %30 = vector.extract_strided_slice %22 {offsets = [0, 64], sizes = [16, 64], strides = [1, 1]} : vector<16x512xf32> to vector<16x64xf32>
    %cst_44 = arith.constant 0.466666669 : f32
    %31 = vector.broadcast %cst_44 : f32 to vector<16x64xf32>
    %32 = arith.mulf %31, %30 : vector<16x64xf32>
    %33 = arith.addf %29, %32 : vector<16x64xf32>
    %c1_45 = arith.constant 1 : index
    %c2 = arith.constant 2 : index
    %c64_46 = arith.constant 64 : index
    %34 = vector.load %arg11[%c1_45, %c2, %c64_46] : memref<18x18x128xf32, #tpu.memory_space<vmem>>, vector<16x1x64xf32>
    %35 = vector.shape_cast %34 : vector<16x1x64xf32> to vector<16x64xf32>
    %36 = vector.shape_cast %33 : vector<16x64xf32> to vector<16x1x64xf32>
    tpu.vector_store %arg11[%c1_45, %c2, %c64_46], %36 {strides = array<i32>} : memref<18x18x128xf32, #tpu.memory_space<vmem>>, vector<16x1x64xf32>,
    %37 = vector.extract_strided_slice %22 {offsets = [0, 0], sizes = [16, 64], strides = [1, 1]} : vector<16x512xf32> to vector<16x64xf32>
    %cst_47 = arith.constant 0.0666666701 : f32
    %38 = vector.broadcast %cst_47 : f32 to vector<16x64xf32>
    %39 = arith.mulf %38, %37 : vector<16x64xf32>
    %40 = vector.extract_strided_slice %22 {offsets = [0, 64], sizes = [16, 64], strides = [1, 1]} : vector<16x512xf32> to vector<16x64xf32>
    %cst_48 = arith.constant 0.933333337 : f32
    %41 = vector.broadcast %cst_48 : f32 to vector<16x64xf32>
    %42 = arith.mulf %41, %40 : vector<16x64xf32>
    %43 = arith.addf %39, %42 : vector<16x64xf32>
    %c1_49 = arith.constant 1 : index
    %c3 = arith.constant 3 : index
    %c64_50 = arith.constant 64 : index
    %44 = vector.load %arg11[%c1_49, %c3, %c64_50] : memref<18x18x128xf32, #tpu.memory_space<vmem>>, vector<16x1x64xf32>
    %45 = vector.shape_cast %44 : vector<16x1x64xf32> to vector<16x64xf32>
    %46 = vector.shape_cast %43 : vector<16x64xf32> to vector<16x1x64xf32>
    tpu.vector_store %arg11[%c1_49, %c3, %c64_50], %46 {strides = array<i32>} : memref<18x18x128xf32, #tpu.memory_space<vmem>>, vector<16x1x64xf32>,
    %47 = vector.extract_strided_slice %22 {offsets = [0, 64], sizes = [16, 64], strides = [1, 1]} : vector<16x512xf32> to vector<16x64xf32>
    %cst_51 = arith.constant 6.000000e-01 : f32
    %48 = vector.broadcast %cst_51 : f32 to vector<16x64xf32>
    %49 = arith.mulf %48, %47 : vector<16x64xf32>
    %50 = vector.extract_strided_slice %22 {offsets = [0, 128], sizes = [16, 64], strides = [1, 1]} : vector<16x512xf32> to vector<16x64xf32>
    %cst_52 = arith.constant 4.000000e-01 : f32
    %51 = vector.broadcast %cst_52 : f32 to vector<16x64xf32>
    %52 = arith.mulf %51, %50 : vector<16x64xf32>
    %53 = arith.addf %49, %52 : vector<16x64xf32>
    %c1_53 = arith.constant 1 : index
    %c4 = arith.constant 4 : index
    %c64_54 = arith.constant 64 : index
    %54 = vector.load %arg11[%c1_53, %c4, %c64_54] : memref<18x18x128xf32, #tpu.memory_space<vmem>>, vector<16x1x64xf32>
    %55 = vector.shape_cast %54 : vector<16x1x64xf32> to vector<16x64xf32>
    %56 = vector.shape_cast %53 : vector<16x64xf32> to vector<16x1x64xf32>
    tpu.vector_store %arg11[%c1_53, %c4, %c64_54], %56 {strides = array<i32>} : memref<18x18x128xf32, #tpu.memory_space<vmem>>, vector<16x1x64xf32>,
    %57 = vector.extract_strided_slice %22 {offsets = [0, 64], sizes = [16, 64], strides = [1, 1]} : vector<16x512xf32> to vector<16x64xf32>
    %cst_55 = arith.constant 0.13333334 : f32
    %58 = vector.broadcast %cst_55 : f32 to vector<16x64xf32>
    %59 = arith.mulf %58, %57 : vector<16x64xf32>
    %60 = vector.extract_strided_slice %22 {offsets = [0, 128], sizes = [16, 64], strides = [1, 1]} : vector<16x512xf32> to vector<16x64xf32>
    %cst_56 = arith.constant 0.866666674 : f32
    %61 = vector.broadcast %cst_56 : f32 to vector<16x64xf32>
    %62 = arith.mulf %61, %60 : vector<16x64xf32>
    %63 = arith.addf %59, %62 : vector<16x64xf32>
    %c1_57 = arith.constant 1 : index
    %c5 = arith.constant 5 : index
    %c64_58 = arith.constant 64 : index
    %64 = vector.load %arg11[%c1_57, %c5, %c64_58] : memref<18x18x128xf32, #tpu.memory_space<vmem>>, vector<16x1x64xf32>
    %65 = vector.shape_cast %64 : vector<16x1x64xf32> to vector<16x64xf32>
    %66 = vector.shape_cast %63 : vector<16x64xf32> to vector<16x1x64xf32>
    tpu.vector_store %arg11[%c1_57, %c5, %c64_58], %66 {strides = array<i32>} : memref<18x18x128xf32, #tpu.memory_space<vmem>>, vector<16x1x64xf32>,
    %67 = vector.extract_strided_slice %22 {offsets = [0, 128], sizes = [16, 64], strides = [1, 1]} : vector<16x512xf32> to vector<16x64xf32>
    %cst_59 = arith.constant 0.666666686 : f32
    %68 = vector.broadcast %cst_59 : f32 to vector<16x64xf32>
    %69 = arith.mulf %68, %67 : vector<16x64xf32>
    %70 = vector.extract_strided_slice %22 {offsets = [0, 192], sizes = [16, 64], strides = [1, 1]} : vector<16x512xf32> to vector<16x64xf32>
    %cst_60 = arith.constant 0.333333343 : f32
    %71 = vector.broadcast %cst_60 : f32 to vector<16x64xf32>
    %72 = arith.mulf %71, %70 : vector<16x64xf32>
    %73 = arith.addf %69, %72 : vector<16x64xf32>
    %c1_61 = arith.constant 1 : index
    %c6 = arith.constant 6 : index
    %c64_62 = arith.constant 64 : index
    %74 = vector.load %arg11[%c1_61, %c6, %c64_62] : memref<18x18x128xf32, #tpu.memory_space<vmem>>, vector<16x1x64xf32>
    %75 = vector.shape_cast %74 : vector<16x1x64xf32> to vector<16x64xf32>
    %76 = vector.shape_cast %73 : vector<16x64xf32> to vector<16x1x64xf32>
    tpu.vector_store %arg11[%c1_61, %c6, %c64_62], %76 {strides = array<i32>} : memref<18x18x128xf32, #tpu.memory_space<vmem>>, vector<16x1x64xf32>,
    %77 = vector.extract_strided_slice %22 {offsets = [0, 128], sizes = [16, 64], strides = [1, 1]} : vector<16x512xf32> to vector<16x64xf32>
    %cst_63 = arith.constant 2.000000e-01 : f32
    %78 = vector.broadcast %cst_63 : f32 to vector<16x64xf32>
    %79 = arith.mulf %78, %77 : vector<16x64xf32>
    %80 = vector.extract_strided_slice %22 {offsets = [0, 192], sizes = [16, 64], strides = [1, 1]} : vector<16x512xf32> to vector<16x64xf32>
    %cst_64 = arith.constant 8.000000e-01 : f32
    %81 = vector.broadcast %cst_64 : f32 to vector<16x64xf32>
    %82 = arith.mulf %81, %80 : vector<16x64xf32>
    %83 = arith.addf %79, %82 : vector<16x64xf32>
    %c1_65 = arith.constant 1 : index
    %c7 = arith.constant 7 : index
    %c64_66 = arith.constant 64 : index
    %84 = vector.load %arg11[%c1_65, %c7, %c64_66] : memref<18x18x128xf32, #tpu.memory_space<vmem>>, vector<16x1x64xf32>
    %85 = vector.shape_cast %84 : vector<16x1x64xf32> to vector<16x64xf32>
    %86 = vector.shape_cast %83 : vector<16x64xf32> to vector<16x1x64xf32>
    tpu.vector_store %arg11[%c1_65, %c7, %c64_66], %86 {strides = array<i32>} : memref<18x18x128xf32, #tpu.memory_space<vmem>>, vector<16x1x64xf32>,
    %87 = vector.extract_strided_slice %22 {offsets = [0, 192], sizes = [16, 64], strides = [1, 1]} : vector<16x512xf32> to vector<16x64xf32>
    %cst_67 = arith.constant 0.733333349 : f32
    %88 = vector.broadcast %cst_67 : f32 to vector<16x64xf32>
    %89 = arith.mulf %88, %87 : vector<16x64xf32>
    %90 = vector.extract_strided_slice %22 {offsets = [0, 256], sizes = [16, 64], strides = [1, 1]} : vector<16x512xf32> to vector<16x64xf32>
    %cst_68 = arith.constant 0.266666681 : f32
    %91 = vector.broadcast %cst_68 : f32 to vector<16x64xf32>
    %92 = arith.mulf %91, %90 : vector<16x64xf32>
    %93 = arith.addf %89, %92 : vector<16x64xf32>
    %c1_69 = arith.constant 1 : index
    %c8 = arith.constant 8 : index
    %c64_70 = arith.constant 64 : index
    %94 = vector.load %arg11[%c1_69, %c8, %c64_70] : memref<18x18x128xf32, #tpu.memory_space<vmem>>, vector<16x1x64xf32>
    %95 = vector.shape_cast %94 : vector<16x1x64xf32> to vector<16x64xf32>
    %96 = vector.shape_cast %93 : vector<16x64xf32> to vector<16x1x64xf32>
    tpu.vector_store %arg11[%c1_69, %c8, %c64_70], %96 {strides = array<i32>} : memref<18x18x128xf32, #tpu.memory_space<vmem>>, vector<16x1x64xf32>,
    %97 = vector.extract_strided_slice %22 {offsets = [0, 192], sizes = [16, 64], strides = [1, 1]} : vector<16x512xf32> to vector<16x64xf32>
    %cst_71 = arith.constant 0.266666681 : f32
    %98 = vector.broadcast %cst_71 : f32 to vector<16x64xf32>
    %99 = arith.mulf %98, %97 : vector<16x64xf32>
    %100 = vector.extract_strided_slice %22 {offsets = [0, 256], sizes = [16, 64], strides = [1, 1]} : vector<16x512xf32> to vector<16x64xf32>
    %cst_72 = arith.constant 0.733333349 : f32
    %101 = vector.broadcast %cst_72 : f32 to vector<16x64xf32>
    %102 = arith.mulf %101, %100 : vector<16x64xf32>
    %103 = arith.addf %99, %102 : vector<16x64xf32>
    %c1_73 = arith.constant 1 : index
    %c9 = arith.constant 9 : index
    %c64_74 = arith.constant 64 : index
    %104 = vector.load %arg11[%c1_73, %c9, %c64_74] : memref<18x18x128xf32, #tpu.memory_space<vmem>>, vector<16x1x64xf32>
    %105 = vector.shape_cast %104 : vector<16x1x64xf32> to vector<16x64xf32>
    %106 = vector.shape_cast %103 : vector<16x64xf32> to vector<16x1x64xf32>
    tpu.vector_store %arg11[%c1_73, %c9, %c64_74], %106 {strides = array<i32>} : memref<18x18x128xf32, #tpu.memory_space<vmem>>, vector<16x1x64xf32>,
    %107 = vector.extract_strided_slice %22 {offsets = [0, 256], sizes = [16, 64], strides = [1, 1]} : vector<16x512xf32> to vector<16x64xf32>
    %cst_75 = arith.constant 8.000000e-01 : f32
    %108 = vector.broadcast %cst_75 : f32 to vector<16x64xf32>
    %109 = arith.mulf %108, %107 : vector<16x64xf32>
    %110 = vector.extract_strided_slice %22 {offsets = [0, 320], sizes = [16, 64], strides = [1, 1]} : vector<16x512xf32> to vector<16x64xf32>
    %cst_76 = arith.constant 2.000000e-01 : f32
    %111 = vector.broadcast %cst_76 : f32 to vector<16x64xf32>
    %112 = arith.mulf %111, %110 : vector<16x64xf32>
    %113 = arith.addf %109, %112 : vector<16x64xf32>
    %c1_77 = arith.constant 1 : index
    %c10 = arith.constant 10 : index
    %c64_78 = arith.constant 64 : index
    %114 = vector.load %arg11[%c1_77, %c10, %c64_78] : memref<18x18x128xf32, #tpu.memory_space<vmem>>, vector<16x1x64xf32>
    %115 = vector.shape_cast %114 : vector<16x1x64xf32> to vector<16x64xf32>
    %116 = vector.shape_cast %113 : vector<16x64xf32> to vector<16x1x64xf32>
    tpu.vector_store %arg11[%c1_77, %c10, %c64_78], %116 {strides = array<i32>} : memref<18x18x128xf32, #tpu.memory_space<vmem>>, vector<16x1x64xf32>,
    %117 = vector.extract_strided_slice %22 {offsets = [0, 256], sizes = [16, 64], strides = [1, 1]} : vector<16x512xf32> to vector<16x64xf32>
    %cst_79 = arith.constant 0.333333343 : f32
    %118 = vector.broadcast %cst_79 : f32 to vector<16x64xf32>
    %119 = arith.mulf %118, %117 : vector<16x64xf32>
    %120 = vector.extract_strided_slice %22 {offsets = [0, 320], sizes = [16, 64], strides = [1, 1]} : vector<16x512xf32> to vector<16x64xf32>
    %cst_80 = arith.constant 0.666666686 : f32
    %121 = vector.broadcast %cst_80 : f32 to vector<16x64xf32>
    %122 = arith.mulf %121, %120 : vector<16x64xf32>
    %123 = arith.addf %119, %122 : vector<16x64xf32>
    %c1_81 = arith.constant 1 : index
    %c11 = arith.constant 11 : index
    %c64_82 = arith.constant 64 : index
    %124 = vector.load %arg11[%c1_81, %c11, %c64_82] : memref<18x18x128xf32, #tpu.memory_space<vmem>>, vector<16x1x64xf32>
    %125 = vector.shape_cast %124 : vector<16x1x64xf32> to vector<16x64xf32>
    %126 = vector.shape_cast %123 : vector<16x64xf32> to vector<16x1x64xf32>
    tpu.vector_store %arg11[%c1_81, %c11, %c64_82], %126 {strides = array<i32>} : memref<18x18x128xf32, #tpu.memory_space<vmem>>, vector<16x1x64xf32>,
    %127 = vector.extract_strided_slice %22 {offsets = [0, 320], sizes = [16, 64], strides = [1, 1]} : vector<16x512xf32> to vector<16x64xf32>
    %cst_83 = arith.constant 0.866666674 : f32
    %128 = vector.broadcast %cst_83 : f32 to vector<16x64xf32>
    %129 = arith.mulf %128, %127 : vector<16x64xf32>
    %130 = vector.extract_strided_slice %22 {offsets = [0, 384], sizes = [16, 64], strides = [1, 1]} : vector<16x512xf32> to vector<16x64xf32>
    %cst_84 = arith.constant 0.13333334 : f32
    %131 = vector.broadcast %cst_84 : f32 to vector<16x64xf32>
    %132 = arith.mulf %131, %130 : vector<16x64xf32>
    %133 = arith.addf %129, %132 : vector<16x64xf32>
    %c1_85 = arith.constant 1 : index
    %c12 = arith.constant 12 : index
    %c64_86 = arith.constant 64 : index
    %134 = vector.load %arg11[%c1_85, %c12, %c64_86] : memref<18x18x128xf32, #tpu.memory_space<vmem>>, vector<16x1x64xf32>
    %135 = vector.shape_cast %134 : vector<16x1x64xf32> to vector<16x64xf32>
    %136 = vector.shape_cast %133 : vector<16x64xf32> to vector<16x1x64xf32>
    tpu.vector_store %arg11[%c1_85, %c12, %c64_86], %136 {strides = array<i32>} : memref<18x18x128xf32, #tpu.memory_space<vmem>>, vector<16x1x64xf32>,
    %137 = vector.extract_strided_slice %22 {offsets = [0, 320], sizes = [16, 64], strides = [1, 1]} : vector<16x512xf32> to vector<16x64xf32>
    %cst_87 = arith.constant 4.000000e-01 : f32
    %138 = vector.broadcast %cst_87 : f32 to vector<16x64xf32>
    %139 = arith.mulf %138, %137 : vector<16x64xf32>
    %140 = vector.extract_strided_slice %22 {offsets = [0, 384], sizes = [16, 64], strides = [1, 1]} : vector<16x512xf32> to vector<16x64xf32>
    %cst_88 = arith.constant 6.000000e-01 : f32
    %141 = vector.broadcast %cst_88 : f32 to vector<16x64xf32>
    %142 = arith.mulf %141, %140 : vector<16x64xf32>
    %143 = arith.addf %139, %142 : vector<16x64xf32>
    %c1_89 = arith.constant 1 : index
    %c13 = arith.constant 13 : index
    %c64_90 = arith.constant 64 : index
    %144 = vector.load %arg11[%c1_89, %c13, %c64_90] : memref<18x18x128xf32, #tpu.memory_space<vmem>>, vector<16x1x64xf32>
    %145 = vector.shape_cast %144 : vector<16x1x64xf32> to vector<16x64xf32>
    %146 = vector.shape_cast %143 : vector<16x64xf32> to vector<16x1x64xf32>
    tpu.vector_store %arg11[%c1_89, %c13, %c64_90], %146 {strides = array<i32>} : memref<18x18x128xf32, #tpu.memory_space<vmem>>, vector<16x1x64xf32>,
    %147 = vector.extract_strided_slice %22 {offsets = [0, 384], sizes = [16, 64], strides = [1, 1]} : vector<16x512xf32> to vector<16x64xf32>
    %cst_91 = arith.constant 0.933333337 : f32
    %148 = vector.broadcast %cst_91 : f32 to vector<16x64xf32>
    %149 = arith.mulf %148, %147 : vector<16x64xf32>
    %150 = vector.extract_strided_slice %22 {offsets = [0, 448], sizes = [16, 64], strides = [1, 1]} : vector<16x512xf32> to vector<16x64xf32>
    %cst_92 = arith.constant 0.0666666701 : f32
    %151 = vector.broadcast %cst_92 : f32 to vector<16x64xf32>
    %152 = arith.mulf %151, %150 : vector<16x64xf32>
    %153 = arith.addf %149, %152 : vector<16x64xf32>
    %c1_93 = arith.constant 1 : index
    %c14 = arith.constant 14 : index
    %c64_94 = arith.constant 64 : index
    %154 = vector.load %arg11[%c1_93, %c14, %c64_94] : memref<18x18x128xf32, #tpu.memory_space<vmem>>, vector<16x1x64xf32>
    %155 = vector.shape_cast %154 : vector<16x1x64xf32> to vector<16x64xf32>
    %156 = vector.shape_cast %153 : vector<16x64xf32> to vector<16x1x64xf32>
    tpu.vector_store %arg11[%c1_93, %c14, %c64_94], %156 {strides = array<i32>} : memref<18x18x128xf32, #tpu.memory_space<vmem>>, vector<16x1x64xf32>,
    %157 = vector.extract_strided_slice %22 {offsets = [0, 384], sizes = [16, 64], strides = [1, 1]} : vector<16x512xf32> to vector<16x64xf32>
    %cst_95 = arith.constant 0.466666669 : f32
    %158 = vector.broadcast %cst_95 : f32 to vector<16x64xf32>
    %159 = arith.mulf %158, %157 : vector<16x64xf32>
    %160 = vector.extract_strided_slice %22 {offsets = [0, 448], sizes = [16, 64], strides = [1, 1]} : vector<16x512xf32> to vector<16x64xf32>
    %cst_96 = arith.constant 0.533333361 : f32
    %161 = vector.broadcast %cst_96 : f32 to vector<16x64xf32>
    %162 = arith.mulf %161, %160 : vector<16x64xf32>
    %163 = arith.addf %159, %162 : vector<16x64xf32>
    %c1_97 = arith.constant 1 : index
    %c15 = arith.constant 15 : index
    %c64_98 = arith.constant 64 : index
    %164 = vector.load %arg11[%c1_97, %c15, %c64_98] : memref<18x18x128xf32, #tpu.memory_space<vmem>>, vector<16x1x64xf32>
    %165 = vector.shape_cast %164 : vector<16x1x64xf32> to vector<16x64xf32>
    %166 = vector.shape_cast %163 : vector<16x64xf32> to vector<16x1x64xf32>
    tpu.vector_store %arg11[%c1_97, %c15, %c64_98], %166 {strides = array<i32>} : memref<18x18x128xf32, #tpu.memory_space<vmem>>, vector<16x1x64xf32>,
    %167 = vector.extract_strided_slice %22 {offsets = [0, 448], sizes = [16, 64], strides = [1, 1]} : vector<16x512xf32> to vector<16x64xf32>
    %c1_99 = arith.constant 1 : index
    %c16 = arith.constant 16 : index
    %c64_100 = arith.constant 64 : index
    %168 = vector.load %arg11[%c1_99, %c16, %c64_100] : memref<18x18x128xf32, #tpu.memory_space<vmem>>, vector<16x1x64xf32>
    %169 = vector.shape_cast %168 : vector<16x1x64xf32> to vector<16x64xf32>
    %170 = vector.shape_cast %167 : vector<16x64xf32> to vector<16x1x64xf32>
    tpu.vector_store %arg11[%c1_99, %c16, %c64_100], %170 {strides = array<i32>} : memref<18x18x128xf32, #tpu.memory_space<vmem>>, vector<16x1x64xf32>,
    %c0_101 = arith.constant 0 : index
    %c0_102 = arith.constant 0 : index
    %171 = vector.load %arg5[%c0_101, %c0_102] : memref<1x128xf32, #tpu.memory_space<vmem>>, vector<1x128xf32>
    %172 = vector.shape_cast %171 : vector<1x128xf32> to vector<128xf32>
    %173 = vector.shape_cast %172 : vector<128xf32> to vector<1x128xf32>
    %174 = vector.broadcast %173 : vector<1x128xf32> to vector<256x128xf32>
    %c0_103 = arith.constant 0 : index
    %c0_104 = arith.constant 0 : index
    %c0_105 = arith.constant 0 : index
    %175 = vector.load %arg11[%c0_103, %c0_104, %c0_105] : memref<18x18x128xf32, #tpu.memory_space<vmem>>, vector<18x16x128xf32>
    %176 = arith.truncf %175 : vector<18x16x128xf32> to vector<18x16x128xbf16>
    %177 = vector.extract_strided_slice %176 {offsets = [0, 0, 0], sizes = [16, 16, 128], strides = [1, 1, 1]} : vector<18x16x128xbf16> to vector<16x16x128xbf16>
    %178 = vector.shape_cast %177 : vector<16x16x128xbf16> to vector<256x128xbf16>
    %c0_106 = arith.constant 0 : index
    %c0_107 = arith.constant 0 : index
    %c0_108 = arith.constant 0 : index
    %c0_109 = arith.constant 0 : index
    %179 = vector.load %arg4[%c0_106, %c0_107, %c0_108, %c0_109] : memref<3x3x128x128xbf16, #tpu.memory_space<vmem>>, vector<1x1x128x128xbf16>
    %180 = vector.shape_cast %179 : vector<1x1x128x128xbf16> to vector<128x128xbf16>
    %cst_110 = arith.constant dense<0.000000e+00> : vector<256x128xf32>
    %181 = tpu.matmul %178, %180, %cst_110 {dimension_numbers = #tpu.dot_dimension_numbers<[1], [0], [0], [1], [0, 0, 1, 1], [], []>} : vector<256x128xbf16>, vector<128x128xbf16>, vector<256x128xf32> -> vector<256x128xf32>
    %182 = arith.addf %174, %181 : vector<256x128xf32>
    %183 = vector.extract_strided_slice %176 {offsets = [1, 0, 0], sizes = [16, 16, 128], strides = [1, 1, 1]} : vector<18x16x128xbf16> to vector<16x16x128xbf16>
    %184 = vector.shape_cast %183 : vector<16x16x128xbf16> to vector<256x128xbf16>
    %c1_111 = arith.constant 1 : index
    %c0_112 = arith.constant 0 : index
    %c0_113 = arith.constant 0 : index
    %c0_114 = arith.constant 0 : index
    %185 = vector.load %arg4[%c1_111, %c0_112, %c0_113, %c0_114] : memref<3x3x128x128xbf16, #tpu.memory_space<vmem>>, vector<1x1x128x128xbf16>
    %186 = vector.shape_cast %185 : vector<1x1x128x128xbf16> to vector<128x128xbf16>
    %cst_115 = arith.constant dense<0.000000e+00> : vector<256x128xf32>
    %187 = tpu.matmul %184, %186, %cst_115 {dimension_numbers = #tpu.dot_dimension_numbers<[1], [0], [0], [1], [0, 0, 1, 1], [], []>} : vector<256x128xbf16>, vector<128x128xbf16>, vector<256x128xf32> -> vector<256x128xf32>
    %188 = arith.addf %182, %187 : vector<256x128xf32>
    %189 = vector.extract_strided_slice %176 {offsets = [2, 0, 0], sizes = [16, 16, 128], strides = [1, 1, 1]} : vector<18x16x128xbf16> to vector<16x16x128xbf16>
    %190 = vector.shape_cast %189 : vector<16x16x128xbf16> to vector<256x128xbf16>
    %c2_116 = arith.constant 2 : index
    %c0_117 = arith.constant 0 : index
    %c0_118 = arith.constant 0 : index
    %c0_119 = arith.constant 0 : index
    %191 = vector.load %arg4[%c2_116, %c0_117, %c0_118, %c0_119] : memref<3x3x128x128xbf16, #tpu.memory_space<vmem>>, vector<1x1x128x128xbf16>
    %192 = vector.shape_cast %191 : vector<1x1x128x128xbf16> to vector<128x128xbf16>
    %cst_120 = arith.constant dense<0.000000e+00> : vector<256x128xf32>
    %193 = tpu.matmul %190, %192, %cst_120 {dimension_numbers = #tpu.dot_dimension_numbers<[1], [0], [0], [1], [0, 0, 1, 1], [], []>} : vector<256x128xbf16>, vector<128x128xbf16>, vector<256x128xf32> -> vector<256x128xf32>
    %194 = arith.addf %188, %193 : vector<256x128xf32>
    %c0_121 = arith.constant 0 : index
    %c1_122 = arith.constant 1 : index
    %c0_123 = arith.constant 0 : index
    %195 = vector.load %arg11[%c0_121, %c1_122, %c0_123] : memref<18x18x128xf32, #tpu.memory_space<vmem>>, vector<18x16x128xf32>
    %196 = arith.truncf %195 : vector<18x16x128xf32> to vector<18x16x128xbf16>
    %197 = vector.extract_strided_slice %196 {offsets = [0, 0, 0], sizes = [16, 16, 128], strides = [1, 1, 1]} : vector<18x16x128xbf16> to vector<16x16x128xbf16>
    %198 = vector.shape_cast %197 : vector<16x16x128xbf16> to vector<256x128xbf16>
    %c0_124 = arith.constant 0 : index
    %c1_125 = arith.constant 1 : index
    %c0_126 = arith.constant 0 : index
    %c0_127 = arith.constant 0 : index
    %199 = vector.load %arg4[%c0_124, %c1_125, %c0_126, %c0_127] : memref<3x3x128x128xbf16, #tpu.memory_space<vmem>>, vector<1x1x128x128xbf16>
    %200 = vector.shape_cast %199 : vector<1x1x128x128xbf16> to vector<128x128xbf16>
    %cst_128 = arith.constant dense<0.000000e+00> : vector<256x128xf32>
    %201 = tpu.matmul %198, %200, %cst_128 {dimension_numbers = #tpu.dot_dimension_numbers<[1], [0], [0], [1], [0, 0, 1, 1], [], []>} : vector<256x128xbf16>, vector<128x128xbf16>, vector<256x128xf32> -> vector<256x128xf32>
    %202 = arith.addf %194, %201 : vector<256x128xf32>
    %203 = vector.extract_strided_slice %196 {offsets = [1, 0, 0], sizes = [16, 16, 128], strides = [1, 1, 1]} : vector<18x16x128xbf16> to vector<16x16x128xbf16>
    %204 = vector.shape_cast %203 : vector<16x16x128xbf16> to vector<256x128xbf16>
    %c1_129 = arith.constant 1 : index
    %c1_130 = arith.constant 1 : index
    %c0_131 = arith.constant 0 : index
    %c0_132 = arith.constant 0 : index
    %205 = vector.load %arg4[%c1_129, %c1_130, %c0_131, %c0_132] : memref<3x3x128x128xbf16, #tpu.memory_space<vmem>>, vector<1x1x128x128xbf16>
    %206 = vector.shape_cast %205 : vector<1x1x128x128xbf16> to vector<128x128xbf16>
    %cst_133 = arith.constant dense<0.000000e+00> : vector<256x128xf32>
    %207 = tpu.matmul %204, %206, %cst_133 {dimension_numbers = #tpu.dot_dimension_numbers<[1], [0], [0], [1], [0, 0, 1, 1], [], []>} : vector<256x128xbf16>, vector<128x128xbf16>, vector<256x128xf32> -> vector<256x128xf32>
    %208 = arith.addf %202, %207 : vector<256x128xf32>
    %209 = vector.extract_strided_slice %196 {offsets = [2, 0, 0], sizes = [16, 16, 128], strides = [1, 1, 1]} : vector<18x16x128xbf16> to vector<16x16x128xbf16>
    %210 = vector.shape_cast %209 : vector<16x16x128xbf16> to vector<256x128xbf16>
    %c2_134 = arith.constant 2 : index
    %c1_135 = arith.constant 1 : index
    %c0_136 = arith.constant 0 : index
    %c0_137 = arith.constant 0 : index
    %211 = vector.load %arg4[%c2_134, %c1_135, %c0_136, %c0_137] : memref<3x3x128x128xbf16, #tpu.memory_space<vmem>>, vector<1x1x128x128xbf16>
    %212 = vector.shape_cast %211 : vector<1x1x128x128xbf16> to vector<128x128xbf16>
    %cst_138 = arith.constant dense<0.000000e+00> : vector<256x128xf32>
    %213 = tpu.matmul %210, %212, %cst_138 {dimension_numbers = #tpu.dot_dimension_numbers<[1], [0], [0], [1], [0, 0, 1, 1], [], []>} : vector<256x128xbf16>, vector<128x128xbf16>, vector<256x128xf32> -> vector<256x128xf32>
    %214 = arith.addf %208, %213 : vector<256x128xf32>
    %c0_139 = arith.constant 0 : index
    %c2_140 = arith.constant 2 : index
    %c0_141 = arith.constant 0 : index
    %215 = vector.load %arg11[%c0_139, %c2_140, %c0_141] : memref<18x18x128xf32, #tpu.memory_space<vmem>>, vector<18x16x128xf32>
    %216 = arith.truncf %215 : vector<18x16x128xf32> to vector<18x16x128xbf16>
    %217 = vector.extract_strided_slice %216 {offsets = [0, 0, 0], sizes = [16, 16, 128], strides = [1, 1, 1]} : vector<18x16x128xbf16> to vector<16x16x128xbf16>
    %218 = vector.shape_cast %217 : vector<16x16x128xbf16> to vector<256x128xbf16>
    %c0_142 = arith.constant 0 : index
    %c2_143 = arith.constant 2 : index
    %c0_144 = arith.constant 0 : index
    %c0_145 = arith.constant 0 : index
    %219 = vector.load %arg4[%c0_142, %c2_143, %c0_144, %c0_145] : memref<3x3x128x128xbf16, #tpu.memory_space<vmem>>, vector<1x1x128x128xbf16>
    %220 = vector.shape_cast %219 : vector<1x1x128x128xbf16> to vector<128x128xbf16>
    %cst_146 = arith.constant dense<0.000000e+00> : vector<256x128xf32>
    %221 = tpu.matmul %218, %220, %cst_146 {dimension_numbers = #tpu.dot_dimension_numbers<[1], [0], [0], [1], [0, 0, 1, 1], [], []>} : vector<256x128xbf16>, vector<128x128xbf16>, vector<256x128xf32> -> vector<256x128xf32>
    %222 = arith.addf %214, %221 : vector<256x128xf32>
    %223 = vector.extract_strided_slice %216 {offsets = [1, 0, 0], sizes = [16, 16, 128], strides = [1, 1, 1]} : vector<18x16x128xbf16> to vector<16x16x128xbf16>
    %224 = vector.shape_cast %223 : vector<16x16x128xbf16> to vector<256x128xbf16>
    %c1_147 = arith.constant 1 : index
    %c2_148 = arith.constant 2 : index
    %c0_149 = arith.constant 0 : index
    %c0_150 = arith.constant 0 : index
    %225 = vector.load %arg4[%c1_147, %c2_148, %c0_149, %c0_150] : memref<3x3x128x128xbf16, #tpu.memory_space<vmem>>, vector<1x1x128x128xbf16>
    %226 = vector.shape_cast %225 : vector<1x1x128x128xbf16> to vector<128x128xbf16>
    %cst_151 = arith.constant dense<0.000000e+00> : vector<256x128xf32>
    %227 = tpu.matmul %224, %226, %cst_151 {dimension_numbers = #tpu.dot_dimension_numbers<[1], [0], [0], [1], [0, 0, 1, 1], [], []>} : vector<256x128xbf16>, vector<128x128xbf16>, vector<256x128xf32> -> vector<256x128xf32>
    %228 = arith.addf %222, %227 : vector<256x128xf32>
    %229 = vector.extract_strided_slice %216 {offsets = [2, 0, 0], sizes = [16, 16, 128], strides = [1, 1, 1]} : vector<18x16x128xbf16> to vector<16x16x128xbf16>
    %230 = vector.shape_cast %229 : vector<16x16x128xbf16> to vector<256x128xbf16>
    %c2_152 = arith.constant 2 : index
    %c2_153 = arith.constant 2 : index
    %c0_154 = arith.constant 0 : index
    %c0_155 = arith.constant 0 : index
    %231 = vector.load %arg4[%c2_152, %c2_153, %c0_154, %c0_155] : memref<3x3x128x128xbf16, #tpu.memory_space<vmem>>, vector<1x1x128x128xbf16>
    %232 = vector.shape_cast %231 : vector<1x1x128x128xbf16> to vector<128x128xbf16>
    %cst_156 = arith.constant dense<0.000000e+00> : vector<256x128xf32>
    %233 = tpu.matmul %230, %232, %cst_156 {dimension_numbers = #tpu.dot_dimension_numbers<[1], [0], [0], [1], [0, 0, 1, 1], [], []>} : vector<256x128xbf16>, vector<128x128xbf16>, vector<256x128xf32> -> vector<256x128xf32>
    %234 = arith.addf %228, %233 : vector<256x128xf32>
    %cst_157 = arith.constant 0.000000e+00 : f32
    %235 = vector.broadcast %cst_157 : f32 to vector<256x128xf32>
    %236 = arith.maximumf %234, %235 : vector<256x128xf32>
    %237 = vector.shape_cast %236 : vector<256x128xf32> to vector<16x16x128xf32>
    %c1_158 = arith.constant 1 : index
    %c1_159 = arith.constant 1 : index
    %c0_160 = arith.constant 0 : index
    %238 = vector.load %arg12[%c1_158, %c1_159, %c0_160] : memref<18x18x128xf32, #tpu.memory_space<vmem>>, vector<16x16x128xf32>
    tpu.vector_store %arg12[%c1_158, %c1_159, %c0_160], %237 {strides = array<i32>} : memref<18x18x128xf32, #tpu.memory_space<vmem>>, vector<16x16x128xf32>,
    %c0_161 = arith.constant 0 : index
    %c0_162 = arith.constant 0 : index
    %239 = vector.load %arg7[%c0_161, %c0_162] : memref<1x128xf32, #tpu.memory_space<vmem>>, vector<1x128xf32>
    %240 = vector.shape_cast %239 : vector<1x128xf32> to vector<128xf32>
    %241 = vector.shape_cast %240 : vector<128xf32> to vector<1x128xf32>
    %242 = vector.broadcast %241 : vector<1x128xf32> to vector<256x128xf32>
    %c0_163 = arith.constant 0 : index
    %c0_164 = arith.constant 0 : index
    %c0_165 = arith.constant 0 : index
    %243 = vector.load %arg12[%c0_163, %c0_164, %c0_165] : memref<18x18x128xf32, #tpu.memory_space<vmem>>, vector<18x16x128xf32>
    %244 = arith.truncf %243 : vector<18x16x128xf32> to vector<18x16x128xbf16>
    %245 = vector.extract_strided_slice %244 {offsets = [0, 0, 0], sizes = [16, 16, 128], strides = [1, 1, 1]} : vector<18x16x128xbf16> to vector<16x16x128xbf16>
    %246 = vector.shape_cast %245 : vector<16x16x128xbf16> to vector<256x128xbf16>
    %c0_166 = arith.constant 0 : index
    %c0_167 = arith.constant 0 : index
    %c0_168 = arith.constant 0 : index
    %c0_169 = arith.constant 0 : index
    %247 = vector.load %arg6[%c0_166, %c0_167, %c0_168, %c0_169] : memref<3x3x128x128xbf16, #tpu.memory_space<vmem>>, vector<1x1x128x128xbf16>
    %248 = vector.shape_cast %247 : vector<1x1x128x128xbf16> to vector<128x128xbf16>
    %cst_170 = arith.constant dense<0.000000e+00> : vector<256x128xf32>
    %249 = tpu.matmul %246, %248, %cst_170 {dimension_numbers = #tpu.dot_dimension_numbers<[1], [0], [0], [1], [0, 0, 1, 1], [], []>} : vector<256x128xbf16>, vector<128x128xbf16>, vector<256x128xf32> -> vector<256x128xf32>
    %250 = arith.addf %242, %249 : vector<256x128xf32>
    %251 = vector.extract_strided_slice %244 {offsets = [1, 0, 0], sizes = [16, 16, 128], strides = [1, 1, 1]} : vector<18x16x128xbf16> to vector<16x16x128xbf16>
    %252 = vector.shape_cast %251 : vector<16x16x128xbf16> to vector<256x128xbf16>
    %c1_171 = arith.constant 1 : index
    %c0_172 = arith.constant 0 : index
    %c0_173 = arith.constant 0 : index
    %c0_174 = arith.constant 0 : index
    %253 = vector.load %arg6[%c1_171, %c0_172, %c0_173, %c0_174] : memref<3x3x128x128xbf16, #tpu.memory_space<vmem>>, vector<1x1x128x128xbf16>
    %254 = vector.shape_cast %253 : vector<1x1x128x128xbf16> to vector<128x128xbf16>
    %cst_175 = arith.constant dense<0.000000e+00> : vector<256x128xf32>
    %255 = tpu.matmul %252, %254, %cst_175 {dimension_numbers = #tpu.dot_dimension_numbers<[1], [0], [0], [1], [0, 0, 1, 1], [], []>} : vector<256x128xbf16>, vector<128x128xbf16>, vector<256x128xf32> -> vector<256x128xf32>
    %256 = arith.addf %250, %255 : vector<256x128xf32>
    %257 = vector.extract_strided_slice %244 {offsets = [2, 0, 0], sizes = [16, 16, 128], strides = [1, 1, 1]} : vector<18x16x128xbf16> to vector<16x16x128xbf16>
    %258 = vector.shape_cast %257 : vector<16x16x128xbf16> to vector<256x128xbf16>
    %c2_176 = arith.constant 2 : index
    %c0_177 = arith.constant 0 : index
    %c0_178 = arith.constant 0 : index
    %c0_179 = arith.constant 0 : index
    %259 = vector.load %arg6[%c2_176, %c0_177, %c0_178, %c0_179] : memref<3x3x128x128xbf16, #tpu.memory_space<vmem>>, vector<1x1x128x128xbf16>
    %260 = vector.shape_cast %259 : vector<1x1x128x128xbf16> to vector<128x128xbf16>
    %cst_180 = arith.constant dense<0.000000e+00> : vector<256x128xf32>
    %261 = tpu.matmul %258, %260, %cst_180 {dimension_numbers = #tpu.dot_dimension_numbers<[1], [0], [0], [1], [0, 0, 1, 1], [], []>} : vector<256x128xbf16>, vector<128x128xbf16>, vector<256x128xf32> -> vector<256x128xf32>
    %262 = arith.addf %256, %261 : vector<256x128xf32>
    %c0_181 = arith.constant 0 : index
    %c1_182 = arith.constant 1 : index
    %c0_183 = arith.constant 0 : index
    %263 = vector.load %arg12[%c0_181, %c1_182, %c0_183] : memref<18x18x128xf32, #tpu.memory_space<vmem>>, vector<18x16x128xf32>
    %264 = arith.truncf %263 : vector<18x16x128xf32> to vector<18x16x128xbf16>
    %265 = vector.extract_strided_slice %264 {offsets = [0, 0, 0], sizes = [16, 16, 128], strides = [1, 1, 1]} : vector<18x16x128xbf16> to vector<16x16x128xbf16>
    %266 = vector.shape_cast %265 : vector<16x16x128xbf16> to vector<256x128xbf16>
    %c0_184 = arith.constant 0 : index
    %c1_185 = arith.constant 1 : index
    %c0_186 = arith.constant 0 : index
    %c0_187 = arith.constant 0 : index
    %267 = vector.load %arg6[%c0_184, %c1_185, %c0_186, %c0_187] : memref<3x3x128x128xbf16, #tpu.memory_space<vmem>>, vector<1x1x128x128xbf16>
    %268 = vector.shape_cast %267 : vector<1x1x128x128xbf16> to vector<128x128xbf16>
    %cst_188 = arith.constant dense<0.000000e+00> : vector<256x128xf32>
    %269 = tpu.matmul %266, %268, %cst_188 {dimension_numbers = #tpu.dot_dimension_numbers<[1], [0], [0], [1], [0, 0, 1, 1], [], []>} : vector<256x128xbf16>, vector<128x128xbf16>, vector<256x128xf32> -> vector<256x128xf32>
    %270 = arith.addf %262, %269 : vector<256x128xf32>
    %271 = vector.extract_strided_slice %264 {offsets = [1, 0, 0], sizes = [16, 16, 128], strides = [1, 1, 1]} : vector<18x16x128xbf16> to vector<16x16x128xbf16>
    %272 = vector.shape_cast %271 : vector<16x16x128xbf16> to vector<256x128xbf16>
    %c1_189 = arith.constant 1 : index
    %c1_190 = arith.constant 1 : index
    %c0_191 = arith.constant 0 : index
    %c0_192 = arith.constant 0 : index
    %273 = vector.load %arg6[%c1_189, %c1_190, %c0_191, %c0_192] : memref<3x3x128x128xbf16, #tpu.memory_space<vmem>>, vector<1x1x128x128xbf16>
    %274 = vector.shape_cast %273 : vector<1x1x128x128xbf16> to vector<128x128xbf16>
    %cst_193 = arith.constant dense<0.000000e+00> : vector<256x128xf32>
    %275 = tpu.matmul %272, %274, %cst_193 {dimension_numbers = #tpu.dot_dimension_numbers<[1], [0], [0], [1], [0, 0, 1, 1], [], []>} : vector<256x128xbf16>, vector<128x128xbf16>, vector<256x128xf32> -> vector<256x128xf32>
    %276 = arith.addf %270, %275 : vector<256x128xf32>
    %277 = vector.extract_strided_slice %264 {offsets = [2, 0, 0], sizes = [16, 16, 128], strides = [1, 1, 1]} : vector<18x16x128xbf16> to vector<16x16x128xbf16>
    %278 = vector.shape_cast %277 : vector<16x16x128xbf16> to vector<256x128xbf16>
    %c2_194 = arith.constant 2 : index
    %c1_195 = arith.constant 1 : index
    %c0_196 = arith.constant 0 : index
    %c0_197 = arith.constant 0 : index
    %279 = vector.load %arg6[%c2_194, %c1_195, %c0_196, %c0_197] : memref<3x3x128x128xbf16, #tpu.memory_space<vmem>>, vector<1x1x128x128xbf16>
    %280 = vector.shape_cast %279 : vector<1x1x128x128xbf16> to vector<128x128xbf16>
    %cst_198 = arith.constant dense<0.000000e+00> : vector<256x128xf32>
    %281 = tpu.matmul %278, %280, %cst_198 {dimension_numbers = #tpu.dot_dimension_numbers<[1], [0], [0], [1], [0, 0, 1, 1], [], []>} : vector<256x128xbf16>, vector<128x128xbf16>, vector<256x128xf32> -> vector<256x128xf32>
    %282 = arith.addf %276, %281 : vector<256x128xf32>
    %c0_199 = arith.constant 0 : index
    %c2_200 = arith.constant 2 : index
    %c0_201 = arith.constant 0 : index
    %283 = vector.load %arg12[%c0_199, %c2_200, %c0_201] : memref<18x18x128xf32, #tpu.memory_space<vmem>>, vector<18x16x128xf32>
    %284 = arith.truncf %283 : vector<18x16x128xf32> to vector<18x16x128xbf16>
    %285 = vector.extract_strided_slice %284 {offsets = [0, 0, 0], sizes = [16, 16, 128], strides = [1, 1, 1]} : vector<18x16x128xbf16> to vector<16x16x128xbf16>
    %286 = vector.shape_cast %285 : vector<16x16x128xbf16> to vector<256x128xbf16>
    %c0_202 = arith.constant 0 : index
    %c2_203 = arith.constant 2 : index
    %c0_204 = arith.constant 0 : index
    %c0_205 = arith.constant 0 : index
    %287 = vector.load %arg6[%c0_202, %c2_203, %c0_204, %c0_205] : memref<3x3x128x128xbf16, #tpu.memory_space<vmem>>, vector<1x1x128x128xbf16>
    %288 = vector.shape_cast %287 : vector<1x1x128x128xbf16> to vector<128x128xbf16>
    %cst_206 = arith.constant dense<0.000000e+00> : vector<256x128xf32>
    %289 = tpu.matmul %286, %288, %cst_206 {dimension_numbers = #tpu.dot_dimension_numbers<[1], [0], [0], [1], [0, 0, 1, 1], [], []>} : vector<256x128xbf16>, vector<128x128xbf16>, vector<256x128xf32> -> vector<256x128xf32>
    %290 = arith.addf %282, %289 : vector<256x128xf32>
    %291 = vector.extract_strided_slice %284 {offsets = [1, 0, 0], sizes = [16, 16, 128], strides = [1, 1, 1]} : vector<18x16x128xbf16> to vector<16x16x128xbf16>
    %292 = vector.shape_cast %291 : vector<16x16x128xbf16> to vector<256x128xbf16>
    %c1_207 = arith.constant 1 : index
    %c2_208 = arith.constant 2 : index
    %c0_209 = arith.constant 0 : index
    %c0_210 = arith.constant 0 : index
    %293 = vector.load %arg6[%c1_207, %c2_208, %c0_209, %c0_210] : memref<3x3x128x128xbf16, #tpu.memory_space<vmem>>, vector<1x1x128x128xbf16>
    %294 = vector.shape_cast %293 : vector<1x1x128x128xbf16> to vector<128x128xbf16>
    %cst_211 = arith.constant dense<0.000000e+00> : vector<256x128xf32>
    %295 = tpu.matmul %292, %294, %cst_211 {dimension_numbers = #tpu.dot_dimension_numbers<[1], [0], [0], [1], [0, 0, 1, 1], [], []>} : vector<256x128xbf16>, vector<128x128xbf16>, vector<256x128xf32> -> vector<256x128xf32>
    %296 = arith.addf %290, %295 : vector<256x128xf32>
    %297 = vector.extract_strided_slice %284 {offsets = [2, 0, 0], sizes = [16, 16, 128], strides = [1, 1, 1]} : vector<18x16x128xbf16> to vector<16x16x128xbf16>
    %298 = vector.shape_cast %297 : vector<16x16x128xbf16> to vector<256x128xbf16>
    %c2_212 = arith.constant 2 : index
    %c2_213 = arith.constant 2 : index
    %c0_214 = arith.constant 0 : index
    %c0_215 = arith.constant 0 : index
    %299 = vector.load %arg6[%c2_212, %c2_213, %c0_214, %c0_215] : memref<3x3x128x128xbf16, #tpu.memory_space<vmem>>, vector<1x1x128x128xbf16>
    %300 = vector.shape_cast %299 : vector<1x1x128x128xbf16> to vector<128x128xbf16>
    %cst_216 = arith.constant dense<0.000000e+00> : vector<256x128xf32>
    %301 = tpu.matmul %298, %300, %cst_216 {dimension_numbers = #tpu.dot_dimension_numbers<[1], [0], [0], [1], [0, 0, 1, 1], [], []>} : vector<256x128xbf16>, vector<128x128xbf16>, vector<256x128xf32> -> vector<256x128xf32>
    %302 = arith.addf %296, %301 : vector<256x128xf32>
    %c1_217 = arith.constant 1 : index
    %c1_218 = arith.constant 1 : index
    %c0_219 = arith.constant 0 : index
    %303 = vector.load %arg11[%c1_217, %c1_218, %c0_219] : memref<18x18x128xf32, #tpu.memory_space<vmem>>, vector<16x16x128xf32>
    %304 = arith.truncf %303 : vector<16x16x128xf32> to vector<16x16x128xbf16>
    %305 = vector.shape_cast %304 : vector<16x16x128xbf16> to vector<256x128xbf16>
    %c0_220 = arith.constant 0 : index
    %c0_221 = arith.constant 0 : index
    %306 = vector.load %arg8[%c0_220, %c0_221] : memref<128x128xbf16, #tpu.memory_space<vmem>>, vector<128x128xbf16>
    %cst_222 = arith.constant dense<0.000000e+00> : vector<256x128xf32>
    %307 = tpu.matmul %305, %306, %cst_222 {dimension_numbers = #tpu.dot_dimension_numbers<[1], [0], [0], [1], [0, 0, 1, 1], [], []>} : vector<256x128xbf16>, vector<128x128xbf16>, vector<256x128xf32> -> vector<256x128xf32>
    %c0_223 = arith.constant 0 : index
    %c0_224 = arith.constant 0 : index
    %308 = vector.load %arg9[%c0_223, %c0_224] : memref<1x128xf32, #tpu.memory_space<vmem>>, vector<1x128xf32>
    %309 = vector.shape_cast %308 : vector<1x128xf32> to vector<128xf32>
    %310 = vector.shape_cast %309 : vector<128xf32> to vector<1x128xf32>
    %311 = vector.broadcast %310 : vector<1x128xf32> to vector<256x128xf32>
    %312 = arith.addf %307, %311 : vector<256x128xf32>
    %313 = arith.addf %302, %312 : vector<256x128xf32>
    %cst_225 = arith.constant 0.000000e+00 : f32
    %314 = vector.broadcast %cst_225 : f32 to vector<256x128xf32>
    %315 = arith.maximumf %313, %314 : vector<256x128xf32>
    %c0_226 = arith.constant 0 : index
    %c0_227 = arith.constant 0 : index
    %c0_228 = arith.constant 0 : index
    %316 = vector.load %arg10[%c0_226, %c0_227, %c0_228] : memref<1x256x128xf32, #tpu.memory_space<vmem>>, vector<1x256x128xf32>
    %317 = vector.shape_cast %316 : vector<1x256x128xf32> to vector<256x128xf32>
    %318 = vector.shape_cast %315 : vector<256x128xf32> to vector<1x256x128xf32>
    tpu.vector_store %arg10[%c0_226, %c0_227, %c0_228], %318 {strides = array<i32>} : memref<1x256x128xf32, #tpu.memory_space<vmem>>, vector<1x256x128xf32>,
    return
  }
  func.func @transform_0(%arg0: i32) -> (i32, i32, i32) {
    %c0_i32 = arith.constant 0 : i32
    %c0_i32_0 = arith.constant 0 : i32
    %c0_i32_1 = arith.constant 0 : i32
    return %arg0, %c0_i32, %c0_i32_0 : i32, i32, i32
  }
  func.func @transform_1(%arg0: i32) -> (i32, i32, i32, i32) {
    %c0_i32 = arith.constant 0 : i32
    %c0_i32_0 = arith.constant 0 : i32
    %c0_i32_1 = arith.constant 0 : i32
    %c0_i32_2 = arith.constant 0 : i32
    return %arg0, %c0_i32, %c0_i32_0, %c0_i32_1 : i32, i32, i32, i32
  }
  func.func @transform_2(%arg0: i32) -> (i32, i32) {
    %c0_i32 = arith.constant 0 : i32
    %c0_i32_0 = arith.constant 0 : i32
    %c0_i32_1 = arith.constant 0 : i32
    return %c0_i32, %c0_i32_0 : i32, i32
  }
  func.func @transform_3(%arg0: i32) -> (i32, i32, i32, i32) {
    %c0_i32 = arith.constant 0 : i32
    %c0_i32_0 = arith.constant 0 : i32
    %c0_i32_1 = arith.constant 0 : i32
    %c0_i32_2 = arith.constant 0 : i32
    %c0_i32_3 = arith.constant 0 : i32
    return %c0_i32, %c0_i32_0, %c0_i32_1, %c0_i32_2 : i32, i32, i32, i32
  }
  func.func @transform_4(%arg0: i32) -> (i32, i32) {
    %c0_i32 = arith.constant 0 : i32
    %c0_i32_0 = arith.constant 0 : i32
    %c0_i32_1 = arith.constant 0 : i32
    return %c0_i32, %c0_i32_0 : i32, i32
  }
  func.func @transform_5(%arg0: i32) -> (i32, i32, i32, i32) {
    %c0_i32 = arith.constant 0 : i32
    %c0_i32_0 = arith.constant 0 : i32
    %c0_i32_1 = arith.constant 0 : i32
    %c0_i32_2 = arith.constant 0 : i32
    %c0_i32_3 = arith.constant 0 : i32
    return %c0_i32, %c0_i32_0, %c0_i32_1, %c0_i32_2 : i32, i32, i32, i32
  }
  func.func @transform_6(%arg0: i32) -> (i32, i32) {
    %c0_i32 = arith.constant 0 : i32
    %c0_i32_0 = arith.constant 0 : i32
    %c0_i32_1 = arith.constant 0 : i32
    return %c0_i32, %c0_i32_0 : i32, i32
  }
  func.func @transform_7(%arg0: i32) -> (i32, i32) {
    %c0_i32 = arith.constant 0 : i32
    %c0_i32_0 = arith.constant 0 : i32
    %c0_i32_1 = arith.constant 0 : i32
    return %c0_i32, %c0_i32_0 : i32, i32
  }
  func.func @transform_8(%arg0: i32) -> (i32, i32) {
    %c0_i32 = arith.constant 0 : i32
    %c0_i32_0 = arith.constant 0 : i32
    %c0_i32_1 = arith.constant 0 : i32
    return %c0_i32, %c0_i32_0 : i32, i32
  }
  func.func @transform_9(%arg0: i32) -> (i32, i32, i32) {
    %c0_i32 = arith.constant 0 : i32
    %c0_i32_0 = arith.constant 0 : i32
    %c0_i32_1 = arith.constant 0 : i32
    return %arg0, %c0_i32, %c0_i32_0 : i32, i32, i32
  }
}

</mosaic_0001>

<llo_original>
// kernel: tpu_custom_call.1
$region0: #{tpu_custom_call.1}
  #allocation0 [shape = 'u32[]', space=smem, size = 0x4, offset = 0x4, fixed_abs, tag = 'smem constant byte address 0x4 - core index']
  #allocation1 [shape = 'u32[144,128]{1,0:T(1,128)}', space=vmem, size = 0x12000, scoped, tag = 'internal scratch']
  #allocation2 [shape = 'f32[18,18,128]{2,1,0:T(8,128)}', space=vmem, size = 0x36000, scoped, tag = 'scratch operand']
  #allocation3 [shape = 'f32[18,18,128]{2,1,0:T(8,128)}', space=vmem, size = 0x36000, scoped, tag = 'scratch operand']
  %s0 = inlined_call_operand.hbm [shape: f32[2,8,512], index: 0, kind: input, shape index: {}]
  %s1 = inlined_call_operand.hbm [shape: f32[2,16,16,64], index: 1, kind: input, shape index: {}]
  %s2 = inlined_call_operand.vmem [shape: f32[16,8], index: 2, kind: input, shape index: {}]
  %s3 = inlined_call_operand.hbm [shape: bf16[3,3,128,128], index: 3, kind: input, shape index: {}]
  %s4 = inlined_call_operand.vmem [shape: f32[1,128], index: 4, kind: input, shape index: {}]
  %s5 = inlined_call_operand.hbm [shape: bf16[3,3,128,128], index: 5, kind: input, shape index: {}]
  %s6 = inlined_call_operand.vmem [shape: f32[1,128], index: 6, kind: input, shape index: {}]
  %s7 = inlined_call_operand.hbm [shape: bf16[128,128], index: 7, kind: input, shape index: {}]
  %s8 = inlined_call_operand.vmem [shape: f32[1,128], index: 8, kind: input, shape index: {}]
  %s9 = inlined_call_operand.hbm [shape: f32[2,256,128], index: 9, kind: output, shape index: {}]
  %s10 = sld [smem:[#allocation0]]
  $region89: #{tpu_custom_call.1} parent=0
    _
  %s12 = ssub.s32 1, %s10
  %s13 = scalar_select 0, %s12, %s10
  $region1: #{tpu_custom_call.1} parent=0
    #allocation4 [shape = 'u8[32768]{0}', space=vmem, size = 0x8000, scoped, tag = 'input window, operand 0']
    #allocation5 [shape = 's32[2]{0}', space=sflag, size = 0x8, scoped, tag = 'scoped memory for tpu_custom_call.1']
    #allocation6 [shape = 's32[2]{0}', space=sflag, size = 0x8, scoped, tag = 'scoped memory for tpu_custom_call.1']
    #allocation7 [shape = 'u8[262144]{0}', space=vmem, size = 0x40000, scoped, tag = 'input window, operand 1']
    #allocation8 [shape = 's32[2]{0}', space=sflag, size = 0x8, scoped, tag = 'scoped memory for tpu_custom_call.1']
    #allocation9 [shape = 'u8[294912]{0}', space=vmem, size = 0x48000, scoped, tag = 'input window, operand 3, single buffered']
    #allocation10 [shape = 'u8[294912]{0}', space=vmem, size = 0x48000, scoped, tag = 'input window, operand 5, single buffered']
    #allocation11 [shape = 's32[1]{0}', space=sflag, size = 0x4, scoped, tag = 'scoped memory for tpu_custom_call.1']
    #allocation12 [shape = 'u8[32768]{0}', space=vmem, size = 0x8000, scoped, tag = 'input window, operand 7, single buffered']
    #allocation13 [shape = 'u8[262144]{0}', space=vmem, size = 0x40000, scoped, tag = 'output window, operand 0']
    %14 = vsyncpa [#allocation5], 0
    %s15 = scalar_lea.sflag [#allocation5], 1
    %16 = vsyncpa %s15, 0
    %17 = vsyncpa [#allocation8], 0
    %s18 = scalar_lea.sflag [#allocation8], 1
    %19 = vsyncpa %s18, 0
    %20 = vsyncpa [#allocation11], 0
    %21 = vsyncpa [#allocation6], 0
    %s22 = scalar_lea.sflag [#allocation6], 1
    %23 = vsyncpa %s22, 0
    loop: start=0, step=1, limit=4
    $region2: #{tpu_custom_call.1} parent=1 // loop_pre_header
      _
    $region3: #{tpu_custom_call.1} parent=1 // loop_header
      %s25 = sphi 0, %s29
      %p26 = scmp.ge.s32.totalorder %s25, 4
      %s35 = sphi 0, %s37
      %s38 = sphi 0, %s35
      %s39 = sphi 0, %s38
      %s55 = sphi 0, %s39
      %s61 = sphi 0, %s63
      %s64 = sphi 0, %s61
      %s65 = sphi 0, %s64
      %s81 = sphi 0, %s65
      %s85 = sphi 0, %s85
      %s87 = sphi 0, %s85
      %s88 = sphi 0, %s87
      %s102 = sphi 0, %s88
      %s106 = sphi 0, %s106
      %s108 = sphi 0, %s106
      %s109 = sphi 0, %s108
      %s123 = sphi 0, %s109
      %s127 = sphi 0, %s127
      %s129 = sphi 0, %s127
      %s130 = sphi 0, %s129
      %s144 = sphi 0, %s130
      %s148 = sphi 0, %s148
      %s150 = sphi 0, %s148
      %s151 = sphi 0, %s150
      %s165 = sphi 0, %s151
      %s169 = sphi 0, %s169
      %s171 = sphi 0, %s169
      %s172 = sphi 0, %s171
      %s186 = sphi 0, %s172
      %s190 = sphi 0, %s190
      %s192 = sphi 0, %s190
      %s193 = sphi 0, %s192
      %s207 = sphi 0, %s193
      %s211 = sphi 0, %s211
      %s213 = sphi 0, %s211
      %s214 = sphi 0, %s213
      %s228 = sphi 0, %s214
      %s234 = sphi 0, %s236
      %s237 = sphi 0, %s234
      %s238 = sphi 0, %s237
      %s254 = sphi 0, %s238
    $region4: #{tpu_custom_call.1} parent=1 // loop_header_branch
      %28 = sbr.rel (%p26) target = $region8
    $region5: #{tpu_custom_call.1} parent=1 // loop_body
      %s30 = ssub.s32 %s25, 1
      %s31 = ssub.s32 %s25, 2
      %s32 = sadd.s32 %s25, 1
      %s33 = ssub.s32 %s25, %s32
      %p34 = scmp.eq.s32.totalorder %s33, 0
      %s36 = sadd.s32 %s35, 1
      %s37 = scalar_select %p34, %s35, %s36
      %p40 = pneg %p34
      %p41 = scmp.eq.s32.totalorder %s25, 1
      %p42 = por %p40, %p41
      %p43 = scmp.ne.s32.totalorder %s35, %s38
      %p44 = scmp.eq.s32.totalorder %s25, 0
      %p45 = por %p43, %p44
      %p46 = scmp.ne.s32.totalorder %s35, %s38
      %p47 = scmp.eq.s32.totalorder %s30, 1
      %p48 = por %p46, %p47
      %p49 = scmp.ne.s32.totalorder %s38, %s39
      %p50 = scmp.eq.s32.totalorder %s30, 0
      %p51 = por %p49, %p50
      %p52 = scmp.ne.s32.totalorder %s38, %s39
      %p53 = scmp.eq.s32.totalorder %s31, 1
      %p54 = por %p52, %p53
      %p56 = scmp.ne.s32.totalorder %s39, %s55
      %p57 = scmp.eq.s32.totalorder %s31, 0
      %p58 = por %p56, %p57
      %s59 = ssub.s32 %s25, %s32
      %p60 = scmp.eq.s32.totalorder %s59, 0
      %s62 = sadd.s32 %s61, 1
      %s63 = scalar_select %p60, %s61, %s62
      %p66 = pneg %p60
      %p67 = scmp.eq.s32.totalorder %s25, 1
      %p68 = por %p66, %p67
      %p69 = scmp.ne.s32.totalorder %s61, %s64
      %p70 = scmp.eq.s32.totalorder %s25, 0
      %p71 = por %p69, %p70
      %p72 = scmp.ne.s32.totalorder %s61, %s64
      %p73 = scmp.eq.s32.totalorder %s30, 1
      %p74 = por %p72, %p73
      %p75 = scmp.ne.s32.totalorder %s64, %s65
      %p76 = scmp.eq.s32.totalorder %s30, 0
      %p77 = por %p75, %p76
      %p78 = scmp.ne.s32.totalorder %s64, %s65
      %p79 = scmp.eq.s32.totalorder %s31, 1
      %p80 = por %p78, %p79
      %p82 = scmp.ne.s32.totalorder %s65, %s81
      %p83 = scmp.eq.s32.totalorder %s31, 0
      %p84 = por %p82, %p83
      %s86 = sadd.s32 %s85, 1
      %p89 = scmp.eq.s32.totalorder %s25, 1
      %p90 = scmp.ne.s32.totalorder %s85, %s87
      %p91 = scmp.eq.s32.totalorder %s25, 0
      %p92 = por %p90, %p91
      %p93 = scmp.ne.s32.totalorder %s85, %s87
      %p94 = scmp.eq.s32.totalorder %s30, 1
      %p95 = por %p93, %p94
      %p96 = scmp.ne.s32.totalorder %s87, %s88
      %p97 = scmp.eq.s32.totalorder %s30, 0
      %p98 = por %p96, %p97
      %p99 = scmp.ne.s32.totalorder %s87, %s88
      %p100 = scmp.eq.s32.totalorder %s31, 1
      %p101 = por %p99, %p100
      %p103 = scmp.ne.s32.totalorder %s88, %s102
      %p104 = scmp.eq.s32.totalorder %s31, 0
      %p105 = por %p103, %p104
      %s107 = sadd.s32 %s106, 1
      %p110 = scmp.eq.s32.totalorder %s25, 1
      %p111 = scmp.ne.s32.totalorder %s106, %s108
      %p112 = scmp.eq.s32.totalorder %s25, 0
      %p113 = por %p111, %p112
      %p114 = scmp.ne.s32.totalorder %s106, %s108
      %p115 = scmp.eq.s32.totalorder %s30, 1
      %p116 = por %p114, %p115
      %p117 = scmp.ne.s32.totalorder %s108, %s109
      %p118 = scmp.eq.s32.totalorder %s30, 0
      %p119 = por %p117, %p118
      %p120 = scmp.ne.s32.totalorder %s108, %s109
      %p121 = scmp.eq.s32.totalorder %s31, 1
      %p122 = por %p120, %p121
      %p124 = scmp.ne.s32.totalorder %s109, %s123
      %p125 = scmp.eq.s32.totalorder %s31, 0
      %p126 = por %p124, %p125
      %s128 = sadd.s32 %s127, 1
      %p131 = scmp.eq.s32.totalorder %s25, 1
      %p132 = scmp.ne.s32.totalorder %s127, %s129
      %p133 = scmp.eq.s32.totalorder %s25, 0
      %p134 = por %p132, %p133
      %p135 = scmp.ne.s32.totalorder %s127, %s129
      %p136 = scmp.eq.s32.totalorder %s30, 1
      %p137 = por %p135, %p136
      %p138 = scmp.ne.s32.totalorder %s129, %s130
      %p139 = scmp.eq.s32.totalorder %s30, 0
      %p140 = por %p138, %p139
      %p141 = scmp.ne.s32.totalorder %s129, %s130
      %p142 = scmp.eq.s32.totalorder %s31, 1
      %p143 = por %p141, %p142
      %p145 = scmp.ne.s32.totalorder %s130, %s144
      %p146 = scmp.eq.s32.totalorder %s31, 0
      %p147 = por %p145, %p146
      %s149 = sadd.s32 %s148, 1
      %p152 = scmp.eq.s32.totalorder %s25, 1
      %p153 = scmp.ne.s32.totalorder %s148, %s150
      %p154 = scmp.eq.s32.totalorder %s25, 0
      %p155 = por %p153, %p154
      %p156 = scmp.ne.s32.totalorder %s148, %s150
      %p157 = scmp.eq.s32.totalorder %s30, 1
      %p158 = por %p156, %p157
      %p159 = scmp.ne.s32.totalorder %s150, %s151
      %p160 = scmp.eq.s32.totalorder %s30, 0
      %p161 = por %p159, %p160
      %p162 = scmp.ne.s32.totalorder %s150, %s151
      %p163 = scmp.eq.s32.totalorder %s31, 1
      %p164 = por %p162, %p163
      %p166 = scmp.ne.s32.totalorder %s151, %s165
      %p167 = scmp.eq.s32.totalorder %s31, 0
      %p168 = por %p166, %p167
      %s170 = sadd.s32 %s169, 1
      %p173 = scmp.eq.s32.totalorder %s25, 1
      %p174 = scmp.ne.s32.totalorder %s169, %s171
      %p175 = scmp.eq.s32.totalorder %s25, 0
      %p176 = por %p174, %p175
      %p177 = scmp.ne.s32.totalorder %s169, %s171
      %p178 = scmp.eq.s32.totalorder %s30, 1
      %p179 = por %p177, %p178
      %p180 = scmp.ne.s32.totalorder %s171, %s172
      %p181 = scmp.eq.s32.totalorder %s30, 0
      %p182 = por %p180, %p181
      %p183 = scmp.ne.s32.totalorder %s171, %s172
      %p184 = scmp.eq.s32.totalorder %s31, 1
      %p185 = por %p183, %p184
      %p187 = scmp.ne.s32.totalorder %s172, %s186
      %p188 = scmp.eq.s32.totalorder %s31, 0
      %p189 = por %p187, %p188
      %s191 = sadd.s32 %s190, 1
      %p194 = scmp.eq.s32.totalorder %s25, 1
      %p195 = scmp.ne.s32.totalorder %s190, %s192
      %p196 = scmp.eq.s32.totalorder %s25, 0
      %p197 = por %p195, %p196
      %p198 = scmp.ne.s32.totalorder %s190, %s192
      %p199 = scmp.eq.s32.totalorder %s30, 1
      %p200 = por %p198, %p199
      %p201 = scmp.ne.s32.totalorder %s192, %s193
      %p202 = scmp.eq.s32.totalorder %s30, 0
      %p203 = por %p201, %p202
      %p204 = scmp.ne.s32.totalorder %s192, %s193
      %p205 = scmp.eq.s32.totalorder %s31, 1
      %p206 = por %p204, %p205
      %p208 = scmp.ne.s32.totalorder %s193, %s207
      %p209 = scmp.eq.s32.totalorder %s31, 0
      %p210 = por %p208, %p209
      %s212 = sadd.s32 %s211, 1
      %p215 = scmp.eq.s32.totalorder %s25, 1
      %p216 = scmp.ne.s32.totalorder %s211, %s213
      %p217 = scmp.eq.s32.totalorder %s25, 0
      %p218 = por %p216, %p217
      %p219 = scmp.ne.s32.totalorder %s211, %s213
      %p220 = scmp.eq.s32.totalorder %s30, 1
      %p221 = por %p219, %p220
      %p222 = scmp.ne.s32.totalorder %s213, %s214
      %p223 = scmp.eq.s32.totalorder %s30, 0
      %p224 = por %p222, %p223
      %p225 = scmp.ne.s32.totalorder %s213, %s214
      %p226 = scmp.eq.s32.totalorder %s31, 1
      %p227 = por %p225, %p226
      %p229 = scmp.ne.s32.totalorder %s214, %s228
      %p230 = scmp.eq.s32.totalorder %s31, 0
      %p231 = por %p229, %p230
      %s232 = ssub.s32 %s25, %s32
      %p233 = scmp.eq.s32.totalorder %s232, 0
      %s235 = sadd.s32 %s234, 1
      %s236 = scalar_select %p233, %s234, %s235
      %p239 = pneg %p233
      %p240 = scmp.eq.s32.totalorder %s25, 1
      %p241 = por %p239, %p240
      %p242 = scmp.ne.s32.totalorder %s234, %s237
      %p243 = scmp.eq.s32.totalorder %s25, 0
      %p244 = por %p242, %p243
      %p245 = scmp.ne.s32.totalorder %s234, %s237
      %p246 = scmp.eq.s32.totalorder %s30, 1
      %p247 = por %p245, %p246
      %p248 = scmp.ne.s32.totalorder %s237, %s238
      %p249 = scmp.eq.s32.totalorder %s30, 0
      %p250 = por %p248, %p249
      %p251 = scmp.ne.s32.totalorder %s237, %s238
      %p252 = scmp.eq.s32.totalorder %s31, 1
      %p253 = por %p251, %p252
      %p255 = scmp.ne.s32.totalorder %s238, %s254
      %p256 = scmp.eq.s32.totalorder %s31, 0
      %p257 = por %p255, %p256
      %p258 = scmp.le.s32.totalorder 1, %s25
      %p259 = scmp.lt.s32.totalorder %s25, 3
      %p260 = pnand %p258, %p259
      %p261 = pneg %p260
      // Predicated region
      $region9: #{tpu_custom_call.1} parent=5 // pred_check
        _
      $region10: #{tpu_custom_call.1} parent=5 // pred_check_branch
        %263 = sbr.rel (%p260) target = $region12
      $region11: #{tpu_custom_call.1} parent=5 // pred_region
        %s264 = ssub.s32 %s25, 1
        // Predicated region
        $region13: #{tpu_custom_call.1} parent=11 // pred_check
          %p265 = pneg %p98
        $region14: #{tpu_custom_call.1} parent=11 // pred_check_branch
          %267 = sbr.rel (%p265) target = $region16
        $region15: #{tpu_custom_call.1} parent=11 // pred_region
          _
        $region16: #{tpu_custom_call.1} parent=11 // pred_fallthru
          _
        // Predicated region
        $region17: #{tpu_custom_call.1} parent=11 // pred_check
          %p268 = pneg %p119
        $region18: #{tpu_custom_call.1} parent=11 // pred_check_branch
          %270 = sbr.rel (%p268) target = $region20
        $region19: #{tpu_custom_call.1} parent=11 // pred_region
          %s272 = ssub.s32 9216, 9216
          %273 = vsyncadd [#allocation8], %s272
          %s274 = sshll.u32 [#allocation9], 4
          %s275 = int_to_ptr.vmem [resolvable:$true] %s274
          %280 = dma.hbm_to_vmem [thread:$0]  %s3, 9216, %s275, [#allocation8], 64, 64, 4
        $region20: #{tpu_custom_call.1} parent=11 // pred_fallthru
          _
        // Predicated region
        $region21: #{tpu_custom_call.1} parent=11 // pred_check
          %p281 = pneg %p140
        $region22: #{tpu_custom_call.1} parent=11 // pred_check_branch
          %283 = sbr.rel (%p281) target = $region24
        $region23: #{tpu_custom_call.1} parent=11 // pred_region
          _
        $region24: #{tpu_custom_call.1} parent=11 // pred_fallthru
          _
        // Predicated region
        $region25: #{tpu_custom_call.1} parent=11 // pred_check
          %p284 = pneg %p161
        $region26: #{tpu_custom_call.1} parent=11 // pred_check_branch
          %286 = sbr.rel (%p284) target = $region28
        $region27: #{tpu_custom_call.1} parent=11 // pred_region
          %s288 = ssub.s32 9216, 9216
          %289 = vsyncadd [#allocation11], %s288
          %s290 = sshll.u32 [#allocation10], 4
          %s291 = int_to_ptr.vmem [resolvable:$true] %s290
          %296 = dma.hbm_to_vmem [thread:$0]  %s5, 9216, %s291, [#allocation11], 64, 64, 4
        $region28: #{tpu_custom_call.1} parent=11 // pred_fallthru
          _
        // Predicated region
        $region29: #{tpu_custom_call.1} parent=11 // pred_check
          %p297 = pneg %p182
        $region30: #{tpu_custom_call.1} parent=11 // pred_check_branch
          %299 = sbr.rel (%p297) target = $region32
        $region31: #{tpu_custom_call.1} parent=11 // pred_region
          _
        $region32: #{tpu_custom_call.1} parent=11 // pred_fallthru
          _
        // Predicated region
        $region33: #{tpu_custom_call.1} parent=11 // pred_check
          %p300 = pneg %p203
        $region34: #{tpu_custom_call.1} parent=11 // pred_check_branch
          %302 = sbr.rel (%p300) target = $region36
        $region35: #{tpu_custom_call.1} parent=11 // pred_region
          %s304 = ssub.s32 1024, 1024
          %305 = vsyncadd [#allocation11], %s304
          %s306 = sshll.u32 [#allocation12], 4
          %s307 = int_to_ptr.vmem [resolvable:$true] %s306
          %312 = dma.hbm_to_vmem [thread:$0]  %s7, 1024, %s307, [#allocation11], 64, 64, 4
        $region36: #{tpu_custom_call.1} parent=11 // pred_fallthru
          _
        // Predicated region
        $region37: #{tpu_custom_call.1} parent=11 // pred_check
          %p313 = pneg %p224
        $region38: #{tpu_custom_call.1} parent=11 // pred_check_branch
          %315 = sbr.rel (%p313) target = $region40
        $region39: #{tpu_custom_call.1} parent=11 // pred_region
          _
        $region40: #{tpu_custom_call.1} parent=11 // pred_fallthru
          _
      $region12: #{tpu_custom_call.1} parent=5 // pred_fallthru
        _
      %p316 = scmp.lt.s32.totalorder %s25, 2
      // Predicated region
      $region41: #{tpu_custom_call.1} parent=5 // pred_check
        %p317 = pneg %p316
      $region42: #{tpu_custom_call.1} parent=5 // pred_check_branch
        %319 = sbr.rel (%p317) target = $region44
      $region43: #{tpu_custom_call.1} parent=5 // pred_region
        // Predicated region
        $region45: #{tpu_custom_call.1} parent=43 // pred_check
          %p320 = pneg %p45
        $region46: #{tpu_custom_call.1} parent=43 // pred_check_branch
          %322 = sbr.rel (%p320) target = $region48
        $region47: #{tpu_custom_call.1} parent=43 // pred_region
          %s323 = sand.u32 %s35, 1
          %s324 = scalar_lea.sflag [#allocation5], %s323
          %s325 = sand.u32 %s35, 1
          %s326 = smul.addr %s325, 32
          %s327 = scalar_lea.vmem [#allocation4], %s326
          %s329 = ssub.s32 512, 512
          %330 = vsyncadd %s324, %s329
          %s331 = smul.addr %s25, 4
          %s332 = smul.addr %s331, 128
          %s333 = scalar_lea.hbm %s0, %s332
          %s335 = sshll.u32 %s327, 4
          %s336 = int_to_ptr.vmem [resolvable:$true] %s335
          %338 = dma.hbm_to_vmem [thread:$0]  %s333, 512, %s336, %s324
        $region48: #{tpu_custom_call.1} parent=43 // pred_fallthru
          _
        // Predicated region
        $region49: #{tpu_custom_call.1} parent=43 // pred_check
          %p339 = pneg %p71
        $region50: #{tpu_custom_call.1} parent=43 // pred_check_branch
          %341 = sbr.rel (%p339) target = $region52
        $region51: #{tpu_custom_call.1} parent=43 // pred_region
          %s342 = sand.u32 %s25, 1
          %s343 = scalar_lea.sflag [#allocation8], %s342
          %s344 = sand.u32 %s61, 1
          %s345 = smul.addr %s344, 256
          %s346 = scalar_lea.vmem [#allocation7], %s345
          %s348 = ssub.s32 4096, 4096
          %349 = vsyncadd %s343, %s348
          %s350 = smul.addr %s25, 32
          %s351 = smul.addr %s350, 128
          %s352 = scalar_lea.hbm %s1, %s351
          %s353 = sshll.u32 %s346, 4
          %s354 = int_to_ptr.vmem [resolvable:$true] %s353
          %359 = dma.hbm_to_vmem [thread:$0]  %s352, 4096, %s354, %s343, 128, 128, 8
        $region52: #{tpu_custom_call.1} parent=43 // pred_fallthru
          _
      $region44: #{tpu_custom_call.1} parent=5 // pred_fallthru
        _
      %p360 = scmp.le.s32.totalorder 1, %s25
      %p361 = scmp.lt.s32.totalorder %s25, 3
      %p362 = pnand %p360, %p361
      %p363 = pneg %p362
      // Predicated region
      $region53: #{tpu_custom_call.1} parent=5 // pred_check
        _
      $region54: #{tpu_custom_call.1} parent=5 // pred_check_branch
        %365 = sbr.rel (%p362) target = $region56
      $region55: #{tpu_custom_call.1} parent=5 // pred_region
        %s366 = ssub.s32 %s25, 1
        %s367 = sand.u32 %s38, 1
        %s368 = scalar_lea.sflag [#allocation5], %s367
        %s369 = sand.u32 %s38, 1
        %s370 = smul.addr %s369, 32
        %s371 = scalar_lea.vmem [#allocation4], %s370
        // Predicated region
        $region57: #{tpu_custom_call.1} parent=55 // pred_check
          %p372 = pneg %p51
        $region58: #{tpu_custom_call.1} parent=55 // pred_check_branch
          %374 = sbr.rel (%p372) target = $region60
        $region59: #{tpu_custom_call.1} parent=55 // pred_region
          %375 = dma.done %s368, 512
        $region60: #{tpu_custom_call.1} parent=55 // pred_fallthru
          _
        %s376 = sand.u32 %s30, 1
        %s377 = scalar_lea.sflag [#allocation8], %s376
        %s378 = sand.u32 %s64, 1
        %s379 = smul.addr %s378, 256
        %s380 = scalar_lea.vmem [#allocation7], %s379
        // Predicated region
        $region61: #{tpu_custom_call.1} parent=55 // pred_check
          %p381 = pneg %p77
        $region62: #{tpu_custom_call.1} parent=55 // pred_check_branch
          %383 = sbr.rel (%p381) target = $region64
        $region63: #{tpu_custom_call.1} parent=55 // pred_region
          %384 = dma.done %s377, 4096
        $region64: #{tpu_custom_call.1} parent=55 // pred_fallthru
          _
        // Predicated region
        $region65: #{tpu_custom_call.1} parent=55 // pred_check
          %p385 = pneg %p119
        $region66: #{tpu_custom_call.1} parent=55 // pred_check_branch
          %387 = sbr.rel (%p385) target = $region68
        $region67: #{tpu_custom_call.1} parent=55 // pred_region
          %388 = dma.done [#allocation8], 9216
        $region68: #{tpu_custom_call.1} parent=55 // pred_fallthru
          _
        // Predicated region
        $region69: #{tpu_custom_call.1} parent=55 // pred_check
          %p389 = pneg %p161
        $region70: #{tpu_custom_call.1} parent=55 // pred_check_branch
          %391 = sbr.rel (%p389) target = $region72
        $region71: #{tpu_custom_call.1} parent=55 // pred_region
          %392 = dma.done [#allocation11], 9216
        $region72: #{tpu_custom_call.1} parent=55 // pred_fallthru
          _
        // Predicated region
        $region73: #{tpu_custom_call.1} parent=55 // pred_check
          %p393 = pneg %p203
        $region74: #{tpu_custom_call.1} parent=55 // pred_check_branch
          %395 = sbr.rel (%p393) target = $region76
        $region75: #{tpu_custom_call.1} parent=55 // pred_region
          %396 = dma.done [#allocation11], 1024
        $region76: #{tpu_custom_call.1} parent=55 // pred_fallthru
          _
        %s397 = sand.u32 %s38, 1
        %s398 = scalar_lea.sflag [#allocation5], %s397
        %s399 = sand.u32 %s38, 1
        %s400 = smul.addr %s399, 32
        %s401 = scalar_lea.vmem [#allocation4], %s400
        %p402 = pneg %p51
        %p403 = pneg %p48
        %s404 = sand.u32 %s30, 1
        %s405 = scalar_lea.sflag [#allocation8], %s404
        %s406 = sand.u32 %s64, 1
        %s407 = smul.addr %s406, 256
        %s408 = scalar_lea.vmem [#allocation7], %s407
        %p409 = pneg %p77
        %p410 = pneg %p74
        %p411 = pneg %p98
        %p412 = pneg %p95
        %p413 = pneg %p119
        %p414 = pneg %p116
        %p415 = pneg %p140
        %p416 = pneg %p137
        %p417 = pneg %p161
        %p418 = pneg %p158
        %p419 = pneg %p182
        %p420 = pneg %p179
        %p421 = pneg %p203
        %p422 = pneg %p200
        %p423 = pneg %p224
        %p424 = pneg %p221
        %p425 = pneg %p250
        %p426 = pneg %p247
        %s427 = sand.u32 %s237, 1
        %s428 = scalar_lea.sflag [#allocation6], %s427
        %s429 = sand.u32 %s237, 1
        %s430 = smul.addr %s429, 256
        %s431 = scalar_lea.vmem [#allocation13], %s430
        %433 = vst [vmem:[#allocation2] sm:$0xff] 0.0
        %434 = vst [vmem:[#allocation2 + $0x8] sm:$0xff] 0.0
        %435 = vst [vmem:[#allocation2 + $0x10] sm:$0x3] 0.0
        %s436 = scalar_lea.vmem [#allocation2], 408
        %437 = vst [vmem:[%s436] sm:$0xff] 0.0
        %438 = vst [vmem:[%s436 + $0x8] sm:$0xff] 0.0
        %439 = vst [vmem:[%s436 + $0x10] sm:$0x3] 0.0
        %440 = vst [vmem:[#allocation2] sm:$0x1] 0.0
        %441 = vst [vmem:[#allocation2 + $0x18] sm:$0x1] 0.0
        %442 = vst [vmem:[#allocation2 + $0x30] sm:$0x1] 0.0
        %443 = vst [vmem:[#allocation2 + $0x48] sm:$0x1] 0.0
        %444 = vst [vmem:[#allocation2 + $0x60] sm:$0x1] 0.0
        %445 = vst [vmem:[#allocation2 + $0x78] sm:$0x1] 0.0
        %446 = vst [vmem:[#allocation2 + $0x90] sm:$0x1] 0.0
        %447 = vst [vmem:[#allocation2 + $0xa8] sm:$0x1] 0.0
        %448 = vst [vmem:[#allocation2 + $0xc0] sm:$0x1] 0.0
        %449 = vst [vmem:[#allocation2 + $0xd8] sm:$0x1] 0.0
        %450 = vst [vmem:[#allocation2 + $0xf0] sm:$0x1] 0.0
        %451 = vst [vmem:[#allocation2 + $0x108] sm:$0x1] 0.0
        %452 = vst [vmem:[#allocation2 + $0x120] sm:$0x1] 0.0
        %453 = vst [vmem:[#allocation2 + $0x138] sm:$0x1] 0.0
        %454 = vst [vmem:[#allocation2 + $0x150] sm:$0x1] 0.0
        %455 = vst [vmem:[#allocation2 + $0x168] sm:$0x1] 0.0
        %456 = vst [vmem:[#allocation2 + $0x180] sm:$0x1] 0.0
        %457 = vst [vmem:[#allocation2 + $0x198] sm:$0x1] 0.0
        %458 = vst [vmem:[#allocation2 + $0x11] sm:$0x1] 0.0
        %459 = vst [vmem:[#allocation2 + $0x29] sm:$0x1] 0.0
        %460 = vst [vmem:[#allocation2 + $0x41] sm:$0x1] 0.0
        %461 = vst [vmem:[#allocation2 + $0x59] sm:$0x1] 0.0
        %462 = vst [vmem:[#allocation2 + $0x71] sm:$0x1] 0.0
        %463 = vst [vmem:[#allocation2 + $0x89] sm:$0x1] 0.0
        %464 = vst [vmem:[#allocation2 + $0xa1] sm:$0x1] 0.0
        %465 = vst [vmem:[#allocation2 + $0xb9] sm:$0x1] 0.0
        %466 = vst [vmem:[#allocation2 + $0xd1] sm:$0x1] 0.0
        %467 = vst [vmem:[#allocation2 + $0xe9] sm:$0x1] 0.0
        %468 = vst [vmem:[#allocation2 + $0x101] sm:$0x1] 0.0
        %469 = vst [vmem:[#allocation2 + $0x119] sm:$0x1] 0.0
        %470 = vst [vmem:[#allocation2 + $0x131] sm:$0x1] 0.0
        %471 = vst [vmem:[#allocation2 + $0x149] sm:$0x1] 0.0
        %472 = vst [vmem:[#allocation2 + $0x161] sm:$0x1] 0.0
        %473 = vst [vmem:[#allocation2 + $0x179] sm:$0x1] 0.0
        %474 = vst [vmem:[#allocation2 + $0x191] sm:$0x1] 0.0
        %475 = vst [vmem:[#allocation2 + $0x1a9] sm:$0x1] 0.0
        %476 = vst [vmem:[#allocation3] sm:$0xff] 0.0
        %477 = vst [vmem:[#allocation3 + $0x8] sm:$0xff] 0.0
        %478 = vst [vmem:[#allocation3 + $0x10] sm:$0x3] 0.0
        %s479 = scalar_lea.vmem [#allocation3], 408
        %480 = vst [vmem:[%s479] sm:$0xff] 0.0
        %481 = vst [vmem:[%s479 + $0x8] sm:$0xff] 0.0
        %482 = vst [vmem:[%s479 + $0x10] sm:$0x3] 0.0
        %483 = vst [vmem:[#allocation3] sm:$0x1] 0.0
        %484 = vst [vmem:[#allocation3 + $0x18] sm:$0x1] 0.0
        %485 = vst [vmem:[#allocation3 + $0x30] sm:$0x1] 0.0
        %486 = vst [vmem:[#allocation3 + $0x48] sm:$0x1] 0.0
        %487 = vst [vmem:[#allocation3 + $0x60] sm:$0x1] 0.0
        %488 = vst [vmem:[#allocation3 + $0x78] sm:$0x1] 0.0
        %489 = vst [vmem:[#allocation3 + $0x90] sm:$0x1] 0.0
        %490 = vst [vmem:[#allocation3 + $0xa8] sm:$0x1] 0.0
        %491 = vst [vmem:[#allocation3 + $0xc0] sm:$0x1] 0.0
        %492 = vst [vmem:[#allocation3 + $0xd8] sm:$0x1] 0.0
        %493 = vst [vmem:[#allocation3 + $0xf0] sm:$0x1] 0.0
        %494 = vst [vmem:[#allocation3 + $0x108] sm:$0x1] 0.0
        %495 = vst [vmem:[#allocation3 + $0x120] sm:$0x1] 0.0
        %496 = vst [vmem:[#allocation3 + $0x138] sm:$0x1] 0.0
        %497 = vst [vmem:[#allocation3 + $0x150] sm:$0x1] 0.0
        %498 = vst [vmem:[#allocation3 + $0x168] sm:$0x1] 0.0
        %499 = vst [vmem:[#allocation3 + $0x180] sm:$0x1] 0.0
        %500 = vst [vmem:[#allocation3 + $0x198] sm:$0x1] 0.0
        %501 = vst [vmem:[#allocation3 + $0x11] sm:$0x1] 0.0
        %502 = vst [vmem:[#allocation3 + $0x29] sm:$0x1] 0.0
        %503 = vst [vmem:[#allocation3 + $0x41] sm:$0x1] 0.0
        %504 = vst [vmem:[#allocation3 + $0x59] sm:$0x1] 0.0
        %505 = vst [vmem:[#allocation3 + $0x71] sm:$0x1] 0.0
        %506 = vst [vmem:[#allocation3 + $0x89] sm:$0x1] 0.0
        %507 = vst [vmem:[#allocation3 + $0xa1] sm:$0x1] 0.0
        %508 = vst [vmem:[#allocation3 + $0xb9] sm:$0x1] 0.0
        %509 = vst [vmem:[#allocation3 + $0xd1] sm:$0x1] 0.0
        %510 = vst [vmem:[#allocation3 + $0xe9] sm:$0x1] 0.0
        %511 = vst [vmem:[#allocation3 + $0x101] sm:$0x1] 0.0
        %512 = vst [vmem:[#allocation3 + $0x119] sm:$0x1] 0.0
        %513 = vst [vmem:[#allocation3 + $0x131] sm:$0x1] 0.0
        %514 = vst [vmem:[#allocation3 + $0x149] sm:$0x1] 0.0
        %515 = vst [vmem:[#allocation3 + $0x161] sm:$0x1] 0.0
        %516 = vst [vmem:[#allocation3 + $0x179] sm:$0x1] 0.0
        %517 = vst [vmem:[#allocation3 + $0x191] sm:$0x1] 0.0
        %518 = vst [vmem:[#allocation3 + $0x1a9] sm:$0x1] 0.0
        %v519 = vld [vmem:[%s380] sm:$0xff]
        %v520 = vld [vmem:[%s380 + $0x8] sm:$0xff]
        %v521 = vld [vmem:[%s380 + $0x10] sm:$0xff]
        %v522 = vld [vmem:[%s380 + $0x18] sm:$0xff]
        %v523 = vld [vmem:[%s380 + $0x20] sm:$0xff]
        %v524 = vld [vmem:[%s380 + $0x28] sm:$0xff]
        %v525 = vld [vmem:[%s380 + $0x30] sm:$0xff]
        %v526 = vld [vmem:[%s380 + $0x38] sm:$0xff]
        %v527 = vld [vmem:[%s380 + $0x40] sm:$0xff]
        %v528 = vld [vmem:[%s380 + $0x48] sm:$0xff]
        %v529 = vld [vmem:[%s380 + $0x50] sm:$0xff]
        %v530 = vld [vmem:[%s380 + $0x58] sm:$0xff]
        %v531 = vld [vmem:[%s380 + $0x60] sm:$0xff]
        %v532 = vld [vmem:[%s380 + $0x68] sm:$0xff]
        %v533 = vld [vmem:[%s380 + $0x70] sm:$0xff]
        %v534 = vld [vmem:[%s380 + $0x78] sm:$0xff]
        %v535 = vld [vmem:[%s380 + $0x80] sm:$0xff]
        %v536 = vld [vmem:[%s380 + $0x88] sm:$0xff]
        %v537 = vld [vmem:[%s380 + $0x90] sm:$0xff]
        %v538 = vld [vmem:[%s380 + $0x98] sm:$0xff]
        %v539 = vld [vmem:[%s380 + $0xa0] sm:$0xff]
        %v540 = vld [vmem:[%s380 + $0xa8] sm:$0xff]
        %v541 = vld [vmem:[%s380 + $0xb0] sm:$0xff]
        %v542 = vld [vmem:[%s380 + $0xb8] sm:$0xff]
        %v543 = vld [vmem:[%s380 + $0xc0] sm:$0xff]
        %v544 = vld [vmem:[%s380 + $0xc8] sm:$0xff]
        %v545 = vld [vmem:[%s380 + $0xd0] sm:$0xff]
        %v546 = vld [vmem:[%s380 + $0xd8] sm:$0xff]
        %v547 = vld [vmem:[%s380 + $0xe0] sm:$0xff]
        %v548 = vld [vmem:[%s380 + $0xe8] sm:$0xff]
        %v549 = vld [vmem:[%s380 + $0xf0] sm:$0xff]
        %v550 = vld [vmem:[%s380 + $0xf8] sm:$0xff]
        %s551 = scalar_lea.vmem [#allocation2], 24
        %vm552 = vcmask 523264
        %553 = vst.msk [vmem:[%s551 + $0x1] sm:$0xff] %vm552, %v519
        %554 = vst.msk [vmem:[%s551 + $0x9] sm:$0xff] %vm552, %v520
        %555 = vst.msk [vmem:[%s551 + $0x19] sm:$0xff] %vm552, %v521
        %556 = vst.msk [vmem:[%s551 + $0x21] sm:$0xff] %vm552, %v522
        %557 = vst.msk [vmem:[%s551 + $0x31] sm:$0xff] %vm552, %v523
        %558 = vst.msk [vmem:[%s551 + $0x39] sm:$0xff] %vm552, %v524
        %559 = vst.msk [vmem:[%s551 + $0x49] sm:$0xff] %vm552, %v525
        %560 = vst.msk [vmem:[%s551 + $0x51] sm:$0xff] %vm552, %v526
        %561 = vst.msk [vmem:[%s551 + $0x61] sm:$0xff] %vm552, %v527
        %562 = vst.msk [vmem:[%s551 + $0x69] sm:$0xff] %vm552, %v528
        %563 = vst.msk [vmem:[%s551 + $0x79] sm:$0xff] %vm552, %v529
        %564 = vst.msk [vmem:[%s551 + $0x81] sm:$0xff] %vm552, %v530
        %565 = vst.msk [vmem:[%s551 + $0x91] sm:$0xff] %vm552, %v531
        %566 = vst.msk [vmem:[%s551 + $0x99] sm:$0xff] %vm552, %v532
        %567 = vst.msk [vmem:[%s551 + $0xa9] sm:$0xff] %vm552, %v533
        %568 = vst.msk [vmem:[%s551 + $0xb1] sm:$0xff] %vm552, %v534
        %569 = vst.msk [vmem:[%s551 + $0xc1] sm:$0xff] %vm552, %v535
        %570 = vst.msk [vmem:[%s551 + $0xc9] sm:$0xff] %vm552, %v536
        %571 = vst.msk [vmem:[%s551 + $0xd9] sm:$0xff] %vm552, %v537
        %572 = vst.msk [vmem:[%s551 + $0xe1] sm:$0xff] %vm552, %v538
        %573 = vst.msk [vmem:[%s551 + $0xf1] sm:$0xff] %vm552, %v539
        %574 = vst.msk [vmem:[%s551 + $0xf9] sm:$0xff] %vm552, %v540
        %575 = vst.msk [vmem:[%s551 + $0x109] sm:$0xff] %vm552, %v541
        %576 = vst.msk [vmem:[%s551 + $0x111] sm:$0xff] %vm552, %v542
        %577 = vst.msk [vmem:[%s551 + $0x121] sm:$0xff] %vm552, %v543
        %578 = vst.msk [vmem:[%s551 + $0x129] sm:$0xff] %vm552, %v544
        %579 = vst.msk [vmem:[%s551 + $0x139] sm:$0xff] %vm552, %v545
        %580 = vst.msk [vmem:[%s551 + $0x141] sm:$0xff] %vm552, %v546
        %581 = vst.msk [vmem:[%s551 + $0x151] sm:$0xff] %vm552, %v547
        %582 = vst.msk [vmem:[%s551 + $0x159] sm:$0xff] %vm552, %v548
        %583 = vst.msk [vmem:[%s551 + $0x169] sm:$0xff] %vm552, %v549
        %584 = vst.msk [vmem:[%s551 + $0x171] sm:$0xff] %vm552, %v550
        %v585 = vld [vmem:[%s2] sm:$0xff]
        %v586 = vld [vmem:[%s2 + $0x8] sm:$0xff]
        %v587 = vld [vmem:[%s371] sm:$0xff]
        %v588 = vld [vmem:[%s371 + $0x8] sm:$0xff]
        %v589 = vld [vmem:[%s371 + $0x10] sm:$0xff]
        %v590 = vld [vmem:[%s371 + $0x18] sm:$0xff]
        %vm591 = vcmask 64512
        %v593 = vsel %vm591, %v585, 0
        %v596 = vsel %vm591, %v586, 0
        %598 = vmatprep.subr.mxu0 0.0
        %599 = vmatpush1.msra.mxu0 0.0
        %600 = vmatprep.subr.mxu0 0.0
        %601 = vmatpush1.msra.mxu0 0.0
        %602 = vmatprep.subr.mxu0 0.0
        %603 = vmatpush1.msra.mxu0 0.0
        %604 = vmatprep.subr.mxu0 0.0
        %605 = vmatpush1.msra.mxu0 0.0
        %606 = vmatprep.subr.mxu0 0.0
        %607 = vmatpush1.msra.mxu0 0.0
        %608 = vmatprep.subr.mxu0 0.0
        %609 = vmatpush1.msra.mxu0 0.0
        %610 = vmatprep.subr.mxu0 0.0
        %611 = vmatpush1.msra.mxu0 0.0
        %612 = vmatprep.subr.mxu0 0.0
        %613 = vmatpush1.msra.mxu0 0.0
        %614 = vmatprep.subr.mxu0 0.0
        %615 = vmatpush1.msra.mxu0 0.0
        %616 = vmatprep.subr.mxu0 0.0
        %617 = vmatpush1.msra.mxu0 0.0
        %618 = vmatprep.subr.mxu0 0.0
        %619 = vmatpush1.msra.mxu0 0.0
        %620 = vmatprep.subr.mxu0 0.0
        %621 = vmatpush1.msra.mxu0 0.0
        %622 = vmatprep.subr.mxu0 0.0
        %623 = vmatpush1.msra.mxu0 0.0
        %624 = vmatprep.subr.mxu0 0.0
        %625 = vmatpush1.msra.mxu0 0.0
        %626 = vmatprep.subr.mxu0 0.0
        %627 = vmatpush1.msra.mxu0 0.0
        %628 = vmatprep.subr.mxu0 %v588
        %629 = vmatpush1.msra.mxu0 %v587
        %630 = vmatprep.subr.mxu0 0.0
        %631 = vmatpush2.msra.mxu0 0.0
        %632 = vmatprep.subr.mxu0 0.0
        %633 = vmatpush2.msra.mxu0 0.0
        %634 = vmatprep.subr.mxu0 0.0
        %635 = vmatpush2.msra.mxu0 0.0
        %636 = vmatprep.subr.mxu0 0.0
        %637 = vmatpush2.msra.mxu0 0.0
        %638 = vmatprep.subr.mxu0 0.0
        %639 = vmatpush2.msra.mxu0 0.0
        %640 = vmatprep.subr.mxu0 0.0
        %641 = vmatpush2.msra.mxu0 0.0
        %642 = vmatprep.subr.mxu0 0.0
        %643 = vmatpush2.msra.mxu0 0.0
        %644 = vmatprep.subr.mxu0 0.0
        %645 = vmatpush2.msra.mxu0 0.0
        %646 = vmatprep.subr.mxu0 0.0
        %647 = vmatpush2.msra.mxu0 0.0
        %648 = vmatprep.subr.mxu0 0.0
        %649 = vmatpush2.msra.mxu0 0.0
        %650 = vmatprep.subr.mxu0 0.0
        %651 = vmatpush2.msra.mxu0 0.0
        %652 = vmatprep.subr.mxu0 0.0
        %653 = vmatpush2.msra.mxu0 0.0
        %654 = vmatprep.subr.mxu0 0.0
        %655 = vmatpush2.msra.mxu0 0.0
        %656 = vmatprep.subr.mxu0 0.0
        %657 = vmatpush2.msra.mxu0 0.0
        %658 = vmatprep.subr.mxu0 0.0
        %659 = vmatpush2.msra.mxu0 0.0
        %660 = vmatprep.subr.mxu0 0.0
        %661 = vmatpush2.msra.mxu0 0.0
        %662 = vmatprep.mubr.f32.mxu0 0.0
        %663 = vmatmul.mubr.f32.gmra.mxu0 %v593
        %v664 = vpop.f32.mrf.mxu0
        %v665 = vadd.f32 0.0, %v664
        %v666 = vpop.f32.mrf.mxu0
        %v667 = vadd.f32 0.0, %v666
        %668 = vmatprep.mubr.f32.mxu0 0.0
        %669 = vmatmul.mubr.f32.gmra.mxu0 %v596
        %v670 = vpop.f32.mrf.mxu0
        %v671 = vadd.f32 0.0, %v670
        %v672 = vpop.f32.mrf.mxu0
        %v673 = vadd.f32 0.0, %v672
        %674 = vdwg.mxu0
        %675 = vmatprep.subr.mxu0 0.0
        %676 = vmatpush1.msra.mxu0 0.0
        %677 = vmatprep.subr.mxu0 0.0
        %678 = vmatpush1.msra.mxu0 0.0
        %679 = vmatprep.subr.mxu0 0.0
        %680 = vmatpush1.msra.mxu0 0.0
        %681 = vmatprep.subr.mxu0 0.0
        %682 = vmatpush1.msra.mxu0 0.0
        %683 = vmatprep.subr.mxu0 0.0
        %684 = vmatpush1.msra.mxu0 0.0
        %685 = vmatprep.subr.mxu0 0.0
        %686 = vmatpush1.msra.mxu0 0.0
        %687 = vmatprep.subr.mxu0 0.0
        %688 = vmatpush1.msra.mxu0 0.0
        %689 = vmatprep.subr.mxu0 0.0
        %690 = vmatpush1.msra.mxu0 0.0
        %691 = vmatprep.subr.mxu0 0.0
        %692 = vmatpush1.msra.mxu0 0.0
        %693 = vmatprep.subr.mxu0 0.0
        %694 = vmatpush1.msra.mxu0 0.0
        %695 = vmatprep.subr.mxu0 0.0
        %696 = vmatpush1.msra.mxu0 0.0
        %697 = vmatprep.subr.mxu0 0.0
        %698 = vmatpush1.msra.mxu0 0.0
        %699 = vmatprep.subr.mxu0 0.0
        %700 = vmatpush1.msra.mxu0 0.0
        %701 = vmatprep.subr.mxu0 0.0
        %702 = vmatpush1.msra.mxu0 0.0
        %703 = vmatprep.subr.mxu0 0.0
        %704 = vmatpush1.msra.mxu0 0.0
        %705 = vmatprep.subr.mxu0 %v590
        %706 = vmatpush1.msra.mxu0 %v589
        %707 = vmatprep.subr.mxu0 0.0
        %708 = vmatpush2.msra.mxu0 0.0
        %709 = vmatprep.subr.mxu0 0.0
        %710 = vmatpush2.msra.mxu0 0.0
        %711 = vmatprep.subr.mxu0 0.0
        %712 = vmatpush2.msra.mxu0 0.0
        %713 = vmatprep.subr.mxu0 0.0
        %714 = vmatpush2.msra.mxu0 0.0
        %715 = vmatprep.subr.mxu0 0.0
        %716 = vmatpush2.msra.mxu0 0.0
        %717 = vmatprep.subr.mxu0 0.0
        %718 = vmatpush2.msra.mxu0 0.0
        %719 = vmatprep.subr.mxu0 0.0
        %720 = vmatpush2.msra.mxu0 0.0
        %721 = vmatprep.subr.mxu0 0.0
        %722 = vmatpush2.msra.mxu0 0.0
        %723 = vmatprep.subr.mxu0 0.0
        %724 = vmatpush2.msra.mxu0 0.0
        %725 = vmatprep.subr.mxu0 0.0
        %726 = vmatpush2.msra.mxu0 0.0
        %727 = vmatprep.subr.mxu0 0.0
        %728 = vmatpush2.msra.mxu0 0.0
        %729 = vmatprep.subr.mxu0 0.0
        %730 = vmatpush2.msra.mxu0 0.0
        %731 = vmatprep.subr.mxu0 0.0
        %732 = vmatpush2.msra.mxu0 0.0
        %733 = vmatprep.subr.mxu0 0.0
        %734 = vmatpush2.msra.mxu0 0.0
        %735 = vmatprep.subr.mxu0 0.0
        %736 = vmatpush2.msra.mxu0 0.0
        %737 = vmatprep.subr.mxu0 0.0
        %738 = vmatpush2.msra.mxu0 0.0
        %739 = vmatprep.mubr.f32.mxu0 0.0
        %740 = vmatmul.mubr.f32.gmra.mxu0 %v593
        %v741 = vpop.f32.mrf.mxu0
        %v742 = vadd.f32 0.0, %v741
        %v743 = vpop.f32.mrf.mxu0
        %v744 = vadd.f32 0.0, %v743
        %745 = vmatprep.mubr.f32.mxu0 0.0
        %746 = vmatmul.mubr.f32.gmra.mxu0 %v596
        %v747 = vpop.f32.mrf.mxu0
        %v748 = vadd.f32 0.0, %v747
        %v749 = vpop.f32.mrf.mxu0
        %v750 = vadd.f32 0.0, %v749
        %751 = vdwg.mxu0
        %v754 = vcombine.high %v665, %v665
        %v756 = vunpack.c.l.s4 1966171168
        %v757 = vunpack.c.0.s8 %v756
        %v758 = vlaneseq
        %v759 = vshrl.u32 %v758, 7
        %v760 = vsub.s32 %v757, %v759
        %v761 = vrot.slane %v665, %v760
        %v763 = vunpack.c.l.s4 1966171168
        %v764 = vunpack.c.0.s8 %v763
        %v765 = vlaneseq
        %v766 = vshrl.u32 %v765, 7
        %v767 = vsub.s32 %v764, %v766
        %v768 = vrot.slane %v754, %v767
        %v769 = vcombine.high %v761, %v761
        %v770 = vcombine.high %v768, %v768
        %v772 = vunpack.c.l.s4 1966171168
        %v773 = vunpack.c.0.s8 %v772
        %v774 = vlaneseq
        %v775 = vshrl.u32 %v774, 7
        %v776 = vsub.s32 %v773, %v775
        %v777 = vrot.slane %v761, %v776
        %v779 = vunpack.c.l.s4 1966171168
        %v780 = vunpack.c.0.s8 %v779
        %v781 = vlaneseq
        %v782 = vshrl.u32 %v781, 7
        %v783 = vsub.s32 %v780, %v782
        %v784 = vrot.slane %v768, %v783
        %v786 = vunpack.c.l.s4 1966171168
        %v787 = vunpack.c.0.s8 %v786
        %v788 = vlaneseq
        %v789 = vshrl.u32 %v788, 7
        %v790 = vsub.s32 %v787, %v789
        %v791 = vrot.slane %v769, %v790
        %v793 = vunpack.c.l.s4 1966171168
        %v794 = vunpack.c.0.s8 %v793
        %v795 = vlaneseq
        %v796 = vshrl.u32 %v795, 7
        %v797 = vsub.s32 %v794, %v796
        %v798 = vrot.slane %v770, %v797
        %v799 = vcombine.high %v777, %v777
        %v800 = vcombine.high %v784, %v784
        %v801 = vcombine.high %v791, %v791
        %v802 = vcombine.high %v798, %v798
        %v803 = vcombine.high %v671, %v671
        %v805 = vunpack.c.l.s4 1966171168
        %v806 = vunpack.c.0.s8 %v805
        %v807 = vlaneseq
        %v808 = vshrl.u32 %v807, 7
        %v809 = vsub.s32 %v806, %v808
        %v810 = vrot.slane %v671, %v809
        %v812 = vunpack.c.l.s4 1966171168
        %v813 = vunpack.c.0.s8 %v812
        %v814 = vlaneseq
        %v815 = vshrl.u32 %v814, 7
        %v816 = vsub.s32 %v813, %v815
        %v817 = vrot.slane %v803, %v816
        %v818 = vcombine.high %v810, %v810
        %v819 = vcombine.high %v817, %v817
        %v821 = vunpack.c.l.s4 1966171168
        %v822 = vunpack.c.0.s8 %v821
        %v823 = vlaneseq
        %v824 = vshrl.u32 %v823, 7
        %v825 = vsub.s32 %v822, %v824
        %v826 = vrot.slane %v810, %v825
        %v828 = vunpack.c.l.s4 1966171168
        %v829 = vunpack.c.0.s8 %v828
        %v830 = vlaneseq
        %v831 = vshrl.u32 %v830, 7
        %v832 = vsub.s32 %v829, %v831
        %v833 = vrot.slane %v817, %v832
        %v835 = vunpack.c.l.s4 1966171168
        %v836 = vunpack.c.0.s8 %v835
        %v837 = vlaneseq
        %v838 = vshrl.u32 %v837, 7
        %v839 = vsub.s32 %v836, %v838
        %v840 = vrot.slane %v818, %v839
        %v842 = vunpack.c.l.s4 1966171168
        %v843 = vunpack.c.0.s8 %v842
        %v844 = vlaneseq
        %v845 = vshrl.u32 %v844, 7
        %v846 = vsub.s32 %v843, %v845
        %v847 = vrot.slane %v819, %v846
        %v848 = vcombine.high %v826, %v826
        %v849 = vcombine.high %v833, %v833
        %v850 = vcombine.high %v840, %v840
        %v851 = vcombine.high %v847, %v847
        %v852 = vlaneseq
        %v853 = vshrl.u32 %v852, 7
        %v854 = vsub.s32 0, %v853
        %v855 = vrot.slane %v777, %v854
        %v856 = vlaneseq
        %v857 = vshrl.u32 %v856, 7
        %v858 = vsub.s32 0, %v857
        %v859 = vrot.slane %v791, %v858
        %v860 = vlaneseq
        %v861 = vshrl.u32 %v860, 7
        %v862 = vsub.s32 0, %v861
        %v863 = vrot.slane %v799, %v862
        %v864 = vlaneseq
        %v865 = vshrl.u32 %v864, 7
        %v866 = vsub.s32 0, %v865
        %v867 = vrot.slane %v801, %v866
        %v868 = vlaneseq
        %v869 = vshrl.u32 %v868, 7
        %v870 = vsub.s32 0, %v869
        %v871 = vrot.slane %v784, %v870
        %v872 = vlaneseq
        %v873 = vshrl.u32 %v872, 7
        %v874 = vsub.s32 0, %v873
        %v875 = vrot.slane %v798, %v874
        %v876 = vlaneseq
        %v877 = vshrl.u32 %v876, 7
        %v878 = vsub.s32 0, %v877
        %v879 = vrot.slane %v800, %v878
        %v880 = vlaneseq
        %v881 = vshrl.u32 %v880, 7
        %v882 = vsub.s32 0, %v881
        %v883 = vrot.slane %v802, %v882
        %v884 = vlaneseq
        %v885 = vshrl.u32 %v884, 7
        %v886 = vsub.s32 0, %v885
        %v887 = vrot.slane %v826, %v886
        %v888 = vlaneseq
        %v889 = vshrl.u32 %v888, 7
        %v890 = vsub.s32 0, %v889
        %v891 = vrot.slane %v840, %v890
        %v892 = vlaneseq
        %v893 = vshrl.u32 %v892, 7
        %v894 = vsub.s32 0, %v893
        %v895 = vrot.slane %v848, %v894
        %v896 = vlaneseq
        %v897 = vshrl.u32 %v896, 7
        %v898 = vsub.s32 0, %v897
        %v899 = vrot.slane %v850, %v898
        %v900 = vlaneseq
        %v901 = vshrl.u32 %v900, 7
        %v902 = vsub.s32 0, %v901
        %v903 = vrot.slane %v833, %v902
        %v904 = vlaneseq
        %v905 = vshrl.u32 %v904, 7
        %v906 = vsub.s32 0, %v905
        %v907 = vrot.slane %v847, %v906
        %v908 = vlaneseq
        %v909 = vshrl.u32 %v908, 7
        %v910 = vsub.s32 0, %v909
        %v911 = vrot.slane %v849, %v910
        %v912 = vlaneseq
        %v913 = vshrl.u32 %v912, 7
        %v914 = vsub.s32 0, %v913
        %v915 = vrot.slane %v851, %v914
        %916 = vrot.lane.b32.xlu0 %v855, 64
        %v917 = vpop.permute.xlu0 %916
        %918 = vrot.lane.b32.xlu0 %v859, 64
        %v919 = vpop.permute.xlu0 %918
        %920 = vrot.lane.b32.xlu0 %v863, 64
        %v921 = vpop.permute.xlu0 %920
        %922 = vrot.lane.b32.xlu0 %v867, 64
        %v923 = vpop.permute.xlu0 %922
        %924 = vrot.lane.b32.xlu0 %v871, 64
        %v925 = vpop.permute.xlu0 %924
        %926 = vrot.lane.b32.xlu0 %v875, 64
        %v927 = vpop.permute.xlu0 %926
        %928 = vrot.lane.b32.xlu0 %v879, 64
        %v929 = vpop.permute.xlu0 %928
        %930 = vrot.lane.b32.xlu0 %v883, 64
        %v931 = vpop.permute.xlu0 %930
        %932 = vrot.lane.b32.xlu0 %v887, 64
        %v933 = vpop.permute.xlu0 %932
        %934 = vrot.lane.b32.xlu0 %v891, 64
        %v935 = vpop.permute.xlu0 %934
        %936 = vrot.lane.b32.xlu0 %v895, 64
        %v937 = vpop.permute.xlu0 %936
        %938 = vrot.lane.b32.xlu0 %v899, 64
        %v939 = vpop.permute.xlu0 %938
        %940 = vrot.lane.b32.xlu0 %v903, 64
        %v941 = vpop.permute.xlu0 %940
        %942 = vrot.lane.b32.xlu0 %v907, 64
        %v943 = vpop.permute.xlu0 %942
        %944 = vrot.lane.b32.xlu0 %v911, 64
        %v945 = vpop.permute.xlu0 %944
        %946 = vrot.lane.b32.xlu0 %v915, 64
        %v947 = vpop.permute.xlu0 %946
        %vm964 = vcmask 1040896
        %965 = vst.msk [vmem:[%s551 + $0x1] sm:$0x1] %vm964, %v917
        %966 = vst.msk [vmem:[%s551 + $0x19] sm:$0x1] %vm964, %v919
        %967 = vst.msk [vmem:[%s551 + $0x31] sm:$0x1] %vm964, %v921
        %968 = vst.msk [vmem:[%s551 + $0x49] sm:$0x1] %vm964, %v923
        %969 = vst.msk [vmem:[%s551 + $0x61] sm:$0x1] %vm964, %v925
        %970 = vst.msk [vmem:[%s551 + $0x79] sm:$0x1] %vm964, %v927
        %971 = vst.msk [vmem:[%s551 + $0x91] sm:$0x1] %vm964, %v929
        %972 = vst.msk [vmem:[%s551 + $0xa9] sm:$0x1] %vm964, %v931
        %973 = vst.msk [vmem:[%s551 + $0xc1] sm:$0x1] %vm964, %v933
        %974 = vst.msk [vmem:[%s551 + $0xd9] sm:$0x1] %vm964, %v935
        %975 = vst.msk [vmem:[%s551 + $0xf1] sm:$0x1] %vm964, %v937
        %976 = vst.msk [vmem:[%s551 + $0x109] sm:$0x1] %vm964, %v939
        %977 = vst.msk [vmem:[%s551 + $0x121] sm:$0x1] %vm964, %v941
        %978 = vst.msk [vmem:[%s551 + $0x139] sm:$0x1] %vm964, %v943
        %979 = vst.msk [vmem:[%s551 + $0x151] sm:$0x1] %vm964, %v945
        %980 = vst.msk [vmem:[%s551 + $0x169] sm:$0x1] %vm964, %v947
        %v981 = vmul.f32 %v665, 0.53333336
        %v982 = vmul.f32 %v671, 0.53333336
        %v983 = vmul.f32 %v665, 0.46666667
        %v984 = vmul.f32 %v671, 0.46666667
        %987 = vrot.lane.b32.xlu0 %v983, 64
        %v988 = vpop.permute.xlu0 %987
        %989 = vrot.lane.b32.xlu0 %v984, 64
        %v990 = vpop.permute.xlu0 %989
        %v993 = vadd.f32 %v981, %v988
        %v994 = vadd.f32 %v982, %v990
        %v997 = vcombine.high %v993, %v993
        %v999 = vunpack.c.l.s4 1966171168
        %v1000 = vunpack.c.0.s8 %v999
        %v1001 = vlaneseq
        %v1002 = vshrl.u32 %v1001, 7
        %v1003 = vsub.s32 %v1000, %v1002
        %v1004 = vrot.slane %v993, %v1003
        %v1006 = vunpack.c.l.s4 1966171168
        %v1007 = vunpack.c.0.s8 %v1006
        %v1008 = vlaneseq
        %v1009 = vshrl.u32 %v1008, 7
        %v1010 = vsub.s32 %v1007, %v1009
        %v1011 = vrot.slane %v997, %v1010
        %v1012 = vcombine.high %v1004, %v1004
        %v1013 = vcombine.high %v1011, %v1011
        %v1015 = vunpack.c.l.s4 1966171168
        %v1016 = vunpack.c.0.s8 %v1015
        %v1017 = vlaneseq
        %v1018 = vshrl.u32 %v1017, 7
        %v1019 = vsub.s32 %v1016, %v1018
        %v1020 = vrot.slane %v1004, %v1019
        %v1022 = vunpack.c.l.s4 1966171168
        %v1023 = vunpack.c.0.s8 %v1022
        %v1024 = vlaneseq
        %v1025 = vshrl.u32 %v1024, 7
        %v1026 = vsub.s32 %v1023, %v1025
        %v1027 = vrot.slane %v1011, %v1026
        %v1029 = vunpack.c.l.s4 1966171168
        %v1030 = vunpack.c.0.s8 %v1029
        %v1031 = vlaneseq
        %v1032 = vshrl.u32 %v1031, 7
        %v1033 = vsub.s32 %v1030, %v1032
        %v1034 = vrot.slane %v1012, %v1033
        %v1036 = vunpack.c.l.s4 1966171168
        %v1037 = vunpack.c.0.s8 %v1036
        %v1038 = vlaneseq
        %v1039 = vshrl.u32 %v1038, 7
        %v1040 = vsub.s32 %v1037, %v1039
        %v1041 = vrot.slane %v1013, %v1040
        %v1042 = vcombine.high %v1020, %v1020
        %v1043 = vcombine.high %v1027, %v1027
        %v1044 = vcombine.high %v1034, %v1034
        %v1045 = vcombine.high %v1041, %v1041
        %v1046 = vcombine.high %v994, %v994
        %v1048 = vunpack.c.l.s4 1966171168
        %v1049 = vunpack.c.0.s8 %v1048
        %v1050 = vlaneseq
        %v1051 = vshrl.u32 %v1050, 7
        %v1052 = vsub.s32 %v1049, %v1051
        %v1053 = vrot.slane %v994, %v1052
        %v1055 = vunpack.c.l.s4 1966171168
        %v1056 = vunpack.c.0.s8 %v1055
        %v1057 = vlaneseq
        %v1058 = vshrl.u32 %v1057, 7
        %v1059 = vsub.s32 %v1056, %v1058
        %v1060 = vrot.slane %v1046, %v1059
        %v1061 = vcombine.high %v1053, %v1053
        %v1062 = vcombine.high %v1060, %v1060
        %v1064 = vunpack.c.l.s4 1966171168
        %v1065 = vunpack.c.0.s8 %v1064
        %v1066 = vlaneseq
        %v1067 = vshrl.u32 %v1066, 7
        %v1068 = vsub.s32 %v1065, %v1067
        %v1069 = vrot.slane %v1053, %v1068
        %v1071 = vunpack.c.l.s4 1966171168
        %v1072 = vunpack.c.0.s8 %v1071
        %v1073 = vlaneseq
        %v1074 = vshrl.u32 %v1073, 7
        %v1075 = vsub.s32 %v1072, %v1074
        %v1076 = vrot.slane %v1060, %v1075
        %v1078 = vunpack.c.l.s4 1966171168
        %v1079 = vunpack.c.0.s8 %v1078
        %v1080 = vlaneseq
        %v1081 = vshrl.u32 %v1080, 7
        %v1082 = vsub.s32 %v1079, %v1081
        %v1083 = vrot.slane %v1061, %v1082
        %v1085 = vunpack.c.l.s4 1966171168
        %v1086 = vunpack.c.0.s8 %v1085
        %v1087 = vlaneseq
        %v1088 = vshrl.u32 %v1087, 7
        %v1089 = vsub.s32 %v1086, %v1088
        %v1090 = vrot.slane %v1062, %v1089
        %v1091 = vcombine.high %v1069, %v1069
        %v1092 = vcombine.high %v1076, %v1076
        %v1093 = vcombine.high %v1083, %v1083
        %v1094 = vcombine.high %v1090, %v1090
        %v1095 = vlaneseq
        %v1096 = vshrl.u32 %v1095, 7
        %v1097 = vsub.s32 0, %v1096
        %v1098 = vrot.slane %v1020, %v1097
        %v1099 = vlaneseq
        %v1100 = vshrl.u32 %v1099, 7
        %v1101 = vsub.s32 0, %v1100
        %v1102 = vrot.slane %v1034, %v1101
        %v1103 = vlaneseq
        %v1104 = vshrl.u32 %v1103, 7
        %v1105 = vsub.s32 0, %v1104
        %v1106 = vrot.slane %v1042, %v1105
        %v1107 = vlaneseq
        %v1108 = vshrl.u32 %v1107, 7
        %v1109 = vsub.s32 0, %v1108
        %v1110 = vrot.slane %v1044, %v1109
        %v1111 = vlaneseq
        %v1112 = vshrl.u32 %v1111, 7
        %v1113 = vsub.s32 0, %v1112
        %v1114 = vrot.slane %v1027, %v1113
        %v1115 = vlaneseq
        %v1116 = vshrl.u32 %v1115, 7
        %v1117 = vsub.s32 0, %v1116
        %v1118 = vrot.slane %v1041, %v1117
        %v1119 = vlaneseq
        %v1120 = vshrl.u32 %v1119, 7
        %v1121 = vsub.s32 0, %v1120
        %v1122 = vrot.slane %v1043, %v1121
        %v1123 = vlaneseq
        %v1124 = vshrl.u32 %v1123, 7
        %v1125 = vsub.s32 0, %v1124
        %v1126 = vrot.slane %v1045, %v1125
        %v1127 = vlaneseq
        %v1128 = vshrl.u32 %v1127, 7
        %v1129 = vsub.s32 0, %v1128
        %v1130 = vrot.slane %v1069, %v1129
        %v1131 = vlaneseq
        %v1132 = vshrl.u32 %v1131, 7
        %v1133 = vsub.s32 0, %v1132
        %v1134 = vrot.slane %v1083, %v1133
        %v1135 = vlaneseq
        %v1136 = vshrl.u32 %v1135, 7
        %v1137 = vsub.s32 0, %v1136
        %v1138 = vrot.slane %v1091, %v1137
        %v1139 = vlaneseq
        %v1140 = vshrl.u32 %v1139, 7
        %v1141 = vsub.s32 0, %v1140
        %v1142 = vrot.slane %v1093, %v1141
        %v1143 = vlaneseq
        %v1144 = vshrl.u32 %v1143, 7
        %v1145 = vsub.s32 0, %v1144
        %v1146 = vrot.slane %v1076, %v1145
        %v1147 = vlaneseq
        %v1148 = vshrl.u32 %v1147, 7
        %v1149 = vsub.s32 0, %v1148
        %v1150 = vrot.slane %v1090, %v1149
        %v1151 = vlaneseq
        %v1152 = vshrl.u32 %v1151, 7
        %v1153 = vsub.s32 0, %v1152
        %v1154 = vrot.slane %v1092, %v1153
        %v1155 = vlaneseq
        %v1156 = vshrl.u32 %v1155, 7
        %v1157 = vsub.s32 0, %v1156
        %v1158 = vrot.slane %v1094, %v1157
        %1159 = vrot.lane.b32.xlu0 %v1098, 64
        %v1160 = vpop.permute.xlu0 %1159
        %1161 = vrot.lane.b32.xlu0 %v1102, 64
        %v1162 = vpop.permute.xlu0 %1161
        %1163 = vrot.lane.b32.xlu0 %v1106, 64
        %v1164 = vpop.permute.xlu0 %1163
        %1165 = vrot.lane.b32.xlu0 %v1110, 64
        %v1166 = vpop.permute.xlu0 %1165
        %1167 = vrot.lane.b32.xlu0 %v1114, 64
        %v1168 = vpop.permute.xlu0 %1167
        %1169 = vrot.lane.b32.xlu0 %v1118, 64
        %v1170 = vpop.permute.xlu0 %1169
        %1171 = vrot.lane.b32.xlu0 %v1122, 64
        %v1172 = vpop.permute.xlu0 %1171
        %1173 = vrot.lane.b32.xlu0 %v1126, 64
        %v1174 = vpop.permute.xlu0 %1173
        %1175 = vrot.lane.b32.xlu0 %v1130, 64
        %v1176 = vpop.permute.xlu0 %1175
        %1177 = vrot.lane.b32.xlu0 %v1134, 64
        %v1178 = vpop.permute.xlu0 %1177
        %1179 = vrot.lane.b32.xlu0 %v1138, 64
        %v1180 = vpop.permute.xlu0 %1179
        %1181 = vrot.lane.b32.xlu0 %v1142, 64
        %v1182 = vpop.permute.xlu0 %1181
        %1183 = vrot.lane.b32.xlu0 %v1146, 64
        %v1184 = vpop.permute.xlu0 %1183
        %1185 = vrot.lane.b32.xlu0 %v1150, 64
        %v1186 = vpop.permute.xlu0 %1185
        %1187 = vrot.lane.b32.xlu0 %v1154, 64
        %v1188 = vpop.permute.xlu0 %1187
        %1189 = vrot.lane.b32.xlu0 %v1158, 64
        %v1190 = vpop.permute.xlu0 %1189
        %1207 = vst.msk [vmem:[%s551 + $0x2] sm:$0x1] %vm964, %v1160
        %1208 = vst.msk [vmem:[%s551 + $0x1a] sm:$0x1] %vm964, %v1162
        %1209 = vst.msk [vmem:[%s551 + $0x32] sm:$0x1] %vm964, %v1164
        %1210 = vst.msk [vmem:[%s551 + $0x4a] sm:$0x1] %vm964, %v1166
        %1211 = vst.msk [vmem:[%s551 + $0x62] sm:$0x1] %vm964, %v1168
        %1212 = vst.msk [vmem:[%s551 + $0x7a] sm:$0x1] %vm964, %v1170
        %1213 = vst.msk [vmem:[%s551 + $0x92] sm:$0x1] %vm964, %v1172
        %1214 = vst.msk [vmem:[%s551 + $0xaa] sm:$0x1] %vm964, %v1174
        %1215 = vst.msk [vmem:[%s551 + $0xc2] sm:$0x1] %vm964, %v1176
        %1216 = vst.msk [vmem:[%s551 + $0xda] sm:$0x1] %vm964, %v1178
        %1217 = vst.msk [vmem:[%s551 + $0xf2] sm:$0x1] %vm964, %v1180
        %1218 = vst.msk [vmem:[%s551 + $0x10a] sm:$0x1] %vm964, %v1182
        %1219 = vst.msk [vmem:[%s551 + $0x122] sm:$0x1] %vm964, %v1184
        %1220 = vst.msk [vmem:[%s551 + $0x13a] sm:$0x1] %vm964, %v1186
        %1221 = vst.msk [vmem:[%s551 + $0x152] sm:$0x1] %vm964, %v1188
        %1222 = vst.msk [vmem:[%s551 + $0x16a] sm:$0x1] %vm964, %v1190
        %v1223 = vmul.f32 %v665, 0.06666667
        %v1224 = vmul.f32 %v671, 0.06666667
        %v1225 = vmul.f32 %v665, 0.93333334
        %v1226 = vmul.f32 %v671, 0.93333334
        %1229 = vrot.lane.b32.xlu0 %v1225, 64
        %v1230 = vpop.permute.xlu0 %1229
        %1231 = vrot.lane.b32.xlu0 %v1226, 64
        %v1232 = vpop.permute.xlu0 %1231
        %v1235 = vadd.f32 %v1223, %v1230
        %v1236 = vadd.f32 %v1224, %v1232
        %v1239 = vcombine.high %v1235, %v1235
        %v1241 = vunpack.c.l.s4 1966171168
        %v1242 = vunpack.c.0.s8 %v1241
        %v1243 = vlaneseq
        %v1244 = vshrl.u32 %v1243, 7
        %v1245 = vsub.s32 %v1242, %v1244
        %v1246 = vrot.slane %v1235, %v1245
        %v1248 = vunpack.c.l.s4 1966171168
        %v1249 = vunpack.c.0.s8 %v1248
        %v1250 = vlaneseq
        %v1251 = vshrl.u32 %v1250, 7
        %v1252 = vsub.s32 %v1249, %v1251
        %v1253 = vrot.slane %v1239, %v1252
        %v1254 = vcombine.high %v1246, %v1246
        %v1255 = vcombine.high %v1253, %v1253
        %v1257 = vunpack.c.l.s4 1966171168
        %v1258 = vunpack.c.0.s8 %v1257
        %v1259 = vlaneseq
        %v1260 = vshrl.u32 %v1259, 7
        %v1261 = vsub.s32 %v1258, %v1260
        %v1262 = vrot.slane %v1246, %v1261
        %v1264 = vunpack.c.l.s4 1966171168
        %v1265 = vunpack.c.0.s8 %v1264
        %v1266 = vlaneseq
        %v1267 = vshrl.u32 %v1266, 7
        %v1268 = vsub.s32 %v1265, %v1267
        %v1269 = vrot.slane %v1253, %v1268
        %v1271 = vunpack.c.l.s4 1966171168
        %v1272 = vunpack.c.0.s8 %v1271
        %v1273 = vlaneseq
        %v1274 = vshrl.u32 %v1273, 7
        %v1275 = vsub.s32 %v1272, %v1274
        %v1276 = vrot.slane %v1254, %v1275
        %v1278 = vunpack.c.l.s4 1966171168
        %v1279 = vunpack.c.0.s8 %v1278
        %v1280 = vlaneseq
        %v1281 = vshrl.u32 %v1280, 7
        %v1282 = vsub.s32 %v1279, %v1281
        %v1283 = vrot.slane %v1255, %v1282
        %v1284 = vcombine.high %v1262, %v1262
        %v1285 = vcombine.high %v1269, %v1269
        %v1286 = vcombine.high %v1276, %v1276
        %v1287 = vcombine.high %v1283, %v1283
        %v1288 = vcombine.high %v1236, %v1236
        %v1290 = vunpack.c.l.s4 1966171168
        %v1291 = vunpack.c.0.s8 %v1290
        %v1292 = vlaneseq
        %v1293 = vshrl.u32 %v1292, 7
        %v1294 = vsub.s32 %v1291, %v1293
        %v1295 = vrot.slane %v1236, %v1294
        %v1297 = vunpack.c.l.s4 1966171168
        %v1298 = vunpack.c.0.s8 %v1297
        %v1299 = vlaneseq
        %v1300 = vshrl.u32 %v1299, 7
        %v1301 = vsub.s32 %v1298, %v1300
        %v1302 = vrot.slane %v1288, %v1301
        %v1303 = vcombine.high %v1295, %v1295
        %v1304 = vcombine.high %v1302, %v1302
        %v1306 = vunpack.c.l.s4 1966171168
        %v1307 = vunpack.c.0.s8 %v1306
        %v1308 = vlaneseq
        %v1309 = vshrl.u32 %v1308, 7
        %v1310 = vsub.s32 %v1307, %v1309
        %v1311 = vrot.slane %v1295, %v1310
        %v1313 = vunpack.c.l.s4 1966171168
        %v1314 = vunpack.c.0.s8 %v1313
        %v1315 = vlaneseq
        %v1316 = vshrl.u32 %v1315, 7
        %v1317 = vsub.s32 %v1314, %v1316
        %v1318 = vrot.slane %v1302, %v1317
        %v1320 = vunpack.c.l.s4 1966171168
        %v1321 = vunpack.c.0.s8 %v1320
        %v1322 = vlaneseq
        %v1323 = vshrl.u32 %v1322, 7
        %v1324 = vsub.s32 %v1321, %v1323
        %v1325 = vrot.slane %v1303, %v1324
        %v1327 = vunpack.c.l.s4 1966171168
        %v1328 = vunpack.c.0.s8 %v1327
        %v1329 = vlaneseq
        %v1330 = vshrl.u32 %v1329, 7
        %v1331 = vsub.s32 %v1328, %v1330
        %v1332 = vrot.slane %v1304, %v1331
        %v1333 = vcombine.high %v1311, %v1311
        %v1334 = vcombine.high %v1318, %v1318
        %v1335 = vcombine.high %v1325, %v1325
        %v1336 = vcombine.high %v1332, %v1332
        %v1337 = vlaneseq
        %v1338 = vshrl.u32 %v1337, 7
        %v1339 = vsub.s32 0, %v1338
        %v1340 = vrot.slane %v1262, %v1339
        %v1341 = vlaneseq
        %v1342 = vshrl.u32 %v1341, 7
        %v1343 = vsub.s32 0, %v1342
        %v1344 = vrot.slane %v1276, %v1343
        %v1345 = vlaneseq
        %v1346 = vshrl.u32 %v1345, 7
        %v1347 = vsub.s32 0, %v1346
        %v1348 = vrot.slane %v1284, %v1347
        %v1349 = vlaneseq
        %v1350 = vshrl.u32 %v1349, 7
        %v1351 = vsub.s32 0, %v1350
        %v1352 = vrot.slane %v1286, %v1351
        %v1353 = vlaneseq
        %v1354 = vshrl.u32 %v1353, 7
        %v1355 = vsub.s32 0, %v1354
        %v1356 = vrot.slane %v1269, %v1355
        %v1357 = vlaneseq
        %v1358 = vshrl.u32 %v1357, 7
        %v1359 = vsub.s32 0, %v1358
        %v1360 = vrot.slane %v1283, %v1359
        %v1361 = vlaneseq
        %v1362 = vshrl.u32 %v1361, 7
        %v1363 = vsub.s32 0, %v1362
        %v1364 = vrot.slane %v1285, %v1363
        %v1365 = vlaneseq
        %v1366 = vshrl.u32 %v1365, 7
        %v1367 = vsub.s32 0, %v1366
        %v1368 = vrot.slane %v1287, %v1367
        %v1369 = vlaneseq
        %v1370 = vshrl.u32 %v1369, 7
        %v1371 = vsub.s32 0, %v1370
        %v1372 = vrot.slane %v1311, %v1371
        %v1373 = vlaneseq
        %v1374 = vshrl.u32 %v1373, 7
        %v1375 = vsub.s32 0, %v1374
        %v1376 = vrot.slane %v1325, %v1375
        %v1377 = vlaneseq
        %v1378 = vshrl.u32 %v1377, 7
        %v1379 = vsub.s32 0, %v1378
        %v1380 = vrot.slane %v1333, %v1379
        %v1381 = vlaneseq
        %v1382 = vshrl.u32 %v1381, 7
        %v1383 = vsub.s32 0, %v1382
        %v1384 = vrot.slane %v1335, %v1383
        %v1385 = vlaneseq
        %v1386 = vshrl.u32 %v1385, 7
        %v1387 = vsub.s32 0, %v1386
        %v1388 = vrot.slane %v1318, %v1387
        %v1389 = vlaneseq
        %v1390 = vshrl.u32 %v1389, 7
        %v1391 = vsub.s32 0, %v1390
        %v1392 = vrot.slane %v1332, %v1391
        %v1393 = vlaneseq
        %v1394 = vshrl.u32 %v1393, 7
        %v1395 = vsub.s32 0, %v1394
        %v1396 = vrot.slane %v1334, %v1395
        %v1397 = vlaneseq
        %v1398 = vshrl.u32 %v1397, 7
        %v1399 = vsub.s32 0, %v1398
        %v1400 = vrot.slane %v1336, %v1399
        %1401 = vrot.lane.b32.xlu0 %v1340, 64
        %v1402 = vpop.permute.xlu0 %1401
        %1403 = vrot.lane.b32.xlu0 %v1344, 64
        %v1404 = vpop.permute.xlu0 %1403
        %1405 = vrot.lane.b32.xlu0 %v1348, 64
        %v1406 = vpop.permute.xlu0 %1405
        %1407 = vrot.lane.b32.xlu0 %v1352, 64
        %v1408 = vpop.permute.xlu0 %1407
        %1409 = vrot.lane.b32.xlu0 %v1356, 64
        %v1410 = vpop.permute.xlu0 %1409
        %1411 = vrot.lane.b32.xlu0 %v1360, 64
        %v1412 = vpop.permute.xlu0 %1411
        %1413 = vrot.lane.b32.xlu0 %v1364, 64
        %v1414 = vpop.permute.xlu0 %1413
        %1415 = vrot.lane.b32.xlu0 %v1368, 64
        %v1416 = vpop.permute.xlu0 %1415
        %1417 = vrot.lane.b32.xlu0 %v1372, 64
        %v1418 = vpop.permute.xlu0 %1417
        %1419 = vrot.lane.b32.xlu0 %v1376, 64
        %v1420 = vpop.permute.xlu0 %1419
        %1421 = vrot.lane.b32.xlu0 %v1380, 64
        %v1422 = vpop.permute.xlu0 %1421
        %1423 = vrot.lane.b32.xlu0 %v1384, 64
        %v1424 = vpop.permute.xlu0 %1423
        %1425 = vrot.lane.b32.xlu0 %v1388, 64
        %v1426 = vpop.permute.xlu0 %1425
        %1427 = vrot.lane.b32.xlu0 %v1392, 64
        %v1428 = vpop.permute.xlu0 %1427
        %1429 = vrot.lane.b32.xlu0 %v1396, 64
        %v1430 = vpop.permute.xlu0 %1429
        %1431 = vrot.lane.b32.xlu0 %v1400, 64
        %v1432 = vpop.permute.xlu0 %1431
        %1449 = vst.msk [vmem:[%s551 + $0x3] sm:$0x1] %vm964, %v1402
        %1450 = vst.msk [vmem:[%s551 + $0x1b] sm:$0x1] %vm964, %v1404
        %1451 = vst.msk [vmem:[%s551 + $0x33] sm:$0x1] %vm964, %v1406
        %1452 = vst.msk [vmem:[%s551 + $0x4b] sm:$0x1] %vm964, %v1408
        %1453 = vst.msk [vmem:[%s551 + $0x63] sm:$0x1] %vm964, %v1410
        %1454 = vst.msk [vmem:[%s551 + $0x7b] sm:$0x1] %vm964, %v1412
        %1455 = vst.msk [vmem:[%s551 + $0x93] sm:$0x1] %vm964, %v1414
        %1456 = vst.msk [vmem:[%s551 + $0xab] sm:$0x1] %vm964, %v1416
        %1457 = vst.msk [vmem:[%s551 + $0xc3] sm:$0x1] %vm964, %v1418
        %1458 = vst.msk [vmem:[%s551 + $0xdb] sm:$0x1] %vm964, %v1420
        %1459 = vst.msk [vmem:[%s551 + $0xf3] sm:$0x1] %vm964, %v1422
        %1460 = vst.msk [vmem:[%s551 + $0x10b] sm:$0x1] %vm964, %v1424
        %1461 = vst.msk [vmem:[%s551 + $0x123] sm:$0x1] %vm964, %v1426
        %1462 = vst.msk [vmem:[%s551 + $0x13b] sm:$0x1] %vm964, %v1428
        %1463 = vst.msk [vmem:[%s551 + $0x153] sm:$0x1] %vm964, %v1430
        %1464 = vst.msk [vmem:[%s551 + $0x16b] sm:$0x1] %vm964, %v1432
        %v1465 = vmul.f32 %v665, 0.6
        %v1466 = vmul.f32 %v671, 0.6
        %v1467 = vmul.f32 %v667, 0.4
        %v1468 = vmul.f32 %v673, 0.4
        %1471 = vrot.lane.b32.xlu0 %v1467, 64
        %v1472 = vpop.permute.xlu0 %1471
        %1473 = vrot.lane.b32.xlu0 %v1468, 64
        %v1474 = vpop.permute.xlu0 %1473
        %v1477 = vadd.f32 %v1465, %v1472
        %v1478 = vadd.f32 %v1466, %v1474
        %v1481 = vcombine.high %v1477, %v1477
        %v1483 = vunpack.c.l.s4 1966171168
        %v1484 = vunpack.c.0.s8 %v1483
        %v1485 = vlaneseq
        %v1486 = vshrl.u32 %v1485, 7
        %v1487 = vsub.s32 %v1484, %v1486
        %v1488 = vrot.slane %v1477, %v1487
        %v1490 = vunpack.c.l.s4 1966171168
        %v1491 = vunpack.c.0.s8 %v1490
        %v1492 = vlaneseq
        %v1493 = vshrl.u32 %v1492, 7
        %v1494 = vsub.s32 %v1491, %v1493
        %v1495 = vrot.slane %v1481, %v1494
        %v1496 = vcombine.high %v1488, %v1488
        %v1497 = vcombine.high %v1495, %v1495
        %v1499 = vunpack.c.l.s4 1966171168
        %v1500 = vunpack.c.0.s8 %v1499
        %v1501 = vlaneseq
        %v1502 = vshrl.u32 %v1501, 7
        %v1503 = vsub.s32 %v1500, %v1502
        %v1504 = vrot.slane %v1488, %v1503
        %v1506 = vunpack.c.l.s4 1966171168
        %v1507 = vunpack.c.0.s8 %v1506
        %v1508 = vlaneseq
        %v1509 = vshrl.u32 %v1508, 7
        %v1510 = vsub.s32 %v1507, %v1509
        %v1511 = vrot.slane %v1495, %v1510
        %v1513 = vunpack.c.l.s4 1966171168
        %v1514 = vunpack.c.0.s8 %v1513
        %v1515 = vlaneseq
        %v1516 = vshrl.u32 %v1515, 7
        %v1517 = vsub.s32 %v1514, %v1516
        %v1518 = vrot.slane %v1496, %v1517
        %v1520 = vunpack.c.l.s4 1966171168
        %v1521 = vunpack.c.0.s8 %v1520
        %v1522 = vlaneseq
        %v1523 = vshrl.u32 %v1522, 7
        %v1524 = vsub.s32 %v1521, %v1523
        %v1525 = vrot.slane %v1497, %v1524
        %v1526 = vcombine.high %v1504, %v1504
        %v1527 = vcombine.high %v1511, %v1511
        %v1528 = vcombine.high %v1518, %v1518
        %v1529 = vcombine.high %v1525, %v1525
        %v1530 = vcombine.high %v1478, %v1478
        %v1532 = vunpack.c.l.s4 1966171168
        %v1533 = vunpack.c.0.s8 %v1532
        %v1534 = vlaneseq
        %v1535 = vshrl.u32 %v1534, 7
        %v1536 = vsub.s32 %v1533, %v1535
        %v1537 = vrot.slane %v1478, %v1536
        %v1539 = vunpack.c.l.s4 1966171168
        %v1540 = vunpack.c.0.s8 %v1539
        %v1541 = vlaneseq
        %v1542 = vshrl.u32 %v1541, 7
        %v1543 = vsub.s32 %v1540, %v1542
        %v1544 = vrot.slane %v1530, %v1543
        %v1545 = vcombine.high %v1537, %v1537
        %v1546 = vcombine.high %v1544, %v1544
        %v1548 = vunpack.c.l.s4 1966171168
        %v1549 = vunpack.c.0.s8 %v1548
        %v1550 = vlaneseq
        %v1551 = vshrl.u32 %v1550, 7
        %v1552 = vsub.s32 %v1549, %v1551
        %v1553 = vrot.slane %v1537, %v1552
        %v1555 = vunpack.c.l.s4 1966171168
        %v1556 = vunpack.c.0.s8 %v1555
        %v1557 = vlaneseq
        %v1558 = vshrl.u32 %v1557, 7
        %v1559 = vsub.s32 %v1556, %v1558
        %v1560 = vrot.slane %v1544, %v1559
        %v1562 = vunpack.c.l.s4 1966171168
        %v1563 = vunpack.c.0.s8 %v1562
        %v1564 = vlaneseq
        %v1565 = vshrl.u32 %v1564, 7
        %v1566 = vsub.s32 %v1563, %v1565
        %v1567 = vrot.slane %v1545, %v1566
        %v1569 = vunpack.c.l.s4 1966171168
        %v1570 = vunpack.c.0.s8 %v1569
        %v1571 = vlaneseq
        %v1572 = vshrl.u32 %v1571, 7
        %v1573 = vsub.s32 %v1570, %v1572
        %v1574 = vrot.slane %v1546, %v1573
        %v1575 = vcombine.high %v1553, %v1553
        %v1576 = vcombine.high %v1560, %v1560
        %v1577 = vcombine.high %v1567, %v1567
        %v1578 = vcombine.high %v1574, %v1574
        %1595 = vst.msk [vmem:[%s551 + $0x4] sm:$0x1] %vm964, %v1504
        %1596 = vst.msk [vmem:[%s551 + $0x1c] sm:$0x1] %vm964, %v1518
        %1597 = vst.msk [vmem:[%s551 + $0x34] sm:$0x1] %vm964, %v1526
        %1598 = vst.msk [vmem:[%s551 + $0x4c] sm:$0x1] %vm964, %v1528
        %1599 = vst.msk [vmem:[%s551 + $0x64] sm:$0x1] %vm964, %v1511
        %1600 = vst.msk [vmem:[%s551 + $0x7c] sm:$0x1] %vm964, %v1525
        %1601 = vst.msk [vmem:[%s551 + $0x94] sm:$0x1] %vm964, %v1527
        %1602 = vst.msk [vmem:[%s551 + $0xac] sm:$0x1] %vm964, %v1529
        %1603 = vst.msk [vmem:[%s551 + $0xc4] sm:$0x1] %vm964, %v1553
        %1604 = vst.msk [vmem:[%s551 + $0xdc] sm:$0x1] %vm964, %v1567
        %1605 = vst.msk [vmem:[%s551 + $0xf4] sm:$0x1] %vm964, %v1575
        %1606 = vst.msk [vmem:[%s551 + $0x10c] sm:$0x1] %vm964, %v1577
        %1607 = vst.msk [vmem:[%s551 + $0x124] sm:$0x1] %vm964, %v1560
        %1608 = vst.msk [vmem:[%s551 + $0x13c] sm:$0x1] %vm964, %v1574
        %1609 = vst.msk [vmem:[%s551 + $0x154] sm:$0x1] %vm964, %v1576
        %1610 = vst.msk [vmem:[%s551 + $0x16c] sm:$0x1] %vm964, %v1578
        %v1611 = vmul.f32 %v665, 0.13333334
        %v1612 = vmul.f32 %v671, 0.13333334
        %v1613 = vmul.f32 %v667, 0.8666667
        %v1614 = vmul.f32 %v673, 0.8666667
        %1617 = vrot.lane.b32.xlu0 %v1613, 64
        %v1618 = vpop.permute.xlu0 %1617
        %1619 = vrot.lane.b32.xlu0 %v1614, 64
        %v1620 = vpop.permute.xlu0 %1619
        %v1623 = vadd.f32 %v1611, %v1618
        %v1624 = vadd.f32 %v1612, %v1620
        %v1627 = vcombine.high %v1623, %v1623
        %v1629 = vunpack.c.l.s4 1966171168
        %v1630 = vunpack.c.0.s8 %v1629
        %v1631 = vlaneseq
        %v1632 = vshrl.u32 %v1631, 7
        %v1633 = vsub.s32 %v1630, %v1632
        %v1634 = vrot.slane %v1623, %v1633
        %v1636 = vunpack.c.l.s4 1966171168
        %v1637 = vunpack.c.0.s8 %v1636
        %v1638 = vlaneseq
        %v1639 = vshrl.u32 %v1638, 7
        %v1640 = vsub.s32 %v1637, %v1639
        %v1641 = vrot.slane %v1627, %v1640
        %v1642 = vcombine.high %v1634, %v1634
        %v1643 = vcombine.high %v1641, %v1641
        %v1645 = vunpack.c.l.s4 1966171168
        %v1646 = vunpack.c.0.s8 %v1645
        %v1647 = vlaneseq
        %v1648 = vshrl.u32 %v1647, 7
        %v1649 = vsub.s32 %v1646, %v1648
        %v1650 = vrot.slane %v1634, %v1649
        %v1652 = vunpack.c.l.s4 1966171168
        %v1653 = vunpack.c.0.s8 %v1652
        %v1654 = vlaneseq
        %v1655 = vshrl.u32 %v1654, 7
        %v1656 = vsub.s32 %v1653, %v1655
        %v1657 = vrot.slane %v1641, %v1656
        %v1659 = vunpack.c.l.s4 1966171168
        %v1660 = vunpack.c.0.s8 %v1659
        %v1661 = vlaneseq
        %v1662 = vshrl.u32 %v1661, 7
        %v1663 = vsub.s32 %v1660, %v1662
        %v1664 = vrot.slane %v1642, %v1663
        %v1666 = vunpack.c.l.s4 1966171168
        %v1667 = vunpack.c.0.s8 %v1666
        %v1668 = vlaneseq
        %v1669 = vshrl.u32 %v1668, 7
        %v1670 = vsub.s32 %v1667, %v1669
        %v1671 = vrot.slane %v1643, %v1670
        %v1672 = vcombine.high %v1650, %v1650
        %v1673 = vcombine.high %v1657, %v1657
        %v1674 = vcombine.high %v1664, %v1664
        %v1675 = vcombine.high %v1671, %v1671
        %v1676 = vcombine.high %v1624, %v1624
        %v1678 = vunpack.c.l.s4 1966171168
        %v1679 = vunpack.c.0.s8 %v1678
        %v1680 = vlaneseq
        %v1681 = vshrl.u32 %v1680, 7
        %v1682 = vsub.s32 %v1679, %v1681
        %v1683 = vrot.slane %v1624, %v1682
        %v1685 = vunpack.c.l.s4 1966171168
        %v1686 = vunpack.c.0.s8 %v1685
        %v1687 = vlaneseq
        %v1688 = vshrl.u32 %v1687, 7
        %v1689 = vsub.s32 %v1686, %v1688
        %v1690 = vrot.slane %v1676, %v1689
        %v1691 = vcombine.high %v1683, %v1683
        %v1692 = vcombine.high %v1690, %v1690
        %v1694 = vunpack.c.l.s4 1966171168
        %v1695 = vunpack.c.0.s8 %v1694
        %v1696 = vlaneseq
        %v1697 = vshrl.u32 %v1696, 7
        %v1698 = vsub.s32 %v1695, %v1697
        %v1699 = vrot.slane %v1683, %v1698
        %v1701 = vunpack.c.l.s4 1966171168
        %v1702 = vunpack.c.0.s8 %v1701
        %v1703 = vlaneseq
        %v1704 = vshrl.u32 %v1703, 7
        %v1705 = vsub.s32 %v1702, %v1704
        %v1706 = vrot.slane %v1690, %v1705
        %v1708 = vunpack.c.l.s4 1966171168
        %v1709 = vunpack.c.0.s8 %v1708
        %v1710 = vlaneseq
        %v1711 = vshrl.u32 %v1710, 7
        %v1712 = vsub.s32 %v1709, %v1711
        %v1713 = vrot.slane %v1691, %v1712
        %v1715 = vunpack.c.l.s4 1966171168
        %v1716 = vunpack.c.0.s8 %v1715
        %v1717 = vlaneseq
        %v1718 = vshrl.u32 %v1717, 7
        %v1719 = vsub.s32 %v1716, %v1718
        %v1720 = vrot.slane %v1692, %v1719
        %v1721 = vcombine.high %v1699, %v1699
        %v1722 = vcombine.high %v1706, %v1706
        %v1723 = vcombine.high %v1713, %v1713
        %v1724 = vcombine.high %v1720, %v1720
        %1741 = vst.msk [vmem:[%s551 + $0x5] sm:$0x1] %vm964, %v1650
        %1742 = vst.msk [vmem:[%s551 + $0x1d] sm:$0x1] %vm964, %v1664
        %1743 = vst.msk [vmem:[%s551 + $0x35] sm:$0x1] %vm964, %v1672
        %1744 = vst.msk [vmem:[%s551 + $0x4d] sm:$0x1] %vm964, %v1674
        %1745 = vst.msk [vmem:[%s551 + $0x65] sm:$0x1] %vm964, %v1657
        %1746 = vst.msk [vmem:[%s551 + $0x7d] sm:$0x1] %vm964, %v1671
        %1747 = vst.msk [vmem:[%s551 + $0x95] sm:$0x1] %vm964, %v1673
        %1748 = vst.msk [vmem:[%s551 + $0xad] sm:$0x1] %vm964, %v1675
        %1749 = vst.msk [vmem:[%s551 + $0xc5] sm:$0x1] %vm964, %v1699
        %1750 = vst.msk [vmem:[%s551 + $0xdd] sm:$0x1] %vm964, %v1713
        %1751 = vst.msk [vmem:[%s551 + $0xf5] sm:$0x1] %vm964, %v1721
        %1752 = vst.msk [vmem:[%s551 + $0x10d] sm:$0x1] %vm964, %v1723
        %1753 = vst.msk [vmem:[%s551 + $0x125] sm:$0x1] %vm964, %v1706
        %1754 = vst.msk [vmem:[%s551 + $0x13d] sm:$0x1] %vm964, %v1720
        %1755 = vst.msk [vmem:[%s551 + $0x155] sm:$0x1] %vm964, %v1722
        %1756 = vst.msk [vmem:[%s551 + $0x16d] sm:$0x1] %vm964, %v1724
        %v1757 = vmul.f32 %v667, 0.6666667
        %v1758 = vmul.f32 %v673, 0.6666667
        %v1759 = vmul.f32 %v667, 0.33333334
        %v1760 = vmul.f32 %v673, 0.33333334
        %1763 = vrot.lane.b32.xlu0 %v1759, 64
        %v1764 = vpop.permute.xlu0 %1763
        %1765 = vrot.lane.b32.xlu0 %v1760, 64
        %v1766 = vpop.permute.xlu0 %1765
        %v1769 = vadd.f32 %v1757, %v1764
        %v1770 = vadd.f32 %v1758, %v1766
        %v1773 = vcombine.high %v1769, %v1769
        %v1775 = vunpack.c.l.s4 1966171168
        %v1776 = vunpack.c.0.s8 %v1775
        %v1777 = vlaneseq
        %v1778 = vshrl.u32 %v1777, 7
        %v1779 = vsub.s32 %v1776, %v1778
        %v1780 = vrot.slane %v1769, %v1779
        %v1782 = vunpack.c.l.s4 1966171168
        %v1783 = vunpack.c.0.s8 %v1782
        %v1784 = vlaneseq
        %v1785 = vshrl.u32 %v1784, 7
        %v1786 = vsub.s32 %v1783, %v1785
        %v1787 = vrot.slane %v1773, %v1786
        %v1788 = vcombine.high %v1780, %v1780
        %v1789 = vcombine.high %v1787, %v1787
        %v1791 = vunpack.c.l.s4 1966171168
        %v1792 = vunpack.c.0.s8 %v1791
        %v1793 = vlaneseq
        %v1794 = vshrl.u32 %v1793, 7
        %v1795 = vsub.s32 %v1792, %v1794
        %v1796 = vrot.slane %v1780, %v1795
        %v1798 = vunpack.c.l.s4 1966171168
        %v1799 = vunpack.c.0.s8 %v1798
        %v1800 = vlaneseq
        %v1801 = vshrl.u32 %v1800, 7
        %v1802 = vsub.s32 %v1799, %v1801
        %v1803 = vrot.slane %v1787, %v1802
        %v1805 = vunpack.c.l.s4 1966171168
        %v1806 = vunpack.c.0.s8 %v1805
        %v1807 = vlaneseq
        %v1808 = vshrl.u32 %v1807, 7
        %v1809 = vsub.s32 %v1806, %v1808
        %v1810 = vrot.slane %v1788, %v1809
        %v1812 = vunpack.c.l.s4 1966171168
        %v1813 = vunpack.c.0.s8 %v1812
        %v1814 = vlaneseq
        %v1815 = vshrl.u32 %v1814, 7
        %v1816 = vsub.s32 %v1813, %v1815
        %v1817 = vrot.slane %v1789, %v1816
        %v1818 = vcombine.high %v1796, %v1796
        %v1819 = vcombine.high %v1803, %v1803
        %v1820 = vcombine.high %v1810, %v1810
        %v1821 = vcombine.high %v1817, %v1817
        %v1822 = vcombine.high %v1770, %v1770
        %v1824 = vunpack.c.l.s4 1966171168
        %v1825 = vunpack.c.0.s8 %v1824
        %v1826 = vlaneseq
        %v1827 = vshrl.u32 %v1826, 7
        %v1828 = vsub.s32 %v1825, %v1827
        %v1829 = vrot.slane %v1770, %v1828
        %v1831 = vunpack.c.l.s4 1966171168
        %v1832 = vunpack.c.0.s8 %v1831
        %v1833 = vlaneseq
        %v1834 = vshrl.u32 %v1833, 7
        %v1835 = vsub.s32 %v1832, %v1834
        %v1836 = vrot.slane %v1822, %v1835
        %v1837 = vcombine.high %v1829, %v1829
        %v1838 = vcombine.high %v1836, %v1836
        %v1840 = vunpack.c.l.s4 1966171168
        %v1841 = vunpack.c.0.s8 %v1840
        %v1842 = vlaneseq
        %v1843 = vshrl.u32 %v1842, 7
        %v1844 = vsub.s32 %v1841, %v1843
        %v1845 = vrot.slane %v1829, %v1844
        %v1847 = vunpack.c.l.s4 1966171168
        %v1848 = vunpack.c.0.s8 %v1847
        %v1849 = vlaneseq
        %v1850 = vshrl.u32 %v1849, 7
        %v1851 = vsub.s32 %v1848, %v1850
        %v1852 = vrot.slane %v1836, %v1851
        %v1854 = vunpack.c.l.s4 1966171168
        %v1855 = vunpack.c.0.s8 %v1854
        %v1856 = vlaneseq
        %v1857 = vshrl.u32 %v1856, 7
        %v1858 = vsub.s32 %v1855, %v1857
        %v1859 = vrot.slane %v1837, %v1858
        %v1861 = vunpack.c.l.s4 1966171168
        %v1862 = vunpack.c.0.s8 %v1861
        %v1863 = vlaneseq
        %v1864 = vshrl.u32 %v1863, 7
        %v1865 = vsub.s32 %v1862, %v1864
        %v1866 = vrot.slane %v1838, %v1865
        %v1867 = vcombine.high %v1845, %v1845
        %v1868 = vcombine.high %v1852, %v1852
        %v1869 = vcombine.high %v1859, %v1859
        %v1870 = vcombine.high %v1866, %v1866
        %v1871 = vlaneseq
        %v1872 = vshrl.u32 %v1871, 7
        %v1873 = vsub.s32 0, %v1872
        %v1874 = vrot.slane %v1796, %v1873
        %v1875 = vlaneseq
        %v1876 = vshrl.u32 %v1875, 7
        %v1877 = vsub.s32 0, %v1876
        %v1878 = vrot.slane %v1810, %v1877
        %v1879 = vlaneseq
        %v1880 = vshrl.u32 %v1879, 7
        %v1881 = vsub.s32 0, %v1880
        %v1882 = vrot.slane %v1818, %v1881
        %v1883 = vlaneseq
        %v1884 = vshrl.u32 %v1883, 7
        %v1885 = vsub.s32 0, %v1884
        %v1886 = vrot.slane %v1820, %v1885
        %v1887 = vlaneseq
        %v1888 = vshrl.u32 %v1887, 7
        %v1889 = vsub.s32 0, %v1888
        %v1890 = vrot.slane %v1803, %v1889
        %v1891 = vlaneseq
        %v1892 = vshrl.u32 %v1891, 7
        %v1893 = vsub.s32 0, %v1892
        %v1894 = vrot.slane %v1817, %v1893
        %v1895 = vlaneseq
        %v1896 = vshrl.u32 %v1895, 7
        %v1897 = vsub.s32 0, %v1896
        %v1898 = vrot.slane %v1819, %v1897
        %v1899 = vlaneseq
        %v1900 = vshrl.u32 %v1899, 7
        %v1901 = vsub.s32 0, %v1900
        %v1902 = vrot.slane %v1821, %v1901
        %v1903 = vlaneseq
        %v1904 = vshrl.u32 %v1903, 7
        %v1905 = vsub.s32 0, %v1904
        %v1906 = vrot.slane %v1845, %v1905
        %v1907 = vlaneseq
        %v1908 = vshrl.u32 %v1907, 7
        %v1909 = vsub.s32 0, %v1908
        %v1910 = vrot.slane %v1859, %v1909
        %v1911 = vlaneseq
        %v1912 = vshrl.u32 %v1911, 7
        %v1913 = vsub.s32 0, %v1912
        %v1914 = vrot.slane %v1867, %v1913
        %v1915 = vlaneseq
        %v1916 = vshrl.u32 %v1915, 7
        %v1917 = vsub.s32 0, %v1916
        %v1918 = vrot.slane %v1869, %v1917
        %v1919 = vlaneseq
        %v1920 = vshrl.u32 %v1919, 7
        %v1921 = vsub.s32 0, %v1920
        %v1922 = vrot.slane %v1852, %v1921
        %v1923 = vlaneseq
        %v1924 = vshrl.u32 %v1923, 7
        %v1925 = vsub.s32 0, %v1924
        %v1926 = vrot.slane %v1866, %v1925
        %v1927 = vlaneseq
        %v1928 = vshrl.u32 %v1927, 7
        %v1929 = vsub.s32 0, %v1928
        %v1930 = vrot.slane %v1868, %v1929
        %v1931 = vlaneseq
        %v1932 = vshrl.u32 %v1931, 7
        %v1933 = vsub.s32 0, %v1932
        %v1934 = vrot.slane %v1870, %v1933
        %1935 = vrot.lane.b32.xlu0 %v1874, 64
        %v1936 = vpop.permute.xlu0 %1935
        %1937 = vrot.lane.b32.xlu0 %v1878, 64
        %v1938 = vpop.permute.xlu0 %1937
        %1939 = vrot.lane.b32.xlu0 %v1882, 64
        %v1940 = vpop.permute.xlu0 %1939
        %1941 = vrot.lane.b32.xlu0 %v1886, 64
        %v1942 = vpop.permute.xlu0 %1941
        %1943 = vrot.lane.b32.xlu0 %v1890, 64
        %v1944 = vpop.permute.xlu0 %1943
        %1945 = vrot.lane.b32.xlu0 %v1894, 64
        %v1946 = vpop.permute.xlu0 %1945
        %1947 = vrot.lane.b32.xlu0 %v1898, 64
        %v1948 = vpop.permute.xlu0 %1947
        %1949 = vrot.lane.b32.xlu0 %v1902, 64
        %v1950 = vpop.permute.xlu0 %1949
        %1951 = vrot.lane.b32.xlu0 %v1906, 64
        %v1952 = vpop.permute.xlu0 %1951
        %1953 = vrot.lane.b32.xlu0 %v1910, 64
        %v1954 = vpop.permute.xlu0 %1953
        %1955 = vrot.lane.b32.xlu0 %v1914, 64
        %v1956 = vpop.permute.xlu0 %1955
        %1957 = vrot.lane.b32.xlu0 %v1918, 64
        %v1958 = vpop.permute.xlu0 %1957
        %1959 = vrot.lane.b32.xlu0 %v1922, 64
        %v1960 = vpop.permute.xlu0 %1959
        %1961 = vrot.lane.b32.xlu0 %v1926, 64
        %v1962 = vpop.permute.xlu0 %1961
        %1963 = vrot.lane.b32.xlu0 %v1930, 64
        %v1964 = vpop.permute.xlu0 %1963
        %1965 = vrot.lane.b32.xlu0 %v1934, 64
        %v1966 = vpop.permute.xlu0 %1965
        %1983 = vst.msk [vmem:[%s551 + $0x6] sm:$0x1] %vm964, %v1936
        %1984 = vst.msk [vmem:[%s551 + $0x1e] sm:$0x1] %vm964, %v1938
        %1985 = vst.msk [vmem:[%s551 + $0x36] sm:$0x1] %vm964, %v1940
        %1986 = vst.msk [vmem:[%s551 + $0x4e] sm:$0x1] %vm964, %v1942
        %1987 = vst.msk [vmem:[%s551 + $0x66] sm:$0x1] %vm964, %v1944
        %1988 = vst.msk [vmem:[%s551 + $0x7e] sm:$0x1] %vm964, %v1946
        %1989 = vst.msk [vmem:[%s551 + $0x96] sm:$0x1] %vm964, %v1948
        %1990 = vst.msk [vmem:[%s551 + $0xae] sm:$0x1] %vm964, %v1950
        %1991 = vst.msk [vmem:[%s551 + $0xc6] sm:$0x1] %vm964, %v1952
        %1992 = vst.msk [vmem:[%s551 + $0xde] sm:$0x1] %vm964, %v1954
        %1993 = vst.msk [vmem:[%s551 + $0xf6] sm:$0x1] %vm964, %v1956
        %1994 = vst.msk [vmem:[%s551 + $0x10e] sm:$0x1] %vm964, %v1958
        %1995 = vst.msk [vmem:[%s551 + $0x126] sm:$0x1] %vm964, %v1960
        %1996 = vst.msk [vmem:[%s551 + $0x13e] sm:$0x1] %vm964, %v1962
        %1997 = vst.msk [vmem:[%s551 + $0x156] sm:$0x1] %vm964, %v1964
        %1998 = vst.msk [vmem:[%s551 + $0x16e] sm:$0x1] %vm964, %v1966
        %v1999 = vmul.f32 %v667, 0.2
        %v2000 = vmul.f32 %v673, 0.2
        %v2001 = vmul.f32 %v667, 0.8
        %v2002 = vmul.f32 %v673, 0.8
        %2005 = vrot.lane.b32.xlu0 %v2001, 64
        %v2006 = vpop.permute.xlu0 %2005
        %2007 = vrot.lane.b32.xlu0 %v2002, 64
        %v2008 = vpop.permute.xlu0 %2007
        %v2011 = vadd.f32 %v1999, %v2006
        %v2012 = vadd.f32 %v2000, %v2008
        %v2015 = vcombine.high %v2011, %v2011
        %v2017 = vunpack.c.l.s4 1966171168
        %v2018 = vunpack.c.0.s8 %v2017
        %v2019 = vlaneseq
        %v2020 = vshrl.u32 %v2019, 7
        %v2021 = vsub.s32 %v2018, %v2020
        %v2022 = vrot.slane %v2011, %v2021
        %v2024 = vunpack.c.l.s4 1966171168
        %v2025 = vunpack.c.0.s8 %v2024
        %v2026 = vlaneseq
        %v2027 = vshrl.u32 %v2026, 7
        %v2028 = vsub.s32 %v2025, %v2027
        %v2029 = vrot.slane %v2015, %v2028
        %v2030 = vcombine.high %v2022, %v2022
        %v2031 = vcombine.high %v2029, %v2029
        %v2033 = vunpack.c.l.s4 1966171168
        %v2034 = vunpack.c.0.s8 %v2033
        %v2035 = vlaneseq
        %v2036 = vshrl.u32 %v2035, 7
        %v2037 = vsub.s32 %v2034, %v2036
        %v2038 = vrot.slane %v2022, %v2037
        %v2040 = vunpack.c.l.s4 1966171168
        %v2041 = vunpack.c.0.s8 %v2040
        %v2042 = vlaneseq
        %v2043 = vshrl.u32 %v2042, 7
        %v2044 = vsub.s32 %v2041, %v2043
        %v2045 = vrot.slane %v2029, %v2044
        %v2047 = vunpack.c.l.s4 1966171168
        %v2048 = vunpack.c.0.s8 %v2047
        %v2049 = vlaneseq
        %v2050 = vshrl.u32 %v2049, 7
        %v2051 = vsub.s32 %v2048, %v2050
        %v2052 = vrot.slane %v2030, %v2051
        %v2054 = vunpack.c.l.s4 1966171168
        %v2055 = vunpack.c.0.s8 %v2054
        %v2056 = vlaneseq
        %v2057 = vshrl.u32 %v2056, 7
        %v2058 = vsub.s32 %v2055, %v2057
        %v2059 = vrot.slane %v2031, %v2058
        %v2060 = vcombine.high %v2038, %v2038
        %v2061 = vcombine.high %v2045, %v2045
        %v2062 = vcombine.high %v2052, %v2052
        %v2063 = vcombine.high %v2059, %v2059
        %v2064 = vcombine.high %v2012, %v2012
        %v2066 = vunpack.c.l.s4 1966171168
        %v2067 = vunpack.c.0.s8 %v2066
        %v2068 = vlaneseq
        %v2069 = vshrl.u32 %v2068, 7
        %v2070 = vsub.s32 %v2067, %v2069
        %v2071 = vrot.slane %v2012, %v2070
        %v2073 = vunpack.c.l.s4 1966171168
        %v2074 = vunpack.c.0.s8 %v2073
        %v2075 = vlaneseq
        %v2076 = vshrl.u32 %v2075, 7
        %v2077 = vsub.s32 %v2074, %v2076
        %v2078 = vrot.slane %v2064, %v2077
        %v2079 = vcombine.high %v2071, %v2071
        %v2080 = vcombine.high %v2078, %v2078
        %v2082 = vunpack.c.l.s4 1966171168
        %v2083 = vunpack.c.0.s8 %v2082
        %v2084 = vlaneseq
        %v2085 = vshrl.u32 %v2084, 7
        %v2086 = vsub.s32 %v2083, %v2085
        %v2087 = vrot.slane %v2071, %v2086
        %v2089 = vunpack.c.l.s4 1966171168
        %v2090 = vunpack.c.0.s8 %v2089
        %v2091 = vlaneseq
        %v2092 = vshrl.u32 %v2091, 7
        %v2093 = vsub.s32 %v2090, %v2092
        %v2094 = vrot.slane %v2078, %v2093
        %v2096 = vunpack.c.l.s4 1966171168
        %v2097 = vunpack.c.0.s8 %v2096
        %v2098 = vlaneseq
        %v2099 = vshrl.u32 %v2098, 7
        %v2100 = vsub.s32 %v2097, %v2099
        %v2101 = vrot.slane %v2079, %v2100
        %v2103 = vunpack.c.l.s4 1966171168
        %v2104 = vunpack.c.0.s8 %v2103
        %v2105 = vlaneseq
        %v2106 = vshrl.u32 %v2105, 7
        %v2107 = vsub.s32 %v2104, %v2106
        %v2108 = vrot.slane %v2080, %v2107
        %v2109 = vcombine.high %v2087, %v2087
        %v2110 = vcombine.high %v2094, %v2094
        %v2111 = vcombine.high %v2101, %v2101
        %v2112 = vcombine.high %v2108, %v2108
        %v2113 = vlaneseq
        %v2114 = vshrl.u32 %v2113, 7
        %v2115 = vsub.s32 0, %v2114
        %v2116 = vrot.slane %v2038, %v2115
        %v2117 = vlaneseq
        %v2118 = vshrl.u32 %v2117, 7
        %v2119 = vsub.s32 0, %v2118
        %v2120 = vrot.slane %v2052, %v2119
        %v2121 = vlaneseq
        %v2122 = vshrl.u32 %v2121, 7
        %v2123 = vsub.s32 0, %v2122
        %v2124 = vrot.slane %v2060, %v2123
        %v2125 = vlaneseq
        %v2126 = vshrl.u32 %v2125, 7
        %v2127 = vsub.s32 0, %v2126
        %v2128 = vrot.slane %v2062, %v2127
        %v2129 = vlaneseq
        %v2130 = vshrl.u32 %v2129, 7
        %v2131 = vsub.s32 0, %v2130
        %v2132 = vrot.slane %v2045, %v2131
        %v2133 = vlaneseq
        %v2134 = vshrl.u32 %v2133, 7
        %v2135 = vsub.s32 0, %v2134
        %v2136 = vrot.slane %v2059, %v2135
        %v2137 = vlaneseq
        %v2138 = vshrl.u32 %v2137, 7
        %v2139 = vsub.s32 0, %v2138
        %v2140 = vrot.slane %v2061, %v2139
        %v2141 = vlaneseq
        %v2142 = vshrl.u32 %v2141, 7
        %v2143 = vsub.s32 0, %v2142
        %v2144 = vrot.slane %v2063, %v2143
        %v2145 = vlaneseq
        %v2146 = vshrl.u32 %v2145, 7
        %v2147 = vsub.s32 0, %v2146
        %v2148 = vrot.slane %v2087, %v2147
        %v2149 = vlaneseq
        %v2150 = vshrl.u32 %v2149, 7
        %v2151 = vsub.s32 0, %v2150
        %v2152 = vrot.slane %v2101, %v2151
        %v2153 = vlaneseq
        %v2154 = vshrl.u32 %v2153, 7
        %v2155 = vsub.s32 0, %v2154
        %v2156 = vrot.slane %v2109, %v2155
        %v2157 = vlaneseq
        %v2158 = vshrl.u32 %v2157, 7
        %v2159 = vsub.s32 0, %v2158
        %v2160 = vrot.slane %v2111, %v2159
        %v2161 = vlaneseq
        %v2162 = vshrl.u32 %v2161, 7
        %v2163 = vsub.s32 0, %v2162
        %v2164 = vrot.slane %v2094, %v2163
        %v2165 = vlaneseq
        %v2166 = vshrl.u32 %v2165, 7
        %v2167 = vsub.s32 0, %v2166
        %v2168 = vrot.slane %v2108, %v2167
        %v2169 = vlaneseq
        %v2170 = vshrl.u32 %v2169, 7
        %v2171 = vsub.s32 0, %v2170
        %v2172 = vrot.slane %v2110, %v2171
        %v2173 = vlaneseq
        %v2174 = vshrl.u32 %v2173, 7
        %v2175 = vsub.s32 0, %v2174
        %v2176 = vrot.slane %v2112, %v2175
        %2177 = vrot.lane.b32.xlu0 %v2116, 64
        %v2178 = vpop.permute.xlu0 %2177
        %2179 = vrot.lane.b32.xlu0 %v2120, 64
        %v2180 = vpop.permute.xlu0 %2179
        %2181 = vrot.lane.b32.xlu0 %v2124, 64
        %v2182 = vpop.permute.xlu0 %2181
        %2183 = vrot.lane.b32.xlu0 %v2128, 64
        %v2184 = vpop.permute.xlu0 %2183
        %2185 = vrot.lane.b32.xlu0 %v2132, 64
        %v2186 = vpop.permute.xlu0 %2185
        %2187 = vrot.lane.b32.xlu0 %v2136, 64
        %v2188 = vpop.permute.xlu0 %2187
        %2189 = vrot.lane.b32.xlu0 %v2140, 64
        %v2190 = vpop.permute.xlu0 %2189
        %2191 = vrot.lane.b32.xlu0 %v2144, 64
        %v2192 = vpop.permute.xlu0 %2191
        %2193 = vrot.lane.b32.xlu0 %v2148, 64
        %v2194 = vpop.permute.xlu0 %2193
        %2195 = vrot.lane.b32.xlu0 %v2152, 64
        %v2196 = vpop.permute.xlu0 %2195
        %2197 = vrot.lane.b32.xlu0 %v2156, 64
        %v2198 = vpop.permute.xlu0 %2197
        %2199 = vrot.lane.b32.xlu0 %v2160, 64
        %v2200 = vpop.permute.xlu0 %2199
        %2201 = vrot.lane.b32.xlu0 %v2164, 64
        %v2202 = vpop.permute.xlu0 %2201
        %2203 = vrot.lane.b32.xlu0 %v2168, 64
        %v2204 = vpop.permute.xlu0 %2203
        %2205 = vrot.lane.b32.xlu0 %v2172, 64
        %v2206 = vpop.permute.xlu0 %2205
        %2207 = vrot.lane.b32.xlu0 %v2176, 64
        %v2208 = vpop.permute.xlu0 %2207
        %2225 = vst.msk [vmem:[%s551 + $0x7] sm:$0x1] %vm964, %v2178
        %2226 = vst.msk [vmem:[%s551 + $0x1f] sm:$0x1] %vm964, %v2180
        %2227 = vst.msk [vmem:[%s551 + $0x37] sm:$0x1] %vm964, %v2182
        %2228 = vst.msk [vmem:[%s551 + $0x4f] sm:$0x1] %vm964, %v2184
        %2229 = vst.msk [vmem:[%s551 + $0x67] sm:$0x1] %vm964, %v2186
        %2230 = vst.msk [vmem:[%s551 + $0x7f] sm:$0x1] %vm964, %v2188
        %2231 = vst.msk [vmem:[%s551 + $0x97] sm:$0x1] %vm964, %v2190
        %2232 = vst.msk [vmem:[%s551 + $0xaf] sm:$0x1] %vm964, %v2192
        %2233 = vst.msk [vmem:[%s551 + $0xc7] sm:$0x1] %vm964, %v2194
        %2234 = vst.msk [vmem:[%s551 + $0xdf] sm:$0x1] %vm964, %v2196
        %2235 = vst.msk [vmem:[%s551 + $0xf7] sm:$0x1] %vm964, %v2198
        %2236 = vst.msk [vmem:[%s551 + $0x10f] sm:$0x1] %vm964, %v2200
        %2237 = vst.msk [vmem:[%s551 + $0x127] sm:$0x1] %vm964, %v2202
        %2238 = vst.msk [vmem:[%s551 + $0x13f] sm:$0x1] %vm964, %v2204
        %2239 = vst.msk [vmem:[%s551 + $0x157] sm:$0x1] %vm964, %v2206
        %2240 = vst.msk [vmem:[%s551 + $0x16f] sm:$0x1] %vm964, %v2208
        %v2241 = vmul.f32 %v667, 0.73333335
        %v2242 = vmul.f32 %v673, 0.73333335
        %v2243 = vmul.f32 %v742, 0.26666668
        %v2244 = vmul.f32 %v748, 0.26666668
        %2247 = vrot.lane.b32.xlu0 %v2243, 64
        %v2248 = vpop.permute.xlu0 %2247
        %2249 = vrot.lane.b32.xlu0 %v2244, 64
        %v2250 = vpop.permute.xlu0 %2249
        %v2253 = vadd.f32 %v2241, %v2248
        %v2254 = vadd.f32 %v2242, %v2250
        %v2257 = vcombine.high %v2253, %v2253
        %v2259 = vunpack.c.l.s4 1966171168
        %v2260 = vunpack.c.0.s8 %v2259
        %v2261 = vlaneseq
        %v2262 = vshrl.u32 %v2261, 7
        %v2263 = vsub.s32 %v2260, %v2262
        %v2264 = vrot.slane %v2253, %v2263
        %v2266 = vunpack.c.l.s4 1966171168
        %v2267 = vunpack.c.0.s8 %v2266
        %v2268 = vlaneseq
        %v2269 = vshrl.u32 %v2268, 7
        %v2270 = vsub.s32 %v2267, %v2269
        %v2271 = vrot.slane %v2257, %v2270
        %v2272 = vcombine.high %v2264, %v2264
        %v2273 = vcombine.high %v2271, %v2271
        %v2275 = vunpack.c.l.s4 1966171168
        %v2276 = vunpack.c.0.s8 %v2275
        %v2277 = vlaneseq
        %v2278 = vshrl.u32 %v2277, 7
        %v2279 = vsub.s32 %v2276, %v2278
        %v2280 = vrot.slane %v2264, %v2279
        %v2282 = vunpack.c.l.s4 1966171168
        %v2283 = vunpack.c.0.s8 %v2282
        %v2284 = vlaneseq
        %v2285 = vshrl.u32 %v2284, 7
        %v2286 = vsub.s32 %v2283, %v2285
        %v2287 = vrot.slane %v2271, %v2286
        %v2289 = vunpack.c.l.s4 1966171168
        %v2290 = vunpack.c.0.s8 %v2289
        %v2291 = vlaneseq
        %v2292 = vshrl.u32 %v2291, 7
        %v2293 = vsub.s32 %v2290, %v2292
        %v2294 = vrot.slane %v2272, %v2293
        %v2296 = vunpack.c.l.s4 1966171168
        %v2297 = vunpack.c.0.s8 %v2296
        %v2298 = vlaneseq
        %v2299 = vshrl.u32 %v2298, 7
        %v2300 = vsub.s32 %v2297, %v2299
        %v2301 = vrot.slane %v2273, %v2300
        %v2302 = vcombine.high %v2280, %v2280
        %v2303 = vcombine.high %v2287, %v2287
        %v2304 = vcombine.high %v2294, %v2294
        %v2305 = vcombine.high %v2301, %v2301
        %v2306 = vcombine.high %v2254, %v2254
        %v2308 = vunpack.c.l.s4 1966171168
        %v2309 = vunpack.c.0.s8 %v2308
        %v2310 = vlaneseq
        %v2311 = vshrl.u32 %v2310, 7
        %v2312 = vsub.s32 %v2309, %v2311
        %v2313 = vrot.slane %v2254, %v2312
        %v2315 = vunpack.c.l.s4 1966171168
        %v2316 = vunpack.c.0.s8 %v2315
        %v2317 = vlaneseq
        %v2318 = vshrl.u32 %v2317, 7
        %v2319 = vsub.s32 %v2316, %v2318
        %v2320 = vrot.slane %v2306, %v2319
        %v2321 = vcombine.high %v2313, %v2313
        %v2322 = vcombine.high %v2320, %v2320
        %v2324 = vunpack.c.l.s4 1966171168
        %v2325 = vunpack.c.0.s8 %v2324
        %v2326 = vlaneseq
        %v2327 = vshrl.u32 %v2326, 7
        %v2328 = vsub.s32 %v2325, %v2327
        %v2329 = vrot.slane %v2313, %v2328
        %v2331 = vunpack.c.l.s4 1966171168
        %v2332 = vunpack.c.0.s8 %v2331
        %v2333 = vlaneseq
        %v2334 = vshrl.u32 %v2333, 7
        %v2335 = vsub.s32 %v2332, %v2334
        %v2336 = vrot.slane %v2320, %v2335
        %v2338 = vunpack.c.l.s4 1966171168
        %v2339 = vunpack.c.0.s8 %v2338
        %v2340 = vlaneseq
        %v2341 = vshrl.u32 %v2340, 7
        %v2342 = vsub.s32 %v2339, %v2341
        %v2343 = vrot.slane %v2321, %v2342
        %v2345 = vunpack.c.l.s4 1966171168
        %v2346 = vunpack.c.0.s8 %v2345
        %v2347 = vlaneseq
        %v2348 = vshrl.u32 %v2347, 7
        %v2349 = vsub.s32 %v2346, %v2348
        %v2350 = vrot.slane %v2322, %v2349
        %v2351 = vcombine.high %v2329, %v2329
        %v2352 = vcombine.high %v2336, %v2336
        %v2353 = vcombine.high %v2343, %v2343
        %v2354 = vcombine.high %v2350, %v2350
        %2371 = vst.msk [vmem:[%s551 + $0x8] sm:$0x1] %vm964, %v2280
        %2372 = vst.msk [vmem:[%s551 + $0x20] sm:$0x1] %vm964, %v2294
        %2373 = vst.msk [vmem:[%s551 + $0x38] sm:$0x1] %vm964, %v2302
        %2374 = vst.msk [vmem:[%s551 + $0x50] sm:$0x1] %vm964, %v2304
        %2375 = vst.msk [vmem:[%s551 + $0x68] sm:$0x1] %vm964, %v2287
        %2376 = vst.msk [vmem:[%s551 + $0x80] sm:$0x1] %vm964, %v2301
        %2377 = vst.msk [vmem:[%s551 + $0x98] sm:$0x1] %vm964, %v2303
        %2378 = vst.msk [vmem:[%s551 + $0xb0] sm:$0x1] %vm964, %v2305
        %2379 = vst.msk [vmem:[%s551 + $0xc8] sm:$0x1] %vm964, %v2329
        %2380 = vst.msk [vmem:[%s551 + $0xe0] sm:$0x1] %vm964, %v2343
        %2381 = vst.msk [vmem:[%s551 + $0xf8] sm:$0x1] %vm964, %v2351
        %2382 = vst.msk [vmem:[%s551 + $0x110] sm:$0x1] %vm964, %v2353
        %2383 = vst.msk [vmem:[%s551 + $0x128] sm:$0x1] %vm964, %v2336
        %2384 = vst.msk [vmem:[%s551 + $0x140] sm:$0x1] %vm964, %v2350
        %2385 = vst.msk [vmem:[%s551 + $0x158] sm:$0x1] %vm964, %v2352
        %2386 = vst.msk [vmem:[%s551 + $0x170] sm:$0x1] %vm964, %v2354
        %v2387 = vmul.f32 %v667, 0.26666668
        %v2388 = vmul.f32 %v673, 0.26666668
        %v2389 = vmul.f32 %v742, 0.73333335
        %v2390 = vmul.f32 %v748, 0.73333335
        %2393 = vrot.lane.b32.xlu0 %v2389, 64
        %v2394 = vpop.permute.xlu0 %2393
        %2395 = vrot.lane.b32.xlu0 %v2390, 64
        %v2396 = vpop.permute.xlu0 %2395
        %v2399 = vadd.f32 %v2387, %v2394
        %v2400 = vadd.f32 %v2388, %v2396
        %v2403 = vcombine.high %v2399, %v2399
        %v2405 = vunpack.c.l.s4 1966171168
        %v2406 = vunpack.c.0.s8 %v2405
        %v2407 = vlaneseq
        %v2408 = vshrl.u32 %v2407, 7
        %v2409 = vsub.s32 %v2406, %v2408
        %v2410 = vrot.slane %v2399, %v2409
        %v2412 = vunpack.c.l.s4 1966171168
        %v2413 = vunpack.c.0.s8 %v2412
        %v2414 = vlaneseq
        %v2415 = vshrl.u32 %v2414, 7
        %v2416 = vsub.s32 %v2413, %v2415
        %v2417 = vrot.slane %v2403, %v2416
        %v2418 = vcombine.high %v2410, %v2410
        %v2419 = vcombine.high %v2417, %v2417
        %v2421 = vunpack.c.l.s4 1966171168
        %v2422 = vunpack.c.0.s8 %v2421
        %v2423 = vlaneseq
        %v2424 = vshrl.u32 %v2423, 7
        %v2425 = vsub.s32 %v2422, %v2424
        %v2426 = vrot.slane %v2410, %v2425
        %v2428 = vunpack.c.l.s4 1966171168
        %v2429 = vunpack.c.0.s8 %v2428
        %v2430 = vlaneseq
        %v2431 = vshrl.u32 %v2430, 7
        %v2432 = vsub.s32 %v2429, %v2431
        %v2433 = vrot.slane %v2417, %v2432
        %v2435 = vunpack.c.l.s4 1966171168
        %v2436 = vunpack.c.0.s8 %v2435
        %v2437 = vlaneseq
        %v2438 = vshrl.u32 %v2437, 7
        %v2439 = vsub.s32 %v2436, %v2438
        %v2440 = vrot.slane %v2418, %v2439
        %v2442 = vunpack.c.l.s4 1966171168
        %v2443 = vunpack.c.0.s8 %v2442
        %v2444 = vlaneseq
        %v2445 = vshrl.u32 %v2444, 7
        %v2446 = vsub.s32 %v2443, %v2445
        %v2447 = vrot.slane %v2419, %v2446
        %v2448 = vcombine.high %v2426, %v2426
        %v2449 = vcombine.high %v2433, %v2433
        %v2450 = vcombine.high %v2440, %v2440
        %v2451 = vcombine.high %v2447, %v2447
        %v2452 = vcombine.high %v2400, %v2400
        %v2454 = vunpack.c.l.s4 1966171168
        %v2455 = vunpack.c.0.s8 %v2454
        %v2456 = vlaneseq
        %v2457 = vshrl.u32 %v2456, 7
        %v2458 = vsub.s32 %v2455, %v2457
        %v2459 = vrot.slane %v2400, %v2458
        %v2461 = vunpack.c.l.s4 1966171168
        %v2462 = vunpack.c.0.s8 %v2461
        %v2463 = vlaneseq
        %v2464 = vshrl.u32 %v2463, 7
        %v2465 = vsub.s32 %v2462, %v2464
        %v2466 = vrot.slane %v2452, %v2465
        %v2467 = vcombine.high %v2459, %v2459
        %v2468 = vcombine.high %v2466, %v2466
        %v2470 = vunpack.c.l.s4 1966171168
        %v2471 = vunpack.c.0.s8 %v2470
        %v2472 = vlaneseq
        %v2473 = vshrl.u32 %v2472, 7
        %v2474 = vsub.s32 %v2471, %v2473
        %v2475 = vrot.slane %v2459, %v2474
        %v2477 = vunpack.c.l.s4 1966171168
        %v2478 = vunpack.c.0.s8 %v2477
        %v2479 = vlaneseq
        %v2480 = vshrl.u32 %v2479, 7
        %v2481 = vsub.s32 %v2478, %v2480
        %v2482 = vrot.slane %v2466, %v2481
        %v2484 = vunpack.c.l.s4 1966171168
        %v2485 = vunpack.c.0.s8 %v2484
        %v2486 = vlaneseq
        %v2487 = vshrl.u32 %v2486, 7
        %v2488 = vsub.s32 %v2485, %v2487
        %v2489 = vrot.slane %v2467, %v2488
        %v2491 = vunpack.c.l.s4 1966171168
        %v2492 = vunpack.c.0.s8 %v2491
        %v2493 = vlaneseq
        %v2494 = vshrl.u32 %v2493, 7
        %v2495 = vsub.s32 %v2492, %v2494
        %v2496 = vrot.slane %v2468, %v2495
        %v2497 = vcombine.high %v2475, %v2475
        %v2498 = vcombine.high %v2482, %v2482
        %v2499 = vcombine.high %v2489, %v2489
        %v2500 = vcombine.high %v2496, %v2496
        %2517 = vst.msk [vmem:[%s551 + $0x9] sm:$0x1] %vm964, %v2426
        %2518 = vst.msk [vmem:[%s551 + $0x21] sm:$0x1] %vm964, %v2440
        %2519 = vst.msk [vmem:[%s551 + $0x39] sm:$0x1] %vm964, %v2448
        %2520 = vst.msk [vmem:[%s551 + $0x51] sm:$0x1] %vm964, %v2450
        %2521 = vst.msk [vmem:[%s551 + $0x69] sm:$0x1] %vm964, %v2433
        %2522 = vst.msk [vmem:[%s551 + $0x81] sm:$0x1] %vm964, %v2447
        %2523 = vst.msk [vmem:[%s551 + $0x99] sm:$0x1] %vm964, %v2449
        %2524 = vst.msk [vmem:[%s551 + $0xb1] sm:$0x1] %vm964, %v2451
        %2525 = vst.msk [vmem:[%s551 + $0xc9] sm:$0x1] %vm964, %v2475
        %2526 = vst.msk [vmem:[%s551 + $0xe1] sm:$0x1] %vm964, %v2489
        %2527 = vst.msk [vmem:[%s551 + $0xf9] sm:$0x1] %vm964, %v2497
        %2528 = vst.msk [vmem:[%s551 + $0x111] sm:$0x1] %vm964, %v2499
        %2529 = vst.msk [vmem:[%s551 + $0x129] sm:$0x1] %vm964, %v2482
        %2530 = vst.msk [vmem:[%s551 + $0x141] sm:$0x1] %vm964, %v2496
        %2531 = vst.msk [vmem:[%s551 + $0x159] sm:$0x1] %vm964, %v2498
        %2532 = vst.msk [vmem:[%s551 + $0x171] sm:$0x1] %vm964, %v2500
        %v2533 = vmul.f32 %v742, 0.8
        %v2534 = vmul.f32 %v748, 0.8
        %v2535 = vmul.f32 %v742, 0.2
        %v2536 = vmul.f32 %v748, 0.2
        %2539 = vrot.lane.b32.xlu0 %v2535, 64
        %v2540 = vpop.permute.xlu0 %2539
        %2541 = vrot.lane.b32.xlu0 %v2536, 64
        %v2542 = vpop.permute.xlu0 %2541
        %v2545 = vadd.f32 %v2533, %v2540
        %v2546 = vadd.f32 %v2534, %v2542
        %v2549 = vcombine.high %v2545, %v2545
        %v2551 = vunpack.c.l.s4 1966171168
        %v2552 = vunpack.c.0.s8 %v2551
        %v2553 = vlaneseq
        %v2554 = vshrl.u32 %v2553, 7
        %v2555 = vsub.s32 %v2552, %v2554
        %v2556 = vrot.slane %v2545, %v2555
        %v2558 = vunpack.c.l.s4 1966171168
        %v2559 = vunpack.c.0.s8 %v2558
        %v2560 = vlaneseq
        %v2561 = vshrl.u32 %v2560, 7
        %v2562 = vsub.s32 %v2559, %v2561
        %v2563 = vrot.slane %v2549, %v2562
        %v2564 = vcombine.high %v2556, %v2556
        %v2565 = vcombine.high %v2563, %v2563
        %v2567 = vunpack.c.l.s4 1966171168
        %v2568 = vunpack.c.0.s8 %v2567
        %v2569 = vlaneseq
        %v2570 = vshrl.u32 %v2569, 7
        %v2571 = vsub.s32 %v2568, %v2570
        %v2572 = vrot.slane %v2556, %v2571
        %v2574 = vunpack.c.l.s4 1966171168
        %v2575 = vunpack.c.0.s8 %v2574
        %v2576 = vlaneseq
        %v2577 = vshrl.u32 %v2576, 7
        %v2578 = vsub.s32 %v2575, %v2577
        %v2579 = vrot.slane %v2563, %v2578
        %v2581 = vunpack.c.l.s4 1966171168
        %v2582 = vunpack.c.0.s8 %v2581
        %v2583 = vlaneseq
        %v2584 = vshrl.u32 %v2583, 7
        %v2585 = vsub.s32 %v2582, %v2584
        %v2586 = vrot.slane %v2564, %v2585
        %v2588 = vunpack.c.l.s4 1966171168
        %v2589 = vunpack.c.0.s8 %v2588
        %v2590 = vlaneseq
        %v2591 = vshrl.u32 %v2590, 7
        %v2592 = vsub.s32 %v2589, %v2591
        %v2593 = vrot.slane %v2565, %v2592
        %v2594 = vcombine.high %v2572, %v2572
        %v2595 = vcombine.high %v2579, %v2579
        %v2596 = vcombine.high %v2586, %v2586
        %v2597 = vcombine.high %v2593, %v2593
        %v2598 = vcombine.high %v2546, %v2546
        %v2600 = vunpack.c.l.s4 1966171168
        %v2601 = vunpack.c.0.s8 %v2600
        %v2602 = vlaneseq
        %v2603 = vshrl.u32 %v2602, 7
        %v2604 = vsub.s32 %v2601, %v2603
        %v2605 = vrot.slane %v2546, %v2604
        %v2607 = vunpack.c.l.s4 1966171168
        %v2608 = vunpack.c.0.s8 %v2607
        %v2609 = vlaneseq
        %v2610 = vshrl.u32 %v2609, 7
        %v2611 = vsub.s32 %v2608, %v2610
        %v2612 = vrot.slane %v2598, %v2611
        %v2613 = vcombine.high %v2605, %v2605
        %v2614 = vcombine.high %v2612, %v2612
        %v2616 = vunpack.c.l.s4 1966171168
        %v2617 = vunpack.c.0.s8 %v2616
        %v2618 = vlaneseq
        %v2619 = vshrl.u32 %v2618, 7
        %v2620 = vsub.s32 %v2617, %v2619
        %v2621 = vrot.slane %v2605, %v2620
        %v2623 = vunpack.c.l.s4 1966171168
        %v2624 = vunpack.c.0.s8 %v2623
        %v2625 = vlaneseq
        %v2626 = vshrl.u32 %v2625, 7
        %v2627 = vsub.s32 %v2624, %v2626
        %v2628 = vrot.slane %v2612, %v2627
        %v2630 = vunpack.c.l.s4 1966171168
        %v2631 = vunpack.c.0.s8 %v2630
        %v2632 = vlaneseq
        %v2633 = vshrl.u32 %v2632, 7
        %v2634 = vsub.s32 %v2631, %v2633
        %v2635 = vrot.slane %v2613, %v2634
        %v2637 = vunpack.c.l.s4 1966171168
        %v2638 = vunpack.c.0.s8 %v2637
        %v2639 = vlaneseq
        %v2640 = vshrl.u32 %v2639, 7
        %v2641 = vsub.s32 %v2638, %v2640
        %v2642 = vrot.slane %v2614, %v2641
        %v2643 = vcombine.high %v2621, %v2621
        %v2644 = vcombine.high %v2628, %v2628
        %v2645 = vcombine.high %v2635, %v2635
        %v2646 = vcombine.high %v2642, %v2642
        %v2647 = vlaneseq
        %v2648 = vshrl.u32 %v2647, 7
        %v2649 = vsub.s32 0, %v2648
        %v2650 = vrot.slane %v2572, %v2649
        %v2651 = vlaneseq
        %v2652 = vshrl.u32 %v2651, 7
        %v2653 = vsub.s32 0, %v2652
        %v2654 = vrot.slane %v2586, %v2653
        %v2655 = vlaneseq
        %v2656 = vshrl.u32 %v2655, 7
        %v2657 = vsub.s32 0, %v2656
        %v2658 = vrot.slane %v2594, %v2657
        %v2659 = vlaneseq
        %v2660 = vshrl.u32 %v2659, 7
        %v2661 = vsub.s32 0, %v2660
        %v2662 = vrot.slane %v2596, %v2661
        %v2663 = vlaneseq
        %v2664 = vshrl.u32 %v2663, 7
        %v2665 = vsub.s32 0, %v2664
        %v2666 = vrot.slane %v2579, %v2665
        %v2667 = vlaneseq
        %v2668 = vshrl.u32 %v2667, 7
        %v2669 = vsub.s32 0, %v2668
        %v2670 = vrot.slane %v2593, %v2669
        %v2671 = vlaneseq
        %v2672 = vshrl.u32 %v2671, 7
        %v2673 = vsub.s32 0, %v2672
        %v2674 = vrot.slane %v2595, %v2673
        %v2675 = vlaneseq
        %v2676 = vshrl.u32 %v2675, 7
        %v2677 = vsub.s32 0, %v2676
        %v2678 = vrot.slane %v2597, %v2677
        %v2679 = vlaneseq
        %v2680 = vshrl.u32 %v2679, 7
        %v2681 = vsub.s32 0, %v2680
        %v2682 = vrot.slane %v2621, %v2681
        %v2683 = vlaneseq
        %v2684 = vshrl.u32 %v2683, 7
        %v2685 = vsub.s32 0, %v2684
        %v2686 = vrot.slane %v2635, %v2685
        %v2687 = vlaneseq
        %v2688 = vshrl.u32 %v2687, 7
        %v2689 = vsub.s32 0, %v2688
        %v2690 = vrot.slane %v2643, %v2689
        %v2691 = vlaneseq
        %v2692 = vshrl.u32 %v2691, 7
        %v2693 = vsub.s32 0, %v2692
        %v2694 = vrot.slane %v2645, %v2693
        %v2695 = vlaneseq
        %v2696 = vshrl.u32 %v2695, 7
        %v2697 = vsub.s32 0, %v2696
        %v2698 = vrot.slane %v2628, %v2697
        %v2699 = vlaneseq
        %v2700 = vshrl.u32 %v2699, 7
        %v2701 = vsub.s32 0, %v2700
        %v2702 = vrot.slane %v2642, %v2701
        %v2703 = vlaneseq
        %v2704 = vshrl.u32 %v2703, 7
        %v2705 = vsub.s32 0, %v2704
        %v2706 = vrot.slane %v2644, %v2705
        %v2707 = vlaneseq
        %v2708 = vshrl.u32 %v2707, 7
        %v2709 = vsub.s32 0, %v2708
        %v2710 = vrot.slane %v2646, %v2709
        %2711 = vrot.lane.b32.xlu0 %v2650, 64
        %v2712 = vpop.permute.xlu0 %2711
        %2713 = vrot.lane.b32.xlu0 %v2654, 64
        %v2714 = vpop.permute.xlu0 %2713
        %2715 = vrot.lane.b32.xlu0 %v2658, 64
        %v2716 = vpop.permute.xlu0 %2715
        %2717 = vrot.lane.b32.xlu0 %v2662, 64
        %v2718 = vpop.permute.xlu0 %2717
        %2719 = vrot.lane.b32.xlu0 %v2666, 64
        %v2720 = vpop.permute.xlu0 %2719
        %2721 = vrot.lane.b32.xlu0 %v2670, 64
        %v2722 = vpop.permute.xlu0 %2721
        %2723 = vrot.lane.b32.xlu0 %v2674, 64
        %v2724 = vpop.permute.xlu0 %2723
        %2725 = vrot.lane.b32.xlu0 %v2678, 64
        %v2726 = vpop.permute.xlu0 %2725
        %2727 = vrot.lane.b32.xlu0 %v2682, 64
        %v2728 = vpop.permute.xlu0 %2727
        %2729 = vrot.lane.b32.xlu0 %v2686, 64
        %v2730 = vpop.permute.xlu0 %2729
        %2731 = vrot.lane.b32.xlu0 %v2690, 64
        %v2732 = vpop.permute.xlu0 %2731
        %2733 = vrot.lane.b32.xlu0 %v2694, 64
        %v2734 = vpop.permute.xlu0 %2733
        %2735 = vrot.lane.b32.xlu0 %v2698, 64
        %v2736 = vpop.permute.xlu0 %2735
        %2737 = vrot.lane.b32.xlu0 %v2702, 64
        %v2738 = vpop.permute.xlu0 %2737
        %2739 = vrot.lane.b32.xlu0 %v2706, 64
        %v2740 = vpop.permute.xlu0 %2739
        %2741 = vrot.lane.b32.xlu0 %v2710, 64
        %v2742 = vpop.permute.xlu0 %2741
        %2759 = vst.msk [vmem:[%s551 + $0xa] sm:$0x1] %vm964, %v2712
        %2760 = vst.msk [vmem:[%s551 + $0x22] sm:$0x1] %vm964, %v2714
        %2761 = vst.msk [vmem:[%s551 + $0x3a] sm:$0x1] %vm964, %v2716
        %2762 = vst.msk [vmem:[%s551 + $0x52] sm:$0x1] %vm964, %v2718
        %2763 = vst.msk [vmem:[%s551 + $0x6a] sm:$0x1] %vm964, %v2720
        %2764 = vst.msk [vmem:[%s551 + $0x82] sm:$0x1] %vm964, %v2722
        %2765 = vst.msk [vmem:[%s551 + $0x9a] sm:$0x1] %vm964, %v2724
        %2766 = vst.msk [vmem:[%s551 + $0xb2] sm:$0x1] %vm964, %v2726
        %2767 = vst.msk [vmem:[%s551 + $0xca] sm:$0x1] %vm964, %v2728
        %2768 = vst.msk [vmem:[%s551 + $0xe2] sm:$0x1] %vm964, %v2730
        %2769 = vst.msk [vmem:[%s551 + $0xfa] sm:$0x1] %vm964, %v2732
        %2770 = vst.msk [vmem:[%s551 + $0x112] sm:$0x1] %vm964, %v2734
        %2771 = vst.msk [vmem:[%s551 + $0x12a] sm:$0x1] %vm964, %v2736
        %2772 = vst.msk [vmem:[%s551 + $0x142] sm:$0x1] %vm964, %v2738
        %2773 = vst.msk [vmem:[%s551 + $0x15a] sm:$0x1] %vm964, %v2740
        %2774 = vst.msk [vmem:[%s551 + $0x172] sm:$0x1] %vm964, %v2742
        %v2775 = vmul.f32 %v742, 0.33333334
        %v2776 = vmul.f32 %v748, 0.33333334
        %v2777 = vmul.f32 %v742, 0.6666667
        %v2778 = vmul.f32 %v748, 0.6666667
        %2781 = vrot.lane.b32.xlu0 %v2777, 64
        %v2782 = vpop.permute.xlu0 %2781
        %2783 = vrot.lane.b32.xlu0 %v2778, 64
        %v2784 = vpop.permute.xlu0 %2783
        %v2787 = vadd.f32 %v2775, %v2782
        %v2788 = vadd.f32 %v2776, %v2784
        %v2791 = vcombine.high %v2787, %v2787
        %v2793 = vunpack.c.l.s4 1966171168
        %v2794 = vunpack.c.0.s8 %v2793
        %v2795 = vlaneseq
        %v2796 = vshrl.u32 %v2795, 7
        %v2797 = vsub.s32 %v2794, %v2796
        %v2798 = vrot.slane %v2787, %v2797
        %v2800 = vunpack.c.l.s4 1966171168
        %v2801 = vunpack.c.0.s8 %v2800
        %v2802 = vlaneseq
        %v2803 = vshrl.u32 %v2802, 7
        %v2804 = vsub.s32 %v2801, %v2803
        %v2805 = vrot.slane %v2791, %v2804
        %v2806 = vcombine.high %v2798, %v2798
        %v2807 = vcombine.high %v2805, %v2805
        %v2809 = vunpack.c.l.s4 1966171168
        %v2810 = vunpack.c.0.s8 %v2809
        %v2811 = vlaneseq
        %v2812 = vshrl.u32 %v2811, 7
        %v2813 = vsub.s32 %v2810, %v2812
        %v2814 = vrot.slane %v2798, %v2813
        %v2816 = vunpack.c.l.s4 1966171168
        %v2817 = vunpack.c.0.s8 %v2816
        %v2818 = vlaneseq
        %v2819 = vshrl.u32 %v2818, 7
        %v2820 = vsub.s32 %v2817, %v2819
        %v2821 = vrot.slane %v2805, %v2820
        %v2823 = vunpack.c.l.s4 1966171168
        %v2824 = vunpack.c.0.s8 %v2823
        %v2825 = vlaneseq
        %v2826 = vshrl.u32 %v2825, 7
        %v2827 = vsub.s32 %v2824, %v2826
        %v2828 = vrot.slane %v2806, %v2827
        %v2830 = vunpack.c.l.s4 1966171168
        %v2831 = vunpack.c.0.s8 %v2830
        %v2832 = vlaneseq
        %v2833 = vshrl.u32 %v2832, 7
        %v2834 = vsub.s32 %v2831, %v2833
        %v2835 = vrot.slane %v2807, %v2834
        %v2836 = vcombine.high %v2814, %v2814
        %v2837 = vcombine.high %v2821, %v2821
        %v2838 = vcombine.high %v2828, %v2828
        %v2839 = vcombine.high %v2835, %v2835
        %v2840 = vcombine.high %v2788, %v2788
        %v2842 = vunpack.c.l.s4 1966171168
        %v2843 = vunpack.c.0.s8 %v2842
        %v2844 = vlaneseq
        %v2845 = vshrl.u32 %v2844, 7
        %v2846 = vsub.s32 %v2843, %v2845
        %v2847 = vrot.slane %v2788, %v2846
        %v2849 = vunpack.c.l.s4 1966171168
        %v2850 = vunpack.c.0.s8 %v2849
        %v2851 = vlaneseq
        %v2852 = vshrl.u32 %v2851, 7
        %v2853 = vsub.s32 %v2850, %v2852
        %v2854 = vrot.slane %v2840, %v2853
        %v2855 = vcombine.high %v2847, %v2847
        %v2856 = vcombine.high %v2854, %v2854
        %v2858 = vunpack.c.l.s4 1966171168
        %v2859 = vunpack.c.0.s8 %v2858
        %v2860 = vlaneseq
        %v2861 = vshrl.u32 %v2860, 7
        %v2862 = vsub.s32 %v2859, %v2861
        %v2863 = vrot.slane %v2847, %v2862
        %v2865 = vunpack.c.l.s4 1966171168
        %v2866 = vunpack.c.0.s8 %v2865
        %v2867 = vlaneseq
        %v2868 = vshrl.u32 %v2867, 7
        %v2869 = vsub.s32 %v2866, %v2868
        %v2870 = vrot.slane %v2854, %v2869
        %v2872 = vunpack.c.l.s4 1966171168
        %v2873 = vunpack.c.0.s8 %v2872
        %v2874 = vlaneseq
        %v2875 = vshrl.u32 %v2874, 7
        %v2876 = vsub.s32 %v2873, %v2875
        %v2877 = vrot.slane %v2855, %v2876
        %v2879 = vunpack.c.l.s4 1966171168
        %v2880 = vunpack.c.0.s8 %v2879
        %v2881 = vlaneseq
        %v2882 = vshrl.u32 %v2881, 7
        %v2883 = vsub.s32 %v2880, %v2882
        %v2884 = vrot.slane %v2856, %v2883
        %v2885 = vcombine.high %v2863, %v2863
        %v2886 = vcombine.high %v2870, %v2870
        %v2887 = vcombine.high %v2877, %v2877
        %v2888 = vcombine.high %v2884, %v2884
        %v2889 = vlaneseq
        %v2890 = vshrl.u32 %v2889, 7
        %v2891 = vsub.s32 0, %v2890
        %v2892 = vrot.slane %v2814, %v2891
        %v2893 = vlaneseq
        %v2894 = vshrl.u32 %v2893, 7
        %v2895 = vsub.s32 0, %v2894
        %v2896 = vrot.slane %v2828, %v2895
        %v2897 = vlaneseq
        %v2898 = vshrl.u32 %v2897, 7
        %v2899 = vsub.s32 0, %v2898
        %v2900 = vrot.slane %v2836, %v2899
        %v2901 = vlaneseq
        %v2902 = vshrl.u32 %v2901, 7
        %v2903 = vsub.s32 0, %v2902
        %v2904 = vrot.slane %v2838, %v2903
        %v2905 = vlaneseq
        %v2906 = vshrl.u32 %v2905, 7
        %v2907 = vsub.s32 0, %v2906
        %v2908 = vrot.slane %v2821, %v2907
        %v2909 = vlaneseq
        %v2910 = vshrl.u32 %v2909, 7
        %v2911 = vsub.s32 0, %v2910
        %v2912 = vrot.slane %v2835, %v2911
        %v2913 = vlaneseq
        %v2914 = vshrl.u32 %v2913, 7
        %v2915 = vsub.s32 0, %v2914
        %v2916 = vrot.slane %v2837, %v2915
        %v2917 = vlaneseq
        %v2918 = vshrl.u32 %v2917, 7
        %v2919 = vsub.s32 0, %v2918
        %v2920 = vrot.slane %v2839, %v2919
        %v2921 = vlaneseq
        %v2922 = vshrl.u32 %v2921, 7
        %v2923 = vsub.s32 0, %v2922
        %v2924 = vrot.slane %v2863, %v2923
        %v2925 = vlaneseq
        %v2926 = vshrl.u32 %v2925, 7
        %v2927 = vsub.s32 0, %v2926
        %v2928 = vrot.slane %v2877, %v2927
        %v2929 = vlaneseq
        %v2930 = vshrl.u32 %v2929, 7
        %v2931 = vsub.s32 0, %v2930
        %v2932 = vrot.slane %v2885, %v2931
        %v2933 = vlaneseq
        %v2934 = vshrl.u32 %v2933, 7
        %v2935 = vsub.s32 0, %v2934
        %v2936 = vrot.slane %v2887, %v2935
        %v2937 = vlaneseq
        %v2938 = vshrl.u32 %v2937, 7
        %v2939 = vsub.s32 0, %v2938
        %v2940 = vrot.slane %v2870, %v2939
        %v2941 = vlaneseq
        %v2942 = vshrl.u32 %v2941, 7
        %v2943 = vsub.s32 0, %v2942
        %v2944 = vrot.slane %v2884, %v2943
        %v2945 = vlaneseq
        %v2946 = vshrl.u32 %v2945, 7
        %v2947 = vsub.s32 0, %v2946
        %v2948 = vrot.slane %v2886, %v2947
        %v2949 = vlaneseq
        %v2950 = vshrl.u32 %v2949, 7
        %v2951 = vsub.s32 0, %v2950
        %v2952 = vrot.slane %v2888, %v2951
        %2953 = vrot.lane.b32.xlu0 %v2892, 64
        %v2954 = vpop.permute.xlu0 %2953
        %2955 = vrot.lane.b32.xlu0 %v2896, 64
        %v2956 = vpop.permute.xlu0 %2955
        %2957 = vrot.lane.b32.xlu0 %v2900, 64
        %v2958 = vpop.permute.xlu0 %2957
        %2959 = vrot.lane.b32.xlu0 %v2904, 64
        %v2960 = vpop.permute.xlu0 %2959
        %2961 = vrot.lane.b32.xlu0 %v2908, 64
        %v2962 = vpop.permute.xlu0 %2961
        %2963 = vrot.lane.b32.xlu0 %v2912, 64
        %v2964 = vpop.permute.xlu0 %2963
        %2965 = vrot.lane.b32.xlu0 %v2916, 64
        %v2966 = vpop.permute.xlu0 %2965
        %2967 = vrot.lane.b32.xlu0 %v2920, 64
        %v2968 = vpop.permute.xlu0 %2967
        %2969 = vrot.lane.b32.xlu0 %v2924, 64
        %v2970 = vpop.permute.xlu0 %2969
        %2971 = vrot.lane.b32.xlu0 %v2928, 64
        %v2972 = vpop.permute.xlu0 %2971
        %2973 = vrot.lane.b32.xlu0 %v2932, 64
        %v2974 = vpop.permute.xlu0 %2973
        %2975 = vrot.lane.b32.xlu0 %v2936, 64
        %v2976 = vpop.permute.xlu0 %2975
        %2977 = vrot.lane.b32.xlu0 %v2940, 64
        %v2978 = vpop.permute.xlu0 %2977
        %2979 = vrot.lane.b32.xlu0 %v2944, 64
        %v2980 = vpop.permute.xlu0 %2979
        %2981 = vrot.lane.b32.xlu0 %v2948, 64
        %v2982 = vpop.permute.xlu0 %2981
        %2983 = vrot.lane.b32.xlu0 %v2952, 64
        %v2984 = vpop.permute.xlu0 %2983
        %3001 = vst.msk [vmem:[%s551 + $0xb] sm:$0x1] %vm964, %v2954
        %3002 = vst.msk [vmem:[%s551 + $0x23] sm:$0x1] %vm964, %v2956
        %3003 = vst.msk [vmem:[%s551 + $0x3b] sm:$0x1] %vm964, %v2958
        %3004 = vst.msk [vmem:[%s551 + $0x53] sm:$0x1] %vm964, %v2960
        %3005 = vst.msk [vmem:[%s551 + $0x6b] sm:$0x1] %vm964, %v2962
        %3006 = vst.msk [vmem:[%s551 + $0x83] sm:$0x1] %vm964, %v2964
        %3007 = vst.msk [vmem:[%s551 + $0x9b] sm:$0x1] %vm964, %v2966
        %3008 = vst.msk [vmem:[%s551 + $0xb3] sm:$0x1] %vm964, %v2968
        %3009 = vst.msk [vmem:[%s551 + $0xcb] sm:$0x1] %vm964, %v2970
        %3010 = vst.msk [vmem:[%s551 + $0xe3] sm:$0x1] %vm964, %v2972
        %3011 = vst.msk [vmem:[%s551 + $0xfb] sm:$0x1] %vm964, %v2974
        %3012 = vst.msk [vmem:[%s551 + $0x113] sm:$0x1] %vm964, %v2976
        %3013 = vst.msk [vmem:[%s551 + $0x12b] sm:$0x1] %vm964, %v2978
        %3014 = vst.msk [vmem:[%s551 + $0x143] sm:$0x1] %vm964, %v2980
        %3015 = vst.msk [vmem:[%s551 + $0x15b] sm:$0x1] %vm964, %v2982
        %3016 = vst.msk [vmem:[%s551 + $0x173] sm:$0x1] %vm964, %v2984
        %v3017 = vmul.f32 %v742, 0.8666667
        %v3018 = vmul.f32 %v748, 0.8666667
        %v3019 = vmul.f32 %v744, 0.13333334
        %v3020 = vmul.f32 %v750, 0.13333334
        %3023 = vrot.lane.b32.xlu0 %v3019, 64
        %v3024 = vpop.permute.xlu0 %3023
        %3025 = vrot.lane.b32.xlu0 %v3020, 64
        %v3026 = vpop.permute.xlu0 %3025
        %v3029 = vadd.f32 %v3017, %v3024
        %v3030 = vadd.f32 %v3018, %v3026
        %v3033 = vcombine.high %v3029, %v3029
        %v3035 = vunpack.c.l.s4 1966171168
        %v3036 = vunpack.c.0.s8 %v3035
        %v3037 = vlaneseq
        %v3038 = vshrl.u32 %v3037, 7
        %v3039 = vsub.s32 %v3036, %v3038
        %v3040 = vrot.slane %v3029, %v3039
        %v3042 = vunpack.c.l.s4 1966171168
        %v3043 = vunpack.c.0.s8 %v3042
        %v3044 = vlaneseq
        %v3045 = vshrl.u32 %v3044, 7
        %v3046 = vsub.s32 %v3043, %v3045
        %v3047 = vrot.slane %v3033, %v3046
        %v3048 = vcombine.high %v3040, %v3040
        %v3049 = vcombine.high %v3047, %v3047
        %v3051 = vunpack.c.l.s4 1966171168
        %v3052 = vunpack.c.0.s8 %v3051
        %v3053 = vlaneseq
        %v3054 = vshrl.u32 %v3053, 7
        %v3055 = vsub.s32 %v3052, %v3054
        %v3056 = vrot.slane %v3040, %v3055
        %v3058 = vunpack.c.l.s4 1966171168
        %v3059 = vunpack.c.0.s8 %v3058
        %v3060 = vlaneseq
        %v3061 = vshrl.u32 %v3060, 7
        %v3062 = vsub.s32 %v3059, %v3061
        %v3063 = vrot.slane %v3047, %v3062
        %v3065 = vunpack.c.l.s4 1966171168
        %v3066 = vunpack.c.0.s8 %v3065
        %v3067 = vlaneseq
        %v3068 = vshrl.u32 %v3067, 7
        %v3069 = vsub.s32 %v3066, %v3068
        %v3070 = vrot.slane %v3048, %v3069
        %v3072 = vunpack.c.l.s4 1966171168
        %v3073 = vunpack.c.0.s8 %v3072
        %v3074 = vlaneseq
        %v3075 = vshrl.u32 %v3074, 7
        %v3076 = vsub.s32 %v3073, %v3075
        %v3077 = vrot.slane %v3049, %v3076
        %v3078 = vcombine.high %v3056, %v3056
        %v3079 = vcombine.high %v3063, %v3063
        %v3080 = vcombine.high %v3070, %v3070
        %v3081 = vcombine.high %v3077, %v3077
        %v3082 = vcombine.high %v3030, %v3030
        %v3084 = vunpack.c.l.s4 1966171168
        %v3085 = vunpack.c.0.s8 %v3084
        %v3086 = vlaneseq
        %v3087 = vshrl.u32 %v3086, 7
        %v3088 = vsub.s32 %v3085, %v3087
        %v3089 = vrot.slane %v3030, %v3088
        %v3091 = vunpack.c.l.s4 1966171168
        %v3092 = vunpack.c.0.s8 %v3091
        %v3093 = vlaneseq
        %v3094 = vshrl.u32 %v3093, 7
        %v3095 = vsub.s32 %v3092, %v3094
        %v3096 = vrot.slane %v3082, %v3095
        %v3097 = vcombine.high %v3089, %v3089
        %v3098 = vcombine.high %v3096, %v3096
        %v3100 = vunpack.c.l.s4 1966171168
        %v3101 = vunpack.c.0.s8 %v3100
        %v3102 = vlaneseq
        %v3103 = vshrl.u32 %v3102, 7
        %v3104 = vsub.s32 %v3101, %v3103
        %v3105 = vrot.slane %v3089, %v3104
        %v3107 = vunpack.c.l.s4 1966171168
        %v3108 = vunpack.c.0.s8 %v3107
        %v3109 = vlaneseq
        %v3110 = vshrl.u32 %v3109, 7
        %v3111 = vsub.s32 %v3108, %v3110
        %v3112 = vrot.slane %v3096, %v3111
        %v3114 = vunpack.c.l.s4 1966171168
        %v3115 = vunpack.c.0.s8 %v3114
        %v3116 = vlaneseq
        %v3117 = vshrl.u32 %v3116, 7
        %v3118 = vsub.s32 %v3115, %v3117
        %v3119 = vrot.slane %v3097, %v3118
        %v3121 = vunpack.c.l.s4 1966171168
        %v3122 = vunpack.c.0.s8 %v3121
        %v3123 = vlaneseq
        %v3124 = vshrl.u32 %v3123, 7
        %v3125 = vsub.s32 %v3122, %v3124
        %v3126 = vrot.slane %v3098, %v3125
        %v3127 = vcombine.high %v3105, %v3105
        %v3128 = vcombine.high %v3112, %v3112
        %v3129 = vcombine.high %v3119, %v3119
        %v3130 = vcombine.high %v3126, %v3126
        %3147 = vst.msk [vmem:[%s551 + $0xc] sm:$0x1] %vm964, %v3056
        %3148 = vst.msk [vmem:[%s551 + $0x24] sm:$0x1] %vm964, %v3070
        %3149 = vst.msk [vmem:[%s551 + $0x3c] sm:$0x1] %vm964, %v3078
        %3150 = vst.msk [vmem:[%s551 + $0x54] sm:$0x1] %vm964, %v3080
        %3151 = vst.msk [vmem:[%s551 + $0x6c] sm:$0x1] %vm964, %v3063
        %3152 = vst.msk [vmem:[%s551 + $0x84] sm:$0x1] %vm964, %v3077
        %3153 = vst.msk [vmem:[%s551 + $0x9c] sm:$0x1] %vm964, %v3079
        %3154 = vst.msk [vmem:[%s551 + $0xb4] sm:$0x1] %vm964, %v3081
        %3155 = vst.msk [vmem:[%s551 + $0xcc] sm:$0x1] %vm964, %v3105
        %3156 = vst.msk [vmem:[%s551 + $0xe4] sm:$0x1] %vm964, %v3119
        %3157 = vst.msk [vmem:[%s551 + $0xfc] sm:$0x1] %vm964, %v3127
        %3158 = vst.msk [vmem:[%s551 + $0x114] sm:$0x1] %vm964, %v3129
        %3159 = vst.msk [vmem:[%s551 + $0x12c] sm:$0x1] %vm964, %v3112
        %3160 = vst.msk [vmem:[%s551 + $0x144] sm:$0x1] %vm964, %v3126
        %3161 = vst.msk [vmem:[%s551 + $0x15c] sm:$0x1] %vm964, %v3128
        %3162 = vst.msk [vmem:[%s551 + $0x174] sm:$0x1] %vm964, %v3130
        %v3163 = vmul.f32 %v742, 0.4
        %v3164 = vmul.f32 %v748, 0.4
        %v3165 = vmul.f32 %v744, 0.6
        %v3166 = vmul.f32 %v750, 0.6
        %3169 = vrot.lane.b32.xlu0 %v3165, 64
        %v3170 = vpop.permute.xlu0 %3169
        %3171 = vrot.lane.b32.xlu0 %v3166, 64
        %v3172 = vpop.permute.xlu0 %3171
        %v3175 = vadd.f32 %v3163, %v3170
        %v3176 = vadd.f32 %v3164, %v3172
        %v3179 = vcombine.high %v3175, %v3175
        %v3181 = vunpack.c.l.s4 1966171168
        %v3182 = vunpack.c.0.s8 %v3181
        %v3183 = vlaneseq
        %v3184 = vshrl.u32 %v3183, 7
        %v3185 = vsub.s32 %v3182, %v3184
        %v3186 = vrot.slane %v3175, %v3185
        %v3188 = vunpack.c.l.s4 1966171168
        %v3189 = vunpack.c.0.s8 %v3188
        %v3190 = vlaneseq
        %v3191 = vshrl.u32 %v3190, 7
        %v3192 = vsub.s32 %v3189, %v3191
        %v3193 = vrot.slane %v3179, %v3192
        %v3194 = vcombine.high %v3186, %v3186
        %v3195 = vcombine.high %v3193, %v3193
        %v3197 = vunpack.c.l.s4 1966171168
        %v3198 = vunpack.c.0.s8 %v3197
        %v3199 = vlaneseq
        %v3200 = vshrl.u32 %v3199, 7
        %v3201 = vsub.s32 %v3198, %v3200
        %v3202 = vrot.slane %v3186, %v3201
        %v3204 = vunpack.c.l.s4 1966171168
        %v3205 = vunpack.c.0.s8 %v3204
        %v3206 = vlaneseq
        %v3207 = vshrl.u32 %v3206, 7
        %v3208 = vsub.s32 %v3205, %v3207
        %v3209 = vrot.slane %v3193, %v3208
        %v3211 = vunpack.c.l.s4 1966171168
        %v3212 = vunpack.c.0.s8 %v3211
        %v3213 = vlaneseq
        %v3214 = vshrl.u32 %v3213, 7
        %v3215 = vsub.s32 %v3212, %v3214
        %v3216 = vrot.slane %v3194, %v3215
        %v3218 = vunpack.c.l.s4 1966171168
        %v3219 = vunpack.c.0.s8 %v3218
        %v3220 = vlaneseq
        %v3221 = vshrl.u32 %v3220, 7
        %v3222 = vsub.s32 %v3219, %v3221
        %v3223 = vrot.slane %v3195, %v3222
        %v3224 = vcombine.high %v3202, %v3202
        %v3225 = vcombine.high %v3209, %v3209
        %v3226 = vcombine.high %v3216, %v3216
        %v3227 = vcombine.high %v3223, %v3223
        %v3228 = vcombine.high %v3176, %v3176
        %v3230 = vunpack.c.l.s4 1966171168
        %v3231 = vunpack.c.0.s8 %v3230
        %v3232 = vlaneseq
        %v3233 = vshrl.u32 %v3232, 7
        %v3234 = vsub.s32 %v3231, %v3233
        %v3235 = vrot.slane %v3176, %v3234
        %v3237 = vunpack.c.l.s4 1966171168
        %v3238 = vunpack.c.0.s8 %v3237
        %v3239 = vlaneseq
        %v3240 = vshrl.u32 %v3239, 7
        %v3241 = vsub.s32 %v3238, %v3240
        %v3242 = vrot.slane %v3228, %v3241
        %v3243 = vcombine.high %v3235, %v3235
        %v3244 = vcombine.high %v3242, %v3242
        %v3246 = vunpack.c.l.s4 1966171168
        %v3247 = vunpack.c.0.s8 %v3246
        %v3248 = vlaneseq
        %v3249 = vshrl.u32 %v3248, 7
        %v3250 = vsub.s32 %v3247, %v3249
        %v3251 = vrot.slane %v3235, %v3250
        %v3253 = vunpack.c.l.s4 1966171168
        %v3254 = vunpack.c.0.s8 %v3253
        %v3255 = vlaneseq
        %v3256 = vshrl.u32 %v3255, 7
        %v3257 = vsub.s32 %v3254, %v3256
        %v3258 = vrot.slane %v3242, %v3257
        %v3260 = vunpack.c.l.s4 1966171168
        %v3261 = vunpack.c.0.s8 %v3260
        %v3262 = vlaneseq
        %v3263 = vshrl.u32 %v3262, 7
        %v3264 = vsub.s32 %v3261, %v3263
        %v3265 = vrot.slane %v3243, %v3264
        %v3267 = vunpack.c.l.s4 1966171168
        %v3268 = vunpack.c.0.s8 %v3267
        %v3269 = vlaneseq
        %v3270 = vshrl.u32 %v3269, 7
        %v3271 = vsub.s32 %v3268, %v3270
        %v3272 = vrot.slane %v3244, %v3271
        %v3273 = vcombine.high %v3251, %v3251
        %v3274 = vcombine.high %v3258, %v3258
        %v3275 = vcombine.high %v3265, %v3265
        %v3276 = vcombine.high %v3272, %v3272
        %3293 = vst.msk [vmem:[%s551 + $0xd] sm:$0x1] %vm964, %v3202
        %3294 = vst.msk [vmem:[%s551 + $0x25] sm:$0x1] %vm964, %v3216
        %3295 = vst.msk [vmem:[%s551 + $0x3d] sm:$0x1] %vm964, %v3224
        %3296 = vst.msk [vmem:[%s551 + $0x55] sm:$0x1] %vm964, %v3226
        %3297 = vst.msk [vmem:[%s551 + $0x6d] sm:$0x1] %vm964, %v3209
        %3298 = vst.msk [vmem:[%s551 + $0x85] sm:$0x1] %vm964, %v3223
        %3299 = vst.msk [vmem:[%s551 + $0x9d] sm:$0x1] %vm964, %v3225
        %3300 = vst.msk [vmem:[%s551 + $0xb5] sm:$0x1] %vm964, %v3227
        %3301 = vst.msk [vmem:[%s551 + $0xcd] sm:$0x1] %vm964, %v3251
        %3302 = vst.msk [vmem:[%s551 + $0xe5] sm:$0x1] %vm964, %v3265
        %3303 = vst.msk [vmem:[%s551 + $0xfd] sm:$0x1] %vm964, %v3273
        %3304 = vst.msk [vmem:[%s551 + $0x115] sm:$0x1] %vm964, %v3275
        %3305 = vst.msk [vmem:[%s551 + $0x12d] sm:$0x1] %vm964, %v3258
        %3306 = vst.msk [vmem:[%s551 + $0x145] sm:$0x1] %vm964, %v3272
        %3307 = vst.msk [vmem:[%s551 + $0x15d] sm:$0x1] %vm964, %v3274
        %3308 = vst.msk [vmem:[%s551 + $0x175] sm:$0x1] %vm964, %v3276
        %v3309 = vmul.f32 %v744, 0.93333334
        %v3310 = vmul.f32 %v750, 0.93333334
        %v3311 = vmul.f32 %v744, 0.06666667
        %v3312 = vmul.f32 %v750, 0.06666667
        %3315 = vrot.lane.b32.xlu0 %v3311, 64
        %v3316 = vpop.permute.xlu0 %3315
        %3317 = vrot.lane.b32.xlu0 %v3312, 64
        %v3318 = vpop.permute.xlu0 %3317
        %v3321 = vadd.f32 %v3309, %v3316
        %v3322 = vadd.f32 %v3310, %v3318
        %v3325 = vcombine.high %v3321, %v3321
        %v3327 = vunpack.c.l.s4 1966171168
        %v3328 = vunpack.c.0.s8 %v3327
        %v3329 = vlaneseq
        %v3330 = vshrl.u32 %v3329, 7
        %v3331 = vsub.s32 %v3328, %v3330
        %v3332 = vrot.slane %v3321, %v3331
        %v3334 = vunpack.c.l.s4 1966171168
        %v3335 = vunpack.c.0.s8 %v3334
        %v3336 = vlaneseq
        %v3337 = vshrl.u32 %v3336, 7
        %v3338 = vsub.s32 %v3335, %v3337
        %v3339 = vrot.slane %v3325, %v3338
        %v3340 = vcombine.high %v3332, %v3332
        %v3341 = vcombine.high %v3339, %v3339
        %v3343 = vunpack.c.l.s4 1966171168
        %v3344 = vunpack.c.0.s8 %v3343
        %v3345 = vlaneseq
        %v3346 = vshrl.u32 %v3345, 7
        %v3347 = vsub.s32 %v3344, %v3346
        %v3348 = vrot.slane %v3332, %v3347
        %v3350 = vunpack.c.l.s4 1966171168
        %v3351 = vunpack.c.0.s8 %v3350
        %v3352 = vlaneseq
        %v3353 = vshrl.u32 %v3352, 7
        %v3354 = vsub.s32 %v3351, %v3353
        %v3355 = vrot.slane %v3339, %v3354
        %v3357 = vunpack.c.l.s4 1966171168
        %v3358 = vunpack.c.0.s8 %v3357
        %v3359 = vlaneseq
        %v3360 = vshrl.u32 %v3359, 7
        %v3361 = vsub.s32 %v3358, %v3360
        %v3362 = vrot.slane %v3340, %v3361
        %v3364 = vunpack.c.l.s4 1966171168
        %v3365 = vunpack.c.0.s8 %v3364
        %v3366 = vlaneseq
        %v3367 = vshrl.u32 %v3366, 7
        %v3368 = vsub.s32 %v3365, %v3367
        %v3369 = vrot.slane %v3341, %v3368
        %v3370 = vcombine.high %v3348, %v3348
        %v3371 = vcombine.high %v3355, %v3355
        %v3372 = vcombine.high %v3362, %v3362
        %v3373 = vcombine.high %v3369, %v3369
        %v3374 = vcombine.high %v3322, %v3322
        %v3376 = vunpack.c.l.s4 1966171168
        %v3377 = vunpack.c.0.s8 %v3376
        %v3378 = vlaneseq
        %v3379 = vshrl.u32 %v3378, 7
        %v3380 = vsub.s32 %v3377, %v3379
        %v3381 = vrot.slane %v3322, %v3380
        %v3383 = vunpack.c.l.s4 1966171168
        %v3384 = vunpack.c.0.s8 %v3383
        %v3385 = vlaneseq
        %v3386 = vshrl.u32 %v3385, 7
        %v3387 = vsub.s32 %v3384, %v3386
        %v3388 = vrot.slane %v3374, %v3387
        %v3389 = vcombine.high %v3381, %v3381
        %v3390 = vcombine.high %v3388, %v3388
        %v3392 = vunpack.c.l.s4 1966171168
        %v3393 = vunpack.c.0.s8 %v3392
        %v3394 = vlaneseq
        %v3395 = vshrl.u32 %v3394, 7
        %v3396 = vsub.s32 %v3393, %v3395
        %v3397 = vrot.slane %v3381, %v3396
        %v3399 = vunpack.c.l.s4 1966171168
        %v3400 = vunpack.c.0.s8 %v3399
        %v3401 = vlaneseq
        %v3402 = vshrl.u32 %v3401, 7
        %v3403 = vsub.s32 %v3400, %v3402
        %v3404 = vrot.slane %v3388, %v3403
        %v3406 = vunpack.c.l.s4 1966171168
        %v3407 = vunpack.c.0.s8 %v3406
        %v3408 = vlaneseq
        %v3409 = vshrl.u32 %v3408, 7
        %v3410 = vsub.s32 %v3407, %v3409
        %v3411 = vrot.slane %v3389, %v3410
        %v3413 = vunpack.c.l.s4 1966171168
        %v3414 = vunpack.c.0.s8 %v3413
        %v3415 = vlaneseq
        %v3416 = vshrl.u32 %v3415, 7
        %v3417 = vsub.s32 %v3414, %v3416
        %v3418 = vrot.slane %v3390, %v3417
        %v3419 = vcombine.high %v3397, %v3397
        %v3420 = vcombine.high %v3404, %v3404
        %v3421 = vcombine.high %v3411, %v3411
        %v3422 = vcombine.high %v3418, %v3418
        %v3423 = vlaneseq
        %v3424 = vshrl.u32 %v3423, 7
        %v3425 = vsub.s32 0, %v3424
        %v3426 = vrot.slane %v3348, %v3425
        %v3427 = vlaneseq
        %v3428 = vshrl.u32 %v3427, 7
        %v3429 = vsub.s32 0, %v3428
        %v3430 = vrot.slane %v3362, %v3429
        %v3431 = vlaneseq
        %v3432 = vshrl.u32 %v3431, 7
        %v3433 = vsub.s32 0, %v3432
        %v3434 = vrot.slane %v3370, %v3433
        %v3435 = vlaneseq
        %v3436 = vshrl.u32 %v3435, 7
        %v3437 = vsub.s32 0, %v3436
        %v3438 = vrot.slane %v3372, %v3437
        %v3439 = vlaneseq
        %v3440 = vshrl.u32 %v3439, 7
        %v3441 = vsub.s32 0, %v3440
        %v3442 = vrot.slane %v3355, %v3441
        %v3443 = vlaneseq
        %v3444 = vshrl.u32 %v3443, 7
        %v3445 = vsub.s32 0, %v3444
        %v3446 = vrot.slane %v3369, %v3445
        %v3447 = vlaneseq
        %v3448 = vshrl.u32 %v3447, 7
        %v3449 = vsub.s32 0, %v3448
        %v3450 = vrot.slane %v3371, %v3449
        %v3451 = vlaneseq
        %v3452 = vshrl.u32 %v3451, 7
        %v3453 = vsub.s32 0, %v3452
        %v3454 = vrot.slane %v3373, %v3453
        %v3455 = vlaneseq
        %v3456 = vshrl.u32 %v3455, 7
        %v3457 = vsub.s32 0, %v3456
        %v3458 = vrot.slane %v3397, %v3457
        %v3459 = vlaneseq
        %v3460 = vshrl.u32 %v3459, 7
        %v3461 = vsub.s32 0, %v3460
        %v3462 = vrot.slane %v3411, %v3461
        %v3463 = vlaneseq
        %v3464 = vshrl.u32 %v3463, 7
        %v3465 = vsub.s32 0, %v3464
        %v3466 = vrot.slane %v3419, %v3465
        %v3467 = vlaneseq
        %v3468 = vshrl.u32 %v3467, 7
        %v3469 = vsub.s32 0, %v3468
        %v3470 = vrot.slane %v3421, %v3469
        %v3471 = vlaneseq
        %v3472 = vshrl.u32 %v3471, 7
        %v3473 = vsub.s32 0, %v3472
        %v3474 = vrot.slane %v3404, %v3473
        %v3475 = vlaneseq
        %v3476 = vshrl.u32 %v3475, 7
        %v3477 = vsub.s32 0, %v3476
        %v3478 = vrot.slane %v3418, %v3477
        %v3479 = vlaneseq
        %v3480 = vshrl.u32 %v3479, 7
        %v3481 = vsub.s32 0, %v3480
        %v3482 = vrot.slane %v3420, %v3481
        %v3483 = vlaneseq
        %v3484 = vshrl.u32 %v3483, 7
        %v3485 = vsub.s32 0, %v3484
        %v3486 = vrot.slane %v3422, %v3485
        %3487 = vrot.lane.b32.xlu0 %v3426, 64
        %v3488 = vpop.permute.xlu0 %3487
        %3489 = vrot.lane.b32.xlu0 %v3430, 64
        %v3490 = vpop.permute.xlu0 %3489
        %3491 = vrot.lane.b32.xlu0 %v3434, 64
        %v3492 = vpop.permute.xlu0 %3491
        %3493 = vrot.lane.b32.xlu0 %v3438, 64
        %v3494 = vpop.permute.xlu0 %3493
        %3495 = vrot.lane.b32.xlu0 %v3442, 64
        %v3496 = vpop.permute.xlu0 %3495
        %3497 = vrot.lane.b32.xlu0 %v3446, 64
        %v3498 = vpop.permute.xlu0 %3497
        %3499 = vrot.lane.b32.xlu0 %v3450, 64
        %v3500 = vpop.permute.xlu0 %3499
        %3501 = vrot.lane.b32.xlu0 %v3454, 64
        %v3502 = vpop.permute.xlu0 %3501
        %3503 = vrot.lane.b32.xlu0 %v3458, 64
        %v3504 = vpop.permute.xlu0 %3503
        %3505 = vrot.lane.b32.xlu0 %v3462, 64
        %v3506 = vpop.permute.xlu0 %3505
        %3507 = vrot.lane.b32.xlu0 %v3466, 64
        %v3508 = vpop.permute.xlu0 %3507
        %3509 = vrot.lane.b32.xlu0 %v3470, 64
        %v3510 = vpop.permute.xlu0 %3509
        %3511 = vrot.lane.b32.xlu0 %v3474, 64
        %v3512 = vpop.permute.xlu0 %3511
        %3513 = vrot.lane.b32.xlu0 %v3478, 64
        %v3514 = vpop.permute.xlu0 %3513
        %3515 = vrot.lane.b32.xlu0 %v3482, 64
        %v3516 = vpop.permute.xlu0 %3515
        %3517 = vrot.lane.b32.xlu0 %v3486, 64
        %v3518 = vpop.permute.xlu0 %3517
        %3535 = vst.msk [vmem:[%s551 + $0xe] sm:$0x1] %vm964, %v3488
        %3536 = vst.msk [vmem:[%s551 + $0x26] sm:$0x1] %vm964, %v3490
        %3537 = vst.msk [vmem:[%s551 + $0x3e] sm:$0x1] %vm964, %v3492
        %3538 = vst.msk [vmem:[%s551 + $0x56] sm:$0x1] %vm964, %v3494
        %3539 = vst.msk [vmem:[%s551 + $0x6e] sm:$0x1] %vm964, %v3496
        %3540 = vst.msk [vmem:[%s551 + $0x86] sm:$0x1] %vm964, %v3498
        %3541 = vst.msk [vmem:[%s551 + $0x9e] sm:$0x1] %vm964, %v3500
        %3542 = vst.msk [vmem:[%s551 + $0xb6] sm:$0x1] %vm964, %v3502
        %3543 = vst.msk [vmem:[%s551 + $0xce] sm:$0x1] %vm964, %v3504
        %3544 = vst.msk [vmem:[%s551 + $0xe6] sm:$0x1] %vm964, %v3506
        %3545 = vst.msk [vmem:[%s551 + $0xfe] sm:$0x1] %vm964, %v3508
        %3546 = vst.msk [vmem:[%s551 + $0x116] sm:$0x1] %vm964, %v3510
        %3547 = vst.msk [vmem:[%s551 + $0x12e] sm:$0x1] %vm964, %v3512
        %3548 = vst.msk [vmem:[%s551 + $0x146] sm:$0x1] %vm964, %v3514
        %3549 = vst.msk [vmem:[%s551 + $0x15e] sm:$0x1] %vm964, %v3516
        %3550 = vst.msk [vmem:[%s551 + $0x176] sm:$0x1] %vm964, %v3518
        %v3551 = vmul.f32 %v744, 0.46666667
        %v3552 = vmul.f32 %v750, 0.46666667
        %v3553 = vmul.f32 %v744, 0.53333336
        %v3554 = vmul.f32 %v750, 0.53333336
        %3557 = vrot.lane.b32.xlu0 %v3553, 64
        %v3558 = vpop.permute.xlu0 %3557
        %3559 = vrot.lane.b32.xlu0 %v3554, 64
        %v3560 = vpop.permute.xlu0 %3559
        %v3563 = vadd.f32 %v3551, %v3558
        %v3564 = vadd.f32 %v3552, %v3560
        %v3567 = vcombine.high %v3563, %v3563
        %v3569 = vunpack.c.l.s4 1966171168
        %v3570 = vunpack.c.0.s8 %v3569
        %v3571 = vlaneseq
        %v3572 = vshrl.u32 %v3571, 7
        %v3573 = vsub.s32 %v3570, %v3572
        %v3574 = vrot.slane %v3563, %v3573
        %v3576 = vunpack.c.l.s4 1966171168
        %v3577 = vunpack.c.0.s8 %v3576
        %v3578 = vlaneseq
        %v3579 = vshrl.u32 %v3578, 7
        %v3580 = vsub.s32 %v3577, %v3579
        %v3581 = vrot.slane %v3567, %v3580
        %v3582 = vcombine.high %v3574, %v3574
        %v3583 = vcombine.high %v3581, %v3581
        %v3585 = vunpack.c.l.s4 1966171168
        %v3586 = vunpack.c.0.s8 %v3585
        %v3587 = vlaneseq
        %v3588 = vshrl.u32 %v3587, 7
        %v3589 = vsub.s32 %v3586, %v3588
        %v3590 = vrot.slane %v3574, %v3589
        %v3592 = vunpack.c.l.s4 1966171168
        %v3593 = vunpack.c.0.s8 %v3592
        %v3594 = vlaneseq
        %v3595 = vshrl.u32 %v3594, 7
        %v3596 = vsub.s32 %v3593, %v3595
        %v3597 = vrot.slane %v3581, %v3596
        %v3599 = vunpack.c.l.s4 1966171168
        %v3600 = vunpack.c.0.s8 %v3599
        %v3601 = vlaneseq
        %v3602 = vshrl.u32 %v3601, 7
        %v3603 = vsub.s32 %v3600, %v3602
        %v3604 = vrot.slane %v3582, %v3603
        %v3606 = vunpack.c.l.s4 1966171168
        %v3607 = vunpack.c.0.s8 %v3606
        %v3608 = vlaneseq
        %v3609 = vshrl.u32 %v3608, 7
        %v3610 = vsub.s32 %v3607, %v3609
        %v3611 = vrot.slane %v3583, %v3610
        %v3612 = vcombine.high %v3590, %v3590
        %v3613 = vcombine.high %v3597, %v3597
        %v3614 = vcombine.high %v3604, %v3604
        %v3615 = vcombine.high %v3611, %v3611
        %v3616 = vcombine.high %v3564, %v3564
        %v3618 = vunpack.c.l.s4 1966171168
        %v3619 = vunpack.c.0.s8 %v3618
        %v3620 = vlaneseq
        %v3621 = vshrl.u32 %v3620, 7
        %v3622 = vsub.s32 %v3619, %v3621
        %v3623 = vrot.slane %v3564, %v3622
        %v3625 = vunpack.c.l.s4 1966171168
        %v3626 = vunpack.c.0.s8 %v3625
        %v3627 = vlaneseq
        %v3628 = vshrl.u32 %v3627, 7
        %v3629 = vsub.s32 %v3626, %v3628
        %v3630 = vrot.slane %v3616, %v3629
        %v3631 = vcombine.high %v3623, %v3623
        %v3632 = vcombine.high %v3630, %v3630
        %v3634 = vunpack.c.l.s4 1966171168
        %v3635 = vunpack.c.0.s8 %v3634
        %v3636 = vlaneseq
        %v3637 = vshrl.u32 %v3636, 7
        %v3638 = vsub.s32 %v3635, %v3637
        %v3639 = vrot.slane %v3623, %v3638
        %v3641 = vunpack.c.l.s4 1966171168
        %v3642 = vunpack.c.0.s8 %v3641
        %v3643 = vlaneseq
        %v3644 = vshrl.u32 %v3643, 7
        %v3645 = vsub.s32 %v3642, %v3644
        %v3646 = vrot.slane %v3630, %v3645
        %v3648 = vunpack.c.l.s4 1966171168
        %v3649 = vunpack.c.0.s8 %v3648
        %v3650 = vlaneseq
        %v3651 = vshrl.u32 %v3650, 7
        %v3652 = vsub.s32 %v3649, %v3651
        %v3653 = vrot.slane %v3631, %v3652
        %v3655 = vunpack.c.l.s4 1966171168
        %v3656 = vunpack.c.0.s8 %v3655
        %v3657 = vlaneseq
        %v3658 = vshrl.u32 %v3657, 7
        %v3659 = vsub.s32 %v3656, %v3658
        %v3660 = vrot.slane %v3632, %v3659
        %v3661 = vcombine.high %v3639, %v3639
        %v3662 = vcombine.high %v3646, %v3646
        %v3663 = vcombine.high %v3653, %v3653
        %v3664 = vcombine.high %v3660, %v3660
        %v3665 = vlaneseq
        %v3666 = vshrl.u32 %v3665, 7
        %v3667 = vsub.s32 0, %v3666
        %v3668 = vrot.slane %v3590, %v3667
        %v3669 = vlaneseq
        %v3670 = vshrl.u32 %v3669, 7
        %v3671 = vsub.s32 0, %v3670
        %v3672 = vrot.slane %v3604, %v3671
        %v3673 = vlaneseq
        %v3674 = vshrl.u32 %v3673, 7
        %v3675 = vsub.s32 0, %v3674
        %v3676 = vrot.slane %v3612, %v3675
        %v3677 = vlaneseq
        %v3678 = vshrl.u32 %v3677, 7
        %v3679 = vsub.s32 0, %v3678
        %v3680 = vrot.slane %v3614, %v3679
        %v3681 = vlaneseq
        %v3682 = vshrl.u32 %v3681, 7
        %v3683 = vsub.s32 0, %v3682
        %v3684 = vrot.slane %v3597, %v3683
        %v3685 = vlaneseq
        %v3686 = vshrl.u32 %v3685, 7
        %v3687 = vsub.s32 0, %v3686
        %v3688 = vrot.slane %v3611, %v3687
        %v3689 = vlaneseq
        %v3690 = vshrl.u32 %v3689, 7
        %v3691 = vsub.s32 0, %v3690
        %v3692 = vrot.slane %v3613, %v3691
        %v3693 = vlaneseq
        %v3694 = vshrl.u32 %v3693, 7
        %v3695 = vsub.s32 0, %v3694
        %v3696 = vrot.slane %v3615, %v3695
        %v3697 = vlaneseq
        %v3698 = vshrl.u32 %v3697, 7
        %v3699 = vsub.s32 0, %v3698
        %v3700 = vrot.slane %v3639, %v3699
        %v3701 = vlaneseq
        %v3702 = vshrl.u32 %v3701, 7
        %v3703 = vsub.s32 0, %v3702
        %v3704 = vrot.slane %v3653, %v3703
        %v3705 = vlaneseq
        %v3706 = vshrl.u32 %v3705, 7
        %v3707 = vsub.s32 0, %v3706
        %v3708 = vrot.slane %v3661, %v3707
        %v3709 = vlaneseq
        %v3710 = vshrl.u32 %v3709, 7
        %v3711 = vsub.s32 0, %v3710
        %v3712 = vrot.slane %v3663, %v3711
        %v3713 = vlaneseq
        %v3714 = vshrl.u32 %v3713, 7
        %v3715 = vsub.s32 0, %v3714
        %v3716 = vrot.slane %v3646, %v3715
        %v3717 = vlaneseq
        %v3718 = vshrl.u32 %v3717, 7
        %v3719 = vsub.s32 0, %v3718
        %v3720 = vrot.slane %v3660, %v3719
        %v3721 = vlaneseq
        %v3722 = vshrl.u32 %v3721, 7
        %v3723 = vsub.s32 0, %v3722
        %v3724 = vrot.slane %v3662, %v3723
        %v3725 = vlaneseq
        %v3726 = vshrl.u32 %v3725, 7
        %v3727 = vsub.s32 0, %v3726
        %v3728 = vrot.slane %v3664, %v3727
        %3729 = vrot.lane.b32.xlu0 %v3668, 64
        %v3730 = vpop.permute.xlu0 %3729
        %3731 = vrot.lane.b32.xlu0 %v3672, 64
        %v3732 = vpop.permute.xlu0 %3731
        %3733 = vrot.lane.b32.xlu0 %v3676, 64
        %v3734 = vpop.permute.xlu0 %3733
        %3735 = vrot.lane.b32.xlu0 %v3680, 64
        %v3736 = vpop.permute.xlu0 %3735
        %3737 = vrot.lane.b32.xlu0 %v3684, 64
        %v3738 = vpop.permute.xlu0 %3737
        %3739 = vrot.lane.b32.xlu0 %v3688, 64
        %v3740 = vpop.permute.xlu0 %3739
        %3741 = vrot.lane.b32.xlu0 %v3692, 64
        %v3742 = vpop.permute.xlu0 %3741
        %3743 = vrot.lane.b32.xlu0 %v3696, 64
        %v3744 = vpop.permute.xlu0 %3743
        %3745 = vrot.lane.b32.xlu0 %v3700, 64
        %v3746 = vpop.permute.xlu0 %3745
        %3747 = vrot.lane.b32.xlu0 %v3704, 64
        %v3748 = vpop.permute.xlu0 %3747
        %3749 = vrot.lane.b32.xlu0 %v3708, 64
        %v3750 = vpop.permute.xlu0 %3749
        %3751 = vrot.lane.b32.xlu0 %v3712, 64
        %v3752 = vpop.permute.xlu0 %3751
        %3753 = vrot.lane.b32.xlu0 %v3716, 64
        %v3754 = vpop.permute.xlu0 %3753
        %3755 = vrot.lane.b32.xlu0 %v3720, 64
        %v3756 = vpop.permute.xlu0 %3755
        %3757 = vrot.lane.b32.xlu0 %v3724, 64
        %v3758 = vpop.permute.xlu0 %3757
        %3759 = vrot.lane.b32.xlu0 %v3728, 64
        %v3760 = vpop.permute.xlu0 %3759
        %3777 = vst.msk [vmem:[%s551 + $0xf] sm:$0x1] %vm964, %v3730
        %3778 = vst.msk [vmem:[%s551 + $0x27] sm:$0x1] %vm964, %v3732
        %3779 = vst.msk [vmem:[%s551 + $0x3f] sm:$0x1] %vm964, %v3734
        %3780 = vst.msk [vmem:[%s551 + $0x57] sm:$0x1] %vm964, %v3736
        %3781 = vst.msk [vmem:[%s551 + $0x6f] sm:$0x1] %vm964, %v3738
        %3782 = vst.msk [vmem:[%s551 + $0x87] sm:$0x1] %vm964, %v3740
        %3783 = vst.msk [vmem:[%s551 + $0x9f] sm:$0x1] %vm964, %v3742
        %3784 = vst.msk [vmem:[%s551 + $0xb7] sm:$0x1] %vm964, %v3744
        %3785 = vst.msk [vmem:[%s551 + $0xcf] sm:$0x1] %vm964, %v3746
        %3786 = vst.msk [vmem:[%s551 + $0xe7] sm:$0x1] %vm964, %v3748
        %3787 = vst.msk [vmem:[%s551 + $0xff] sm:$0x1] %vm964, %v3750
        %3788 = vst.msk [vmem:[%s551 + $0x117] sm:$0x1] %vm964, %v3752
        %3789 = vst.msk [vmem:[%s551 + $0x12f] sm:$0x1] %vm964, %v3754
        %3790 = vst.msk [vmem:[%s551 + $0x147] sm:$0x1] %vm964, %v3756
        %3791 = vst.msk [vmem:[%s551 + $0x15f] sm:$0x1] %vm964, %v3758
        %3792 = vst.msk [vmem:[%s551 + $0x177] sm:$0x1] %vm964, %v3760
        %v3795 = vcombine.high %v744, %v744
        %v3797 = vunpack.c.l.s4 1966171168
        %v3798 = vunpack.c.0.s8 %v3797
        %v3799 = vlaneseq
        %v3800 = vshrl.u32 %v3799, 7
        %v3801 = vsub.s32 %v3798, %v3800
        %v3802 = vrot.slane %v744, %v3801
        %v3804 = vunpack.c.l.s4 1966171168
        %v3805 = vunpack.c.0.s8 %v3804
        %v3806 = vlaneseq
        %v3807 = vshrl.u32 %v3806, 7
        %v3808 = vsub.s32 %v3805, %v3807
        %v3809 = vrot.slane %v3795, %v3808
        %v3810 = vcombine.high %v3802, %v3802
        %v3811 = vcombine.high %v3809, %v3809
        %v3813 = vunpack.c.l.s4 1966171168
        %v3814 = vunpack.c.0.s8 %v3813
        %v3815 = vlaneseq
        %v3816 = vshrl.u32 %v3815, 7
        %v3817 = vsub.s32 %v3814, %v3816
        %v3818 = vrot.slane %v3802, %v3817
        %v3820 = vunpack.c.l.s4 1966171168
        %v3821 = vunpack.c.0.s8 %v3820
        %v3822 = vlaneseq
        %v3823 = vshrl.u32 %v3822, 7
        %v3824 = vsub.s32 %v3821, %v3823
        %v3825 = vrot.slane %v3809, %v3824
        %v3827 = vunpack.c.l.s4 1966171168
        %v3828 = vunpack.c.0.s8 %v3827
        %v3829 = vlaneseq
        %v3830 = vshrl.u32 %v3829, 7
        %v3831 = vsub.s32 %v3828, %v3830
        %v3832 = vrot.slane %v3810, %v3831
        %v3834 = vunpack.c.l.s4 1966171168
        %v3835 = vunpack.c.0.s8 %v3834
        %v3836 = vlaneseq
        %v3837 = vshrl.u32 %v3836, 7
        %v3838 = vsub.s32 %v3835, %v3837
        %v3839 = vrot.slane %v3811, %v3838
        %v3840 = vcombine.high %v3818, %v3818
        %v3841 = vcombine.high %v3825, %v3825
        %v3842 = vcombine.high %v3832, %v3832
        %v3843 = vcombine.high %v3839, %v3839
        %v3844 = vcombine.high %v750, %v750
        %v3846 = vunpack.c.l.s4 1966171168
        %v3847 = vunpack.c.0.s8 %v3846
        %v3848 = vlaneseq
        %v3849 = vshrl.u32 %v3848, 7
        %v3850 = vsub.s32 %v3847, %v3849
        %v3851 = vrot.slane %v750, %v3850
        %v3853 = vunpack.c.l.s4 1966171168
        %v3854 = vunpack.c.0.s8 %v3853
        %v3855 = vlaneseq
        %v3856 = vshrl.u32 %v3855, 7
        %v3857 = vsub.s32 %v3854, %v3856
        %v3858 = vrot.slane %v3844, %v3857
        %v3859 = vcombine.high %v3851, %v3851
        %v3860 = vcombine.high %v3858, %v3858
        %v3862 = vunpack.c.l.s4 1966171168
        %v3863 = vunpack.c.0.s8 %v3862
        %v3864 = vlaneseq
        %v3865 = vshrl.u32 %v3864, 7
        %v3866 = vsub.s32 %v3863, %v3865
        %v3867 = vrot.slane %v3851, %v3866
        %v3869 = vunpack.c.l.s4 1966171168
        %v3870 = vunpack.c.0.s8 %v3869
        %v3871 = vlaneseq
        %v3872 = vshrl.u32 %v3871, 7
        %v3873 = vsub.s32 %v3870, %v3872
        %v3874 = vrot.slane %v3858, %v3873
        %v3876 = vunpack.c.l.s4 1966171168
        %v3877 = vunpack.c.0.s8 %v3876
        %v3878 = vlaneseq
        %v3879 = vshrl.u32 %v3878, 7
        %v3880 = vsub.s32 %v3877, %v3879
        %v3881 = vrot.slane %v3859, %v3880
        %v3883 = vunpack.c.l.s4 1966171168
        %v3884 = vunpack.c.0.s8 %v3883
        %v3885 = vlaneseq
        %v3886 = vshrl.u32 %v3885, 7
        %v3887 = vsub.s32 %v3884, %v3886
        %v3888 = vrot.slane %v3860, %v3887
        %v3889 = vcombine.high %v3867, %v3867
        %v3890 = vcombine.high %v3874, %v3874
        %v3891 = vcombine.high %v3881, %v3881
        %v3892 = vcombine.high %v3888, %v3888
        %3909 = vst.msk [vmem:[%s551 + $0x10] sm:$0x1] %vm964, %v3818
        %3910 = vst.msk [vmem:[%s551 + $0x28] sm:$0x1] %vm964, %v3832
        %3911 = vst.msk [vmem:[%s551 + $0x40] sm:$0x1] %vm964, %v3840
        %3912 = vst.msk [vmem:[%s551 + $0x58] sm:$0x1] %vm964, %v3842
        %3913 = vst.msk [vmem:[%s551 + $0x70] sm:$0x1] %vm964, %v3825
        %3914 = vst.msk [vmem:[%s551 + $0x88] sm:$0x1] %vm964, %v3839
        %3915 = vst.msk [vmem:[%s551 + $0xa0] sm:$0x1] %vm964, %v3841
        %3916 = vst.msk [vmem:[%s551 + $0xb8] sm:$0x1] %vm964, %v3843
        %3917 = vst.msk [vmem:[%s551 + $0xd0] sm:$0x1] %vm964, %v3867
        %3918 = vst.msk [vmem:[%s551 + $0xe8] sm:$0x1] %vm964, %v3881
        %3919 = vst.msk [vmem:[%s551 + $0x100] sm:$0x1] %vm964, %v3889
        %3920 = vst.msk [vmem:[%s551 + $0x118] sm:$0x1] %vm964, %v3891
        %3921 = vst.msk [vmem:[%s551 + $0x130] sm:$0x1] %vm964, %v3874
        %3922 = vst.msk [vmem:[%s551 + $0x148] sm:$0x1] %vm964, %v3888
        %3923 = vst.msk [vmem:[%s551 + $0x160] sm:$0x1] %vm964, %v3890
        %3924 = vst.msk [vmem:[%s551 + $0x178] sm:$0x1] %vm964, %v3892
        %v3925 = vld [vmem:[%s4] sm:$0x1]
        %v3927 = vlaneseq
        %v3928 = vshrl.u32 %v3927, 7
        %v3929 = vsub.s32 0, %v3928
        %v3930 = vrot.slane %v3925, %v3929
        %v3932 = vld [vmem:[#allocation2] sm:$0xff]
        %v3933 = vld [vmem:[#allocation2 + $0x8] sm:$0xff]
        %v3934 = vld [vmem:[#allocation2 + $0x18] sm:$0xff]
        %v3935 = vld [vmem:[#allocation2 + $0x20] sm:$0xff]
        %v3936 = vld [vmem:[#allocation2 + $0x30] sm:$0xff]
        %v3937 = vld [vmem:[#allocation2 + $0x38] sm:$0xff]
        %v3938 = vld [vmem:[#allocation2 + $0x48] sm:$0xff]
        %v3939 = vld [vmem:[#allocation2 + $0x50] sm:$0xff]
        %v3940 = vld [vmem:[#allocation2 + $0x60] sm:$0xff]
        %v3941 = vld [vmem:[#allocation2 + $0x68] sm:$0xff]
        %v3942 = vld [vmem:[#allocation2 + $0x78] sm:$0xff]
        %v3943 = vld [vmem:[#allocation2 + $0x80] sm:$0xff]
        %v3944 = vld [vmem:[#allocation2 + $0x90] sm:$0xff]
        %v3945 = vld [vmem:[#allocation2 + $0x98] sm:$0xff]
        %v3946 = vld [vmem:[#allocation2 + $0xa8] sm:$0xff]
        %v3947 = vld [vmem:[#allocation2 + $0xb0] sm:$0xff]
        %v3948 = vld [vmem:[#allocation2 + $0xc0] sm:$0xff]
        %v3949 = vld [vmem:[#allocation2 + $0xc8] sm:$0xff]
        %v3950 = vld [vmem:[#allocation2 + $0xd8] sm:$0xff]
        %v3951 = vld [vmem:[#allocation2 + $0xe0] sm:$0xff]
        %v3952 = vld [vmem:[#allocation2 + $0xf0] sm:$0xff]
        %v3953 = vld [vmem:[#allocation2 + $0xf8] sm:$0xff]
        %v3954 = vld [vmem:[#allocation2 + $0x108] sm:$0xff]
        %v3955 = vld [vmem:[#allocation2 + $0x110] sm:$0xff]
        %v3956 = vld [vmem:[#allocation2 + $0x120] sm:$0xff]
        %v3957 = vld [vmem:[#allocation2 + $0x128] sm:$0xff]
        %v3958 = vld [vmem:[#allocation2 + $0x138] sm:$0xff]
        %v3959 = vld [vmem:[#allocation2 + $0x140] sm:$0xff]
        %v3960 = vld [vmem:[#allocation2 + $0x150] sm:$0xff]
        %v3961 = vld [vmem:[#allocation2 + $0x158] sm:$0xff]
        %v3962 = vld [vmem:[#allocation2 + $0x168] sm:$0xff]
        %v3963 = vld [vmem:[#allocation2 + $0x170] sm:$0xff]
        %v3964 = vld [vmem:[#allocation2 + $0x180] sm:$0xff]
        %v3965 = vld [vmem:[#allocation2 + $0x188] sm:$0xff]
        %v3966 = vld [vmem:[#allocation2 + $0x198] sm:$0xff]
        %v3967 = vld [vmem:[#allocation2 + $0x1a0] sm:$0xff]
        %v3968 = vpack.c.bf16 %v3933, %v3932
        %v3969 = vpack.c.bf16 %v3935, %v3934
        %v3970 = vpack.c.bf16 %v3937, %v3936
        %v3971 = vpack.c.bf16 %v3939, %v3938
        %v3972 = vpack.c.bf16 %v3941, %v3940
        %v3973 = vpack.c.bf16 %v3943, %v3942
        %v3974 = vpack.c.bf16 %v3945, %v3944
        %v3975 = vpack.c.bf16 %v3947, %v3946
        %v3976 = vpack.c.bf16 %v3949, %v3948
        %v3977 = vpack.c.bf16 %v3951, %v3950
        %v3978 = vpack.c.bf16 %v3953, %v3952
        %v3979 = vpack.c.bf16 %v3955, %v3954
        %v3980 = vpack.c.bf16 %v3957, %v3956
        %v3981 = vpack.c.bf16 %v3959, %v3958
        %v3982 = vpack.c.bf16 %v3961, %v3960
        %v3983 = vpack.c.bf16 %v3963, %v3962
        %v3984 = vpack.c.bf16 %v3965, %v3964
        %v3985 = vpack.c.bf16 %v3967, %v3966
        %v3986 = vld [vmem:[#allocation9] sm:$0xf]
        %v3987 = vld [vmem:[#allocation9 + $0x4] sm:$0xf]
        %v3988 = vld [vmem:[#allocation9 + $0x8] sm:$0xf]
        %v3989 = vld [vmem:[#allocation9 + $0xc] sm:$0xf]
        %v3990 = vld [vmem:[#allocation9 + $0x10] sm:$0xf]
        %v3991 = vld [vmem:[#allocation9 + $0x14] sm:$0xf]
        %v3992 = vld [vmem:[#allocation9 + $0x18] sm:$0xf]
        %v3993 = vld [vmem:[#allocation9 + $0x1c] sm:$0xf]
        %v3994 = vld [vmem:[#allocation9 + $0x20] sm:$0xf]
        %v3995 = vld [vmem:[#allocation9 + $0x24] sm:$0xf]
        %v3996 = vld [vmem:[#allocation9 + $0x28] sm:$0xf]
        %v3997 = vld [vmem:[#allocation9 + $0x2c] sm:$0xf]
        %v3998 = vld [vmem:[#allocation9 + $0x30] sm:$0xf]
        %v3999 = vld [vmem:[#allocation9 + $0x34] sm:$0xf]
        %v4000 = vld [vmem:[#allocation9 + $0x38] sm:$0xf]
        %v4001 = vld [vmem:[#allocation9 + $0x3c] sm:$0xf]
        %v4018 = vunpack.c.l.b16 %v3986
        %v4019 = vunpack.c.l.b16 %v3987
        %v4020 = vunpack.c.l.b16 %v3988
        %v4021 = vunpack.c.l.b16 %v3989
        %v4022 = vunpack.c.l.b16 %v3990
        %v4023 = vunpack.c.l.b16 %v3991
        %v4024 = vunpack.c.l.b16 %v3992
        %v4025 = vunpack.c.l.b16 %v3993
        %v4026 = vunpack.c.l.b16 %v3994
        %v4027 = vunpack.c.l.b16 %v3995
        %v4028 = vunpack.c.l.b16 %v3996
        %v4029 = vunpack.c.l.b16 %v3997
        %v4030 = vunpack.c.l.b16 %v3998
        %v4031 = vunpack.c.l.b16 %v3999
        %v4032 = vunpack.c.l.b16 %v4000
        %v4033 = vunpack.c.l.b16 %v4001
        %v4034 = vpack.c.b16 %v4019, %v4018
        %v4035 = vpack.c.b16 %v4021, %v4020
        %v4036 = vpack.c.b16 %v4023, %v4022
        %v4037 = vpack.c.b16 %v4025, %v4024
        %v4038 = vpack.c.b16 %v4027, %v4026
        %v4039 = vpack.c.b16 %v4029, %v4028
        %v4040 = vpack.c.b16 %v4031, %v4030
        %v4041 = vpack.c.b16 %v4033, %v4032
        %4050 = vmatprep.subr.bf16.mxu0 0
        %4051 = vmatpush1.bf16.msra.mxu0 %v4041
        %4052 = vmatprep.subr.bf16.mxu0 0
        %4053 = vmatpush1.bf16.msra.mxu0 %v4040
        %4054 = vmatprep.subr.bf16.mxu0 0
        %4055 = vmatpush1.bf16.msra.mxu0 %v4039
        %4056 = vmatprep.subr.bf16.mxu0 0
        %4057 = vmatpush1.bf16.msra.mxu0 %v4038
        %4058 = vmatprep.subr.bf16.mxu0 0
        %4059 = vmatpush1.bf16.msra.mxu0 %v4037
        %4060 = vmatprep.subr.bf16.mxu0 0
        %4061 = vmatpush1.bf16.msra.mxu0 %v4036
        %4062 = vmatprep.subr.bf16.mxu0 0
        %4063 = vmatpush1.bf16.msra.mxu0 %v4035
        %4064 = vmatprep.subr.bf16.mxu0 0
        %4065 = vmatpush1.bf16.msra.mxu0 %v4034
        %4066 = vmatprep.subr.bf16.mxu0 0
        %4067 = vmatpush2.bf16.msra.mxu0 0
        %4068 = vmatprep.subr.bf16.mxu0 0
        %4069 = vmatpush2.bf16.msra.mxu0 0
        %4070 = vmatprep.subr.bf16.mxu0 0
        %4071 = vmatpush2.bf16.msra.mxu0 0
        %4072 = vmatprep.subr.bf16.mxu0 0
        %4073 = vmatpush2.bf16.msra.mxu0 0
        %4074 = vmatprep.subr.bf16.mxu0 0
        %4075 = vmatpush2.bf16.msra.mxu0 0
        %4076 = vmatprep.subr.bf16.mxu0 0
        %4077 = vmatpush2.bf16.msra.mxu0 0
        %4078 = vmatprep.subr.bf16.mxu0 0
        %4079 = vmatpush2.bf16.msra.mxu0 0
        %4080 = vmatprep.subr.bf16.mxu0 0
        %4081 = vmatpush2.bf16.msra.mxu0 0
        %4082 = vmatprep.mubr.bf16.mxu0 0
        %4083 = vmatmul.mubr.bf16.gmra.mxu0 %v3968
        %v4084 = vpop.f32.mrf.mxu0
        %v4085 = vadd.f32 0.0, %v4084
        %v4086 = vpop.f32.mrf.mxu0
        %v4087 = vpop.f32.mrf.mxu0
        %v4088 = vadd.f32 0.0, %v4087
        %v4089 = vpop.f32.mrf.mxu0
        %4090 = vmatprep.mubr.bf16.mxu0 0
        %4091 = vmatmul.mubr.bf16.gmra.mxu0 %v3969
        %v4092 = vpop.f32.mrf.mxu0
        %v4093 = vadd.f32 0.0, %v4092
        %v4094 = vpop.f32.mrf.mxu0
        %v4095 = vpop.f32.mrf.mxu0
        %v4096 = vadd.f32 0.0, %v4095
        %v4097 = vpop.f32.mrf.mxu0
        %4098 = vmatprep.mubr.bf16.mxu0 0
        %4099 = vmatmul.mubr.bf16.gmra.mxu0 %v3970
        %v4100 = vpop.f32.mrf.mxu0
        %v4101 = vadd.f32 0.0, %v4100
        %v4102 = vpop.f32.mrf.mxu0
        %v4103 = vpop.f32.mrf.mxu0
        %v4104 = vadd.f32 0.0, %v4103
        %v4105 = vpop.f32.mrf.mxu0
        %4106 = vmatprep.mubr.bf16.mxu0 0
        %4107 = vmatmul.mubr.bf16.gmra.mxu0 %v3971
        %v4108 = vpop.f32.mrf.mxu0
        %v4109 = vadd.f32 0.0, %v4108
        %v4110 = vpop.f32.mrf.mxu0
        %v4111 = vpop.f32.mrf.mxu0
        %v4112 = vadd.f32 0.0, %v4111
        %v4113 = vpop.f32.mrf.mxu0
        %4114 = vmatprep.mubr.bf16.mxu0 0
        %4115 = vmatmul.mubr.bf16.gmra.mxu0 %v3972
        %v4116 = vpop.f32.mrf.mxu0
        %v4117 = vadd.f32 0.0, %v4116
        %v4118 = vpop.f32.mrf.mxu0
        %v4119 = vpop.f32.mrf.mxu0
        %v4120 = vadd.f32 0.0, %v4119
        %v4121 = vpop.f32.mrf.mxu0
        %4122 = vmatprep.mubr.bf16.mxu0 0
        %4123 = vmatmul.mubr.bf16.gmra.mxu0 %v3973
        %v4124 = vpop.f32.mrf.mxu0
        %v4125 = vadd.f32 0.0, %v4124
        %v4126 = vpop.f32.mrf.mxu0
        %v4127 = vpop.f32.mrf.mxu0
        %v4128 = vadd.f32 0.0, %v4127
        %v4129 = vpop.f32.mrf.mxu0
        %4130 = vmatprep.mubr.bf16.mxu0 0
        %4131 = vmatmul.mubr.bf16.gmra.mxu0 %v3974
        %v4132 = vpop.f32.mrf.mxu0
        %v4133 = vadd.f32 0.0, %v4132
        %v4134 = vpop.f32.mrf.mxu0
        %v4135 = vpop.f32.mrf.mxu0
        %v4136 = vadd.f32 0.0, %v4135
        %v4137 = vpop.f32.mrf.mxu0
        %4138 = vmatprep.mubr.bf16.mxu0 0
        %4139 = vmatmul.mubr.bf16.gmra.mxu0 %v3975
        %v4140 = vpop.f32.mrf.mxu0
        %v4141 = vadd.f32 0.0, %v4140
        %v4142 = vpop.f32.mrf.mxu0
        %v4143 = vpop.f32.mrf.mxu0
        %v4144 = vadd.f32 0.0, %v4143
        %v4145 = vpop.f32.mrf.mxu0
        %4146 = vmatprep.mubr.bf16.mxu0 0
        %4147 = vmatmul.mubr.bf16.gmra.mxu0 %v3976
        %v4148 = vpop.f32.mrf.mxu0
        %v4149 = vadd.f32 0.0, %v4148
        %v4150 = vpop.f32.mrf.mxu0
        %v4151 = vpop.f32.mrf.mxu0
        %v4152 = vadd.f32 0.0, %v4151
        %v4153 = vpop.f32.mrf.mxu0
        %4154 = vmatprep.mubr.bf16.mxu0 0
        %4155 = vmatmul.mubr.bf16.gmra.mxu0 %v3977
        %v4156 = vpop.f32.mrf.mxu0
        %v4157 = vadd.f32 0.0, %v4156
        %v4158 = vpop.f32.mrf.mxu0
        %v4159 = vpop.f32.mrf.mxu0
        %v4160 = vadd.f32 0.0, %v4159
        %v4161 = vpop.f32.mrf.mxu0
        %4162 = vmatprep.mubr.bf16.mxu0 0
        %4163 = vmatmul.mubr.bf16.gmra.mxu0 %v3978
        %v4164 = vpop.f32.mrf.mxu0
        %v4165 = vadd.f32 0.0, %v4164
        %v4166 = vpop.f32.mrf.mxu0
        %v4167 = vpop.f32.mrf.mxu0
        %v4168 = vadd.f32 0.0, %v4167
        %v4169 = vpop.f32.mrf.mxu0
        %4170 = vmatprep.mubr.bf16.mxu0 0
        %4171 = vmatmul.mubr.bf16.gmra.mxu0 %v3979
        %v4172 = vpop.f32.mrf.mxu0
        %v4173 = vadd.f32 0.0, %v4172
        %v4174 = vpop.f32.mrf.mxu0
        %v4175 = vpop.f32.mrf.mxu0
        %v4176 = vadd.f32 0.0, %v4175
        %v4177 = vpop.f32.mrf.mxu0
        %4178 = vmatprep.mubr.bf16.mxu0 0
        %4179 = vmatmul.mubr.bf16.gmra.mxu0 %v3980
        %v4180 = vpop.f32.mrf.mxu0
        %v4181 = vadd.f32 0.0, %v4180
        %v4182 = vpop.f32.mrf.mxu0
        %v4183 = vpop.f32.mrf.mxu0
        %v4184 = vadd.f32 0.0, %v4183
        %v4185 = vpop.f32.mrf.mxu0
        %4186 = vmatprep.mubr.bf16.mxu0 0
        %4187 = vmatmul.mubr.bf16.gmra.mxu0 %v3981
        %v4188 = vpop.f32.mrf.mxu0
        %v4189 = vadd.f32 0.0, %v4188
        %v4190 = vpop.f32.mrf.mxu0
        %v4191 = vpop.f32.mrf.mxu0
        %v4192 = vadd.f32 0.0, %v4191
        %v4193 = vpop.f32.mrf.mxu0
        %4194 = vmatprep.mubr.bf16.mxu0 0
        %4195 = vmatmul.mubr.bf16.gmra.mxu0 %v3982
        %v4196 = vpop.f32.mrf.mxu0
        %v4197 = vadd.f32 0.0, %v4196
        %v4198 = vpop.f32.mrf.mxu0
        %v4199 = vpop.f32.mrf.mxu0
        %v4200 = vadd.f32 0.0, %v4199
        %v4201 = vpop.f32.mrf.mxu0
        %4202 = vmatprep.mubr.bf16.mxu0 0
        %4203 = vmatmul.mubr.bf16.gmra.mxu0 %v3983
        %v4204 = vpop.f32.mrf.mxu0
        %v4205 = vadd.f32 0.0, %v4204
        %v4206 = vpop.f32.mrf.mxu0
        %v4207 = vpop.f32.mrf.mxu0
        %v4208 = vadd.f32 0.0, %v4207
        %v4209 = vpop.f32.mrf.mxu0
        %4210 = vdwg.mxu0
        %v4211 = vadd.f32 %v3930, %v4085
        %v4212 = vadd.f32 %v3930, %v4088
        %v4213 = vadd.f32 %v3930, %v4093
        %v4214 = vadd.f32 %v3930, %v4096
        %v4215 = vadd.f32 %v3930, %v4101
        %v4216 = vadd.f32 %v3930, %v4104
        %v4217 = vadd.f32 %v3930, %v4109
        %v4218 = vadd.f32 %v3930, %v4112
        %v4219 = vadd.f32 %v3930, %v4117
        %v4220 = vadd.f32 %v3930, %v4120
        %v4221 = vadd.f32 %v3930, %v4125
        %v4222 = vadd.f32 %v3930, %v4128
        %v4223 = vadd.f32 %v3930, %v4133
        %v4224 = vadd.f32 %v3930, %v4136
        %v4225 = vadd.f32 %v3930, %v4141
        %v4226 = vadd.f32 %v3930, %v4144
        %v4227 = vadd.f32 %v3930, %v4149
        %v4228 = vadd.f32 %v3930, %v4152
        %v4229 = vadd.f32 %v3930, %v4157
        %v4230 = vadd.f32 %v3930, %v4160
        %v4231 = vadd.f32 %v3930, %v4165
        %v4232 = vadd.f32 %v3930, %v4168
        %v4233 = vadd.f32 %v3930, %v4173
        %v4234 = vadd.f32 %v3930, %v4176
        %v4235 = vadd.f32 %v3930, %v4181
        %v4236 = vadd.f32 %v3930, %v4184
        %v4237 = vadd.f32 %v3930, %v4189
        %v4238 = vadd.f32 %v3930, %v4192
        %v4239 = vadd.f32 %v3930, %v4197
        %v4240 = vadd.f32 %v3930, %v4200
        %v4241 = vadd.f32 %v3930, %v4205
        %v4242 = vadd.f32 %v3930, %v4208
        %s4243 = scalar_lea.vmem [#allocation9], 192
        %v4244 = vld [vmem:[%s4243] sm:$0xf]
        %v4245 = vld [vmem:[%s4243 + $0x4] sm:$0xf]
        %v4246 = vld [vmem:[%s4243 + $0x8] sm:$0xf]
        %v4247 = vld [vmem:[%s4243 + $0xc] sm:$0xf]
        %v4248 = vld [vmem:[%s4243 + $0x10] sm:$0xf]
        %v4249 = vld [vmem:[%s4243 + $0x14] sm:$0xf]
        %v4250 = vld [vmem:[%s4243 + $0x18] sm:$0xf]
        %v4251 = vld [vmem:[%s4243 + $0x1c] sm:$0xf]
        %v4252 = vld [vmem:[%s4243 + $0x20] sm:$0xf]
        %v4253 = vld [vmem:[%s4243 + $0x24] sm:$0xf]
        %v4254 = vld [vmem:[%s4243 + $0x28] sm:$0xf]
        %v4255 = vld [vmem:[%s4243 + $0x2c] sm:$0xf]
        %v4256 = vld [vmem:[%s4243 + $0x30] sm:$0xf]
        %v4257 = vld [vmem:[%s4243 + $0x34] sm:$0xf]
        %v4258 = vld [vmem:[%s4243 + $0x38] sm:$0xf]
        %v4259 = vld [vmem:[%s4243 + $0x3c] sm:$0xf]
        %v4276 = vunpack.c.l.b16 %v4244
        %v4277 = vunpack.c.l.b16 %v4245
        %v4278 = vunpack.c.l.b16 %v4246
        %v4279 = vunpack.c.l.b16 %v4247
        %v4280 = vunpack.c.l.b16 %v4248
        %v4281 = vunpack.c.l.b16 %v4249
        %v4282 = vunpack.c.l.b16 %v4250
        %v4283 = vunpack.c.l.b16 %v4251
        %v4284 = vunpack.c.l.b16 %v4252
        %v4285 = vunpack.c.l.b16 %v4253
        %v4286 = vunpack.c.l.b16 %v4254
        %v4287 = vunpack.c.l.b16 %v4255
        %v4288 = vunpack.c.l.b16 %v4256
        %v4289 = vunpack.c.l.b16 %v4257
        %v4290 = vunpack.c.l.b16 %v4258
        %v4291 = vunpack.c.l.b16 %v4259
        %v4292 = vpack.c.b16 %v4277, %v4276
        %v4293 = vpack.c.b16 %v4279, %v4278
        %v4294 = vpack.c.b16 %v4281, %v4280
        %v4295 = vpack.c.b16 %v4283, %v4282
        %v4296 = vpack.c.b16 %v4285, %v4284
        %v4297 = vpack.c.b16 %v4287, %v4286
        %v4298 = vpack.c.b16 %v4289, %v4288
        %v4299 = vpack.c.b16 %v4291, %v4290
        %4308 = vmatprep.subr.bf16.mxu0 0
        %4309 = vmatpush1.bf16.msra.mxu0 %v4299
        %4310 = vmatprep.subr.bf16.mxu0 0
        %4311 = vmatpush1.bf16.msra.mxu0 %v4298
        %4312 = vmatprep.subr.bf16.mxu0 0
        %4313 = vmatpush1.bf16.msra.mxu0 %v4297
        %4314 = vmatprep.subr.bf16.mxu0 0
        %4315 = vmatpush1.bf16.msra.mxu0 %v4296
        %4316 = vmatprep.subr.bf16.mxu0 0
        %4317 = vmatpush1.bf16.msra.mxu0 %v4295
        %4318 = vmatprep.subr.bf16.mxu0 0
        %4319 = vmatpush1.bf16.msra.mxu0 %v4294
        %4320 = vmatprep.subr.bf16.mxu0 0
        %4321 = vmatpush1.bf16.msra.mxu0 %v4293
        %4322 = vmatprep.subr.bf16.mxu0 0
        %4323 = vmatpush1.bf16.msra.mxu0 %v4292
        %4324 = vmatprep.subr.bf16.mxu0 0
        %4325 = vmatpush2.bf16.msra.mxu0 0
        %4326 = vmatprep.subr.bf16.mxu0 0
        %4327 = vmatpush2.bf16.msra.mxu0 0
        %4328 = vmatprep.subr.bf16.mxu0 0
        %4329 = vmatpush2.bf16.msra.mxu0 0
        %4330 = vmatprep.subr.bf16.mxu0 0
        %4331 = vmatpush2.bf16.msra.mxu0 0
        %4332 = vmatprep.subr.bf16.mxu0 0
        %4333 = vmatpush2.bf16.msra.mxu0 0
        %4334 = vmatprep.subr.bf16.mxu0 0
        %4335 = vmatpush2.bf16.msra.mxu0 0
        %4336 = vmatprep.subr.bf16.mxu0 0
        %4337 = vmatpush2.bf16.msra.mxu0 0
        %4338 = vmatprep.subr.bf16.mxu0 0
        %4339 = vmatpush2.bf16.msra.mxu0 0
        %4340 = vmatprep.mubr.bf16.mxu0 0
        %4341 = vmatmul.mubr.bf16.gmra.mxu0 %v3969
        %v4342 = vpop.f32.mrf.mxu0
        %v4343 = vadd.f32 0.0, %v4342
        %v4344 = vpop.f32.mrf.mxu0
        %v4345 = vpop.f32.mrf.mxu0
        %v4346 = vadd.f32 0.0, %v4345
        %v4347 = vpop.f32.mrf.mxu0
        %4348 = vmatprep.mubr.bf16.mxu0 0
        %4349 = vmatmul.mubr.bf16.gmra.mxu0 %v3970
        %v4350 = vpop.f32.mrf.mxu0
        %v4351 = vadd.f32 0.0, %v4350
        %v4352 = vpop.f32.mrf.mxu0
        %v4353 = vpop.f32.mrf.mxu0
        %v4354 = vadd.f32 0.0, %v4353
        %v4355 = vpop.f32.mrf.mxu0
        %4356 = vmatprep.mubr.bf16.mxu0 0
        %4357 = vmatmul.mubr.bf16.gmra.mxu0 %v3971
        %v4358 = vpop.f32.mrf.mxu0
        %v4359 = vadd.f32 0.0, %v4358
        %v4360 = vpop.f32.mrf.mxu0
        %v4361 = vpop.f32.mrf.mxu0
        %v4362 = vadd.f32 0.0, %v4361
        %v4363 = vpop.f32.mrf.mxu0
        %4364 = vmatprep.mubr.bf16.mxu0 0
        %4365 = vmatmul.mubr.bf16.gmra.mxu0 %v3972
        %v4366 = vpop.f32.mrf.mxu0
        %v4367 = vadd.f32 0.0, %v4366
        %v4368 = vpop.f32.mrf.mxu0
        %v4369 = vpop.f32.mrf.mxu0
        %v4370 = vadd.f32 0.0, %v4369
        %v4371 = vpop.f32.mrf.mxu0
        %4372 = vmatprep.mubr.bf16.mxu0 0
        %4373 = vmatmul.mubr.bf16.gmra.mxu0 %v3973
        %v4374 = vpop.f32.mrf.mxu0
        %v4375 = vadd.f32 0.0, %v4374
        %v4376 = vpop.f32.mrf.mxu0
        %v4377 = vpop.f32.mrf.mxu0
        %v4378 = vadd.f32 0.0, %v4377
        %v4379 = vpop.f32.mrf.mxu0
        %4380 = vmatprep.mubr.bf16.mxu0 0
        %4381 = vmatmul.mubr.bf16.gmra.mxu0 %v3974
        %v4382 = vpop.f32.mrf.mxu0
        %v4383 = vadd.f32 0.0, %v4382
        %v4384 = vpop.f32.mrf.mxu0
        %v4385 = vpop.f32.mrf.mxu0
        %v4386 = vadd.f32 0.0, %v4385
        %v4387 = vpop.f32.mrf.mxu0
        %4388 = vmatprep.mubr.bf16.mxu0 0
        %4389 = vmatmul.mubr.bf16.gmra.mxu0 %v3975
        %v4390 = vpop.f32.mrf.mxu0
        %v4391 = vadd.f32 0.0, %v4390
        %v4392 = vpop.f32.mrf.mxu0
        %v4393 = vpop.f32.mrf.mxu0
        %v4394 = vadd.f32 0.0, %v4393
        %v4395 = vpop.f32.mrf.mxu0
        %4396 = vmatprep.mubr.bf16.mxu0 0
        %4397 = vmatmul.mubr.bf16.gmra.mxu0 %v3976
        %v4398 = vpop.f32.mrf.mxu0
        %v4399 = vadd.f32 0.0, %v4398
        %v4400 = vpop.f32.mrf.mxu0
        %v4401 = vpop.f32.mrf.mxu0
        %v4402 = vadd.f32 0.0, %v4401
        %v4403 = vpop.f32.mrf.mxu0
        %4404 = vmatprep.mubr.bf16.mxu0 0
        %4405 = vmatmul.mubr.bf16.gmra.mxu0 %v3977
        %v4406 = vpop.f32.mrf.mxu0
        %v4407 = vadd.f32 0.0, %v4406
        %v4408 = vpop.f32.mrf.mxu0
        %v4409 = vpop.f32.mrf.mxu0
        %v4410 = vadd.f32 0.0, %v4409
        %v4411 = vpop.f32.mrf.mxu0
        %4412 = vmatprep.mubr.bf16.mxu0 0
        %4413 = vmatmul.mubr.bf16.gmra.mxu0 %v3978
        %v4414 = vpop.f32.mrf.mxu0
        %v4415 = vadd.f32 0.0, %v4414
        %v4416 = vpop.f32.mrf.mxu0
        %v4417 = vpop.f32.mrf.mxu0
        %v4418 = vadd.f32 0.0, %v4417
        %v4419 = vpop.f32.mrf.mxu0
        %4420 = vmatprep.mubr.bf16.mxu0 0
        %4421 = vmatmul.mubr.bf16.gmra.mxu0 %v3979
        %v4422 = vpop.f32.mrf.mxu0
        %v4423 = vadd.f32 0.0, %v4422
        %v4424 = vpop.f32.mrf.mxu0
        %v4425 = vpop.f32.mrf.mxu0
        %v4426 = vadd.f32 0.0, %v4425
        %v4427 = vpop.f32.mrf.mxu0
        %4428 = vmatprep.mubr.bf16.mxu0 0
        %4429 = vmatmul.mubr.bf16.gmra.mxu0 %v3980
        %v4430 = vpop.f32.mrf.mxu0
        %v4431 = vadd.f32 0.0, %v4430
        %v4432 = vpop.f32.mrf.mxu0
        %v4433 = vpop.f32.mrf.mxu0
        %v4434 = vadd.f32 0.0, %v4433
        %v4435 = vpop.f32.mrf.mxu0
        %4436 = vmatprep.mubr.bf16.mxu0 0
        %4437 = vmatmul.mubr.bf16.gmra.mxu0 %v3981
        %v4438 = vpop.f32.mrf.mxu0
        %v4439 = vadd.f32 0.0, %v4438
        %v4440 = vpop.f32.mrf.mxu0
        %v4441 = vpop.f32.mrf.mxu0
        %v4442 = vadd.f32 0.0, %v4441
        %v4443 = vpop.f32.mrf.mxu0
        %4444 = vmatprep.mubr.bf16.mxu0 0
        %4445 = vmatmul.mubr.bf16.gmra.mxu0 %v3982
        %v4446 = vpop.f32.mrf.mxu0
        %v4447 = vadd.f32 0.0, %v4446
        %v4448 = vpop.f32.mrf.mxu0
        %v4449 = vpop.f32.mrf.mxu0
        %v4450 = vadd.f32 0.0, %v4449
        %v4451 = vpop.f32.mrf.mxu0
        %4452 = vmatprep.mubr.bf16.mxu0 0
        %4453 = vmatmul.mubr.bf16.gmra.mxu0 %v3983
        %v4454 = vpop.f32.mrf.mxu0
        %v4455 = vadd.f32 0.0, %v4454
        %v4456 = vpop.f32.mrf.mxu0
        %v4457 = vpop.f32.mrf.mxu0
        %v4458 = vadd.f32 0.0, %v4457
        %v4459 = vpop.f32.mrf.mxu0
        %4460 = vmatprep.mubr.bf16.mxu0 0
        %4461 = vmatmul.mubr.bf16.gmra.mxu0 %v3984
        %v4462 = vpop.f32.mrf.mxu0
        %v4463 = vadd.f32 0.0, %v4462
        %v4464 = vpop.f32.mrf.mxu0
        %v4465 = vpop.f32.mrf.mxu0
        %v4466 = vadd.f32 0.0, %v4465
        %v4467 = vpop.f32.mrf.mxu0
        %4468 = vdwg.mxu0
        %v4469 = vadd.f32 %v4211, %v4343
        %v4470 = vadd.f32 %v4212, %v4346
        %v4471 = vadd.f32 %v4213, %v4351
        %v4472 = vadd.f32 %v4214, %v4354
        %v4473 = vadd.f32 %v4215, %v4359
        %v4474 = vadd.f32 %v4216, %v4362
        %v4475 = vadd.f32 %v4217, %v4367
        %v4476 = vadd.f32 %v4218, %v4370
        %v4477 = vadd.f32 %v4219, %v4375
        %v4478 = vadd.f32 %v4220, %v4378
        %v4479 = vadd.f32 %v4221, %v4383
        %v4480 = vadd.f32 %v4222, %v4386
        %v4481 = vadd.f32 %v4223, %v4391
        %v4482 = vadd.f32 %v4224, %v4394
        %v4483 = vadd.f32 %v4225, %v4399
        %v4484 = vadd.f32 %v4226, %v4402
        %v4485 = vadd.f32 %v4227, %v4407
        %v4486 = vadd.f32 %v4228, %v4410
        %v4487 = vadd.f32 %v4229, %v4415
        %v4488 = vadd.f32 %v4230, %v4418
        %v4489 = vadd.f32 %v4231, %v4423
        %v4490 = vadd.f32 %v4232, %v4426
        %v4491 = vadd.f32 %v4233, %v4431
        %v4492 = vadd.f32 %v4234, %v4434
        %v4493 = vadd.f32 %v4235, %v4439
        %v4494 = vadd.f32 %v4236, %v4442
        %v4495 = vadd.f32 %v4237, %v4447
        %v4496 = vadd.f32 %v4238, %v4450
        %v4497 = vadd.f32 %v4239, %v4455
        %v4498 = vadd.f32 %v4240, %v4458
        %v4499 = vadd.f32 %v4241, %v4463
        %v4500 = vadd.f32 %v4242, %v4466
        %s4501 = scalar_lea.vmem [#allocation9], 384
        %v4502 = vld [vmem:[%s4501] sm:$0xf]
        %v4503 = vld [vmem:[%s4501 + $0x4] sm:$0xf]
        %v4504 = vld [vmem:[%s4501 + $0x8] sm:$0xf]
        %v4505 = vld [vmem:[%s4501 + $0xc] sm:$0xf]
        %v4506 = vld [vmem:[%s4501 + $0x10] sm:$0xf]
        %v4507 = vld [vmem:[%s4501 + $0x14] sm:$0xf]
        %v4508 = vld [vmem:[%s4501 + $0x18] sm:$0xf]
        %v4509 = vld [vmem:[%s4501 + $0x1c] sm:$0xf]
        %v4510 = vld [vmem:[%s4501 + $0x20] sm:$0xf]
        %v4511 = vld [vmem:[%s4501 + $0x24] sm:$0xf]
        %v4512 = vld [vmem:[%s4501 + $0x28] sm:$0xf]
        %v4513 = vld [vmem:[%s4501 + $0x2c] sm:$0xf]
        %v4514 = vld [vmem:[%s4501 + $0x30] sm:$0xf]
        %v4515 = vld [vmem:[%s4501 + $0x34] sm:$0xf]
        %v4516 = vld [vmem:[%s4501 + $0x38] sm:$0xf]
        %v4517 = vld [vmem:[%s4501 + $0x3c] sm:$0xf]
        %v4534 = vunpack.c.l.b16 %v4502
        %v4535 = vunpack.c.l.b16 %v4503
        %v4536 = vunpack.c.l.b16 %v4504
        %v4537 = vunpack.c.l.b16 %v4505
        %v4538 = vunpack.c.l.b16 %v4506
        %v4539 = vunpack.c.l.b16 %v4507
        %v4540 = vunpack.c.l.b16 %v4508
        %v4541 = vunpack.c.l.b16 %v4509
        %v4542 = vunpack.c.l.b16 %v4510
        %v4543 = vunpack.c.l.b16 %v4511
        %v4544 = vunpack.c.l.b16 %v4512
        %v4545 = vunpack.c.l.b16 %v4513
        %v4546 = vunpack.c.l.b16 %v4514
        %v4547 = vunpack.c.l.b16 %v4515
        %v4548 = vunpack.c.l.b16 %v4516
        %v4549 = vunpack.c.l.b16 %v4517
        %v4550 = vpack.c.b16 %v4535, %v4534
        %v4551 = vpack.c.b16 %v4537, %v4536
        %v4552 = vpack.c.b16 %v4539, %v4538
        %v4553 = vpack.c.b16 %v4541, %v4540
        %v4554 = vpack.c.b16 %v4543, %v4542
        %v4555 = vpack.c.b16 %v4545, %v4544
        %v4556 = vpack.c.b16 %v4547, %v4546
        %v4557 = vpack.c.b16 %v4549, %v4548
        %4566 = vmatprep.subr.bf16.mxu0 0
        %4567 = vmatpush1.bf16.msra.mxu0 %v4557
        %4568 = vmatprep.subr.bf16.mxu0 0
        %4569 = vmatpush1.bf16.msra.mxu0 %v4556
        %4570 = vmatprep.subr.bf16.mxu0 0
        %4571 = vmatpush1.bf16.msra.mxu0 %v4555
        %4572 = vmatprep.subr.bf16.mxu0 0
        %4573 = vmatpush1.bf16.msra.mxu0 %v4554
        %4574 = vmatprep.subr.bf16.mxu0 0
        %4575 = vmatpush1.bf16.msra.mxu0 %v4553
        %4576 = vmatprep.subr.bf16.mxu0 0
        %4577 = vmatpush1.bf16.msra.mxu0 %v4552
        %4578 = vmatprep.subr.bf16.mxu0 0
        %4579 = vmatpush1.bf16.msra.mxu0 %v4551
        %4580 = vmatprep.subr.bf16.mxu0 0
        %4581 = vmatpush1.bf16.msra.mxu0 %v4550
        %4582 = vmatprep.subr.bf16.mxu0 0
        %4583 = vmatpush2.bf16.msra.mxu0 0
        %4584 = vmatprep.subr.bf16.mxu0 0
        %4585 = vmatpush2.bf16.msra.mxu0 0
        %4586 = vmatprep.subr.bf16.mxu0 0
        %4587 = vmatpush2.bf16.msra.mxu0 0
        %4588 = vmatprep.subr.bf16.mxu0 0
        %4589 = vmatpush2.bf16.msra.mxu0 0
        %4590 = vmatprep.subr.bf16.mxu0 0
        %4591 = vmatpush2.bf16.msra.mxu0 0
        %4592 = vmatprep.subr.bf16.mxu0 0
        %4593 = vmatpush2.bf16.msra.mxu0 0
        %4594 = vmatprep.subr.bf16.mxu0 0
        %4595 = vmatpush2.bf16.msra.mxu0 0
        %4596 = vmatprep.subr.bf16.mxu0 0
        %4597 = vmatpush2.bf16.msra.mxu0 0
        %4598 = vmatprep.mubr.bf16.mxu0 0
        %4599 = vmatmul.mubr.bf16.gmra.mxu0 %v3970
        %v4600 = vpop.f32.mrf.mxu0
        %v4601 = vadd.f32 0.0, %v4600
        %v4602 = vpop.f32.mrf.mxu0
        %v4603 = vpop.f32.mrf.mxu0
        %v4604 = vadd.f32 0.0, %v4603
        %v4605 = vpop.f32.mrf.mxu0
        %4606 = vmatprep.mubr.bf16.mxu0 0
        %4607 = vmatmul.mubr.bf16.gmra.mxu0 %v3971
        %v4608 = vpop.f32.mrf.mxu0
        %v4609 = vadd.f32 0.0, %v4608
        %v4610 = vpop.f32.mrf.mxu0
        %v4611 = vpop.f32.mrf.mxu0
        %v4612 = vadd.f32 0.0, %v4611
        %v4613 = vpop.f32.mrf.mxu0
        %4614 = vmatprep.mubr.bf16.mxu0 0
        %4615 = vmatmul.mubr.bf16.gmra.mxu0 %v3972
        %v4616 = vpop.f32.mrf.mxu0
        %v4617 = vadd.f32 0.0, %v4616
        %v4618 = vpop.f32.mrf.mxu0
        %v4619 = vpop.f32.mrf.mxu0
        %v4620 = vadd.f32 0.0, %v4619
        %v4621 = vpop.f32.mrf.mxu0
        %4622 = vmatprep.mubr.bf16.mxu0 0
        %4623 = vmatmul.mubr.bf16.gmra.mxu0 %v3973
        %v4624 = vpop.f32.mrf.mxu0
        %v4625 = vadd.f32 0.0, %v4624
        %v4626 = vpop.f32.mrf.mxu0
        %v4627 = vpop.f32.mrf.mxu0
        %v4628 = vadd.f32 0.0, %v4627
        %v4629 = vpop.f32.mrf.mxu0
        %4630 = vmatprep.mubr.bf16.mxu0 0
        %4631 = vmatmul.mubr.bf16.gmra.mxu0 %v3974
        %v4632 = vpop.f32.mrf.mxu0
        %v4633 = vadd.f32 0.0, %v4632
        %v4634 = vpop.f32.mrf.mxu0
        %v4635 = vpop.f32.mrf.mxu0
        %v4636 = vadd.f32 0.0, %v4635
        %v4637 = vpop.f32.mrf.mxu0
        %4638 = vmatprep.mubr.bf16.mxu0 0
        %4639 = vmatmul.mubr.bf16.gmra.mxu0 %v3975
        %v4640 = vpop.f32.mrf.mxu0
        %v4641 = vadd.f32 0.0, %v4640
        %v4642 = vpop.f32.mrf.mxu0
        %v4643 = vpop.f32.mrf.mxu0
        %v4644 = vadd.f32 0.0, %v4643
        %v4645 = vpop.f32.mrf.mxu0
        %4646 = vmatprep.mubr.bf16.mxu0 0
        %4647 = vmatmul.mubr.bf16.gmra.mxu0 %v3976
        %v4648 = vpop.f32.mrf.mxu0
        %v4649 = vadd.f32 0.0, %v4648
        %v4650 = vpop.f32.mrf.mxu0
        %v4651 = vpop.f32.mrf.mxu0
        %v4652 = vadd.f32 0.0, %v4651
        %v4653 = vpop.f32.mrf.mxu0
        %4654 = vmatprep.mubr.bf16.mxu0 0
        %4655 = vmatmul.mubr.bf16.gmra.mxu0 %v3977
        %v4656 = vpop.f32.mrf.mxu0
        %v4657 = vadd.f32 0.0, %v4656
        %v4658 = vpop.f32.mrf.mxu0
        %v4659 = vpop.f32.mrf.mxu0
        %v4660 = vadd.f32 0.0, %v4659
        %v4661 = vpop.f32.mrf.mxu0
        %4662 = vmatprep.mubr.bf16.mxu0 0
        %4663 = vmatmul.mubr.bf16.gmra.mxu0 %v3978
        %v4664 = vpop.f32.mrf.mxu0
        %v4665 = vadd.f32 0.0, %v4664
        %v4666 = vpop.f32.mrf.mxu0
        %v4667 = vpop.f32.mrf.mxu0
        %v4668 = vadd.f32 0.0, %v4667
        %v4669 = vpop.f32.mrf.mxu0
        %4670 = vmatprep.mubr.bf16.mxu0 0
        %4671 = vmatmul.mubr.bf16.gmra.mxu0 %v3979
        %v4672 = vpop.f32.mrf.mxu0
        %v4673 = vadd.f32 0.0, %v4672
        %v4674 = vpop.f32.mrf.mxu0
        %v4675 = vpop.f32.mrf.mxu0
        %v4676 = vadd.f32 0.0, %v4675
        %v4677 = vpop.f32.mrf.mxu0
        %4678 = vmatprep.mubr.bf16.mxu0 0
        %4679 = vmatmul.mubr.bf16.gmra.mxu0 %v3980
        %v4680 = vpop.f32.mrf.mxu0
        %v4681 = vadd.f32 0.0, %v4680
        %v4682 = vpop.f32.mrf.mxu0
        %v4683 = vpop.f32.mrf.mxu0
        %v4684 = vadd.f32 0.0, %v4683
        %v4685 = vpop.f32.mrf.mxu0
        %4686 = vmatprep.mubr.bf16.mxu0 0
        %4687 = vmatmul.mubr.bf16.gmra.mxu0 %v3981
        %v4688 = vpop.f32.mrf.mxu0
        %v4689 = vadd.f32 0.0, %v4688
        %v4690 = vpop.f32.mrf.mxu0
        %v4691 = vpop.f32.mrf.mxu0
        %v4692 = vadd.f32 0.0, %v4691
        %v4693 = vpop.f32.mrf.mxu0
        %4694 = vmatprep.mubr.bf16.mxu0 0
        %4695 = vmatmul.mubr.bf16.gmra.mxu0 %v3982
        %v4696 = vpop.f32.mrf.mxu0
        %v4697 = vadd.f32 0.0, %v4696
        %v4698 = vpop.f32.mrf.mxu0
        %v4699 = vpop.f32.mrf.mxu0
        %v4700 = vadd.f32 0.0, %v4699
        %v4701 = vpop.f32.mrf.mxu0
        %4702 = vmatprep.mubr.bf16.mxu0 0
        %4703 = vmatmul.mubr.bf16.gmra.mxu0 %v3983
        %v4704 = vpop.f32.mrf.mxu0
        %v4705 = vadd.f32 0.0, %v4704
        %v4706 = vpop.f32.mrf.mxu0
        %v4707 = vpop.f32.mrf.mxu0
        %v4708 = vadd.f32 0.0, %v4707
        %v4709 = vpop.f32.mrf.mxu0
        %4710 = vmatprep.mubr.bf16.mxu0 0
        %4711 = vmatmul.mubr.bf16.gmra.mxu0 %v3984
        %v4712 = vpop.f32.mrf.mxu0
        %v4713 = vadd.f32 0.0, %v4712
        %v4714 = vpop.f32.mrf.mxu0
        %v4715 = vpop.f32.mrf.mxu0
        %v4716 = vadd.f32 0.0, %v4715
        %v4717 = vpop.f32.mrf.mxu0
        %4718 = vmatprep.mubr.bf16.mxu0 0
        %4719 = vmatmul.mubr.bf16.gmra.mxu0 %v3985
        %v4720 = vpop.f32.mrf.mxu0
        %v4721 = vadd.f32 0.0, %v4720
        %v4722 = vpop.f32.mrf.mxu0
        %v4723 = vpop.f32.mrf.mxu0
        %v4724 = vadd.f32 0.0, %v4723
        %v4725 = vpop.f32.mrf.mxu0
        %4726 = vdwg.mxu0
        %v4727 = vadd.f32 %v4469, %v4601
        %v4728 = vadd.f32 %v4470, %v4604
        %v4729 = vadd.f32 %v4471, %v4609
        %v4730 = vadd.f32 %v4472, %v4612
        %v4731 = vadd.f32 %v4473, %v4617
        %v4732 = vadd.f32 %v4474, %v4620
        %v4733 = vadd.f32 %v4475, %v4625
        %v4734 = vadd.f32 %v4476, %v4628
        %v4735 = vadd.f32 %v4477, %v4633
        %v4736 = vadd.f32 %v4478, %v4636
        %v4737 = vadd.f32 %v4479, %v4641
        %v4738 = vadd.f32 %v4480, %v4644
        %v4739 = vadd.f32 %v4481, %v4649
        %v4740 = vadd.f32 %v4482, %v4652
        %v4741 = vadd.f32 %v4483, %v4657
        %v4742 = vadd.f32 %v4484, %v4660
        %v4743 = vadd.f32 %v4485, %v4665
        %v4744 = vadd.f32 %v4486, %v4668
        %v4745 = vadd.f32 %v4487, %v4673
        %v4746 = vadd.f32 %v4488, %v4676
        %v4747 = vadd.f32 %v4489, %v4681
        %v4748 = vadd.f32 %v4490, %v4684
        %v4749 = vadd.f32 %v4491, %v4689
        %v4750 = vadd.f32 %v4492, %v4692
        %v4751 = vadd.f32 %v4493, %v4697
        %v4752 = vadd.f32 %v4494, %v4700
        %v4753 = vadd.f32 %v4495, %v4705
        %v4754 = vadd.f32 %v4496, %v4708
        %v4755 = vadd.f32 %v4497, %v4713
        %v4756 = vadd.f32 %v4498, %v4716
        %v4757 = vadd.f32 %v4499, %v4721
        %v4758 = vadd.f32 %v4500, %v4724
        %v4759 = vld [vmem:[#allocation2 + $0x1] sm:$0xff]
        %v4760 = vld [vmem:[#allocation2 + $0x9] sm:$0xff]
        %v4761 = vld [vmem:[#allocation2 + $0x19] sm:$0xff]
        %v4762 = vld [vmem:[#allocation2 + $0x21] sm:$0xff]
        %v4763 = vld [vmem:[#allocation2 + $0x31] sm:$0xff]
        %v4764 = vld [vmem:[#allocation2 + $0x39] sm:$0xff]
        %v4765 = vld [vmem:[#allocation2 + $0x49] sm:$0xff]
        %v4766 = vld [vmem:[#allocation2 + $0x51] sm:$0xff]
        %v4767 = vld [vmem:[#allocation2 + $0x61] sm:$0xff]
        %v4768 = vld [vmem:[#allocation2 + $0x69] sm:$0xff]
        %v4769 = vld [vmem:[#allocation2 + $0x79] sm:$0xff]
        %v4770 = vld [vmem:[#allocation2 + $0x81] sm:$0xff]
        %v4771 = vld [vmem:[#allocation2 + $0x91] sm:$0xff]
        %v4772 = vld [vmem:[#allocation2 + $0x99] sm:$0xff]
        %v4773 = vld [vmem:[#allocation2 + $0xa9] sm:$0xff]
        %v4774 = vld [vmem:[#allocation2 + $0xb1] sm:$0xff]
        %v4775 = vld [vmem:[#allocation2 + $0xc1] sm:$0xff]
        %v4776 = vld [vmem:[#allocation2 + $0xc9] sm:$0xff]
        %v4777 = vld [vmem:[#allocation2 + $0xd9] sm:$0xff]
        %v4778 = vld [vmem:[#allocation2 + $0xe1] sm:$0xff]
        %v4779 = vld [vmem:[#allocation2 + $0xf1] sm:$0xff]
        %v4780 = vld [vmem:[#allocation2 + $0xf9] sm:$0xff]
        %v4781 = vld [vmem:[#allocation2 + $0x109] sm:$0xff]
        %v4782 = vld [vmem:[#allocation2 + $0x111] sm:$0xff]
        %v4783 = vld [vmem:[#allocation2 + $0x121] sm:$0xff]
        %v4784 = vld [vmem:[#allocation2 + $0x129] sm:$0xff]
        %v4785 = vld [vmem:[#allocation2 + $0x139] sm:$0xff]
        %v4786 = vld [vmem:[#allocation2 + $0x141] sm:$0xff]
        %v4787 = vld [vmem:[#allocation2 + $0x151] sm:$0xff]
        %v4788 = vld [vmem:[#allocation2 + $0x159] sm:$0xff]
        %v4789 = vld [vmem:[#allocation2 + $0x169] sm:$0xff]
        %v4790 = vld [vmem:[#allocation2 + $0x171] sm:$0xff]
        %v4791 = vld [vmem:[#allocation2 + $0x181] sm:$0xff]
        %v4792 = vld [vmem:[#allocation2 + $0x189] sm:$0xff]
        %v4793 = vld [vmem:[#allocation2 + $0x199] sm:$0xff]
        %v4794 = vld [vmem:[#allocation2 + $0x1a1] sm:$0xff]
        %v4795 = vpack.c.bf16 %v4760, %v4759
        %v4796 = vpack.c.bf16 %v4762, %v4761
        %v4797 = vpack.c.bf16 %v4764, %v4763
        %v4798 = vpack.c.bf16 %v4766, %v4765
        %v4799 = vpack.c.bf16 %v4768, %v4767
        %v4800 = vpack.c.bf16 %v4770, %v4769
        %v4801 = vpack.c.bf16 %v4772, %v4771
        %v4802 = vpack.c.bf16 %v4774, %v4773
        %v4803 = vpack.c.bf16 %v4776, %v4775
        %v4804 = vpack.c.bf16 %v4778, %v4777
        %v4805 = vpack.c.bf16 %v4780, %v4779
        %v4806 = vpack.c.bf16 %v4782, %v4781
        %v4807 = vpack.c.bf16 %v4784, %v4783
        %v4808 = vpack.c.bf16 %v4786, %v4785
        %v4809 = vpack.c.bf16 %v4788, %v4787
        %v4810 = vpack.c.bf16 %v4790, %v4789
        %v4811 = vpack.c.bf16 %v4792, %v4791
        %v4812 = vpack.c.bf16 %v4794, %v4793
        %s4813 = scalar_lea.vmem [#allocation9], 64
        %v4814 = vld [vmem:[%s4813] sm:$0xf]
        %v4815 = vld [vmem:[%s4813 + $0x4] sm:$0xf]
        %v4816 = vld [vmem:[%s4813 + $0x8] sm:$0xf]
        %v4817 = vld [vmem:[%s4813 + $0xc] sm:$0xf]
        %v4818 = vld [vmem:[%s4813 + $0x10] sm:$0xf]
        %v4819 = vld [vmem:[%s4813 + $0x14] sm:$0xf]
        %v4820 = vld [vmem:[%s4813 + $0x18] sm:$0xf]
        %v4821 = vld [vmem:[%s4813 + $0x1c] sm:$0xf]
        %v4822 = vld [vmem:[%s4813 + $0x20] sm:$0xf]
        %v4823 = vld [vmem:[%s4813 + $0x24] sm:$0xf]
        %v4824 = vld [vmem:[%s4813 + $0x28] sm:$0xf]
        %v4825 = vld [vmem:[%s4813 + $0x2c] sm:$0xf]
        %v4826 = vld [vmem:[%s4813 + $0x30] sm:$0xf]
        %v4827 = vld [vmem:[%s4813 + $0x34] sm:$0xf]
        %v4828 = vld [vmem:[%s4813 + $0x38] sm:$0xf]
        %v4829 = vld [vmem:[%s4813 + $0x3c] sm:$0xf]
        %v4846 = vunpack.c.l.b16 %v4814
        %v4847 = vunpack.c.l.b16 %v4815
        %v4848 = vunpack.c.l.b16 %v4816
        %v4849 = vunpack.c.l.b16 %v4817
        %v4850 = vunpack.c.l.b16 %v4818
        %v4851 = vunpack.c.l.b16 %v4819
        %v4852 = vunpack.c.l.b16 %v4820
        %v4853 = vunpack.c.l.b16 %v4821
        %v4854 = vunpack.c.l.b16 %v4822
        %v4855 = vunpack.c.l.b16 %v4823
        %v4856 = vunpack.c.l.b16 %v4824
        %v4857 = vunpack.c.l.b16 %v4825
        %v4858 = vunpack.c.l.b16 %v4826
        %v4859 = vunpack.c.l.b16 %v4827
        %v4860 = vunpack.c.l.b16 %v4828
        %v4861 = vunpack.c.l.b16 %v4829
        %v4862 = vpack.c.b16 %v4847, %v4846
        %v4863 = vpack.c.b16 %v4849, %v4848
        %v4864 = vpack.c.b16 %v4851, %v4850
        %v4865 = vpack.c.b16 %v4853, %v4852
        %v4866 = vpack.c.b16 %v4855, %v4854
        %v4867 = vpack.c.b16 %v4857, %v4856
        %v4868 = vpack.c.b16 %v4859, %v4858
        %v4869 = vpack.c.b16 %v4861, %v4860
        %4878 = vmatprep.subr.bf16.mxu0 0
        %4879 = vmatpush1.bf16.msra.mxu0 %v4869
        %4880 = vmatprep.subr.bf16.mxu0 0
        %4881 = vmatpush1.bf16.msra.mxu0 %v4868
        %4882 = vmatprep.subr.bf16.mxu0 0
        %4883 = vmatpush1.bf16.msra.mxu0 %v4867
        %4884 = vmatprep.subr.bf16.mxu0 0
        %4885 = vmatpush1.bf16.msra.mxu0 %v4866
        %4886 = vmatprep.subr.bf16.mxu0 0
        %4887 = vmatpush1.bf16.msra.mxu0 %v4865
        %4888 = vmatprep.subr.bf16.mxu0 0
        %4889 = vmatpush1.bf16.msra.mxu0 %v4864
        %4890 = vmatprep.subr.bf16.mxu0 0
        %4891 = vmatpush1.bf16.msra.mxu0 %v4863
        %4892 = vmatprep.subr.bf16.mxu0 0
        %4893 = vmatpush1.bf16.msra.mxu0 %v4862
        %4894 = vmatprep.subr.bf16.mxu0 0
        %4895 = vmatpush2.bf16.msra.mxu0 0
        %4896 = vmatprep.subr.bf16.mxu0 0
        %4897 = vmatpush2.bf16.msra.mxu0 0
        %4898 = vmatprep.subr.bf16.mxu0 0
        %4899 = vmatpush2.bf16.msra.mxu0 0
        %4900 = vmatprep.subr.bf16.mxu0 0
        %4901 = vmatpush2.bf16.msra.mxu0 0
        %4902 = vmatprep.subr.bf16.mxu0 0
        %4903 = vmatpush2.bf16.msra.mxu0 0
        %4904 = vmatprep.subr.bf16.mxu0 0
        %4905 = vmatpush2.bf16.msra.mxu0 0
        %4906 = vmatprep.subr.bf16.mxu0 0
        %4907 = vmatpush2.bf16.msra.mxu0 0
        %4908 = vmatprep.subr.bf16.mxu0 0
        %4909 = vmatpush2.bf16.msra.mxu0 0
        %4910 = vmatprep.mubr.bf16.mxu0 0
        %4911 = vmatmul.mubr.bf16.gmra.mxu0 %v4795
        %v4912 = vpop.f32.mrf.mxu0
        %v4913 = vadd.f32 0.0, %v4912
        %v4914 = vpop.f32.mrf.mxu0
        %v4915 = vpop.f32.mrf.mxu0
        %v4916 = vadd.f32 0.0, %v4915
        %v4917 = vpop.f32.mrf.mxu0
        %4918 = vmatprep.mubr.bf16.mxu0 0
        %4919 = vmatmul.mubr.bf16.gmra.mxu0 %v4796
        %v4920 = vpop.f32.mrf.mxu0
        %v4921 = vadd.f32 0.0, %v4920
        %v4922 = vpop.f32.mrf.mxu0
        %v4923 = vpop.f32.mrf.mxu0
        %v4924 = vadd.f32 0.0, %v4923
        %v4925 = vpop.f32.mrf.mxu0
        %4926 = vmatprep.mubr.bf16.mxu0 0
        %4927 = vmatmul.mubr.bf16.gmra.mxu0 %v4797
        %v4928 = vpop.f32.mrf.mxu0
        %v4929 = vadd.f32 0.0, %v4928
        %v4930 = vpop.f32.mrf.mxu0
        %v4931 = vpop.f32.mrf.mxu0
        %v4932 = vadd.f32 0.0, %v4931
        %v4933 = vpop.f32.mrf.mxu0
        %4934 = vmatprep.mubr.bf16.mxu0 0
        %4935 = vmatmul.mubr.bf16.gmra.mxu0 %v4798
        %v4936 = vpop.f32.mrf.mxu0
        %v4937 = vadd.f32 0.0, %v4936
        %v4938 = vpop.f32.mrf.mxu0
        %v4939 = vpop.f32.mrf.mxu0
        %v4940 = vadd.f32 0.0, %v4939
        %v4941 = vpop.f32.mrf.mxu0
        %4942 = vmatprep.mubr.bf16.mxu0 0
        %4943 = vmatmul.mubr.bf16.gmra.mxu0 %v4799
        %v4944 = vpop.f32.mrf.mxu0
        %v4945 = vadd.f32 0.0, %v4944
        %v4946 = vpop.f32.mrf.mxu0
        %v4947 = vpop.f32.mrf.mxu0
        %v4948 = vadd.f32 0.0, %v4947
        %v4949 = vpop.f32.mrf.mxu0
        %4950 = vmatprep.mubr.bf16.mxu0 0
        %4951 = vmatmul.mubr.bf16.gmra.mxu0 %v4800
        %v4952 = vpop.f32.mrf.mxu0
        %v4953 = vadd.f32 0.0, %v4952
        %v4954 = vpop.f32.mrf.mxu0
        %v4955 = vpop.f32.mrf.mxu0
        %v4956 = vadd.f32 0.0, %v4955
        %v4957 = vpop.f32.mrf.mxu0
        %4958 = vmatprep.mubr.bf16.mxu0 0
        %4959 = vmatmul.mubr.bf16.gmra.mxu0 %v4801
        %v4960 = vpop.f32.mrf.mxu0
        %v4961 = vadd.f32 0.0, %v4960
        %v4962 = vpop.f32.mrf.mxu0
        %v4963 = vpop.f32.mrf.mxu0
        %v4964 = vadd.f32 0.0, %v4963
        %v4965 = vpop.f32.mrf.mxu0
        %4966 = vmatprep.mubr.bf16.mxu0 0
        %4967 = vmatmul.mubr.bf16.gmra.mxu0 %v4802
        %v4968 = vpop.f32.mrf.mxu0
        %v4969 = vadd.f32 0.0, %v4968
        %v4970 = vpop.f32.mrf.mxu0
        %v4971 = vpop.f32.mrf.mxu0
        %v4972 = vadd.f32 0.0, %v4971
        %v4973 = vpop.f32.mrf.mxu0
        %4974 = vmatprep.mubr.bf16.mxu0 0
        %4975 = vmatmul.mubr.bf16.gmra.mxu0 %v4803
        %v4976 = vpop.f32.mrf.mxu0
        %v4977 = vadd.f32 0.0, %v4976
        %v4978 = vpop.f32.mrf.mxu0
        %v4979 = vpop.f32.mrf.mxu0
        %v4980 = vadd.f32 0.0, %v4979
        %v4981 = vpop.f32.mrf.mxu0
        %4982 = vmatprep.mubr.bf16.mxu0 0
        %4983 = vmatmul.mubr.bf16.gmra.mxu0 %v4804
        %v4984 = vpop.f32.mrf.mxu0
        %v4985 = vadd.f32 0.0, %v4984
        %v4986 = vpop.f32.mrf.mxu0
        %v4987 = vpop.f32.mrf.mxu0
        %v4988 = vadd.f32 0.0, %v4987
        %v4989 = vpop.f32.mrf.mxu0
        %4990 = vmatprep.mubr.bf16.mxu0 0
        %4991 = vmatmul.mubr.bf16.gmra.mxu0 %v4805
        %v4992 = vpop.f32.mrf.mxu0
        %v4993 = vadd.f32 0.0, %v4992
        %v4994 = vpop.f32.mrf.mxu0
        %v4995 = vpop.f32.mrf.mxu0
        %v4996 = vadd.f32 0.0, %v4995
        %v4997 = vpop.f32.mrf.mxu0
        %4998 = vmatprep.mubr.bf16.mxu0 0
        %4999 = vmatmul.mubr.bf16.gmra.mxu0 %v4806
        %v5000 = vpop.f32.mrf.mxu0
        %v5001 = vadd.f32 0.0, %v5000
        %v5002 = vpop.f32.mrf.mxu0
        %v5003 = vpop.f32.mrf.mxu0
        %v5004 = vadd.f32 0.0, %v5003
        %v5005 = vpop.f32.mrf.mxu0
        %5006 = vmatprep.mubr.bf16.mxu0 0
        %5007 = vmatmul.mubr.bf16.gmra.mxu0 %v4807
        %v5008 = vpop.f32.mrf.mxu0
        %v5009 = vadd.f32 0.0, %v5008
        %v5010 = vpop.f32.mrf.mxu0
        %v5011 = vpop.f32.mrf.mxu0
        %v5012 = vadd.f32 0.0, %v5011
        %v5013 = vpop.f32.mrf.mxu0
        %5014 = vmatprep.mubr.bf16.mxu0 0
        %5015 = vmatmul.mubr.bf16.gmra.mxu0 %v4808
        %v5016 = vpop.f32.mrf.mxu0
        %v5017 = vadd.f32 0.0, %v5016
        %v5018 = vpop.f32.mrf.mxu0
        %v5019 = vpop.f32.mrf.mxu0
        %v5020 = vadd.f32 0.0, %v5019
        %v5021 = vpop.f32.mrf.mxu0
        %5022 = vmatprep.mubr.bf16.mxu0 0
        %5023 = vmatmul.mubr.bf16.gmra.mxu0 %v4809
        %v5024 = vpop.f32.mrf.mxu0
        %v5025 = vadd.f32 0.0, %v5024
        %v5026 = vpop.f32.mrf.mxu0
        %v5027 = vpop.f32.mrf.mxu0
        %v5028 = vadd.f32 0.0, %v5027
        %v5029 = vpop.f32.mrf.mxu0
        %5030 = vmatprep.mubr.bf16.mxu0 0
        %5031 = vmatmul.mubr.bf16.gmra.mxu0 %v4810
        %v5032 = vpop.f32.mrf.mxu0
        %v5033 = vadd.f32 0.0, %v5032
        %v5034 = vpop.f32.mrf.mxu0
        %v5035 = vpop.f32.mrf.mxu0
        %v5036 = vadd.f32 0.0, %v5035
        %v5037 = vpop.f32.mrf.mxu0
        %5038 = vdwg.mxu0
        %v5039 = vadd.f32 %v4727, %v4913
        %v5040 = vadd.f32 %v4728, %v4916
        %v5041 = vadd.f32 %v4729, %v4921
        %v5042 = vadd.f32 %v4730, %v4924
        %v5043 = vadd.f32 %v4731, %v4929
        %v5044 = vadd.f32 %v4732, %v4932
        %v5045 = vadd.f32 %v4733, %v4937
        %v5046 = vadd.f32 %v4734, %v4940
        %v5047 = vadd.f32 %v4735, %v4945
        %v5048 = vadd.f32 %v4736, %v4948
        %v5049 = vadd.f32 %v4737, %v4953
        %v5050 = vadd.f32 %v4738, %v4956
        %v5051 = vadd.f32 %v4739, %v4961
        %v5052 = vadd.f32 %v4740, %v4964
        %v5053 = vadd.f32 %v4741, %v4969
        %v5054 = vadd.f32 %v4742, %v4972
        %v5055 = vadd.f32 %v4743, %v4977
        %v5056 = vadd.f32 %v4744, %v4980
        %v5057 = vadd.f32 %v4745, %v4985
        %v5058 = vadd.f32 %v4746, %v4988
        %v5059 = vadd.f32 %v4747, %v4993
        %v5060 = vadd.f32 %v4748, %v4996
        %v5061 = vadd.f32 %v4749, %v5001
        %v5062 = vadd.f32 %v4750, %v5004
        %v5063 = vadd.f32 %v4751, %v5009
        %v5064 = vadd.f32 %v4752, %v5012
        %v5065 = vadd.f32 %v4753, %v5017
        %v5066 = vadd.f32 %v4754, %v5020
        %v5067 = vadd.f32 %v4755, %v5025
        %v5068 = vadd.f32 %v4756, %v5028
        %v5069 = vadd.f32 %v4757, %v5033
        %v5070 = vadd.f32 %v4758, %v5036
        %s5071 = scalar_lea.vmem [#allocation9], 256
        %v5072 = vld [vmem:[%s5071] sm:$0xf]
        %v5073 = vld [vmem:[%s5071 + $0x4] sm:$0xf]
        %v5074 = vld [vmem:[%s5071 + $0x8] sm:$0xf]
        %v5075 = vld [vmem:[%s5071 + $0xc] sm:$0xf]
        %v5076 = vld [vmem:[%s5071 + $0x10] sm:$0xf]
        %v5077 = vld [vmem:[%s5071 + $0x14] sm:$0xf]
        %v5078 = vld [vmem:[%s5071 + $0x18] sm:$0xf]
        %v5079 = vld [vmem:[%s5071 + $0x1c] sm:$0xf]
        %v5080 = vld [vmem:[%s5071 + $0x20] sm:$0xf]
        %v5081 = vld [vmem:[%s5071 + $0x24] sm:$0xf]
        %v5082 = vld [vmem:[%s5071 + $0x28] sm:$0xf]
        %v5083 = vld [vmem:[%s5071 + $0x2c] sm:$0xf]
        %v5084 = vld [vmem:[%s5071 + $0x30] sm:$0xf]
        %v5085 = vld [vmem:[%s5071 + $0x34] sm:$0xf]
        %v5086 = vld [vmem:[%s5071 + $0x38] sm:$0xf]
        %v5087 = vld [vmem:[%s5071 + $0x3c] sm:$0xf]
        %v5104 = vunpack.c.l.b16 %v5072
        %v5105 = vunpack.c.l.b16 %v5073
        %v5106 = vunpack.c.l.b16 %v5074
        %v5107 = vunpack.c.l.b16 %v5075
        %v5108 = vunpack.c.l.b16 %v5076
        %v5109 = vunpack.c.l.b16 %v5077
        %v5110 = vunpack.c.l.b16 %v5078
        %v5111 = vunpack.c.l.b16 %v5079
        %v5112 = vunpack.c.l.b16 %v5080
        %v5113 = vunpack.c.l.b16 %v5081
        %v5114 = vunpack.c.l.b16 %v5082
        %v5115 = vunpack.c.l.b16 %v5083
        %v5116 = vunpack.c.l.b16 %v5084
        %v5117 = vunpack.c.l.b16 %v5085
        %v5118 = vunpack.c.l.b16 %v5086
        %v5119 = vunpack.c.l.b16 %v5087
        %v5120 = vpack.c.b16 %v5105, %v5104
        %v5121 = vpack.c.b16 %v5107, %v5106
        %v5122 = vpack.c.b16 %v5109, %v5108
        %v5123 = vpack.c.b16 %v5111, %v5110
        %v5124 = vpack.c.b16 %v5113, %v5112
        %v5125 = vpack.c.b16 %v5115, %v5114
        %v5126 = vpack.c.b16 %v5117, %v5116
        %v5127 = vpack.c.b16 %v5119, %v5118
        %5136 = vmatprep.subr.bf16.mxu0 0
        %5137 = vmatpush1.bf16.msra.mxu0 %v5127
        %5138 = vmatprep.subr.bf16.mxu0 0
        %5139 = vmatpush1.bf16.msra.mxu0 %v5126
        %5140 = vmatprep.subr.bf16.mxu0 0
        %5141 = vmatpush1.bf16.msra.mxu0 %v5125
        %5142 = vmatprep.subr.bf16.mxu0 0
        %5143 = vmatpush1.bf16.msra.mxu0 %v5124
        %5144 = vmatprep.subr.bf16.mxu0 0
        %5145 = vmatpush1.bf16.msra.mxu0 %v5123
        %5146 = vmatprep.subr.bf16.mxu0 0
        %5147 = vmatpush1.bf16.msra.mxu0 %v5122
        %5148 = vmatprep.subr.bf16.mxu0 0
        %5149 = vmatpush1.bf16.msra.mxu0 %v5121
        %5150 = vmatprep.subr.bf16.mxu0 0
        %5151 = vmatpush1.bf16.msra.mxu0 %v5120
        %5152 = vmatprep.subr.bf16.mxu0 0
        %5153 = vmatpush2.bf16.msra.mxu0 0
        %5154 = vmatprep.subr.bf16.mxu0 0
        %5155 = vmatpush2.bf16.msra.mxu0 0
        %5156 = vmatprep.subr.bf16.mxu0 0
        %5157 = vmatpush2.bf16.msra.mxu0 0
        %5158 = vmatprep.subr.bf16.mxu0 0
        %5159 = vmatpush2.bf16.msra.mxu0 0
        %5160 = vmatprep.subr.bf16.mxu0 0
        %5161 = vmatpush2.bf16.msra.mxu0 0
        %5162 = vmatprep.subr.bf16.mxu0 0
        %5163 = vmatpush2.bf16.msra.mxu0 0
        %5164 = vmatprep.subr.bf16.mxu0 0
        %5165 = vmatpush2.bf16.msra.mxu0 0
        %5166 = vmatprep.subr.bf16.mxu0 0
        %5167 = vmatpush2.bf16.msra.mxu0 0
        %5168 = vmatprep.mubr.bf16.mxu0 0
        %5169 = vmatmul.mubr.bf16.gmra.mxu0 %v4796
        %v5170 = vpop.f32.mrf.mxu0
        %v5171 = vadd.f32 0.0, %v5170
        %v5172 = vpop.f32.mrf.mxu0
        %v5173 = vpop.f32.mrf.mxu0
        %v5174 = vadd.f32 0.0, %v5173
        %v5175 = vpop.f32.mrf.mxu0
        %5176 = vmatprep.mubr.bf16.mxu0 0
        %5177 = vmatmul.mubr.bf16.gmra.mxu0 %v4797
        %v5178 = vpop.f32.mrf.mxu0
        %v5179 = vadd.f32 0.0, %v5178
        %v5180 = vpop.f32.mrf.mxu0
        %v5181 = vpop.f32.mrf.mxu0
        %v5182 = vadd.f32 0.0, %v5181
        %v5183 = vpop.f32.mrf.mxu0
        %5184 = vmatprep.mubr.bf16.mxu0 0
        %5185 = vmatmul.mubr.bf16.gmra.mxu0 %v4798
        %v5186 = vpop.f32.mrf.mxu0
        %v5187 = vadd.f32 0.0, %v5186
        %v5188 = vpop.f32.mrf.mxu0
        %v5189 = vpop.f32.mrf.mxu0
        %v5190 = vadd.f32 0.0, %v5189
        %v5191 = vpop.f32.mrf.mxu0
        %5192 = vmatprep.mubr.bf16.mxu0 0
        %5193 = vmatmul.mubr.bf16.gmra.mxu0 %v4799
        %v5194 = vpop.f32.mrf.mxu0
        %v5195 = vadd.f32 0.0, %v5194
        %v5196 = vpop.f32.mrf.mxu0
        %v5197 = vpop.f32.mrf.mxu0
        %v5198 = vadd.f32 0.0, %v5197
        %v5199 = vpop.f32.mrf.mxu0
        %5200 = vmatprep.mubr.bf16.mxu0 0
        %5201 = vmatmul.mubr.bf16.gmra.mxu0 %v4800
        %v5202 = vpop.f32.mrf.mxu0
        %v5203 = vadd.f32 0.0, %v5202
        %v5204 = vpop.f32.mrf.mxu0
        %v5205 = vpop.f32.mrf.mxu0
        %v5206 = vadd.f32 0.0, %v5205
        %v5207 = vpop.f32.mrf.mxu0
        %5208 = vmatprep.mubr.bf16.mxu0 0
        %5209 = vmatmul.mubr.bf16.gmra.mxu0 %v4801
        %v5210 = vpop.f32.mrf.mxu0
        %v5211 = vadd.f32 0.0, %v5210
        %v5212 = vpop.f32.mrf.mxu0
        %v5213 = vpop.f32.mrf.mxu0
        %v5214 = vadd.f32 0.0, %v5213
        %v5215 = vpop.f32.mrf.mxu0
        %5216 = vmatprep.mubr.bf16.mxu0 0
        %5217 = vmatmul.mubr.bf16.gmra.mxu0 %v4802
        %v5218 = vpop.f32.mrf.mxu0
        %v5219 = vadd.f32 0.0, %v5218
        %v5220 = vpop.f32.mrf.mxu0
        %v5221 = vpop.f32.mrf.mxu0
        %v5222 = vadd.f32 0.0, %v5221
        %v5223 = vpop.f32.mrf.mxu0
        %5224 = vmatprep.mubr.bf16.mxu0 0
        %5225 = vmatmul.mubr.bf16.gmra.mxu0 %v4803
        %v5226 = vpop.f32.mrf.mxu0
        %v5227 = vadd.f32 0.0, %v5226
        %v5228 = vpop.f32.mrf.mxu0
        %v5229 = vpop.f32.mrf.mxu0
        %v5230 = vadd.f32 0.0, %v5229
        %v5231 = vpop.f32.mrf.mxu0
        %5232 = vmatprep.mubr.bf16.mxu0 0
        %5233 = vmatmul.mubr.bf16.gmra.mxu0 %v4804
        %v5234 = vpop.f32.mrf.mxu0
        %v5235 = vadd.f32 0.0, %v5234
        %v5236 = vpop.f32.mrf.mxu0
        %v5237 = vpop.f32.mrf.mxu0
        %v5238 = vadd.f32 0.0, %v5237
        %v5239 = vpop.f32.mrf.mxu0
        %5240 = vmatprep.mubr.bf16.mxu0 0
        %5241 = vmatmul.mubr.bf16.gmra.mxu0 %v4805
        %v5242 = vpop.f32.mrf.mxu0
        %v5243 = vadd.f32 0.0, %v5242
        %v5244 = vpop.f32.mrf.mxu0
        %v5245 = vpop.f32.mrf.mxu0
        %v5246 = vadd.f32 0.0, %v5245
        %v5247 = vpop.f32.mrf.mxu0
        %5248 = vmatprep.mubr.bf16.mxu0 0
        %5249 = vmatmul.mubr.bf16.gmra.mxu0 %v4806
        %v5250 = vpop.f32.mrf.mxu0
        %v5251 = vadd.f32 0.0, %v5250
        %v5252 = vpop.f32.mrf.mxu0
        %v5253 = vpop.f32.mrf.mxu0
        %v5254 = vadd.f32 0.0, %v5253
        %v5255 = vpop.f32.mrf.mxu0
        %5256 = vmatprep.mubr.bf16.mxu0 0
        %5257 = vmatmul.mubr.bf16.gmra.mxu0 %v4807
        %v5258 = vpop.f32.mrf.mxu0
        %v5259 = vadd.f32 0.0, %v5258
        %v5260 = vpop.f32.mrf.mxu0
        %v5261 = vpop.f32.mrf.mxu0
        %v5262 = vadd.f32 0.0, %v5261
        %v5263 = vpop.f32.mrf.mxu0
        %5264 = vmatprep.mubr.bf16.mxu0 0
        %5265 = vmatmul.mubr.bf16.gmra.mxu0 %v4808
        %v5266 = vpop.f32.mrf.mxu0
        %v5267 = vadd.f32 0.0, %v5266
        %v5268 = vpop.f32.mrf.mxu0
        %v5269 = vpop.f32.mrf.mxu0
        %v5270 = vadd.f32 0.0, %v5269
        %v5271 = vpop.f32.mrf.mxu0
        %5272 = vmatprep.mubr.bf16.mxu0 0
        %5273 = vmatmul.mubr.bf16.gmra.mxu0 %v4809
        %v5274 = vpop.f32.mrf.mxu0
        %v5275 = vadd.f32 0.0, %v5274
        %v5276 = vpop.f32.mrf.mxu0
        %v5277 = vpop.f32.mrf.mxu0
        %v5278 = vadd.f32 0.0, %v5277
        %v5279 = vpop.f32.mrf.mxu0
        %5280 = vmatprep.mubr.bf16.mxu0 0
        %5281 = vmatmul.mubr.bf16.gmra.mxu0 %v4810
        %v5282 = vpop.f32.mrf.mxu0
        %v5283 = vadd.f32 0.0, %v5282
        %v5284 = vpop.f32.mrf.mxu0
        %v5285 = vpop.f32.mrf.mxu0
        %v5286 = vadd.f32 0.0, %v5285
        %v5287 = vpop.f32.mrf.mxu0
        %5288 = vmatprep.mubr.bf16.mxu0 0
        %5289 = vmatmul.mubr.bf16.gmra.mxu0 %v4811
        %v5290 = vpop.f32.mrf.mxu0
        %v5291 = vadd.f32 0.0, %v5290
        %v5292 = vpop.f32.mrf.mxu0
        %v5293 = vpop.f32.mrf.mxu0
        %v5294 = vadd.f32 0.0, %v5293
        %v5295 = vpop.f32.mrf.mxu0
        %5296 = vdwg.mxu0
        %v5297 = vadd.f32 %v5039, %v5171
        %v5298 = vadd.f32 %v5040, %v5174
        %v5299 = vadd.f32 %v5041, %v5179
        %v5300 = vadd.f32 %v5042, %v5182
        %v5301 = vadd.f32 %v5043, %v5187
        %v5302 = vadd.f32 %v5044, %v5190
        %v5303 = vadd.f32 %v5045, %v5195
        %v5304 = vadd.f32 %v5046, %v5198
        %v5305 = vadd.f32 %v5047, %v5203
        %v5306 = vadd.f32 %v5048, %v5206
        %v5307 = vadd.f32 %v5049, %v5211
        %v5308 = vadd.f32 %v5050, %v5214
        %v5309 = vadd.f32 %v5051, %v5219
        %v5310 = vadd.f32 %v5052, %v5222
        %v5311 = vadd.f32 %v5053, %v5227
        %v5312 = vadd.f32 %v5054, %v5230
        %v5313 = vadd.f32 %v5055, %v5235
        %v5314 = vadd.f32 %v5056, %v5238
        %v5315 = vadd.f32 %v5057, %v5243
        %v5316 = vadd.f32 %v5058, %v5246
        %v5317 = vadd.f32 %v5059, %v5251
        %v5318 = vadd.f32 %v5060, %v5254
        %v5319 = vadd.f32 %v5061, %v5259
        %v5320 = vadd.f32 %v5062, %v5262
        %v5321 = vadd.f32 %v5063, %v5267
        %v5322 = vadd.f32 %v5064, %v5270
        %v5323 = vadd.f32 %v5065, %v5275
        %v5324 = vadd.f32 %v5066, %v5278
        %v5325 = vadd.f32 %v5067, %v5283
        %v5326 = vadd.f32 %v5068, %v5286
        %v5327 = vadd.f32 %v5069, %v5291
        %v5328 = vadd.f32 %v5070, %v5294
        %s5329 = scalar_lea.vmem [#allocation9], 448
        %v5330 = vld [vmem:[%s5329] sm:$0xf]
        %v5331 = vld [vmem:[%s5329 + $0x4] sm:$0xf]
        %v5332 = vld [vmem:[%s5329 + $0x8] sm:$0xf]
        %v5333 = vld [vmem:[%s5329 + $0xc] sm:$0xf]
        %v5334 = vld [vmem:[%s5329 + $0x10] sm:$0xf]
        %v5335 = vld [vmem:[%s5329 + $0x14] sm:$0xf]
        %v5336 = vld [vmem:[%s5329 + $0x18] sm:$0xf]
        %v5337 = vld [vmem:[%s5329 + $0x1c] sm:$0xf]
        %v5338 = vld [vmem:[%s5329 + $0x20] sm:$0xf]
        %v5339 = vld [vmem:[%s5329 + $0x24] sm:$0xf]
        %v5340 = vld [vmem:[%s5329 + $0x28] sm:$0xf]
        %v5341 = vld [vmem:[%s5329 + $0x2c] sm:$0xf]
        %v5342 = vld [vmem:[%s5329 + $0x30] sm:$0xf]
        %v5343 = vld [vmem:[%s5329 + $0x34] sm:$0xf]
        %v5344 = vld [vmem:[%s5329 + $0x38] sm:$0xf]
        %v5345 = vld [vmem:[%s5329 + $0x3c] sm:$0xf]
        %v5362 = vunpack.c.l.b16 %v5330
        %v5363 = vunpack.c.l.b16 %v5331
        %v5364 = vunpack.c.l.b16 %v5332
        %v5365 = vunpack.c.l.b16 %v5333
        %v5366 = vunpack.c.l.b16 %v5334
        %v5367 = vunpack.c.l.b16 %v5335
        %v5368 = vunpack.c.l.b16 %v5336
        %v5369 = vunpack.c.l.b16 %v5337
        %v5370 = vunpack.c.l.b16 %v5338
        %v5371 = vunpack.c.l.b16 %v5339
        %v5372 = vunpack.c.l.b16 %v5340
        %v5373 = vunpack.c.l.b16 %v5341
        %v5374 = vunpack.c.l.b16 %v5342
        %v5375 = vunpack.c.l.b16 %v5343
        %v5376 = vunpack.c.l.b16 %v5344
        %v5377 = vunpack.c.l.b16 %v5345
        %v5378 = vpack.c.b16 %v5363, %v5362
        %v5379 = vpack.c.b16 %v5365, %v5364
        %v5380 = vpack.c.b16 %v5367, %v5366
        %v5381 = vpack.c.b16 %v5369, %v5368
        %v5382 = vpack.c.b16 %v5371, %v5370
        %v5383 = vpack.c.b16 %v5373, %v5372
        %v5384 = vpack.c.b16 %v5375, %v5374
        %v5385 = vpack.c.b16 %v5377, %v5376
        %5394 = vmatprep.subr.bf16.mxu0 0
        %5395 = vmatpush1.bf16.msra.mxu0 %v5385
        %5396 = vmatprep.subr.bf16.mxu0 0
        %5397 = vmatpush1.bf16.msra.mxu0 %v5384
        %5398 = vmatprep.subr.bf16.mxu0 0
        %5399 = vmatpush1.bf16.msra.mxu0 %v5383
        %5400 = vmatprep.subr.bf16.mxu0 0
        %5401 = vmatpush1.bf16.msra.mxu0 %v5382
        %5402 = vmatprep.subr.bf16.mxu0 0
        %5403 = vmatpush1.bf16.msra.mxu0 %v5381
        %5404 = vmatprep.subr.bf16.mxu0 0
        %5405 = vmatpush1.bf16.msra.mxu0 %v5380
        %5406 = vmatprep.subr.bf16.mxu0 0
        %5407 = vmatpush1.bf16.msra.mxu0 %v5379
        %5408 = vmatprep.subr.bf16.mxu0 0
        %5409 = vmatpush1.bf16.msra.mxu0 %v5378
        %5410 = vmatprep.subr.bf16.mxu0 0
        %5411 = vmatpush2.bf16.msra.mxu0 0
        %5412 = vmatprep.subr.bf16.mxu0 0
        %5413 = vmatpush2.bf16.msra.mxu0 0
        %5414 = vmatprep.subr.bf16.mxu0 0
        %5415 = vmatpush2.bf16.msra.mxu0 0
        %5416 = vmatprep.subr.bf16.mxu0 0
        %5417 = vmatpush2.bf16.msra.mxu0 0
        %5418 = vmatprep.subr.bf16.mxu0 0
        %5419 = vmatpush2.bf16.msra.mxu0 0
        %5420 = vmatprep.subr.bf16.mxu0 0
        %5421 = vmatpush2.bf16.msra.mxu0 0
        %5422 = vmatprep.subr.bf16.mxu0 0
        %5423 = vmatpush2.bf16.msra.mxu0 0
        %5424 = vmatprep.subr.bf16.mxu0 0
        %5425 = vmatpush2.bf16.msra.mxu0 0
        %5426 = vmatprep.mubr.bf16.mxu0 0
        %5427 = vmatmul.mubr.bf16.gmra.mxu0 %v4797
        %v5428 = vpop.f32.mrf.mxu0
        %v5429 = vadd.f32 0.0, %v5428
        %v5430 = vpop.f32.mrf.mxu0
        %v5431 = vpop.f32.mrf.mxu0
        %v5432 = vadd.f32 0.0, %v5431
        %v5433 = vpop.f32.mrf.mxu0
        %5434 = vmatprep.mubr.bf16.mxu0 0
        %5435 = vmatmul.mubr.bf16.gmra.mxu0 %v4798
        %v5436 = vpop.f32.mrf.mxu0
        %v5437 = vadd.f32 0.0, %v5436
        %v5438 = vpop.f32.mrf.mxu0
        %v5439 = vpop.f32.mrf.mxu0
        %v5440 = vadd.f32 0.0, %v5439
        %v5441 = vpop.f32.mrf.mxu0
        %5442 = vmatprep.mubr.bf16.mxu0 0
        %5443 = vmatmul.mubr.bf16.gmra.mxu0 %v4799
        %v5444 = vpop.f32.mrf.mxu0
        %v5445 = vadd.f32 0.0, %v5444
        %v5446 = vpop.f32.mrf.mxu0
        %v5447 = vpop.f32.mrf.mxu0
        %v5448 = vadd.f32 0.0, %v5447
        %v5449 = vpop.f32.mrf.mxu0
        %5450 = vmatprep.mubr.bf16.mxu0 0
        %5451 = vmatmul.mubr.bf16.gmra.mxu0 %v4800
        %v5452 = vpop.f32.mrf.mxu0
        %v5453 = vadd.f32 0.0, %v5452
        %v5454 = vpop.f32.mrf.mxu0
        %v5455 = vpop.f32.mrf.mxu0
        %v5456 = vadd.f32 0.0, %v5455
        %v5457 = vpop.f32.mrf.mxu0
        %5458 = vmatprep.mubr.bf16.mxu0 0
        %5459 = vmatmul.mubr.bf16.gmra.mxu0 %v4801
        %v5460 = vpop.f32.mrf.mxu0
        %v5461 = vadd.f32 0.0, %v5460
        %v5462 = vpop.f32.mrf.mxu0
        %v5463 = vpop.f32.mrf.mxu0
        %v5464 = vadd.f32 0.0, %v5463
        %v5465 = vpop.f32.mrf.mxu0
        %5466 = vmatprep.mubr.bf16.mxu0 0
        %5467 = vmatmul.mubr.bf16.gmra.mxu0 %v4802
        %v5468 = vpop.f32.mrf.mxu0
        %v5469 = vadd.f32 0.0, %v5468
        %v5470 = vpop.f32.mrf.mxu0
        %v5471 = vpop.f32.mrf.mxu0
        %v5472 = vadd.f32 0.0, %v5471
        %v5473 = vpop.f32.mrf.mxu0
        %5474 = vmatprep.mubr.bf16.mxu0 0
        %5475 = vmatmul.mubr.bf16.gmra.mxu0 %v4803
        %v5476 = vpop.f32.mrf.mxu0
        %v5477 = vadd.f32 0.0, %v5476
        %v5478 = vpop.f32.mrf.mxu0
        %v5479 = vpop.f32.mrf.mxu0
        %v5480 = vadd.f32 0.0, %v5479
        %v5481 = vpop.f32.mrf.mxu0
        %5482 = vmatprep.mubr.bf16.mxu0 0
        %5483 = vmatmul.mubr.bf16.gmra.mxu0 %v4804
        %v5484 = vpop.f32.mrf.mxu0
        %v5485 = vadd.f32 0.0, %v5484
        %v5486 = vpop.f32.mrf.mxu0
        %v5487 = vpop.f32.mrf.mxu0
        %v5488 = vadd.f32 0.0, %v5487
        %v5489 = vpop.f32.mrf.mxu0
        %5490 = vmatprep.mubr.bf16.mxu0 0
        %5491 = vmatmul.mubr.bf16.gmra.mxu0 %v4805
        %v5492 = vpop.f32.mrf.mxu0
        %v5493 = vadd.f32 0.0, %v5492
        %v5494 = vpop.f32.mrf.mxu0
        %v5495 = vpop.f32.mrf.mxu0
        %v5496 = vadd.f32 0.0, %v5495
        %v5497 = vpop.f32.mrf.mxu0
        %5498 = vmatprep.mubr.bf16.mxu0 0
        %5499 = vmatmul.mubr.bf16.gmra.mxu0 %v4806
        %v5500 = vpop.f32.mrf.mxu0
        %v5501 = vadd.f32 0.0, %v5500
        %v5502 = vpop.f32.mrf.mxu0
        %v5503 = vpop.f32.mrf.mxu0
        %v5504 = vadd.f32 0.0, %v5503
        %v5505 = vpop.f32.mrf.mxu0
        %5506 = vmatprep.mubr.bf16.mxu0 0
        %5507 = vmatmul.mubr.bf16.gmra.mxu0 %v4807
        %v5508 = vpop.f32.mrf.mxu0
        %v5509 = vadd.f32 0.0, %v5508
        %v5510 = vpop.f32.mrf.mxu0
        %v5511 = vpop.f32.mrf.mxu0
        %v5512 = vadd.f32 0.0, %v5511
        %v5513 = vpop.f32.mrf.mxu0
        %5514 = vmatprep.mubr.bf16.mxu0 0
        %5515 = vmatmul.mubr.bf16.gmra.mxu0 %v4808
        %v5516 = vpop.f32.mrf.mxu0
        %v5517 = vadd.f32 0.0, %v5516
        %v5518 = vpop.f32.mrf.mxu0
        %v5519 = vpop.f32.mrf.mxu0
        %v5520 = vadd.f32 0.0, %v5519
        %v5521 = vpop.f32.mrf.mxu0
        %5522 = vmatprep.mubr.bf16.mxu0 0
        %5523 = vmatmul.mubr.bf16.gmra.mxu0 %v4809
        %v5524 = vpop.f32.mrf.mxu0
        %v5525 = vadd.f32 0.0, %v5524
        %v5526 = vpop.f32.mrf.mxu0
        %v5527 = vpop.f32.mrf.mxu0
        %v5528 = vadd.f32 0.0, %v5527
        %v5529 = vpop.f32.mrf.mxu0
        %5530 = vmatprep.mubr.bf16.mxu0 0
        %5531 = vmatmul.mubr.bf16.gmra.mxu0 %v4810
        %v5532 = vpop.f32.mrf.mxu0
        %v5533 = vadd.f32 0.0, %v5532
        %v5534 = vpop.f32.mrf.mxu0
        %v5535 = vpop.f32.mrf.mxu0
        %v5536 = vadd.f32 0.0, %v5535
        %v5537 = vpop.f32.mrf.mxu0
        %5538 = vmatprep.mubr.bf16.mxu0 0
        %5539 = vmatmul.mubr.bf16.gmra.mxu0 %v4811
        %v5540 = vpop.f32.mrf.mxu0
        %v5541 = vadd.f32 0.0, %v5540
        %v5542 = vpop.f32.mrf.mxu0
        %v5543 = vpop.f32.mrf.mxu0
        %v5544 = vadd.f32 0.0, %v5543
        %v5545 = vpop.f32.mrf.mxu0
        %5546 = vmatprep.mubr.bf16.mxu0 0
        %5547 = vmatmul.mubr.bf16.gmra.mxu0 %v4812
        %v5548 = vpop.f32.mrf.mxu0
        %v5549 = vadd.f32 0.0, %v5548
        %v5550 = vpop.f32.mrf.mxu0
        %v5551 = vpop.f32.mrf.mxu0
        %v5552 = vadd.f32 0.0, %v5551
        %v5553 = vpop.f32.mrf.mxu0
        %5554 = vdwg.mxu0
        %v5555 = vadd.f32 %v5297, %v5429
        %v5556 = vadd.f32 %v5298, %v5432
        %v5557 = vadd.f32 %v5299, %v5437
        %v5558 = vadd.f32 %v5300, %v5440
        %v5559 = vadd.f32 %v5301, %v5445
        %v5560 = vadd.f32 %v5302, %v5448
        %v5561 = vadd.f32 %v5303, %v5453
        %v5562 = vadd.f32 %v5304, %v5456
        %v5563 = vadd.f32 %v5305, %v5461
        %v5564 = vadd.f32 %v5306, %v5464
        %v5565 = vadd.f32 %v5307, %v5469
        %v5566 = vadd.f32 %v5308, %v5472
        %v5567 = vadd.f32 %v5309, %v5477
        %v5568 = vadd.f32 %v5310, %v5480
        %v5569 = vadd.f32 %v5311, %v5485
        %v5570 = vadd.f32 %v5312, %v5488
        %v5571 = vadd.f32 %v5313, %v5493
        %v5572 = vadd.f32 %v5314, %v5496
        %v5573 = vadd.f32 %v5315, %v5501
        %v5574 = vadd.f32 %v5316, %v5504
        %v5575 = vadd.f32 %v5317, %v5509
        %v5576 = vadd.f32 %v5318, %v5512
        %v5577 = vadd.f32 %v5319, %v5517
        %v5578 = vadd.f32 %v5320, %v5520
        %v5579 = vadd.f32 %v5321, %v5525
        %v5580 = vadd.f32 %v5322, %v5528
        %v5581 = vadd.f32 %v5323, %v5533
        %v5582 = vadd.f32 %v5324, %v5536
        %v5583 = vadd.f32 %v5325, %v5541
        %v5584 = vadd.f32 %v5326, %v5544
        %v5585 = vadd.f32 %v5327, %v5549
        %v5586 = vadd.f32 %v5328, %v5552
        %v5587 = vld [vmem:[#allocation2 + $0x2] sm:$0xff]
        %v5588 = vld [vmem:[#allocation2 + $0xa] sm:$0xff]
        %v5589 = vld [vmem:[#allocation2 + $0x1a] sm:$0xff]
        %v5590 = vld [vmem:[#allocation2 + $0x22] sm:$0xff]
        %v5591 = vld [vmem:[#allocation2 + $0x32] sm:$0xff]
        %v5592 = vld [vmem:[#allocation2 + $0x3a] sm:$0xff]
        %v5593 = vld [vmem:[#allocation2 + $0x4a] sm:$0xff]
        %v5594 = vld [vmem:[#allocation2 + $0x52] sm:$0xff]
        %v5595 = vld [vmem:[#allocation2 + $0x62] sm:$0xff]
        %v5596 = vld [vmem:[#allocation2 + $0x6a] sm:$0xff]
        %v5597 = vld [vmem:[#allocation2 + $0x7a] sm:$0xff]
        %v5598 = vld [vmem:[#allocation2 + $0x82] sm:$0xff]
        %v5599 = vld [vmem:[#allocation2 + $0x92] sm:$0xff]
        %v5600 = vld [vmem:[#allocation2 + $0x9a] sm:$0xff]
        %v5601 = vld [vmem:[#allocation2 + $0xaa] sm:$0xff]
        %v5602 = vld [vmem:[#allocation2 + $0xb2] sm:$0xff]
        %v5603 = vld [vmem:[#allocation2 + $0xc2] sm:$0xff]
        %v5604 = vld [vmem:[#allocation2 + $0xca] sm:$0xff]
        %v5605 = vld [vmem:[#allocation2 + $0xda] sm:$0xff]
        %v5606 = vld [vmem:[#allocation2 + $0xe2] sm:$0xff]
        %v5607 = vld [vmem:[#allocation2 + $0xf2] sm:$0xff]
        %v5608 = vld [vmem:[#allocation2 + $0xfa] sm:$0xff]
        %v5609 = vld [vmem:[#allocation2 + $0x10a] sm:$0xff]
        %v5610 = vld [vmem:[#allocation2 + $0x112] sm:$0xff]
        %v5611 = vld [vmem:[#allocation2 + $0x122] sm:$0xff]
        %v5612 = vld [vmem:[#allocation2 + $0x12a] sm:$0xff]
        %v5613 = vld [vmem:[#allocation2 + $0x13a] sm:$0xff]
        %v5614 = vld [vmem:[#allocation2 + $0x142] sm:$0xff]
        %v5615 = vld [vmem:[#allocation2 + $0x152] sm:$0xff]
        %v5616 = vld [vmem:[#allocation2 + $0x15a] sm:$0xff]
        %v5617 = vld [vmem:[#allocation2 + $0x16a] sm:$0xff]
        %v5618 = vld [vmem:[#allocation2 + $0x172] sm:$0xff]
        %v5619 = vld [vmem:[#allocation2 + $0x182] sm:$0xff]
        %v5620 = vld [vmem:[#allocation2 + $0x18a] sm:$0xff]
        %v5621 = vld [vmem:[#allocation2 + $0x19a] sm:$0xff]
        %v5622 = vld [vmem:[#allocation2 + $0x1a2] sm:$0xff]
        %v5623 = vpack.c.bf16 %v5588, %v5587
        %v5624 = vpack.c.bf16 %v5590, %v5589
        %v5625 = vpack.c.bf16 %v5592, %v5591
        %v5626 = vpack.c.bf16 %v5594, %v5593
        %v5627 = vpack.c.bf16 %v5596, %v5595
        %v5628 = vpack.c.bf16 %v5598, %v5597
        %v5629 = vpack.c.bf16 %v5600, %v5599
        %v5630 = vpack.c.bf16 %v5602, %v5601
        %v5631 = vpack.c.bf16 %v5604, %v5603
        %v5632 = vpack.c.bf16 %v5606, %v5605
        %v5633 = vpack.c.bf16 %v5608, %v5607
        %v5634 = vpack.c.bf16 %v5610, %v5609
        %v5635 = vpack.c.bf16 %v5612, %v5611
        %v5636 = vpack.c.bf16 %v5614, %v5613
        %v5637 = vpack.c.bf16 %v5616, %v5615
        %v5638 = vpack.c.bf16 %v5618, %v5617
        %v5639 = vpack.c.bf16 %v5620, %v5619
        %v5640 = vpack.c.bf16 %v5622, %v5621
        %s5641 = scalar_lea.vmem [#allocation9], 128
        %v5642 = vld [vmem:[%s5641] sm:$0xf]
        %v5643 = vld [vmem:[%s5641 + $0x4] sm:$0xf]
        %v5644 = vld [vmem:[%s5641 + $0x8] sm:$0xf]
        %v5645 = vld [vmem:[%s5641 + $0xc] sm:$0xf]
        %v5646 = vld [vmem:[%s5641 + $0x10] sm:$0xf]
        %v5647 = vld [vmem:[%s5641 + $0x14] sm:$0xf]
        %v5648 = vld [vmem:[%s5641 + $0x18] sm:$0xf]
        %v5649 = vld [vmem:[%s5641 + $0x1c] sm:$0xf]
        %v5650 = vld [vmem:[%s5641 + $0x20] sm:$0xf]
        %v5651 = vld [vmem:[%s5641 + $0x24] sm:$0xf]
        %v5652 = vld [vmem:[%s5641 + $0x28] sm:$0xf]
        %v5653 = vld [vmem:[%s5641 + $0x2c] sm:$0xf]
        %v5654 = vld [vmem:[%s5641 + $0x30] sm:$0xf]
        %v5655 = vld [vmem:[%s5641 + $0x34] sm:$0xf]
        %v5656 = vld [vmem:[%s5641 + $0x38] sm:$0xf]
        %v5657 = vld [vmem:[%s5641 + $0x3c] sm:$0xf]
        %v5674 = vunpack.c.l.b16 %v5642
        %v5675 = vunpack.c.l.b16 %v5643
        %v5676 = vunpack.c.l.b16 %v5644
        %v5677 = vunpack.c.l.b16 %v5645
        %v5678 = vunpack.c.l.b16 %v5646
        %v5679 = vunpack.c.l.b16 %v5647
        %v5680 = vunpack.c.l.b16 %v5648
        %v5681 = vunpack.c.l.b16 %v5649
        %v5682 = vunpack.c.l.b16 %v5650
        %v5683 = vunpack.c.l.b16 %v5651
        %v5684 = vunpack.c.l.b16 %v5652
        %v5685 = vunpack.c.l.b16 %v5653
        %v5686 = vunpack.c.l.b16 %v5654
        %v5687 = vunpack.c.l.b16 %v5655
        %v5688 = vunpack.c.l.b16 %v5656
        %v5689 = vunpack.c.l.b16 %v5657
        %v5690 = vpack.c.b16 %v5675, %v5674
        %v5691 = vpack.c.b16 %v5677, %v5676
        %v5692 = vpack.c.b16 %v5679, %v5678
        %v5693 = vpack.c.b16 %v5681, %v5680
        %v5694 = vpack.c.b16 %v5683, %v5682
        %v5695 = vpack.c.b16 %v5685, %v5684
        %v5696 = vpack.c.b16 %v5687, %v5686
        %v5697 = vpack.c.b16 %v5689, %v5688
        %5706 = vmatprep.subr.bf16.mxu0 0
        %5707 = vmatpush1.bf16.msra.mxu0 %v5697
        %5708 = vmatprep.subr.bf16.mxu0 0
        %5709 = vmatpush1.bf16.msra.mxu0 %v5696
        %5710 = vmatprep.subr.bf16.mxu0 0
        %5711 = vmatpush1.bf16.msra.mxu0 %v5695
        %5712 = vmatprep.subr.bf16.mxu0 0
        %5713 = vmatpush1.bf16.msra.mxu0 %v5694
        %5714 = vmatprep.subr.bf16.mxu0 0
        %5715 = vmatpush1.bf16.msra.mxu0 %v5693
        %5716 = vmatprep.subr.bf16.mxu0 0
        %5717 = vmatpush1.bf16.msra.mxu0 %v5692
        %5718 = vmatprep.subr.bf16.mxu0 0
        %5719 = vmatpush1.bf16.msra.mxu0 %v5691
        %5720 = vmatprep.subr.bf16.mxu0 0
        %5721 = vmatpush1.bf16.msra.mxu0 %v5690
        %5722 = vmatprep.subr.bf16.mxu0 0
        %5723 = vmatpush2.bf16.msra.mxu0 0
        %5724 = vmatprep.subr.bf16.mxu0 0
        %5725 = vmatpush2.bf16.msra.mxu0 0
        %5726 = vmatprep.subr.bf16.mxu0 0
        %5727 = vmatpush2.bf16.msra.mxu0 0
        %5728 = vmatprep.subr.bf16.mxu0 0
        %5729 = vmatpush2.bf16.msra.mxu0 0
        %5730 = vmatprep.subr.bf16.mxu0 0
        %5731 = vmatpush2.bf16.msra.mxu0 0
        %5732 = vmatprep.subr.bf16.mxu0 0
        %5733 = vmatpush2.bf16.msra.mxu0 0
        %5734 = vmatprep.subr.bf16.mxu0 0
        %5735 = vmatpush2.bf16.msra.mxu0 0
        %5736 = vmatprep.subr.bf16.mxu0 0
        %5737 = vmatpush2.bf16.msra.mxu0 0
        %5738 = vmatprep.mubr.bf16.mxu0 0
        %5739 = vmatmul.mubr.bf16.gmra.mxu0 %v5623
        %v5740 = vpop.f32.mrf.mxu0
        %v5741 = vadd.f32 0.0, %v5740
        %v5742 = vpop.f32.mrf.mxu0
        %v5743 = vpop.f32.mrf.mxu0
        %v5744 = vadd.f32 0.0, %v5743
        %v5745 = vpop.f32.mrf.mxu0
        %5746 = vmatprep.mubr.bf16.mxu0 0
        %5747 = vmatmul.mubr.bf16.gmra.mxu0 %v5624
        %v5748 = vpop.f32.mrf.mxu0
        %v5749 = vadd.f32 0.0, %v5748
        %v5750 = vpop.f32.mrf.mxu0
        %v5751 = vpop.f32.mrf.mxu0
        %v5752 = vadd.f32 0.0, %v5751
        %v5753 = vpop.f32.mrf.mxu0
        %5754 = vmatprep.mubr.bf16.mxu0 0
        %5755 = vmatmul.mubr.bf16.gmra.mxu0 %v5625
        %v5756 = vpop.f32.mrf.mxu0
        %v5757 = vadd.f32 0.0, %v5756
        %v5758 = vpop.f32.mrf.mxu0
        %v5759 = vpop.f32.mrf.mxu0
        %v5760 = vadd.f32 0.0, %v5759
        %v5761 = vpop.f32.mrf.mxu0
        %5762 = vmatprep.mubr.bf16.mxu0 0
        %5763 = vmatmul.mubr.bf16.gmra.mxu0 %v5626
        %v5764 = vpop.f32.mrf.mxu0
        %v5765 = vadd.f32 0.0, %v5764
        %v5766 = vpop.f32.mrf.mxu0
        %v5767 = vpop.f32.mrf.mxu0
        %v5768 = vadd.f32 0.0, %v5767
        %v5769 = vpop.f32.mrf.mxu0
        %5770 = vmatprep.mubr.bf16.mxu0 0
        %5771 = vmatmul.mubr.bf16.gmra.mxu0 %v5627
        %v5772 = vpop.f32.mrf.mxu0
        %v5773 = vadd.f32 0.0, %v5772
        %v5774 = vpop.f32.mrf.mxu0
        %v5775 = vpop.f32.mrf.mxu0
        %v5776 = vadd.f32 0.0, %v5775
        %v5777 = vpop.f32.mrf.mxu0
        %5778 = vmatprep.mubr.bf16.mxu0 0
        %5779 = vmatmul.mubr.bf16.gmra.mxu0 %v5628
        %v5780 = vpop.f32.mrf.mxu0
        %v5781 = vadd.f32 0.0, %v5780
        %v5782 = vpop.f32.mrf.mxu0
        %v5783 = vpop.f32.mrf.mxu0
        %v5784 = vadd.f32 0.0, %v5783
        %v5785 = vpop.f32.mrf.mxu0
        %5786 = vmatprep.mubr.bf16.mxu0 0
        %5787 = vmatmul.mubr.bf16.gmra.mxu0 %v5629
        %v5788 = vpop.f32.mrf.mxu0
        %v5789 = vadd.f32 0.0, %v5788
        %v5790 = vpop.f32.mrf.mxu0
        %v5791 = vpop.f32.mrf.mxu0
        %v5792 = vadd.f32 0.0, %v5791
        %v5793 = vpop.f32.mrf.mxu0
        %5794 = vmatprep.mubr.bf16.mxu0 0
        %5795 = vmatmul.mubr.bf16.gmra.mxu0 %v5630
        %v5796 = vpop.f32.mrf.mxu0
        %v5797 = vadd.f32 0.0, %v5796
        %v5798 = vpop.f32.mrf.mxu0
        %v5799 = vpop.f32.mrf.mxu0
        %v5800 = vadd.f32 0.0, %v5799
        %v5801 = vpop.f32.mrf.mxu0
        %5802 = vmatprep.mubr.bf16.mxu0 0
        %5803 = vmatmul.mubr.bf16.gmra.mxu0 %v5631
        %v5804 = vpop.f32.mrf.mxu0
        %v5805 = vadd.f32 0.0, %v5804
        %v5806 = vpop.f32.mrf.mxu0
        %v5807 = vpop.f32.mrf.mxu0
        %v5808 = vadd.f32 0.0, %v5807
        %v5809 = vpop.f32.mrf.mxu0
        %5810 = vmatprep.mubr.bf16.mxu0 0
        %5811 = vmatmul.mubr.bf16.gmra.mxu0 %v5632
        %v5812 = vpop.f32.mrf.mxu0
        %v5813 = vadd.f32 0.0, %v5812
        %v5814 = vpop.f32.mrf.mxu0
        %v5815 = vpop.f32.mrf.mxu0
        %v5816 = vadd.f32 0.0, %v5815
        %v5817 = vpop.f32.mrf.mxu0
        %5818 = vmatprep.mubr.bf16.mxu0 0
        %5819 = vmatmul.mubr.bf16.gmra.mxu0 %v5633
        %v5820 = vpop.f32.mrf.mxu0
        %v5821 = vadd.f32 0.0, %v5820
        %v5822 = vpop.f32.mrf.mxu0
        %v5823 = vpop.f32.mrf.mxu0
        %v5824 = vadd.f32 0.0, %v5823
        %v5825 = vpop.f32.mrf.mxu0
        %5826 = vmatprep.mubr.bf16.mxu0 0
        %5827 = vmatmul.mubr.bf16.gmra.mxu0 %v5634
        %v5828 = vpop.f32.mrf.mxu0
        %v5829 = vadd.f32 0.0, %v5828
        %v5830 = vpop.f32.mrf.mxu0
        %v5831 = vpop.f32.mrf.mxu0
        %v5832 = vadd.f32 0.0, %v5831
        %v5833 = vpop.f32.mrf.mxu0
        %5834 = vmatprep.mubr.bf16.mxu0 0
        %5835 = vmatmul.mubr.bf16.gmra.mxu0 %v5635
        %v5836 = vpop.f32.mrf.mxu0
        %v5837 = vadd.f32 0.0, %v5836
        %v5838 = vpop.f32.mrf.mxu0
        %v5839 = vpop.f32.mrf.mxu0
        %v5840 = vadd.f32 0.0, %v5839
        %v5841 = vpop.f32.mrf.mxu0
        %5842 = vmatprep.mubr.bf16.mxu0 0
        %5843 = vmatmul.mubr.bf16.gmra.mxu0 %v5636
        %v5844 = vpop.f32.mrf.mxu0
        %v5845 = vadd.f32 0.0, %v5844
        %v5846 = vpop.f32.mrf.mxu0
        %v5847 = vpop.f32.mrf.mxu0
        %v5848 = vadd.f32 0.0, %v5847
        %v5849 = vpop.f32.mrf.mxu0
        %5850 = vmatprep.mubr.bf16.mxu0 0
        %5851 = vmatmul.mubr.bf16.gmra.mxu0 %v5637
        %v5852 = vpop.f32.mrf.mxu0
        %v5853 = vadd.f32 0.0, %v5852
        %v5854 = vpop.f32.mrf.mxu0
        %v5855 = vpop.f32.mrf.mxu0
        %v5856 = vadd.f32 0.0, %v5855
        %v5857 = vpop.f32.mrf.mxu0
        %5858 = vmatprep.mubr.bf16.mxu0 0
        %5859 = vmatmul.mubr.bf16.gmra.mxu0 %v5638
        %v5860 = vpop.f32.mrf.mxu0
        %v5861 = vadd.f32 0.0, %v5860
        %v5862 = vpop.f32.mrf.mxu0
        %v5863 = vpop.f32.mrf.mxu0
        %v5864 = vadd.f32 0.0, %v5863
        %v5865 = vpop.f32.mrf.mxu0
        %5866 = vdwg.mxu0
        %v5867 = vadd.f32 %v5555, %v5741
        %v5868 = vadd.f32 %v5556, %v5744
        %v5869 = vadd.f32 %v5557, %v5749
        %v5870 = vadd.f32 %v5558, %v5752
        %v5871 = vadd.f32 %v5559, %v5757
        %v5872 = vadd.f32 %v5560, %v5760
        %v5873 = vadd.f32 %v5561, %v5765
        %v5874 = vadd.f32 %v5562, %v5768
        %v5875 = vadd.f32 %v5563, %v5773
        %v5876 = vadd.f32 %v5564, %v5776
        %v5877 = vadd.f32 %v5565, %v5781
        %v5878 = vadd.f32 %v5566, %v5784
        %v5879 = vadd.f32 %v5567, %v5789
        %v5880 = vadd.f32 %v5568, %v5792
        %v5881 = vadd.f32 %v5569, %v5797
        %v5882 = vadd.f32 %v5570, %v5800
        %v5883 = vadd.f32 %v5571, %v5805
        %v5884 = vadd.f32 %v5572, %v5808
        %v5885 = vadd.f32 %v5573, %v5813
        %v5886 = vadd.f32 %v5574, %v5816
        %v5887 = vadd.f32 %v5575, %v5821
        %v5888 = vadd.f32 %v5576, %v5824
        %v5889 = vadd.f32 %v5577, %v5829
        %v5890 = vadd.f32 %v5578, %v5832
        %v5891 = vadd.f32 %v5579, %v5837
        %v5892 = vadd.f32 %v5580, %v5840
        %v5893 = vadd.f32 %v5581, %v5845
        %v5894 = vadd.f32 %v5582, %v5848
        %v5895 = vadd.f32 %v5583, %v5853
        %v5896 = vadd.f32 %v5584, %v5856
        %v5897 = vadd.f32 %v5585, %v5861
        %v5898 = vadd.f32 %v5586, %v5864
        %s5899 = scalar_lea.vmem [#allocation9], 320
        %v5900 = vld [vmem:[%s5899] sm:$0xf]
        %v5901 = vld [vmem:[%s5899 + $0x4] sm:$0xf]
        %v5902 = vld [vmem:[%s5899 + $0x8] sm:$0xf]
        %v5903 = vld [vmem:[%s5899 + $0xc] sm:$0xf]
        %v5904 = vld [vmem:[%s5899 + $0x10] sm:$0xf]
        %v5905 = vld [vmem:[%s5899 + $0x14] sm:$0xf]
        %v5906 = vld [vmem:[%s5899 + $0x18] sm:$0xf]
        %v5907 = vld [vmem:[%s5899 + $0x1c] sm:$0xf]
        %v5908 = vld [vmem:[%s5899 + $0x20] sm:$0xf]
        %v5909 = vld [vmem:[%s5899 + $0x24] sm:$0xf]
        %v5910 = vld [vmem:[%s5899 + $0x28] sm:$0xf]
        %v5911 = vld [vmem:[%s5899 + $0x2c] sm:$0xf]
        %v5912 = vld [vmem:[%s5899 + $0x30] sm:$0xf]
        %v5913 = vld [vmem:[%s5899 + $0x34] sm:$0xf]
        %v5914 = vld [vmem:[%s5899 + $0x38] sm:$0xf]
        %v5915 = vld [vmem:[%s5899 + $0x3c] sm:$0xf]
        %v5932 = vunpack.c.l.b16 %v5900
        %v5933 = vunpack.c.l.b16 %v5901
        %v5934 = vunpack.c.l.b16 %v5902
        %v5935 = vunpack.c.l.b16 %v5903
        %v5936 = vunpack.c.l.b16 %v5904
        %v5937 = vunpack.c.l.b16 %v5905
        %v5938 = vunpack.c.l.b16 %v5906
        %v5939 = vunpack.c.l.b16 %v5907
        %v5940 = vunpack.c.l.b16 %v5908
        %v5941 = vunpack.c.l.b16 %v5909
        %v5942 = vunpack.c.l.b16 %v5910
        %v5943 = vunpack.c.l.b16 %v5911
        %v5944 = vunpack.c.l.b16 %v5912
        %v5945 = vunpack.c.l.b16 %v5913
        %v5946 = vunpack.c.l.b16 %v5914
        %v5947 = vunpack.c.l.b16 %v5915
        %v5948 = vpack.c.b16 %v5933, %v5932
        %v5949 = vpack.c.b16 %v5935, %v5934
        %v5950 = vpack.c.b16 %v5937, %v5936
        %v5951 = vpack.c.b16 %v5939, %v5938
        %v5952 = vpack.c.b16 %v5941, %v5940
        %v5953 = vpack.c.b16 %v5943, %v5942
        %v5954 = vpack.c.b16 %v5945, %v5944
        %v5955 = vpack.c.b16 %v5947, %v5946
        %5964 = vmatprep.subr.bf16.mxu0 0
        %5965 = vmatpush1.bf16.msra.mxu0 %v5955
        %5966 = vmatprep.subr.bf16.mxu0 0
        %5967 = vmatpush1.bf16.msra.mxu0 %v5954
        %5968 = vmatprep.subr.bf16.mxu0 0
        %5969 = vmatpush1.bf16.msra.mxu0 %v5953
        %5970 = vmatprep.subr.bf16.mxu0 0
        %5971 = vmatpush1.bf16.msra.mxu0 %v5952
        %5972 = vmatprep.subr.bf16.mxu0 0
        %5973 = vmatpush1.bf16.msra.mxu0 %v5951
        %5974 = vmatprep.subr.bf16.mxu0 0
        %5975 = vmatpush1.bf16.msra.mxu0 %v5950
        %5976 = vmatprep.subr.bf16.mxu0 0
        %5977 = vmatpush1.bf16.msra.mxu0 %v5949
        %5978 = vmatprep.subr.bf16.mxu0 0
        %5979 = vmatpush1.bf16.msra.mxu0 %v5948
        %5980 = vmatprep.subr.bf16.mxu0 0
        %5981 = vmatpush2.bf16.msra.mxu0 0
        %5982 = vmatprep.subr.bf16.mxu0 0
        %5983 = vmatpush2.bf16.msra.mxu0 0
        %5984 = vmatprep.subr.bf16.mxu0 0
        %5985 = vmatpush2.bf16.msra.mxu0 0
        %5986 = vmatprep.subr.bf16.mxu0 0
        %5987 = vmatpush2.bf16.msra.mxu0 0
        %5988 = vmatprep.subr.bf16.mxu0 0
        %5989 = vmatpush2.bf16.msra.mxu0 0
        %5990 = vmatprep.subr.bf16.mxu0 0
        %5991 = vmatpush2.bf16.msra.mxu0 0
        %5992 = vmatprep.subr.bf16.mxu0 0
        %5993 = vmatpush2.bf16.msra.mxu0 0
        %5994 = vmatprep.subr.bf16.mxu0 0
        %5995 = vmatpush2.bf16.msra.mxu0 0
        %5996 = vmatprep.mubr.bf16.mxu0 0
        %5997 = vmatmul.mubr.bf16.gmra.mxu0 %v5624
        %v5998 = vpop.f32.mrf.mxu0
        %v5999 = vadd.f32 0.0, %v5998
        %v6000 = vpop.f32.mrf.mxu0
        %v6001 = vpop.f32.mrf.mxu0
        %v6002 = vadd.f32 0.0, %v6001
        %v6003 = vpop.f32.mrf.mxu0
        %6004 = vmatprep.mubr.bf16.mxu0 0
        %6005 = vmatmul.mubr.bf16.gmra.mxu0 %v5625
        %v6006 = vpop.f32.mrf.mxu0
        %v6007 = vadd.f32 0.0, %v6006
        %v6008 = vpop.f32.mrf.mxu0
        %v6009 = vpop.f32.mrf.mxu0
        %v6010 = vadd.f32 0.0, %v6009
        %v6011 = vpop.f32.mrf.mxu0
        %6012 = vmatprep.mubr.bf16.mxu0 0
        %6013 = vmatmul.mubr.bf16.gmra.mxu0 %v5626
        %v6014 = vpop.f32.mrf.mxu0
        %v6015 = vadd.f32 0.0, %v6014
        %v6016 = vpop.f32.mrf.mxu0
        %v6017 = vpop.f32.mrf.mxu0
        %v6018 = vadd.f32 0.0, %v6017
        %v6019 = vpop.f32.mrf.mxu0
        %6020 = vmatprep.mubr.bf16.mxu0 0
        %6021 = vmatmul.mubr.bf16.gmra.mxu0 %v5627
        %v6022 = vpop.f32.mrf.mxu0
        %v6023 = vadd.f32 0.0, %v6022
        %v6024 = vpop.f32.mrf.mxu0
        %v6025 = vpop.f32.mrf.mxu0
        %v6026 = vadd.f32 0.0, %v6025
        %v6027 = vpop.f32.mrf.mxu0
        %6028 = vmatprep.mubr.bf16.mxu0 0
        %6029 = vmatmul.mubr.bf16.gmra.mxu0 %v5628
        %v6030 = vpop.f32.mrf.mxu0
        %v6031 = vadd.f32 0.0, %v6030
        %v6032 = vpop.f32.mrf.mxu0
        %v6033 = vpop.f32.mrf.mxu0
        %v6034 = vadd.f32 0.0, %v6033
        %v6035 = vpop.f32.mrf.mxu0
        %6036 = vmatprep.mubr.bf16.mxu0 0
        %6037 = vmatmul.mubr.bf16.gmra.mxu0 %v5629
        %v6038 = vpop.f32.mrf.mxu0
        %v6039 = vadd.f32 0.0, %v6038
        %v6040 = vpop.f32.mrf.mxu0
        %v6041 = vpop.f32.mrf.mxu0
        %v6042 = vadd.f32 0.0, %v6041
        %v6043 = vpop.f32.mrf.mxu0
        %6044 = vmatprep.mubr.bf16.mxu0 0
        %6045 = vmatmul.mubr.bf16.gmra.mxu0 %v5630
        %v6046 = vpop.f32.mrf.mxu0
        %v6047 = vadd.f32 0.0, %v6046
        %v6048 = vpop.f32.mrf.mxu0
        %v6049 = vpop.f32.mrf.mxu0
        %v6050 = vadd.f32 0.0, %v6049
        %v6051 = vpop.f32.mrf.mxu0
        %6052 = vmatprep.mubr.bf16.mxu0 0
        %6053 = vmatmul.mubr.bf16.gmra.mxu0 %v5631
        %v6054 = vpop.f32.mrf.mxu0
        %v6055 = vadd.f32 0.0, %v6054
        %v6056 = vpop.f32.mrf.mxu0
        %v6057 = vpop.f32.mrf.mxu0
        %v6058 = vadd.f32 0.0, %v6057
        %v6059 = vpop.f32.mrf.mxu0
        %6060 = vmatprep.mubr.bf16.mxu0 0
        %6061 = vmatmul.mubr.bf16.gmra.mxu0 %v5632
        %v6062 = vpop.f32.mrf.mxu0
        %v6063 = vadd.f32 0.0, %v6062
        %v6064 = vpop.f32.mrf.mxu0
        %v6065 = vpop.f32.mrf.mxu0
        %v6066 = vadd.f32 0.0, %v6065
        %v6067 = vpop.f32.mrf.mxu0
        %6068 = vmatprep.mubr.bf16.mxu0 0
        %6069 = vmatmul.mubr.bf16.gmra.mxu0 %v5633
        %v6070 = vpop.f32.mrf.mxu0
        %v6071 = vadd.f32 0.0, %v6070
        %v6072 = vpop.f32.mrf.mxu0
        %v6073 = vpop.f32.mrf.mxu0
        %v6074 = vadd.f32 0.0, %v6073
        %v6075 = vpop.f32.mrf.mxu0
        %6076 = vmatprep.mubr.bf16.mxu0 0
        %6077 = vmatmul.mubr.bf16.gmra.mxu0 %v5634
        %v6078 = vpop.f32.mrf.mxu0
        %v6079 = vadd.f32 0.0, %v6078
        %v6080 = vpop.f32.mrf.mxu0
        %v6081 = vpop.f32.mrf.mxu0
        %v6082 = vadd.f32 0.0, %v6081
        %v6083 = vpop.f32.mrf.mxu0
        %6084 = vmatprep.mubr.bf16.mxu0 0
        %6085 = vmatmul.mubr.bf16.gmra.mxu0 %v5635
        %v6086 = vpop.f32.mrf.mxu0
        %v6087 = vadd.f32 0.0, %v6086
        %v6088 = vpop.f32.mrf.mxu0
        %v6089 = vpop.f32.mrf.mxu0
        %v6090 = vadd.f32 0.0, %v6089
        %v6091 = vpop.f32.mrf.mxu0
        %6092 = vmatprep.mubr.bf16.mxu0 0
        %6093 = vmatmul.mubr.bf16.gmra.mxu0 %v5636
        %v6094 = vpop.f32.mrf.mxu0
        %v6095 = vadd.f32 0.0, %v6094
        %v6096 = vpop.f32.mrf.mxu0
        %v6097 = vpop.f32.mrf.mxu0
        %v6098 = vadd.f32 0.0, %v6097
        %v6099 = vpop.f32.mrf.mxu0
        %6100 = vmatprep.mubr.bf16.mxu0 0
        %6101 = vmatmul.mubr.bf16.gmra.mxu0 %v5637
        %v6102 = vpop.f32.mrf.mxu0
        %v6103 = vadd.f32 0.0, %v6102
        %v6104 = vpop.f32.mrf.mxu0
        %v6105 = vpop.f32.mrf.mxu0
        %v6106 = vadd.f32 0.0, %v6105
        %v6107 = vpop.f32.mrf.mxu0
        %6108 = vmatprep.mubr.bf16.mxu0 0
        %6109 = vmatmul.mubr.bf16.gmra.mxu0 %v5638
        %v6110 = vpop.f32.mrf.mxu0
        %v6111 = vadd.f32 0.0, %v6110
        %v6112 = vpop.f32.mrf.mxu0
        %v6113 = vpop.f32.mrf.mxu0
        %v6114 = vadd.f32 0.0, %v6113
        %v6115 = vpop.f32.mrf.mxu0
        %6116 = vmatprep.mubr.bf16.mxu0 0
        %6117 = vmatmul.mubr.bf16.gmra.mxu0 %v5639
        %v6118 = vpop.f32.mrf.mxu0
        %v6119 = vadd.f32 0.0, %v6118
        %v6120 = vpop.f32.mrf.mxu0
        %v6121 = vpop.f32.mrf.mxu0
        %v6122 = vadd.f32 0.0, %v6121
        %v6123 = vpop.f32.mrf.mxu0
        %6124 = vdwg.mxu0
        %v6125 = vadd.f32 %v5867, %v5999
        %v6126 = vadd.f32 %v5868, %v6002
        %v6127 = vadd.f32 %v5869, %v6007
        %v6128 = vadd.f32 %v5870, %v6010
        %v6129 = vadd.f32 %v5871, %v6015
        %v6130 = vadd.f32 %v5872, %v6018
        %v6131 = vadd.f32 %v5873, %v6023
        %v6132 = vadd.f32 %v5874, %v6026
        %v6133 = vadd.f32 %v5875, %v6031
        %v6134 = vadd.f32 %v5876, %v6034
        %v6135 = vadd.f32 %v5877, %v6039
        %v6136 = vadd.f32 %v5878, %v6042
        %v6137 = vadd.f32 %v5879, %v6047
        %v6138 = vadd.f32 %v5880, %v6050
        %v6139 = vadd.f32 %v5881, %v6055
        %v6140 = vadd.f32 %v5882, %v6058
        %v6141 = vadd.f32 %v5883, %v6063
        %v6142 = vadd.f32 %v5884, %v6066
        %v6143 = vadd.f32 %v5885, %v6071
        %v6144 = vadd.f32 %v5886, %v6074
        %v6145 = vadd.f32 %v5887, %v6079
        %v6146 = vadd.f32 %v5888, %v6082
        %v6147 = vadd.f32 %v5889, %v6087
        %v6148 = vadd.f32 %v5890, %v6090
        %v6149 = vadd.f32 %v5891, %v6095
        %v6150 = vadd.f32 %v5892, %v6098
        %v6151 = vadd.f32 %v5893, %v6103
        %v6152 = vadd.f32 %v5894, %v6106
        %v6153 = vadd.f32 %v5895, %v6111
        %v6154 = vadd.f32 %v5896, %v6114
        %v6155 = vadd.f32 %v5897, %v6119
        %v6156 = vadd.f32 %v5898, %v6122
        %s6157 = scalar_lea.vmem [#allocation9], 512
        %v6158 = vld [vmem:[%s6157] sm:$0xf]
        %v6159 = vld [vmem:[%s6157 + $0x4] sm:$0xf]
        %v6160 = vld [vmem:[%s6157 + $0x8] sm:$0xf]
        %v6161 = vld [vmem:[%s6157 + $0xc] sm:$0xf]
        %v6162 = vld [vmem:[%s6157 + $0x10] sm:$0xf]
        %v6163 = vld [vmem:[%s6157 + $0x14] sm:$0xf]
        %v6164 = vld [vmem:[%s6157 + $0x18] sm:$0xf]
        %v6165 = vld [vmem:[%s6157 + $0x1c] sm:$0xf]
        %v6166 = vld [vmem:[%s6157 + $0x20] sm:$0xf]
        %v6167 = vld [vmem:[%s6157 + $0x24] sm:$0xf]
        %v6168 = vld [vmem:[%s6157 + $0x28] sm:$0xf]
        %v6169 = vld [vmem:[%s6157 + $0x2c] sm:$0xf]
        %v6170 = vld [vmem:[%s6157 + $0x30] sm:$0xf]
        %v6171 = vld [vmem:[%s6157 + $0x34] sm:$0xf]
        %v6172 = vld [vmem:[%s6157 + $0x38] sm:$0xf]
        %v6173 = vld [vmem:[%s6157 + $0x3c] sm:$0xf]
        %v6190 = vunpack.c.l.b16 %v6158
        %v6191 = vunpack.c.l.b16 %v6159
        %v6192 = vunpack.c.l.b16 %v6160
        %v6193 = vunpack.c.l.b16 %v6161
        %v6194 = vunpack.c.l.b16 %v6162
        %v6195 = vunpack.c.l.b16 %v6163
        %v6196 = vunpack.c.l.b16 %v6164
        %v6197 = vunpack.c.l.b16 %v6165
        %v6198 = vunpack.c.l.b16 %v6166
        %v6199 = vunpack.c.l.b16 %v6167
        %v6200 = vunpack.c.l.b16 %v6168
        %v6201 = vunpack.c.l.b16 %v6169
        %v6202 = vunpack.c.l.b16 %v6170
        %v6203 = vunpack.c.l.b16 %v6171
        %v6204 = vunpack.c.l.b16 %v6172
        %v6205 = vunpack.c.l.b16 %v6173
        %v6206 = vpack.c.b16 %v6191, %v6190
        %v6207 = vpack.c.b16 %v6193, %v6192
        %v6208 = vpack.c.b16 %v6195, %v6194
        %v6209 = vpack.c.b16 %v6197, %v6196
        %v6210 = vpack.c.b16 %v6199, %v6198
        %v6211 = vpack.c.b16 %v6201, %v6200
        %v6212 = vpack.c.b16 %v6203, %v6202
        %v6213 = vpack.c.b16 %v6205, %v6204
        %6222 = vmatprep.subr.bf16.mxu0 0
        %6223 = vmatpush1.bf16.msra.mxu0 %v6213
        %6224 = vmatprep.subr.bf16.mxu0 0
        %6225 = vmatpush1.bf16.msra.mxu0 %v6212
        %6226 = vmatprep.subr.bf16.mxu0 0
        %6227 = vmatpush1.bf16.msra.mxu0 %v6211
        %6228 = vmatprep.subr.bf16.mxu0 0
        %6229 = vmatpush1.bf16.msra.mxu0 %v6210
        %6230 = vmatprep.subr.bf16.mxu0 0
        %6231 = vmatpush1.bf16.msra.mxu0 %v6209
        %6232 = vmatprep.subr.bf16.mxu0 0
        %6233 = vmatpush1.bf16.msra.mxu0 %v6208
        %6234 = vmatprep.subr.bf16.mxu0 0
        %6235 = vmatpush1.bf16.msra.mxu0 %v6207
        %6236 = vmatprep.subr.bf16.mxu0 0
        %6237 = vmatpush1.bf16.msra.mxu0 %v6206
        %6238 = vmatprep.subr.bf16.mxu0 0
        %6239 = vmatpush2.bf16.msra.mxu0 0
        %6240 = vmatprep.subr.bf16.mxu0 0
        %6241 = vmatpush2.bf16.msra.mxu0 0
        %6242 = vmatprep.subr.bf16.mxu0 0
        %6243 = vmatpush2.bf16.msra.mxu0 0
        %6244 = vmatprep.subr.bf16.mxu0 0
        %6245 = vmatpush2.bf16.msra.mxu0 0
        %6246 = vmatprep.subr.bf16.mxu0 0
        %6247 = vmatpush2.bf16.msra.mxu0 0
        %6248 = vmatprep.subr.bf16.mxu0 0
        %6249 = vmatpush2.bf16.msra.mxu0 0
        %6250 = vmatprep.subr.bf16.mxu0 0
        %6251 = vmatpush2.bf16.msra.mxu0 0
        %6252 = vmatprep.subr.bf16.mxu0 0
        %6253 = vmatpush2.bf16.msra.mxu0 0
        %6254 = vmatprep.mubr.bf16.mxu0 0
        %6255 = vmatmul.mubr.bf16.gmra.mxu0 %v5625
        %v6256 = vpop.f32.mrf.mxu0
        %v6257 = vadd.f32 0.0, %v6256
        %v6258 = vpop.f32.mrf.mxu0
        %v6259 = vpop.f32.mrf.mxu0
        %v6260 = vadd.f32 0.0, %v6259
        %v6261 = vpop.f32.mrf.mxu0
        %6262 = vmatprep.mubr.bf16.mxu0 0
        %6263 = vmatmul.mubr.bf16.gmra.mxu0 %v5626
        %v6264 = vpop.f32.mrf.mxu0
        %v6265 = vadd.f32 0.0, %v6264
        %v6266 = vpop.f32.mrf.mxu0
        %v6267 = vpop.f32.mrf.mxu0
        %v6268 = vadd.f32 0.0, %v6267
        %v6269 = vpop.f32.mrf.mxu0
        %6270 = vmatprep.mubr.bf16.mxu0 0
        %6271 = vmatmul.mubr.bf16.gmra.mxu0 %v5627
        %v6272 = vpop.f32.mrf.mxu0
        %v6273 = vadd.f32 0.0, %v6272
        %v6274 = vpop.f32.mrf.mxu0
        %v6275 = vpop.f32.mrf.mxu0
        %v6276 = vadd.f32 0.0, %v6275
        %v6277 = vpop.f32.mrf.mxu0
        %6278 = vmatprep.mubr.bf16.mxu0 0
        %6279 = vmatmul.mubr.bf16.gmra.mxu0 %v5628
        %v6280 = vpop.f32.mrf.mxu0
        %v6281 = vadd.f32 0.0, %v6280
        %v6282 = vpop.f32.mrf.mxu0
        %v6283 = vpop.f32.mrf.mxu0
        %v6284 = vadd.f32 0.0, %v6283
        %v6285 = vpop.f32.mrf.mxu0
        %6286 = vmatprep.mubr.bf16.mxu0 0
        %6287 = vmatmul.mubr.bf16.gmra.mxu0 %v5629
        %v6288 = vpop.f32.mrf.mxu0
        %v6289 = vadd.f32 0.0, %v6288
        %v6290 = vpop.f32.mrf.mxu0
        %v6291 = vpop.f32.mrf.mxu0
        %v6292 = vadd.f32 0.0, %v6291
        %v6293 = vpop.f32.mrf.mxu0
        %6294 = vmatprep.mubr.bf16.mxu0 0
        %6295 = vmatmul.mubr.bf16.gmra.mxu0 %v5630
        %v6296 = vpop.f32.mrf.mxu0
        %v6297 = vadd.f32 0.0, %v6296
        %v6298 = vpop.f32.mrf.mxu0
        %v6299 = vpop.f32.mrf.mxu0
        %v6300 = vadd.f32 0.0, %v6299
        %v6301 = vpop.f32.mrf.mxu0
        %6302 = vmatprep.mubr.bf16.mxu0 0
        %6303 = vmatmul.mubr.bf16.gmra.mxu0 %v5631
        %v6304 = vpop.f32.mrf.mxu0
        %v6305 = vadd.f32 0.0, %v6304
        %v6306 = vpop.f32.mrf.mxu0
        %v6307 = vpop.f32.mrf.mxu0
        %v6308 = vadd.f32 0.0, %v6307
        %v6309 = vpop.f32.mrf.mxu0
        %6310 = vmatprep.mubr.bf16.mxu0 0
        %6311 = vmatmul.mubr.bf16.gmra.mxu0 %v5632
        %v6312 = vpop.f32.mrf.mxu0
        %v6313 = vadd.f32 0.0, %v6312
        %v6314 = vpop.f32.mrf.mxu0
        %v6315 = vpop.f32.mrf.mxu0
        %v6316 = vadd.f32 0.0, %v6315
        %v6317 = vpop.f32.mrf.mxu0
        %6318 = vmatprep.mubr.bf16.mxu0 0
        %6319 = vmatmul.mubr.bf16.gmra.mxu0 %v5633
        %v6320 = vpop.f32.mrf.mxu0
        %v6321 = vadd.f32 0.0, %v6320
        %v6322 = vpop.f32.mrf.mxu0
        %v6323 = vpop.f32.mrf.mxu0
        %v6324 = vadd.f32 0.0, %v6323
        %v6325 = vpop.f32.mrf.mxu0
        %6326 = vmatprep.mubr.bf16.mxu0 0
        %6327 = vmatmul.mubr.bf16.gmra.mxu0 %v5634
        %v6328 = vpop.f32.mrf.mxu0
        %v6329 = vadd.f32 0.0, %v6328
        %v6330 = vpop.f32.mrf.mxu0
        %v6331 = vpop.f32.mrf.mxu0
        %v6332 = vadd.f32 0.0, %v6331
        %v6333 = vpop.f32.mrf.mxu0
        %6334 = vmatprep.mubr.bf16.mxu0 0
        %6335 = vmatmul.mubr.bf16.gmra.mxu0 %v5635
        %v6336 = vpop.f32.mrf.mxu0
        %v6337 = vadd.f32 0.0, %v6336
        %v6338 = vpop.f32.mrf.mxu0
        %v6339 = vpop.f32.mrf.mxu0
        %v6340 = vadd.f32 0.0, %v6339
        %v6341 = vpop.f32.mrf.mxu0
        %6342 = vmatprep.mubr.bf16.mxu0 0
        %6343 = vmatmul.mubr.bf16.gmra.mxu0 %v5636
        %v6344 = vpop.f32.mrf.mxu0
        %v6345 = vadd.f32 0.0, %v6344
        %v6346 = vpop.f32.mrf.mxu0
        %v6347 = vpop.f32.mrf.mxu0
        %v6348 = vadd.f32 0.0, %v6347
        %v6349 = vpop.f32.mrf.mxu0
        %6350 = vmatprep.mubr.bf16.mxu0 0
        %6351 = vmatmul.mubr.bf16.gmra.mxu0 %v5637
        %v6352 = vpop.f32.mrf.mxu0
        %v6353 = vadd.f32 0.0, %v6352
        %v6354 = vpop.f32.mrf.mxu0
        %v6355 = vpop.f32.mrf.mxu0
        %v6356 = vadd.f32 0.0, %v6355
        %v6357 = vpop.f32.mrf.mxu0
        %6358 = vmatprep.mubr.bf16.mxu0 0
        %6359 = vmatmul.mubr.bf16.gmra.mxu0 %v5638
        %v6360 = vpop.f32.mrf.mxu0
        %v6361 = vadd.f32 0.0, %v6360
        %v6362 = vpop.f32.mrf.mxu0
        %v6363 = vpop.f32.mrf.mxu0
        %v6364 = vadd.f32 0.0, %v6363
        %v6365 = vpop.f32.mrf.mxu0
        %6366 = vmatprep.mubr.bf16.mxu0 0
        %6367 = vmatmul.mubr.bf16.gmra.mxu0 %v5639
        %v6368 = vpop.f32.mrf.mxu0
        %v6369 = vadd.f32 0.0, %v6368
        %v6370 = vpop.f32.mrf.mxu0
        %v6371 = vpop.f32.mrf.mxu0
        %v6372 = vadd.f32 0.0, %v6371
        %v6373 = vpop.f32.mrf.mxu0
        %6374 = vmatprep.mubr.bf16.mxu0 0
        %6375 = vmatmul.mubr.bf16.gmra.mxu0 %v5640
        %v6376 = vpop.f32.mrf.mxu0
        %v6377 = vadd.f32 0.0, %v6376
        %v6378 = vpop.f32.mrf.mxu0
        %v6379 = vpop.f32.mrf.mxu0
        %v6380 = vadd.f32 0.0, %v6379
        %v6381 = vpop.f32.mrf.mxu0
        %6382 = vdwg.mxu0
        %v6383 = vadd.f32 %v6125, %v6257
        %v6384 = vadd.f32 %v6126, %v6260
        %v6385 = vadd.f32 %v6127, %v6265
        %v6386 = vadd.f32 %v6128, %v6268
        %v6387 = vadd.f32 %v6129, %v6273
        %v6388 = vadd.f32 %v6130, %v6276
        %v6389 = vadd.f32 %v6131, %v6281
        %v6390 = vadd.f32 %v6132, %v6284
        %v6391 = vadd.f32 %v6133, %v6289
        %v6392 = vadd.f32 %v6134, %v6292
        %v6393 = vadd.f32 %v6135, %v6297
        %v6394 = vadd.f32 %v6136, %v6300
        %v6395 = vadd.f32 %v6137, %v6305
        %v6396 = vadd.f32 %v6138, %v6308
        %v6397 = vadd.f32 %v6139, %v6313
        %v6398 = vadd.f32 %v6140, %v6316
        %v6399 = vadd.f32 %v6141, %v6321
        %v6400 = vadd.f32 %v6142, %v6324
        %v6401 = vadd.f32 %v6143, %v6329
        %v6402 = vadd.f32 %v6144, %v6332
        %v6403 = vadd.f32 %v6145, %v6337
        %v6404 = vadd.f32 %v6146, %v6340
        %v6405 = vadd.f32 %v6147, %v6345
        %v6406 = vadd.f32 %v6148, %v6348
        %v6407 = vadd.f32 %v6149, %v6353
        %v6408 = vadd.f32 %v6150, %v6356
        %v6409 = vadd.f32 %v6151, %v6361
        %v6410 = vadd.f32 %v6152, %v6364
        %v6411 = vadd.f32 %v6153, %v6369
        %v6412 = vadd.f32 %v6154, %v6372
        %v6413 = vadd.f32 %v6155, %v6377
        %v6414 = vadd.f32 %v6156, %v6380
        %v6415 = vmax.f32 %v6383, 0.0
        %v6416 = vmax.f32 %v6384, 0.0
        %v6417 = vmax.f32 %v6385, 0.0
        %v6418 = vmax.f32 %v6386, 0.0
        %v6419 = vmax.f32 %v6387, 0.0
        %v6420 = vmax.f32 %v6388, 0.0
        %v6421 = vmax.f32 %v6389, 0.0
        %v6422 = vmax.f32 %v6390, 0.0
        %v6423 = vmax.f32 %v6391, 0.0
        %v6424 = vmax.f32 %v6392, 0.0
        %v6425 = vmax.f32 %v6393, 0.0
        %v6426 = vmax.f32 %v6394, 0.0
        %v6427 = vmax.f32 %v6395, 0.0
        %v6428 = vmax.f32 %v6396, 0.0
        %v6429 = vmax.f32 %v6397, 0.0
        %v6430 = vmax.f32 %v6398, 0.0
        %v6431 = vmax.f32 %v6399, 0.0
        %v6432 = vmax.f32 %v6400, 0.0
        %v6433 = vmax.f32 %v6401, 0.0
        %v6434 = vmax.f32 %v6402, 0.0
        %v6435 = vmax.f32 %v6403, 0.0
        %v6436 = vmax.f32 %v6404, 0.0
        %v6437 = vmax.f32 %v6405, 0.0
        %v6438 = vmax.f32 %v6406, 0.0
        %v6439 = vmax.f32 %v6407, 0.0
        %v6440 = vmax.f32 %v6408, 0.0
        %v6441 = vmax.f32 %v6409, 0.0
        %v6442 = vmax.f32 %v6410, 0.0
        %v6443 = vmax.f32 %v6411, 0.0
        %v6444 = vmax.f32 %v6412, 0.0
        %v6445 = vmax.f32 %v6413, 0.0
        %v6446 = vmax.f32 %v6414, 0.0
        %s6447 = scalar_lea.vmem [#allocation3], 24
        %6448 = vst [vmem:[%s6447 + $0x1] sm:$0xff] %v6415
        %6449 = vst [vmem:[%s6447 + $0x9] sm:$0xff] %v6416
        %6450 = vst [vmem:[%s6447 + $0x19] sm:$0xff] %v6417
        %6451 = vst [vmem:[%s6447 + $0x21] sm:$0xff] %v6418
        %6452 = vst [vmem:[%s6447 + $0x31] sm:$0xff] %v6419
        %6453 = vst [vmem:[%s6447 + $0x39] sm:$0xff] %v6420
        %6454 = vst [vmem:[%s6447 + $0x49] sm:$0xff] %v6421
        %6455 = vst [vmem:[%s6447 + $0x51] sm:$0xff] %v6422
        %6456 = vst [vmem:[%s6447 + $0x61] sm:$0xff] %v6423
        %6457 = vst [vmem:[%s6447 + $0x69] sm:$0xff] %v6424
        %6458 = vst [vmem:[%s6447 + $0x79] sm:$0xff] %v6425
        %6459 = vst [vmem:[%s6447 + $0x81] sm:$0xff] %v6426
        %6460 = vst [vmem:[%s6447 + $0x91] sm:$0xff] %v6427
        %6461 = vst [vmem:[%s6447 + $0x99] sm:$0xff] %v6428
        %6462 = vst [vmem:[%s6447 + $0xa9] sm:$0xff] %v6429
        %6463 = vst [vmem:[%s6447 + $0xb1] sm:$0xff] %v6430
        %6464 = vst [vmem:[%s6447 + $0xc1] sm:$0xff] %v6431
        %6465 = vst [vmem:[%s6447 + $0xc9] sm:$0xff] %v6432
        %6466 = vst [vmem:[%s6447 + $0xd9] sm:$0xff] %v6433
        %6467 = vst [vmem:[%s6447 + $0xe1] sm:$0xff] %v6434
        %6468 = vst [vmem:[%s6447 + $0xf1] sm:$0xff] %v6435
        %6469 = vst [vmem:[%s6447 + $0xf9] sm:$0xff] %v6436
        %6470 = vst [vmem:[%s6447 + $0x109] sm:$0xff] %v6437
        %6471 = vst [vmem:[%s6447 + $0x111] sm:$0xff] %v6438
        %6472 = vst [vmem:[%s6447 + $0x121] sm:$0xff] %v6439
        %6473 = vst [vmem:[%s6447 + $0x129] sm:$0xff] %v6440
        %6474 = vst [vmem:[%s6447 + $0x139] sm:$0xff] %v6441
        %6475 = vst [vmem:[%s6447 + $0x141] sm:$0xff] %v6442
        %6476 = vst [vmem:[%s6447 + $0x151] sm:$0xff] %v6443
        %6477 = vst [vmem:[%s6447 + $0x159] sm:$0xff] %v6444
        %6478 = vst [vmem:[%s6447 + $0x169] sm:$0xff] %v6445
        %6479 = vst [vmem:[%s6447 + $0x171] sm:$0xff] %v6446
        %v6480 = vld [vmem:[%s6] sm:$0x1]
        %v6482 = vlaneseq
        %v6483 = vshrl.u32 %v6482, 7
        %v6484 = vsub.s32 0, %v6483
        %v6485 = vrot.slane %v6480, %v6484
        %v6487 = vld [vmem:[#allocation3] sm:$0xff]
        %v6488 = vld [vmem:[#allocation3 + $0x8] sm:$0xff]
        %v6489 = vld [vmem:[#allocation3 + $0x18] sm:$0xff]
        %v6490 = vld [vmem:[#allocation3 + $0x20] sm:$0xff]
        %v6491 = vld [vmem:[#allocation3 + $0x30] sm:$0xff]
        %v6492 = vld [vmem:[#allocation3 + $0x38] sm:$0xff]
        %v6493 = vld [vmem:[#allocation3 + $0x48] sm:$0xff]
        %v6494 = vld [vmem:[#allocation3 + $0x50] sm:$0xff]
        %v6495 = vld [vmem:[#allocation3 + $0x60] sm:$0xff]
        %v6496 = vld [vmem:[#allocation3 + $0x68] sm:$0xff]
        %v6497 = vld [vmem:[#allocation3 + $0x78] sm:$0xff]
        %v6498 = vld [vmem:[#allocation3 + $0x80] sm:$0xff]
        %v6499 = vld [vmem:[#allocation3 + $0x90] sm:$0xff]
        %v6500 = vld [vmem:[#allocation3 + $0x98] sm:$0xff]
        %v6501 = vld [vmem:[#allocation3 + $0xa8] sm:$0xff]
        %v6502 = vld [vmem:[#allocation3 + $0xb0] sm:$0xff]
        %v6503 = vld [vmem:[#allocation3 + $0xc0] sm:$0xff]
        %v6504 = vld [vmem:[#allocation3 + $0xc8] sm:$0xff]
        %v6505 = vld [vmem:[#allocation3 + $0xd8] sm:$0xff]
        %v6506 = vld [vmem:[#allocation3 + $0xe0] sm:$0xff]
        %v6507 = vld [vmem:[#allocation3 + $0xf0] sm:$0xff]
        %v6508 = vld [vmem:[#allocation3 + $0xf8] sm:$0xff]
        %v6509 = vld [vmem:[#allocation3 + $0x108] sm:$0xff]
        %v6510 = vld [vmem:[#allocation3 + $0x110] sm:$0xff]
        %v6511 = vld [vmem:[#allocation3 + $0x120] sm:$0xff]
        %v6512 = vld [vmem:[#allocation3 + $0x128] sm:$0xff]
        %v6513 = vld [vmem:[#allocation3 + $0x138] sm:$0xff]
        %v6514 = vld [vmem:[#allocation3 + $0x140] sm:$0xff]
        %v6515 = vld [vmem:[#allocation3 + $0x150] sm:$0xff]
        %v6516 = vld [vmem:[#allocation3 + $0x158] sm:$0xff]
        %v6517 = vld [vmem:[#allocation3 + $0x168] sm:$0xff]
        %v6518 = vld [vmem:[#allocation3 + $0x170] sm:$0xff]
        %v6519 = vld [vmem:[#allocation3 + $0x180] sm:$0xff]
        %v6520 = vld [vmem:[#allocation3 + $0x188] sm:$0xff]
        %v6521 = vld [vmem:[#allocation3 + $0x198] sm:$0xff]
        %v6522 = vld [vmem:[#allocation3 + $0x1a0] sm:$0xff]
        %v6523 = vpack.c.bf16 %v6488, %v6487
        %v6524 = vpack.c.bf16 %v6490, %v6489
        %v6525 = vpack.c.bf16 %v6492, %v6491
        %v6526 = vpack.c.bf16 %v6494, %v6493
        %v6527 = vpack.c.bf16 %v6496, %v6495
        %v6528 = vpack.c.bf16 %v6498, %v6497
        %v6529 = vpack.c.bf16 %v6500, %v6499
        %v6530 = vpack.c.bf16 %v6502, %v6501
        %v6531 = vpack.c.bf16 %v6504, %v6503
        %v6532 = vpack.c.bf16 %v6506, %v6505
        %v6533 = vpack.c.bf16 %v6508, %v6507
        %v6534 = vpack.c.bf16 %v6510, %v6509
        %v6535 = vpack.c.bf16 %v6512, %v6511
        %v6536 = vpack.c.bf16 %v6514, %v6513
        %v6537 = vpack.c.bf16 %v6516, %v6515
        %v6538 = vpack.c.bf16 %v6518, %v6517
        %v6539 = vpack.c.bf16 %v6520, %v6519
        %v6540 = vpack.c.bf16 %v6522, %v6521
        %v6541 = vld [vmem:[#allocation10] sm:$0xf]
        %v6542 = vld [vmem:[#allocation10 + $0x4] sm:$0xf]
        %v6543 = vld [vmem:[#allocation10 + $0x8] sm:$0xf]
        %v6544 = vld [vmem:[#allocation10 + $0xc] sm:$0xf]
        %v6545 = vld [vmem:[#allocation10 + $0x10] sm:$0xf]
        %v6546 = vld [vmem:[#allocation10 + $0x14] sm:$0xf]
        %v6547 = vld [vmem:[#allocation10 + $0x18] sm:$0xf]
        %v6548 = vld [vmem:[#allocation10 + $0x1c] sm:$0xf]
        %v6549 = vld [vmem:[#allocation10 + $0x20] sm:$0xf]
        %v6550 = vld [vmem:[#allocation10 + $0x24] sm:$0xf]
        %v6551 = vld [vmem:[#allocation10 + $0x28] sm:$0xf]
        %v6552 = vld [vmem:[#allocation10 + $0x2c] sm:$0xf]
        %v6553 = vld [vmem:[#allocation10 + $0x30] sm:$0xf]
        %v6554 = vld [vmem:[#allocation10 + $0x34] sm:$0xf]
        %v6555 = vld [vmem:[#allocation10 + $0x38] sm:$0xf]
        %v6556 = vld [vmem:[#allocation10 + $0x3c] sm:$0xf]
        %v6573 = vunpack.c.l.b16 %v6541
        %v6574 = vunpack.c.l.b16 %v6542
        %v6575 = vunpack.c.l.b16 %v6543
        %v6576 = vunpack.c.l.b16 %v6544
        %v6577 = vunpack.c.l.b16 %v6545
        %v6578 = vunpack.c.l.b16 %v6546
        %v6579 = vunpack.c.l.b16 %v6547
        %v6580 = vunpack.c.l.b16 %v6548
        %v6581 = vunpack.c.l.b16 %v6549
        %v6582 = vunpack.c.l.b16 %v6550
        %v6583 = vunpack.c.l.b16 %v6551
        %v6584 = vunpack.c.l.b16 %v6552
        %v6585 = vunpack.c.l.b16 %v6553
        %v6586 = vunpack.c.l.b16 %v6554
        %v6587 = vunpack.c.l.b16 %v6555
        %v6588 = vunpack.c.l.b16 %v6556
        %v6589 = vpack.c.b16 %v6574, %v6573
        %v6590 = vpack.c.b16 %v6576, %v6575
        %v6591 = vpack.c.b16 %v6578, %v6577
        %v6592 = vpack.c.b16 %v6580, %v6579
        %v6593 = vpack.c.b16 %v6582, %v6581
        %v6594 = vpack.c.b16 %v6584, %v6583
        %v6595 = vpack.c.b16 %v6586, %v6585
        %v6596 = vpack.c.b16 %v6588, %v6587
        %6605 = vmatprep.subr.bf16.mxu0 0
        %6606 = vmatpush1.bf16.msra.mxu0 %v6596
        %6607 = vmatprep.subr.bf16.mxu0 0
        %6608 = vmatpush1.bf16.msra.mxu0 %v6595
        %6609 = vmatprep.subr.bf16.mxu0 0
        %6610 = vmatpush1.bf16.msra.mxu0 %v6594
        %6611 = vmatprep.subr.bf16.mxu0 0
        %6612 = vmatpush1.bf16.msra.mxu0 %v6593
        %6613 = vmatprep.subr.bf16.mxu0 0
        %6614 = vmatpush1.bf16.msra.mxu0 %v6592
        %6615 = vmatprep.subr.bf16.mxu0 0
        %6616 = vmatpush1.bf16.msra.mxu0 %v6591
        %6617 = vmatprep.subr.bf16.mxu0 0
        %6618 = vmatpush1.bf16.msra.mxu0 %v6590
        %6619 = vmatprep.subr.bf16.mxu0 0
        %6620 = vmatpush1.bf16.msra.mxu0 %v6589
        %6621 = vmatprep.subr.bf16.mxu0 0
        %6622 = vmatpush2.bf16.msra.mxu0 0
        %6623 = vmatprep.subr.bf16.mxu0 0
        %6624 = vmatpush2.bf16.msra.mxu0 0
        %6625 = vmatprep.subr.bf16.mxu0 0
        %6626 = vmatpush2.bf16.msra.mxu0 0
        %6627 = vmatprep.subr.bf16.mxu0 0
        %6628 = vmatpush2.bf16.msra.mxu0 0
        %6629 = vmatprep.subr.bf16.mxu0 0
        %6630 = vmatpush2.bf16.msra.mxu0 0
        %6631 = vmatprep.subr.bf16.mxu0 0
        %6632 = vmatpush2.bf16.msra.mxu0 0
        %6633 = vmatprep.subr.bf16.mxu0 0
        %6634 = vmatpush2.bf16.msra.mxu0 0
        %6635 = vmatprep.subr.bf16.mxu0 0
        %6636 = vmatpush2.bf16.msra.mxu0 0
        %6637 = vmatprep.mubr.bf16.mxu0 0
        %6638 = vmatmul.mubr.bf16.gmra.mxu0 %v6523
        %v6639 = vpop.f32.mrf.mxu0
        %v6640 = vadd.f32 0.0, %v6639
        %v6641 = vpop.f32.mrf.mxu0
        %v6642 = vpop.f32.mrf.mxu0
        %v6643 = vadd.f32 0.0, %v6642
        %v6644 = vpop.f32.mrf.mxu0
        %6645 = vmatprep.mubr.bf16.mxu0 0
        %6646 = vmatmul.mubr.bf16.gmra.mxu0 %v6524
        %v6647 = vpop.f32.mrf.mxu0
        %v6648 = vadd.f32 0.0, %v6647
        %v6649 = vpop.f32.mrf.mxu0
        %v6650 = vpop.f32.mrf.mxu0
        %v6651 = vadd.f32 0.0, %v6650
        %v6652 = vpop.f32.mrf.mxu0
        %6653 = vmatprep.mubr.bf16.mxu0 0
        %6654 = vmatmul.mubr.bf16.gmra.mxu0 %v6525
        %v6655 = vpop.f32.mrf.mxu0
        %v6656 = vadd.f32 0.0, %v6655
        %v6657 = vpop.f32.mrf.mxu0
        %v6658 = vpop.f32.mrf.mxu0
        %v6659 = vadd.f32 0.0, %v6658
        %v6660 = vpop.f32.mrf.mxu0
        %6661 = vmatprep.mubr.bf16.mxu0 0
        %6662 = vmatmul.mubr.bf16.gmra.mxu0 %v6526
        %v6663 = vpop.f32.mrf.mxu0
        %v6664 = vadd.f32 0.0, %v6663
        %v6665 = vpop.f32.mrf.mxu0
        %v6666 = vpop.f32.mrf.mxu0
        %v6667 = vadd.f32 0.0, %v6666
        %v6668 = vpop.f32.mrf.mxu0
        %6669 = vmatprep.mubr.bf16.mxu0 0
        %6670 = vmatmul.mubr.bf16.gmra.mxu0 %v6527
        %v6671 = vpop.f32.mrf.mxu0
        %v6672 = vadd.f32 0.0, %v6671
        %v6673 = vpop.f32.mrf.mxu0
        %v6674 = vpop.f32.mrf.mxu0
        %v6675 = vadd.f32 0.0, %v6674
        %v6676 = vpop.f32.mrf.mxu0
        %6677 = vmatprep.mubr.bf16.mxu0 0
        %6678 = vmatmul.mubr.bf16.gmra.mxu0 %v6528
        %v6679 = vpop.f32.mrf.mxu0
        %v6680 = vadd.f32 0.0, %v6679
        %v6681 = vpop.f32.mrf.mxu0
        %v6682 = vpop.f32.mrf.mxu0
        %v6683 = vadd.f32 0.0, %v6682
        %v6684 = vpop.f32.mrf.mxu0
        %6685 = vmatprep.mubr.bf16.mxu0 0
        %6686 = vmatmul.mubr.bf16.gmra.mxu0 %v6529
        %v6687 = vpop.f32.mrf.mxu0
        %v6688 = vadd.f32 0.0, %v6687
        %v6689 = vpop.f32.mrf.mxu0
        %v6690 = vpop.f32.mrf.mxu0
        %v6691 = vadd.f32 0.0, %v6690
        %v6692 = vpop.f32.mrf.mxu0
        %6693 = vmatprep.mubr.bf16.mxu0 0
        %6694 = vmatmul.mubr.bf16.gmra.mxu0 %v6530
        %v6695 = vpop.f32.mrf.mxu0
        %v6696 = vadd.f32 0.0, %v6695
        %v6697 = vpop.f32.mrf.mxu0
        %v6698 = vpop.f32.mrf.mxu0
        %v6699 = vadd.f32 0.0, %v6698
        %v6700 = vpop.f32.mrf.mxu0
        %6701 = vmatprep.mubr.bf16.mxu0 0
        %6702 = vmatmul.mubr.bf16.gmra.mxu0 %v6531
        %v6703 = vpop.f32.mrf.mxu0
        %v6704 = vadd.f32 0.0, %v6703
        %v6705 = vpop.f32.mrf.mxu0
        %v6706 = vpop.f32.mrf.mxu0
        %v6707 = vadd.f32 0.0, %v6706
        %v6708 = vpop.f32.mrf.mxu0
        %6709 = vmatprep.mubr.bf16.mxu0 0
        %6710 = vmatmul.mubr.bf16.gmra.mxu0 %v6532
        %v6711 = vpop.f32.mrf.mxu0
        %v6712 = vadd.f32 0.0, %v6711
        %v6713 = vpop.f32.mrf.mxu0
        %v6714 = vpop.f32.mrf.mxu0
        %v6715 = vadd.f32 0.0, %v6714
        %v6716 = vpop.f32.mrf.mxu0
        %6717 = vmatprep.mubr.bf16.mxu0 0
        %6718 = vmatmul.mubr.bf16.gmra.mxu0 %v6533
        %v6719 = vpop.f32.mrf.mxu0
        %v6720 = vadd.f32 0.0, %v6719
        %v6721 = vpop.f32.mrf.mxu0
        %v6722 = vpop.f32.mrf.mxu0
        %v6723 = vadd.f32 0.0, %v6722
        %v6724 = vpop.f32.mrf.mxu0
        %6725 = vmatprep.mubr.bf16.mxu0 0
        %6726 = vmatmul.mubr.bf16.gmra.mxu0 %v6534
        %v6727 = vpop.f32.mrf.mxu0
        %v6728 = vadd.f32 0.0, %v6727
        %v6729 = vpop.f32.mrf.mxu0
        %v6730 = vpop.f32.mrf.mxu0
        %v6731 = vadd.f32 0.0, %v6730
        %v6732 = vpop.f32.mrf.mxu0
        %6733 = vmatprep.mubr.bf16.mxu0 0
        %6734 = vmatmul.mubr.bf16.gmra.mxu0 %v6535
        %v6735 = vpop.f32.mrf.mxu0
        %v6736 = vadd.f32 0.0, %v6735
        %v6737 = vpop.f32.mrf.mxu0
        %v6738 = vpop.f32.mrf.mxu0
        %v6739 = vadd.f32 0.0, %v6738
        %v6740 = vpop.f32.mrf.mxu0
        %6741 = vmatprep.mubr.bf16.mxu0 0
        %6742 = vmatmul.mubr.bf16.gmra.mxu0 %v6536
        %v6743 = vpop.f32.mrf.mxu0
        %v6744 = vadd.f32 0.0, %v6743
        %v6745 = vpop.f32.mrf.mxu0
        %v6746 = vpop.f32.mrf.mxu0
        %v6747 = vadd.f32 0.0, %v6746
        %v6748 = vpop.f32.mrf.mxu0
        %6749 = vmatprep.mubr.bf16.mxu0 0
        %6750 = vmatmul.mubr.bf16.gmra.mxu0 %v6537
        %v6751 = vpop.f32.mrf.mxu0
        %v6752 = vadd.f32 0.0, %v6751
        %v6753 = vpop.f32.mrf.mxu0
        %v6754 = vpop.f32.mrf.mxu0
        %v6755 = vadd.f32 0.0, %v6754
        %v6756 = vpop.f32.mrf.mxu0
        %6757 = vmatprep.mubr.bf16.mxu0 0
        %6758 = vmatmul.mubr.bf16.gmra.mxu0 %v6538
        %v6759 = vpop.f32.mrf.mxu0
        %v6760 = vadd.f32 0.0, %v6759
        %v6761 = vpop.f32.mrf.mxu0
        %v6762 = vpop.f32.mrf.mxu0
        %v6763 = vadd.f32 0.0, %v6762
        %v6764 = vpop.f32.mrf.mxu0
        %6765 = vdwg.mxu0
        %v6766 = vadd.f32 %v6485, %v6640
        %v6767 = vadd.f32 %v6485, %v6643
        %v6768 = vadd.f32 %v6485, %v6648
        %v6769 = vadd.f32 %v6485, %v6651
        %v6770 = vadd.f32 %v6485, %v6656
        %v6771 = vadd.f32 %v6485, %v6659
        %v6772 = vadd.f32 %v6485, %v6664
        %v6773 = vadd.f32 %v6485, %v6667
        %v6774 = vadd.f32 %v6485, %v6672
        %v6775 = vadd.f32 %v6485, %v6675
        %v6776 = vadd.f32 %v6485, %v6680
        %v6777 = vadd.f32 %v6485, %v6683
        %v6778 = vadd.f32 %v6485, %v6688
        %v6779 = vadd.f32 %v6485, %v6691
        %v6780 = vadd.f32 %v6485, %v6696
        %v6781 = vadd.f32 %v6485, %v6699
        %v6782 = vadd.f32 %v6485, %v6704
        %v6783 = vadd.f32 %v6485, %v6707
        %v6784 = vadd.f32 %v6485, %v6712
        %v6785 = vadd.f32 %v6485, %v6715
        %v6786 = vadd.f32 %v6485, %v6720
        %v6787 = vadd.f32 %v6485, %v6723
        %v6788 = vadd.f32 %v6485, %v6728
        %v6789 = vadd.f32 %v6485, %v6731
        %v6790 = vadd.f32 %v6485, %v6736
        %v6791 = vadd.f32 %v6485, %v6739
        %v6792 = vadd.f32 %v6485, %v6744
        %v6793 = vadd.f32 %v6485, %v6747
        %v6794 = vadd.f32 %v6485, %v6752
        %v6795 = vadd.f32 %v6485, %v6755
        %v6796 = vadd.f32 %v6485, %v6760
        %v6797 = vadd.f32 %v6485, %v6763
        %s6798 = scalar_lea.vmem [#allocation10], 192
        %v6799 = vld [vmem:[%s6798] sm:$0xf]
        %v6800 = vld [vmem:[%s6798 + $0x4] sm:$0xf]
        %v6801 = vld [vmem:[%s6798 + $0x8] sm:$0xf]
        %v6802 = vld [vmem:[%s6798 + $0xc] sm:$0xf]
        %v6803 = vld [vmem:[%s6798 + $0x10] sm:$0xf]
        %v6804 = vld [vmem:[%s6798 + $0x14] sm:$0xf]
        %v6805 = vld [vmem:[%s6798 + $0x18] sm:$0xf]
        %v6806 = vld [vmem:[%s6798 + $0x1c] sm:$0xf]
        %v6807 = vld [vmem:[%s6798 + $0x20] sm:$0xf]
        %v6808 = vld [vmem:[%s6798 + $0x24] sm:$0xf]
        %v6809 = vld [vmem:[%s6798 + $0x28] sm:$0xf]
        %v6810 = vld [vmem:[%s6798 + $0x2c] sm:$0xf]
        %v6811 = vld [vmem:[%s6798 + $0x30] sm:$0xf]
        %v6812 = vld [vmem:[%s6798 + $0x34] sm:$0xf]
        %v6813 = vld [vmem:[%s6798 + $0x38] sm:$0xf]
        %v6814 = vld [vmem:[%s6798 + $0x3c] sm:$0xf]
        %v6831 = vunpack.c.l.b16 %v6799
        %v6832 = vunpack.c.l.b16 %v6800
        %v6833 = vunpack.c.l.b16 %v6801
        %v6834 = vunpack.c.l.b16 %v6802
        %v6835 = vunpack.c.l.b16 %v6803
        %v6836 = vunpack.c.l.b16 %v6804
        %v6837 = vunpack.c.l.b16 %v6805
        %v6838 = vunpack.c.l.b16 %v6806
        %v6839 = vunpack.c.l.b16 %v6807
        %v6840 = vunpack.c.l.b16 %v6808
        %v6841 = vunpack.c.l.b16 %v6809
        %v6842 = vunpack.c.l.b16 %v6810
        %v6843 = vunpack.c.l.b16 %v6811
        %v6844 = vunpack.c.l.b16 %v6812
        %v6845 = vunpack.c.l.b16 %v6813
        %v6846 = vunpack.c.l.b16 %v6814
        %v6847 = vpack.c.b16 %v6832, %v6831
        %v6848 = vpack.c.b16 %v6834, %v6833
        %v6849 = vpack.c.b16 %v6836, %v6835
        %v6850 = vpack.c.b16 %v6838, %v6837
        %v6851 = vpack.c.b16 %v6840, %v6839
        %v6852 = vpack.c.b16 %v6842, %v6841
        %v6853 = vpack.c.b16 %v6844, %v6843
        %v6854 = vpack.c.b16 %v6846, %v6845
        %6863 = vmatprep.subr.bf16.mxu0 0
        %6864 = vmatpush1.bf16.msra.mxu0 %v6854
        %6865 = vmatprep.subr.bf16.mxu0 0
        %6866 = vmatpush1.bf16.msra.mxu0 %v6853
        %6867 = vmatprep.subr.bf16.mxu0 0
        %6868 = vmatpush1.bf16.msra.mxu0 %v6852
        %6869 = vmatprep.subr.bf16.mxu0 0
        %6870 = vmatpush1.bf16.msra.mxu0 %v6851
        %6871 = vmatprep.subr.bf16.mxu0 0
        %6872 = vmatpush1.bf16.msra.mxu0 %v6850
        %6873 = vmatprep.subr.bf16.mxu0 0
        %6874 = vmatpush1.bf16.msra.mxu0 %v6849
        %6875 = vmatprep.subr.bf16.mxu0 0
        %6876 = vmatpush1.bf16.msra.mxu0 %v6848
        %6877 = vmatprep.subr.bf16.mxu0 0
        %6878 = vmatpush1.bf16.msra.mxu0 %v6847
        %6879 = vmatprep.subr.bf16.mxu0 0
        %6880 = vmatpush2.bf16.msra.mxu0 0
        %6881 = vmatprep.subr.bf16.mxu0 0
        %6882 = vmatpush2.bf16.msra.mxu0 0
        %6883 = vmatprep.subr.bf16.mxu0 0
        %6884 = vmatpush2.bf16.msra.mxu0 0
        %6885 = vmatprep.subr.bf16.mxu0 0
        %6886 = vmatpush2.bf16.msra.mxu0 0
        %6887 = vmatprep.subr.bf16.mxu0 0
        %6888 = vmatpush2.bf16.msra.mxu0 0
        %6889 = vmatprep.subr.bf16.mxu0 0
        %6890 = vmatpush2.bf16.msra.mxu0 0
        %6891 = vmatprep.subr.bf16.mxu0 0
        %6892 = vmatpush2.bf16.msra.mxu0 0
        %6893 = vmatprep.subr.bf16.mxu0 0
        %6894 = vmatpush2.bf16.msra.mxu0 0
        %6895 = vmatprep.mubr.bf16.mxu0 0
        %6896 = vmatmul.mubr.bf16.gmra.mxu0 %v6524
        %v6897 = vpop.f32.mrf.mxu0
        %v6898 = vadd.f32 0.0, %v6897
        %v6899 = vpop.f32.mrf.mxu0
        %v6900 = vpop.f32.mrf.mxu0
        %v6901 = vadd.f32 0.0, %v6900
        %v6902 = vpop.f32.mrf.mxu0
        %6903 = vmatprep.mubr.bf16.mxu0 0
        %6904 = vmatmul.mubr.bf16.gmra.mxu0 %v6525
        %v6905 = vpop.f32.mrf.mxu0
        %v6906 = vadd.f32 0.0, %v6905
        %v6907 = vpop.f32.mrf.mxu0
        %v6908 = vpop.f32.mrf.mxu0
        %v6909 = vadd.f32 0.0, %v6908
        %v6910 = vpop.f32.mrf.mxu0
        %6911 = vmatprep.mubr.bf16.mxu0 0
        %6912 = vmatmul.mubr.bf16.gmra.mxu0 %v6526
        %v6913 = vpop.f32.mrf.mxu0
        %v6914 = vadd.f32 0.0, %v6913
        %v6915 = vpop.f32.mrf.mxu0
        %v6916 = vpop.f32.mrf.mxu0
        %v6917 = vadd.f32 0.0, %v6916
        %v6918 = vpop.f32.mrf.mxu0
        %6919 = vmatprep.mubr.bf16.mxu0 0
        %6920 = vmatmul.mubr.bf16.gmra.mxu0 %v6527
        %v6921 = vpop.f32.mrf.mxu0
        %v6922 = vadd.f32 0.0, %v6921
        %v6923 = vpop.f32.mrf.mxu0
        %v6924 = vpop.f32.mrf.mxu0
        %v6925 = vadd.f32 0.0, %v6924
        %v6926 = vpop.f32.mrf.mxu0
        %6927 = vmatprep.mubr.bf16.mxu0 0
        %6928 = vmatmul.mubr.bf16.gmra.mxu0 %v6528
        %v6929 = vpop.f32.mrf.mxu0
        %v6930 = vadd.f32 0.0, %v6929
        %v6931 = vpop.f32.mrf.mxu0
        %v6932 = vpop.f32.mrf.mxu0
        %v6933 = vadd.f32 0.0, %v6932
        %v6934 = vpop.f32.mrf.mxu0
        %6935 = vmatprep.mubr.bf16.mxu0 0
        %6936 = vmatmul.mubr.bf16.gmra.mxu0 %v6529
        %v6937 = vpop.f32.mrf.mxu0
        %v6938 = vadd.f32 0.0, %v6937
        %v6939 = vpop.f32.mrf.mxu0
        %v6940 = vpop.f32.mrf.mxu0
        %v6941 = vadd.f32 0.0, %v6940
        %v6942 = vpop.f32.mrf.mxu0
        %6943 = vmatprep.mubr.bf16.mxu0 0
        %6944 = vmatmul.mubr.bf16.gmra.mxu0 %v6530
        %v6945 = vpop.f32.mrf.mxu0
        %v6946 = vadd.f32 0.0, %v6945
        %v6947 = vpop.f32.mrf.mxu0
        %v6948 = vpop.f32.mrf.mxu0
        %v6949 = vadd.f32 0.0, %v6948
        %v6950 = vpop.f32.mrf.mxu0
        %6951 = vmatprep.mubr.bf16.mxu0 0
        %6952 = vmatmul.mubr.bf16.gmra.mxu0 %v6531
        %v6953 = vpop.f32.mrf.mxu0
        %v6954 = vadd.f32 0.0, %v6953
        %v6955 = vpop.f32.mrf.mxu0
        %v6956 = vpop.f32.mrf.mxu0
        %v6957 = vadd.f32 0.0, %v6956
        %v6958 = vpop.f32.mrf.mxu0
        %6959 = vmatprep.mubr.bf16.mxu0 0
        %6960 = vmatmul.mubr.bf16.gmra.mxu0 %v6532
        %v6961 = vpop.f32.mrf.mxu0
        %v6962 = vadd.f32 0.0, %v6961
        %v6963 = vpop.f32.mrf.mxu0
        %v6964 = vpop.f32.mrf.mxu0
        %v6965 = vadd.f32 0.0, %v6964
        %v6966 = vpop.f32.mrf.mxu0
        %6967 = vmatprep.mubr.bf16.mxu0 0
        %6968 = vmatmul.mubr.bf16.gmra.mxu0 %v6533
        %v6969 = vpop.f32.mrf.mxu0
        %v6970 = vadd.f32 0.0, %v6969
        %v6971 = vpop.f32.mrf.mxu0
        %v6972 = vpop.f32.mrf.mxu0
        %v6973 = vadd.f32 0.0, %v6972
        %v6974 = vpop.f32.mrf.mxu0
        %6975 = vmatprep.mubr.bf16.mxu0 0
        %6976 = vmatmul.mubr.bf16.gmra.mxu0 %v6534
        %v6977 = vpop.f32.mrf.mxu0
        %v6978 = vadd.f32 0.0, %v6977
        %v6979 = vpop.f32.mrf.mxu0
        %v6980 = vpop.f32.mrf.mxu0
        %v6981 = vadd.f32 0.0, %v6980
        %v6982 = vpop.f32.mrf.mxu0
        %6983 = vmatprep.mubr.bf16.mxu0 0
        %6984 = vmatmul.mubr.bf16.gmra.mxu0 %v6535
        %v6985 = vpop.f32.mrf.mxu0
        %v6986 = vadd.f32 0.0, %v6985
        %v6987 = vpop.f32.mrf.mxu0
        %v6988 = vpop.f32.mrf.mxu0
        %v6989 = vadd.f32 0.0, %v6988
        %v6990 = vpop.f32.mrf.mxu0
        %6991 = vmatprep.mubr.bf16.mxu0 0
        %6992 = vmatmul.mubr.bf16.gmra.mxu0 %v6536
        %v6993 = vpop.f32.mrf.mxu0
        %v6994 = vadd.f32 0.0, %v6993
        %v6995 = vpop.f32.mrf.mxu0
        %v6996 = vpop.f32.mrf.mxu0
        %v6997 = vadd.f32 0.0, %v6996
        %v6998 = vpop.f32.mrf.mxu0
        %6999 = vmatprep.mubr.bf16.mxu0 0
        %7000 = vmatmul.mubr.bf16.gmra.mxu0 %v6537
        %v7001 = vpop.f32.mrf.mxu0
        %v7002 = vadd.f32 0.0, %v7001
        %v7003 = vpop.f32.mrf.mxu0
        %v7004 = vpop.f32.mrf.mxu0
        %v7005 = vadd.f32 0.0, %v7004
        %v7006 = vpop.f32.mrf.mxu0
        %7007 = vmatprep.mubr.bf16.mxu0 0
        %7008 = vmatmul.mubr.bf16.gmra.mxu0 %v6538
        %v7009 = vpop.f32.mrf.mxu0
        %v7010 = vadd.f32 0.0, %v7009
        %v7011 = vpop.f32.mrf.mxu0
        %v7012 = vpop.f32.mrf.mxu0
        %v7013 = vadd.f32 0.0, %v7012
        %v7014 = vpop.f32.mrf.mxu0
        %7015 = vmatprep.mubr.bf16.mxu0 0
        %7016 = vmatmul.mubr.bf16.gmra.mxu0 %v6539
        %v7017 = vpop.f32.mrf.mxu0
        %v7018 = vadd.f32 0.0, %v7017
        %v7019 = vpop.f32.mrf.mxu0
        %v7020 = vpop.f32.mrf.mxu0
        %v7021 = vadd.f32 0.0, %v7020
        %v7022 = vpop.f32.mrf.mxu0
        %7023 = vdwg.mxu0
        %v7024 = vadd.f32 %v6766, %v6898
        %v7025 = vadd.f32 %v6767, %v6901
        %v7026 = vadd.f32 %v6768, %v6906
        %v7027 = vadd.f32 %v6769, %v6909
        %v7028 = vadd.f32 %v6770, %v6914
        %v7029 = vadd.f32 %v6771, %v6917
        %v7030 = vadd.f32 %v6772, %v6922
        %v7031 = vadd.f32 %v6773, %v6925
        %v7032 = vadd.f32 %v6774, %v6930
        %v7033 = vadd.f32 %v6775, %v6933
        %v7034 = vadd.f32 %v6776, %v6938
        %v7035 = vadd.f32 %v6777, %v6941
        %v7036 = vadd.f32 %v6778, %v6946
        %v7037 = vadd.f32 %v6779, %v6949
        %v7038 = vadd.f32 %v6780, %v6954
        %v7039 = vadd.f32 %v6781, %v6957
        %v7040 = vadd.f32 %v6782, %v6962
        %v7041 = vadd.f32 %v6783, %v6965
        %v7042 = vadd.f32 %v6784, %v6970
        %v7043 = vadd.f32 %v6785, %v6973
        %v7044 = vadd.f32 %v6786, %v6978
        %v7045 = vadd.f32 %v6787, %v6981
        %v7046 = vadd.f32 %v6788, %v6986
        %v7047 = vadd.f32 %v6789, %v6989
        %v7048 = vadd.f32 %v6790, %v6994
        %v7049 = vadd.f32 %v6791, %v6997
        %v7050 = vadd.f32 %v6792, %v7002
        %v7051 = vadd.f32 %v6793, %v7005
        %v7052 = vadd.f32 %v6794, %v7010
        %v7053 = vadd.f32 %v6795, %v7013
        %v7054 = vadd.f32 %v6796, %v7018
        %v7055 = vadd.f32 %v6797, %v7021
        %s7056 = scalar_lea.vmem [#allocation10], 384
        %v7057 = vld [vmem:[%s7056] sm:$0xf]
        %v7058 = vld [vmem:[%s7056 + $0x4] sm:$0xf]
        %v7059 = vld [vmem:[%s7056 + $0x8] sm:$0xf]
        %v7060 = vld [vmem:[%s7056 + $0xc] sm:$0xf]
        %v7061 = vld [vmem:[%s7056 + $0x10] sm:$0xf]
        %v7062 = vld [vmem:[%s7056 + $0x14] sm:$0xf]
        %v7063 = vld [vmem:[%s7056 + $0x18] sm:$0xf]
        %v7064 = vld [vmem:[%s7056 + $0x1c] sm:$0xf]
        %v7065 = vld [vmem:[%s7056 + $0x20] sm:$0xf]
        %v7066 = vld [vmem:[%s7056 + $0x24] sm:$0xf]
        %v7067 = vld [vmem:[%s7056 + $0x28] sm:$0xf]
        %v7068 = vld [vmem:[%s7056 + $0x2c] sm:$0xf]
        %v7069 = vld [vmem:[%s7056 + $0x30] sm:$0xf]
        %v7070 = vld [vmem:[%s7056 + $0x34] sm:$0xf]
        %v7071 = vld [vmem:[%s7056 + $0x38] sm:$0xf]
        %v7072 = vld [vmem:[%s7056 + $0x3c] sm:$0xf]
        %v7089 = vunpack.c.l.b16 %v7057
        %v7090 = vunpack.c.l.b16 %v7058
        %v7091 = vunpack.c.l.b16 %v7059
        %v7092 = vunpack.c.l.b16 %v7060
        %v7093 = vunpack.c.l.b16 %v7061
        %v7094 = vunpack.c.l.b16 %v7062
        %v7095 = vunpack.c.l.b16 %v7063
        %v7096 = vunpack.c.l.b16 %v7064
        %v7097 = vunpack.c.l.b16 %v7065
        %v7098 = vunpack.c.l.b16 %v7066
        %v7099 = vunpack.c.l.b16 %v7067
        %v7100 = vunpack.c.l.b16 %v7068
        %v7101 = vunpack.c.l.b16 %v7069
        %v7102 = vunpack.c.l.b16 %v7070
        %v7103 = vunpack.c.l.b16 %v7071
        %v7104 = vunpack.c.l.b16 %v7072
        %v7105 = vpack.c.b16 %v7090, %v7089
        %v7106 = vpack.c.b16 %v7092, %v7091
        %v7107 = vpack.c.b16 %v7094, %v7093
        %v7108 = vpack.c.b16 %v7096, %v7095
        %v7109 = vpack.c.b16 %v7098, %v7097
        %v7110 = vpack.c.b16 %v7100, %v7099
        %v7111 = vpack.c.b16 %v7102, %v7101
        %v7112 = vpack.c.b16 %v7104, %v7103
        %7121 = vmatprep.subr.bf16.mxu0 0
        %7122 = vmatpush1.bf16.msra.mxu0 %v7112
        %7123 = vmatprep.subr.bf16.mxu0 0
        %7124 = vmatpush1.bf16.msra.mxu0 %v7111
        %7125 = vmatprep.subr.bf16.mxu0 0
        %7126 = vmatpush1.bf16.msra.mxu0 %v7110
        %7127 = vmatprep.subr.bf16.mxu0 0
        %7128 = vmatpush1.bf16.msra.mxu0 %v7109
        %7129 = vmatprep.subr.bf16.mxu0 0
        %7130 = vmatpush1.bf16.msra.mxu0 %v7108
        %7131 = vmatprep.subr.bf16.mxu0 0
        %7132 = vmatpush1.bf16.msra.mxu0 %v7107
        %7133 = vmatprep.subr.bf16.mxu0 0
        %7134 = vmatpush1.bf16.msra.mxu0 %v7106
        %7135 = vmatprep.subr.bf16.mxu0 0
        %7136 = vmatpush1.bf16.msra.mxu0 %v7105
        %7137 = vmatprep.subr.bf16.mxu0 0
        %7138 = vmatpush2.bf16.msra.mxu0 0
        %7139 = vmatprep.subr.bf16.mxu0 0
        %7140 = vmatpush2.bf16.msra.mxu0 0
        %7141 = vmatprep.subr.bf16.mxu0 0
        %7142 = vmatpush2.bf16.msra.mxu0 0
        %7143 = vmatprep.subr.bf16.mxu0 0
        %7144 = vmatpush2.bf16.msra.mxu0 0
        %7145 = vmatprep.subr.bf16.mxu0 0
        %7146 = vmatpush2.bf16.msra.mxu0 0
        %7147 = vmatprep.subr.bf16.mxu0 0
        %7148 = vmatpush2.bf16.msra.mxu0 0
        %7149 = vmatprep.subr.bf16.mxu0 0
        %7150 = vmatpush2.bf16.msra.mxu0 0
        %7151 = vmatprep.subr.bf16.mxu0 0
        %7152 = vmatpush2.bf16.msra.mxu0 0
        %7153 = vmatprep.mubr.bf16.mxu0 0
        %7154 = vmatmul.mubr.bf16.gmra.mxu0 %v6525
        %v7155 = vpop.f32.mrf.mxu0
        %v7156 = vadd.f32 0.0, %v7155
        %v7157 = vpop.f32.mrf.mxu0
        %v7158 = vpop.f32.mrf.mxu0
        %v7159 = vadd.f32 0.0, %v7158
        %v7160 = vpop.f32.mrf.mxu0
        %7161 = vmatprep.mubr.bf16.mxu0 0
        %7162 = vmatmul.mubr.bf16.gmra.mxu0 %v6526
        %v7163 = vpop.f32.mrf.mxu0
        %v7164 = vadd.f32 0.0, %v7163
        %v7165 = vpop.f32.mrf.mxu0
        %v7166 = vpop.f32.mrf.mxu0
        %v7167 = vadd.f32 0.0, %v7166
        %v7168 = vpop.f32.mrf.mxu0
        %7169 = vmatprep.mubr.bf16.mxu0 0
        %7170 = vmatmul.mubr.bf16.gmra.mxu0 %v6527
        %v7171 = vpop.f32.mrf.mxu0
        %v7172 = vadd.f32 0.0, %v7171
        %v7173 = vpop.f32.mrf.mxu0
        %v7174 = vpop.f32.mrf.mxu0
        %v7175 = vadd.f32 0.0, %v7174
        %v7176 = vpop.f32.mrf.mxu0
        %7177 = vmatprep.mubr.bf16.mxu0 0
        %7178 = vmatmul.mubr.bf16.gmra.mxu0 %v6528
        %v7179 = vpop.f32.mrf.mxu0
        %v7180 = vadd.f32 0.0, %v7179
        %v7181 = vpop.f32.mrf.mxu0
        %v7182 = vpop.f32.mrf.mxu0
        %v7183 = vadd.f32 0.0, %v7182
        %v7184 = vpop.f32.mrf.mxu0
        %7185 = vmatprep.mubr.bf16.mxu0 0
        %7186 = vmatmul.mubr.bf16.gmra.mxu0 %v6529
        %v7187 = vpop.f32.mrf.mxu0
        %v7188 = vadd.f32 0.0, %v7187
        %v7189 = vpop.f32.mrf.mxu0
        %v7190 = vpop.f32.mrf.mxu0
        %v7191 = vadd.f32 0.0, %v7190
        %v7192 = vpop.f32.mrf.mxu0
        %7193 = vmatprep.mubr.bf16.mxu0 0
        %7194 = vmatmul.mubr.bf16.gmra.mxu0 %v6530
        %v7195 = vpop.f32.mrf.mxu0
        %v7196 = vadd.f32 0.0, %v7195
        %v7197 = vpop.f32.mrf.mxu0
        %v7198 = vpop.f32.mrf.mxu0
        %v7199 = vadd.f32 0.0, %v7198
        %v7200 = vpop.f32.mrf.mxu0
        %7201 = vmatprep.mubr.bf16.mxu0 0
        %7202 = vmatmul.mubr.bf16.gmra.mxu0 %v6531
        %v7203 = vpop.f32.mrf.mxu0
        %v7204 = vadd.f32 0.0, %v7203
        %v7205 = vpop.f32.mrf.mxu0
        %v7206 = vpop.f32.mrf.mxu0
        %v7207 = vadd.f32 0.0, %v7206
        %v7208 = vpop.f32.mrf.mxu0
        %7209 = vmatprep.mubr.bf16.mxu0 0
        %7210 = vmatmul.mubr.bf16.gmra.mxu0 %v6532
        %v7211 = vpop.f32.mrf.mxu0
        %v7212 = vadd.f32 0.0, %v7211
        %v7213 = vpop.f32.mrf.mxu0
        %v7214 = vpop.f32.mrf.mxu0
        %v7215 = vadd.f32 0.0, %v7214
        %v7216 = vpop.f32.mrf.mxu0
        %7217 = vmatprep.mubr.bf16.mxu0 0
        %7218 = vmatmul.mubr.bf16.gmra.mxu0 %v6533
        %v7219 = vpop.f32.mrf.mxu0
        %v7220 = vadd.f32 0.0, %v7219
        %v7221 = vpop.f32.mrf.mxu0
        %v7222 = vpop.f32.mrf.mxu0
        %v7223 = vadd.f32 0.0, %v7222
        %v7224 = vpop.f32.mrf.mxu0
        %7225 = vmatprep.mubr.bf16.mxu0 0
        %7226 = vmatmul.mubr.bf16.gmra.mxu0 %v6534
        %v7227 = vpop.f32.mrf.mxu0
        %v7228 = vadd.f32 0.0, %v7227
        %v7229 = vpop.f32.mrf.mxu0
        %v7230 = vpop.f32.mrf.mxu0
        %v7231 = vadd.f32 0.0, %v7230
        %v7232 = vpop.f32.mrf.mxu0
        %7233 = vmatprep.mubr.bf16.mxu0 0
        %7234 = vmatmul.mubr.bf16.gmra.mxu0 %v6535
        %v7235 = vpop.f32.mrf.mxu0
        %v7236 = vadd.f32 0.0, %v7235
        %v7237 = vpop.f32.mrf.mxu0
        %v7238 = vpop.f32.mrf.mxu0
        %v7239 = vadd.f32 0.0, %v7238
        %v7240 = vpop.f32.mrf.mxu0
        %7241 = vmatprep.mubr.bf16.mxu0 0
        %7242 = vmatmul.mubr.bf16.gmra.mxu0 %v6536
        %v7243 = vpop.f32.mrf.mxu0
        %v7244 = vadd.f32 0.0, %v7243
        %v7245 = vpop.f32.mrf.mxu0
        %v7246 = vpop.f32.mrf.mxu0
        %v7247 = vadd.f32 0.0, %v7246
        %v7248 = vpop.f32.mrf.mxu0
        %7249 = vmatprep.mubr.bf16.mxu0 0
        %7250 = vmatmul.mubr.bf16.gmra.mxu0 %v6537
        %v7251 = vpop.f32.mrf.mxu0
        %v7252 = vadd.f32 0.0, %v7251
        %v7253 = vpop.f32.mrf.mxu0
        %v7254 = vpop.f32.mrf.mxu0
        %v7255 = vadd.f32 0.0, %v7254
        %v7256 = vpop.f32.mrf.mxu0
        %7257 = vmatprep.mubr.bf16.mxu0 0
        %7258 = vmatmul.mubr.bf16.gmra.mxu0 %v6538
        %v7259 = vpop.f32.mrf.mxu0
        %v7260 = vadd.f32 0.0, %v7259
        %v7261 = vpop.f32.mrf.mxu0
        %v7262 = vpop.f32.mrf.mxu0
        %v7263 = vadd.f32 0.0, %v7262
        %v7264 = vpop.f32.mrf.mxu0
        %7265 = vmatprep.mubr.bf16.mxu0 0
        %7266 = vmatmul.mubr.bf16.gmra.mxu0 %v6539
        %v7267 = vpop.f32.mrf.mxu0
        %v7268 = vadd.f32 0.0, %v7267
        %v7269 = vpop.f32.mrf.mxu0
        %v7270 = vpop.f32.mrf.mxu0
        %v7271 = vadd.f32 0.0, %v7270
        %v7272 = vpop.f32.mrf.mxu0
        %7273 = vmatprep.mubr.bf16.mxu0 0
        %7274 = vmatmul.mubr.bf16.gmra.mxu0 %v6540
        %v7275 = vpop.f32.mrf.mxu0
        %v7276 = vadd.f32 0.0, %v7275
        %v7277 = vpop.f32.mrf.mxu0
        %v7278 = vpop.f32.mrf.mxu0
        %v7279 = vadd.f32 0.0, %v7278
        %v7280 = vpop.f32.mrf.mxu0
        %7281 = vdwg.mxu0
        %v7282 = vadd.f32 %v7024, %v7156
        %v7283 = vadd.f32 %v7025, %v7159
        %v7284 = vadd.f32 %v7026, %v7164
        %v7285 = vadd.f32 %v7027, %v7167
        %v7286 = vadd.f32 %v7028, %v7172
        %v7287 = vadd.f32 %v7029, %v7175
        %v7288 = vadd.f32 %v7030, %v7180
        %v7289 = vadd.f32 %v7031, %v7183
        %v7290 = vadd.f32 %v7032, %v7188
        %v7291 = vadd.f32 %v7033, %v7191
        %v7292 = vadd.f32 %v7034, %v7196
        %v7293 = vadd.f32 %v7035, %v7199
        %v7294 = vadd.f32 %v7036, %v7204
        %v7295 = vadd.f32 %v7037, %v7207
        %v7296 = vadd.f32 %v7038, %v7212
        %v7297 = vadd.f32 %v7039, %v7215
        %v7298 = vadd.f32 %v7040, %v7220
        %v7299 = vadd.f32 %v7041, %v7223
        %v7300 = vadd.f32 %v7042, %v7228
        %v7301 = vadd.f32 %v7043, %v7231
        %v7302 = vadd.f32 %v7044, %v7236
        %v7303 = vadd.f32 %v7045, %v7239
        %v7304 = vadd.f32 %v7046, %v7244
        %v7305 = vadd.f32 %v7047, %v7247
        %v7306 = vadd.f32 %v7048, %v7252
        %v7307 = vadd.f32 %v7049, %v7255
        %v7308 = vadd.f32 %v7050, %v7260
        %v7309 = vadd.f32 %v7051, %v7263
        %v7310 = vadd.f32 %v7052, %v7268
        %v7311 = vadd.f32 %v7053, %v7271
        %v7312 = vadd.f32 %v7054, %v7276
        %v7313 = vadd.f32 %v7055, %v7279
        %v7314 = vld [vmem:[#allocation3 + $0x1] sm:$0xff]
        %v7315 = vld [vmem:[#allocation3 + $0x9] sm:$0xff]
        %v7316 = vld [vmem:[#allocation3 + $0x19] sm:$0xff]
        %v7317 = vld [vmem:[#allocation3 + $0x21] sm:$0xff]
        %v7318 = vld [vmem:[#allocation3 + $0x31] sm:$0xff]
        %v7319 = vld [vmem:[#allocation3 + $0x39] sm:$0xff]
        %v7320 = vld [vmem:[#allocation3 + $0x49] sm:$0xff]
        %v7321 = vld [vmem:[#allocation3 + $0x51] sm:$0xff]
        %v7322 = vld [vmem:[#allocation3 + $0x61] sm:$0xff]
        %v7323 = vld [vmem:[#allocation3 + $0x69] sm:$0xff]
        %v7324 = vld [vmem:[#allocation3 + $0x79] sm:$0xff]
        %v7325 = vld [vmem:[#allocation3 + $0x81] sm:$0xff]
        %v7326 = vld [vmem:[#allocation3 + $0x91] sm:$0xff]
        %v7327 = vld [vmem:[#allocation3 + $0x99] sm:$0xff]
        %v7328 = vld [vmem:[#allocation3 + $0xa9] sm:$0xff]
        %v7329 = vld [vmem:[#allocation3 + $0xb1] sm:$0xff]
        %v7330 = vld [vmem:[#allocation3 + $0xc1] sm:$0xff]
        %v7331 = vld [vmem:[#allocation3 + $0xc9] sm:$0xff]
        %v7332 = vld [vmem:[#allocation3 + $0xd9] sm:$0xff]
        %v7333 = vld [vmem:[#allocation3 + $0xe1] sm:$0xff]
        %v7334 = vld [vmem:[#allocation3 + $0xf1] sm:$0xff]
        %v7335 = vld [vmem:[#allocation3 + $0xf9] sm:$0xff]
        %v7336 = vld [vmem:[#allocation3 + $0x109] sm:$0xff]
        %v7337 = vld [vmem:[#allocation3 + $0x111] sm:$0xff]
        %v7338 = vld [vmem:[#allocation3 + $0x121] sm:$0xff]
        %v7339 = vld [vmem:[#allocation3 + $0x129] sm:$0xff]
        %v7340 = vld [vmem:[#allocation3 + $0x139] sm:$0xff]
        %v7341 = vld [vmem:[#allocation3 + $0x141] sm:$0xff]
        %v7342 = vld [vmem:[#allocation3 + $0x151] sm:$0xff]
        %v7343 = vld [vmem:[#allocation3 + $0x159] sm:$0xff]
        %v7344 = vld [vmem:[#allocation3 + $0x169] sm:$0xff]
        %v7345 = vld [vmem:[#allocation3 + $0x171] sm:$0xff]
        %v7346 = vld [vmem:[#allocation3 + $0x181] sm:$0xff]
        %v7347 = vld [vmem:[#allocation3 + $0x189] sm:$0xff]
        %v7348 = vld [vmem:[#allocation3 + $0x199] sm:$0xff]
        %v7349 = vld [vmem:[#allocation3 + $0x1a1] sm:$0xff]
        %v7350 = vpack.c.bf16 %v7315, %v7314
        %v7351 = vpack.c.bf16 %v7317, %v7316
        %v7352 = vpack.c.bf16 %v7319, %v7318
        %v7353 = vpack.c.bf16 %v7321, %v7320
        %v7354 = vpack.c.bf16 %v7323, %v7322
        %v7355 = vpack.c.bf16 %v7325, %v7324
        %v7356 = vpack.c.bf16 %v7327, %v7326
        %v7357 = vpack.c.bf16 %v7329, %v7328
        %v7358 = vpack.c.bf16 %v7331, %v7330
        %v7359 = vpack.c.bf16 %v7333, %v7332
        %v7360 = vpack.c.bf16 %v7335, %v7334
        %v7361 = vpack.c.bf16 %v7337, %v7336
        %v7362 = vpack.c.bf16 %v7339, %v7338
        %v7363 = vpack.c.bf16 %v7341, %v7340
        %v7364 = vpack.c.bf16 %v7343, %v7342
        %v7365 = vpack.c.bf16 %v7345, %v7344
        %v7366 = vpack.c.bf16 %v7347, %v7346
        %v7367 = vpack.c.bf16 %v7349, %v7348
        %s7368 = scalar_lea.vmem [#allocation10], 64
        %v7369 = vld [vmem:[%s7368] sm:$0xf]
        %v7370 = vld [vmem:[%s7368 + $0x4] sm:$0xf]
        %v7371 = vld [vmem:[%s7368 + $0x8] sm:$0xf]
        %v7372 = vld [vmem:[%s7368 + $0xc] sm:$0xf]
        %v7373 = vld [vmem:[%s7368 + $0x10] sm:$0xf]
        %v7374 = vld [vmem:[%s7368 + $0x14] sm:$0xf]
        %v7375 = vld [vmem:[%s7368 + $0x18] sm:$0xf]
        %v7376 = vld [vmem:[%s7368 + $0x1c] sm:$0xf]
        %v7377 = vld [vmem:[%s7368 + $0x20] sm:$0xf]
        %v7378 = vld [vmem:[%s7368 + $0x24] sm:$0xf]
        %v7379 = vld [vmem:[%s7368 + $0x28] sm:$0xf]
        %v7380 = vld [vmem:[%s7368 + $0x2c] sm:$0xf]
        %v7381 = vld [vmem:[%s7368 + $0x30] sm:$0xf]
        %v7382 = vld [vmem:[%s7368 + $0x34] sm:$0xf]
        %v7383 = vld [vmem:[%s7368 + $0x38] sm:$0xf]
        %v7384 = vld [vmem:[%s7368 + $0x3c] sm:$0xf]
        %v7401 = vunpack.c.l.b16 %v7369
        %v7402 = vunpack.c.l.b16 %v7370
        %v7403 = vunpack.c.l.b16 %v7371
        %v7404 = vunpack.c.l.b16 %v7372
        %v7405 = vunpack.c.l.b16 %v7373
        %v7406 = vunpack.c.l.b16 %v7374
        %v7407 = vunpack.c.l.b16 %v7375
        %v7408 = vunpack.c.l.b16 %v7376
        %v7409 = vunpack.c.l.b16 %v7377
        %v7410 = vunpack.c.l.b16 %v7378
        %v7411 = vunpack.c.l.b16 %v7379
        %v7412 = vunpack.c.l.b16 %v7380
        %v7413 = vunpack.c.l.b16 %v7381
        %v7414 = vunpack.c.l.b16 %v7382
        %v7415 = vunpack.c.l.b16 %v7383
        %v7416 = vunpack.c.l.b16 %v7384
        %v7417 = vpack.c.b16 %v7402, %v7401
        %v7418 = vpack.c.b16 %v7404, %v7403
        %v7419 = vpack.c.b16 %v7406, %v7405
        %v7420 = vpack.c.b16 %v7408, %v7407
        %v7421 = vpack.c.b16 %v7410, %v7409
        %v7422 = vpack.c.b16 %v7412, %v7411
        %v7423 = vpack.c.b16 %v7414, %v7413
        %v7424 = vpack.c.b16 %v7416, %v7415
        %7433 = vmatprep.subr.bf16.mxu0 0
        %7434 = vmatpush1.bf16.msra.mxu0 %v7424
        %7435 = vmatprep.subr.bf16.mxu0 0
        %7436 = vmatpush1.bf16.msra.mxu0 %v7423
        %7437 = vmatprep.subr.bf16.mxu0 0
        %7438 = vmatpush1.bf16.msra.mxu0 %v7422
        %7439 = vmatprep.subr.bf16.mxu0 0
        %7440 = vmatpush1.bf16.msra.mxu0 %v7421
        %7441 = vmatprep.subr.bf16.mxu0 0
        %7442 = vmatpush1.bf16.msra.mxu0 %v7420
        %7443 = vmatprep.subr.bf16.mxu0 0
        %7444 = vmatpush1.bf16.msra.mxu0 %v7419
        %7445 = vmatprep.subr.bf16.mxu0 0
        %7446 = vmatpush1.bf16.msra.mxu0 %v7418
        %7447 = vmatprep.subr.bf16.mxu0 0
        %7448 = vmatpush1.bf16.msra.mxu0 %v7417
        %7449 = vmatprep.subr.bf16.mxu0 0
        %7450 = vmatpush2.bf16.msra.mxu0 0
        %7451 = vmatprep.subr.bf16.mxu0 0
        %7452 = vmatpush2.bf16.msra.mxu0 0
        %7453 = vmatprep.subr.bf16.mxu0 0
        %7454 = vmatpush2.bf16.msra.mxu0 0
        %7455 = vmatprep.subr.bf16.mxu0 0
        %7456 = vmatpush2.bf16.msra.mxu0 0
        %7457 = vmatprep.subr.bf16.mxu0 0
        %7458 = vmatpush2.bf16.msra.mxu0 0
        %7459 = vmatprep.subr.bf16.mxu0 0
        %7460 = vmatpush2.bf16.msra.mxu0 0
        %7461 = vmatprep.subr.bf16.mxu0 0
        %7462 = vmatpush2.bf16.msra.mxu0 0
        %7463 = vmatprep.subr.bf16.mxu0 0
        %7464 = vmatpush2.bf16.msra.mxu0 0
        %7465 = vmatprep.mubr.bf16.mxu0 0
        %7466 = vmatmul.mubr.bf16.gmra.mxu0 %v7350
        %v7467 = vpop.f32.mrf.mxu0
        %v7468 = vadd.f32 0.0, %v7467
        %v7469 = vpop.f32.mrf.mxu0
        %v7470 = vpop.f32.mrf.mxu0
        %v7471 = vadd.f32 0.0, %v7470
        %v7472 = vpop.f32.mrf.mxu0
        %7473 = vmatprep.mubr.bf16.mxu0 0
        %7474 = vmatmul.mubr.bf16.gmra.mxu0 %v7351
        %v7475 = vpop.f32.mrf.mxu0
        %v7476 = vadd.f32 0.0, %v7475
        %v7477 = vpop.f32.mrf.mxu0
        %v7478 = vpop.f32.mrf.mxu0
        %v7479 = vadd.f32 0.0, %v7478
        %v7480 = vpop.f32.mrf.mxu0
        %7481 = vmatprep.mubr.bf16.mxu0 0
        %7482 = vmatmul.mubr.bf16.gmra.mxu0 %v7352
        %v7483 = vpop.f32.mrf.mxu0
        %v7484 = vadd.f32 0.0, %v7483
        %v7485 = vpop.f32.mrf.mxu0
        %v7486 = vpop.f32.mrf.mxu0
        %v7487 = vadd.f32 0.0, %v7486
        %v7488 = vpop.f32.mrf.mxu0
        %7489 = vmatprep.mubr.bf16.mxu0 0
        %7490 = vmatmul.mubr.bf16.gmra.mxu0 %v7353
        %v7491 = vpop.f32.mrf.mxu0
        %v7492 = vadd.f32 0.0, %v7491
        %v7493 = vpop.f32.mrf.mxu0
        %v7494 = vpop.f32.mrf.mxu0
        %v7495 = vadd.f32 0.0, %v7494
        %v7496 = vpop.f32.mrf.mxu0
        %7497 = vmatprep.mubr.bf16.mxu0 0
        %7498 = vmatmul.mubr.bf16.gmra.mxu0 %v7354
        %v7499 = vpop.f32.mrf.mxu0
        %v7500 = vadd.f32 0.0, %v7499
        %v7501 = vpop.f32.mrf.mxu0
        %v7502 = vpop.f32.mrf.mxu0
        %v7503 = vadd.f32 0.0, %v7502
        %v7504 = vpop.f32.mrf.mxu0
        %7505 = vmatprep.mubr.bf16.mxu0 0
        %7506 = vmatmul.mubr.bf16.gmra.mxu0 %v7355
        %v7507 = vpop.f32.mrf.mxu0
        %v7508 = vadd.f32 0.0, %v7507
        %v7509 = vpop.f32.mrf.mxu0
        %v7510 = vpop.f32.mrf.mxu0
        %v7511 = vadd.f32 0.0, %v7510
        %v7512 = vpop.f32.mrf.mxu0
        %7513 = vmatprep.mubr.bf16.mxu0 0
        %7514 = vmatmul.mubr.bf16.gmra.mxu0 %v7356
        %v7515 = vpop.f32.mrf.mxu0
        %v7516 = vadd.f32 0.0, %v7515
        %v7517 = vpop.f32.mrf.mxu0
        %v7518 = vpop.f32.mrf.mxu0
        %v7519 = vadd.f32 0.0, %v7518
        %v7520 = vpop.f32.mrf.mxu0
        %7521 = vmatprep.mubr.bf16.mxu0 0
        %7522 = vmatmul.mubr.bf16.gmra.mxu0 %v7357
        %v7523 = vpop.f32.mrf.mxu0
        %v7524 = vadd.f32 0.0, %v7523
        %v7525 = vpop.f32.mrf.mxu0
        %v7526 = vpop.f32.mrf.mxu0
        %v7527 = vadd.f32 0.0, %v7526
        %v7528 = vpop.f32.mrf.mxu0
        %7529 = vmatprep.mubr.bf16.mxu0 0
        %7530 = vmatmul.mubr.bf16.gmra.mxu0 %v7358
        %v7531 = vpop.f32.mrf.mxu0
        %v7532 = vadd.f32 0.0, %v7531
        %v7533 = vpop.f32.mrf.mxu0
        %v7534 = vpop.f32.mrf.mxu0
        %v7535 = vadd.f32 0.0, %v7534
        %v7536 = vpop.f32.mrf.mxu0
        %7537 = vmatprep.mubr.bf16.mxu0 0
        %7538 = vmatmul.mubr.bf16.gmra.mxu0 %v7359
        %v7539 = vpop.f32.mrf.mxu0
        %v7540 = vadd.f32 0.0, %v7539
        %v7541 = vpop.f32.mrf.mxu0
        %v7542 = vpop.f32.mrf.mxu0
        %v7543 = vadd.f32 0.0, %v7542
        %v7544 = vpop.f32.mrf.mxu0
        %7545 = vmatprep.mubr.bf16.mxu0 0
        %7546 = vmatmul.mubr.bf16.gmra.mxu0 %v7360
        %v7547 = vpop.f32.mrf.mxu0
        %v7548 = vadd.f32 0.0, %v7547
        %v7549 = vpop.f32.mrf.mxu0
        %v7550 = vpop.f32.mrf.mxu0
        %v7551 = vadd.f32 0.0, %v7550
        %v7552 = vpop.f32.mrf.mxu0
        %7553 = vmatprep.mubr.bf16.mxu0 0
        %7554 = vmatmul.mubr.bf16.gmra.mxu0 %v7361
        %v7555 = vpop.f32.mrf.mxu0
        %v7556 = vadd.f32 0.0, %v7555
        %v7557 = vpop.f32.mrf.mxu0
        %v7558 = vpop.f32.mrf.mxu0
        %v7559 = vadd.f32 0.0, %v7558
        %v7560 = vpop.f32.mrf.mxu0
        %7561 = vmatprep.mubr.bf16.mxu0 0
        %7562 = vmatmul.mubr.bf16.gmra.mxu0 %v7362
        %v7563 = vpop.f32.mrf.mxu0
        %v7564 = vadd.f32 0.0, %v7563
        %v7565 = vpop.f32.mrf.mxu0
        %v7566 = vpop.f32.mrf.mxu0
        %v7567 = vadd.f32 0.0, %v7566
        %v7568 = vpop.f32.mrf.mxu0
        %7569 = vmatprep.mubr.bf16.mxu0 0
        %7570 = vmatmul.mubr.bf16.gmra.mxu0 %v7363
        %v7571 = vpop.f32.mrf.mxu0
        %v7572 = vadd.f32 0.0, %v7571
        %v7573 = vpop.f32.mrf.mxu0
        %v7574 = vpop.f32.mrf.mxu0
        %v7575 = vadd.f32 0.0, %v7574
        %v7576 = vpop.f32.mrf.mxu0
        %7577 = vmatprep.mubr.bf16.mxu0 0
        %7578 = vmatmul.mubr.bf16.gmra.mxu0 %v7364
        %v7579 = vpop.f32.mrf.mxu0
        %v7580 = vadd.f32 0.0, %v7579
        %v7581 = vpop.f32.mrf.mxu0
        %v7582 = vpop.f32.mrf.mxu0
        %v7583 = vadd.f32 0.0, %v7582
        %v7584 = vpop.f32.mrf.mxu0
        %7585 = vmatprep.mubr.bf16.mxu0 0
        %7586 = vmatmul.mubr.bf16.gmra.mxu0 %v7365
        %v7587 = vpop.f32.mrf.mxu0
        %v7588 = vadd.f32 0.0, %v7587
        %v7589 = vpop.f32.mrf.mxu0
        %v7590 = vpop.f32.mrf.mxu0
        %v7591 = vadd.f32 0.0, %v7590
        %v7592 = vpop.f32.mrf.mxu0
        %7593 = vdwg.mxu0
        %v7594 = vadd.f32 %v7282, %v7468
        %v7595 = vadd.f32 %v7283, %v7471
        %v7596 = vadd.f32 %v7284, %v7476
        %v7597 = vadd.f32 %v7285, %v7479
        %v7598 = vadd.f32 %v7286, %v7484
        %v7599 = vadd.f32 %v7287, %v7487
        %v7600 = vadd.f32 %v7288, %v7492
        %v7601 = vadd.f32 %v7289, %v7495
        %v7602 = vadd.f32 %v7290, %v7500
        %v7603 = vadd.f32 %v7291, %v7503
        %v7604 = vadd.f32 %v7292, %v7508
        %v7605 = vadd.f32 %v7293, %v7511
        %v7606 = vadd.f32 %v7294, %v7516
        %v7607 = vadd.f32 %v7295, %v7519
        %v7608 = vadd.f32 %v7296, %v7524
        %v7609 = vadd.f32 %v7297, %v7527
        %v7610 = vadd.f32 %v7298, %v7532
        %v7611 = vadd.f32 %v7299, %v7535
        %v7612 = vadd.f32 %v7300, %v7540
        %v7613 = vadd.f32 %v7301, %v7543
        %v7614 = vadd.f32 %v7302, %v7548
        %v7615 = vadd.f32 %v7303, %v7551
        %v7616 = vadd.f32 %v7304, %v7556
        %v7617 = vadd.f32 %v7305, %v7559
        %v7618 = vadd.f32 %v7306, %v7564
        %v7619 = vadd.f32 %v7307, %v7567
        %v7620 = vadd.f32 %v7308, %v7572
        %v7621 = vadd.f32 %v7309, %v7575
        %v7622 = vadd.f32 %v7310, %v7580
        %v7623 = vadd.f32 %v7311, %v7583
        %v7624 = vadd.f32 %v7312, %v7588
        %v7625 = vadd.f32 %v7313, %v7591
        %s7626 = scalar_lea.vmem [#allocation10], 256
        %v7627 = vld [vmem:[%s7626] sm:$0xf]
        %v7628 = vld [vmem:[%s7626 + $0x4] sm:$0xf]
        %v7629 = vld [vmem:[%s7626 + $0x8] sm:$0xf]
        %v7630 = vld [vmem:[%s7626 + $0xc] sm:$0xf]
        %v7631 = vld [vmem:[%s7626 + $0x10] sm:$0xf]
        %v7632 = vld [vmem:[%s7626 + $0x14] sm:$0xf]
        %v7633 = vld [vmem:[%s7626 + $0x18] sm:$0xf]
        %v7634 = vld [vmem:[%s7626 + $0x1c] sm:$0xf]
        %v7635 = vld [vmem:[%s7626 + $0x20] sm:$0xf]
        %v7636 = vld [vmem:[%s7626 + $0x24] sm:$0xf]
        %v7637 = vld [vmem:[%s7626 + $0x28] sm:$0xf]
        %v7638 = vld [vmem:[%s7626 + $0x2c] sm:$0xf]
        %v7639 = vld [vmem:[%s7626 + $0x30] sm:$0xf]
        %v7640 = vld [vmem:[%s7626 + $0x34] sm:$0xf]
        %v7641 = vld [vmem:[%s7626 + $0x38] sm:$0xf]
        %v7642 = vld [vmem:[%s7626 + $0x3c] sm:$0xf]
        %v7659 = vunpack.c.l.b16 %v7627
        %v7660 = vunpack.c.l.b16 %v7628
        %v7661 = vunpack.c.l.b16 %v7629
        %v7662 = vunpack.c.l.b16 %v7630
        %v7663 = vunpack.c.l.b16 %v7631
        %v7664 = vunpack.c.l.b16 %v7632
        %v7665 = vunpack.c.l.b16 %v7633
        %v7666 = vunpack.c.l.b16 %v7634
        %v7667 = vunpack.c.l.b16 %v7635
        %v7668 = vunpack.c.l.b16 %v7636
        %v7669 = vunpack.c.l.b16 %v7637
        %v7670 = vunpack.c.l.b16 %v7638
        %v7671 = vunpack.c.l.b16 %v7639
        %v7672 = vunpack.c.l.b16 %v7640
        %v7673 = vunpack.c.l.b16 %v7641
        %v7674 = vunpack.c.l.b16 %v7642
        %v7675 = vpack.c.b16 %v7660, %v7659
        %v7676 = vpack.c.b16 %v7662, %v7661
        %v7677 = vpack.c.b16 %v7664, %v7663
        %v7678 = vpack.c.b16 %v7666, %v7665
        %v7679 = vpack.c.b16 %v7668, %v7667
        %v7680 = vpack.c.b16 %v7670, %v7669
        %v7681 = vpack.c.b16 %v7672, %v7671
        %v7682 = vpack.c.b16 %v7674, %v7673
        %7691 = vmatprep.subr.bf16.mxu0 0
        %7692 = vmatpush1.bf16.msra.mxu0 %v7682
        %7693 = vmatprep.subr.bf16.mxu0 0
        %7694 = vmatpush1.bf16.msra.mxu0 %v7681
        %7695 = vmatprep.subr.bf16.mxu0 0
        %7696 = vmatpush1.bf16.msra.mxu0 %v7680
        %7697 = vmatprep.subr.bf16.mxu0 0
        %7698 = vmatpush1.bf16.msra.mxu0 %v7679
        %7699 = vmatprep.subr.bf16.mxu0 0
        %7700 = vmatpush1.bf16.msra.mxu0 %v7678
        %7701 = vmatprep.subr.bf16.mxu0 0
        %7702 = vmatpush1.bf16.msra.mxu0 %v7677
        %7703 = vmatprep.subr.bf16.mxu0 0
        %7704 = vmatpush1.bf16.msra.mxu0 %v7676
        %7705 = vmatprep.subr.bf16.mxu0 0
        %7706 = vmatpush1.bf16.msra.mxu0 %v7675
        %7707 = vmatprep.subr.bf16.mxu0 0
        %7708 = vmatpush2.bf16.msra.mxu0 0
        %7709 = vmatprep.subr.bf16.mxu0 0
        %7710 = vmatpush2.bf16.msra.mxu0 0
        %7711 = vmatprep.subr.bf16.mxu0 0
        %7712 = vmatpush2.bf16.msra.mxu0 0
        %7713 = vmatprep.subr.bf16.mxu0 0
        %7714 = vmatpush2.bf16.msra.mxu0 0
        %7715 = vmatprep.subr.bf16.mxu0 0
        %7716 = vmatpush2.bf16.msra.mxu0 0
        %7717 = vmatprep.subr.bf16.mxu0 0
        %7718 = vmatpush2.bf16.msra.mxu0 0
        %7719 = vmatprep.subr.bf16.mxu0 0
        %7720 = vmatpush2.bf16.msra.mxu0 0
        %7721 = vmatprep.subr.bf16.mxu0 0
        %7722 = vmatpush2.bf16.msra.mxu0 0
        %7723 = vmatprep.mubr.bf16.mxu0 0
        %7724 = vmatmul.mubr.bf16.gmra.mxu0 %v7351
        %v7725 = vpop.f32.mrf.mxu0
        %v7726 = vadd.f32 0.0, %v7725
        %v7727 = vpop.f32.mrf.mxu0
        %v7728 = vpop.f32.mrf.mxu0
        %v7729 = vadd.f32 0.0, %v7728
        %v7730 = vpop.f32.mrf.mxu0
        %7731 = vmatprep.mubr.bf16.mxu0 0
        %7732 = vmatmul.mubr.bf16.gmra.mxu0 %v7352
        %v7733 = vpop.f32.mrf.mxu0
        %v7734 = vadd.f32 0.0, %v7733
        %v7735 = vpop.f32.mrf.mxu0
        %v7736 = vpop.f32.mrf.mxu0
        %v7737 = vadd.f32 0.0, %v7736
        %v7738 = vpop.f32.mrf.mxu0
        %7739 = vmatprep.mubr.bf16.mxu0 0
        %7740 = vmatmul.mubr.bf16.gmra.mxu0 %v7353
        %v7741 = vpop.f32.mrf.mxu0
        %v7742 = vadd.f32 0.0, %v7741
        %v7743 = vpop.f32.mrf.mxu0
        %v7744 = vpop.f32.mrf.mxu0
        %v7745 = vadd.f32 0.0, %v7744
        %v7746 = vpop.f32.mrf.mxu0
        %7747 = vmatprep.mubr.bf16.mxu0 0
        %7748 = vmatmul.mubr.bf16.gmra.mxu0 %v7354
        %v7749 = vpop.f32.mrf.mxu0
        %v7750 = vadd.f32 0.0, %v7749
        %v7751 = vpop.f32.mrf.mxu0
        %v7752 = vpop.f32.mrf.mxu0
        %v7753 = vadd.f32 0.0, %v7752
        %v7754 = vpop.f32.mrf.mxu0
        %7755 = vmatprep.mubr.bf16.mxu0 0
        %7756 = vmatmul.mubr.bf16.gmra.mxu0 %v7355
        %v7757 = vpop.f32.mrf.mxu0
        %v7758 = vadd.f32 0.0, %v7757
        %v7759 = vpop.f32.mrf.mxu0
        %v7760 = vpop.f32.mrf.mxu0
        %v7761 = vadd.f32 0.0, %v7760
        %v7762 = vpop.f32.mrf.mxu0
        %7763 = vmatprep.mubr.bf16.mxu0 0
        %7764 = vmatmul.mubr.bf16.gmra.mxu0 %v7356
        %v7765 = vpop.f32.mrf.mxu0
        %v7766 = vadd.f32 0.0, %v7765
        %v7767 = vpop.f32.mrf.mxu0
        %v7768 = vpop.f32.mrf.mxu0
        %v7769 = vadd.f32 0.0, %v7768
        %v7770 = vpop.f32.mrf.mxu0
        %7771 = vmatprep.mubr.bf16.mxu0 0
        %7772 = vmatmul.mubr.bf16.gmra.mxu0 %v7357
        %v7773 = vpop.f32.mrf.mxu0
        %v7774 = vadd.f32 0.0, %v7773
        %v7775 = vpop.f32.mrf.mxu0
        %v7776 = vpop.f32.mrf.mxu0
        %v7777 = vadd.f32 0.0, %v7776
        %v7778 = vpop.f32.mrf.mxu0
        %7779 = vmatprep.mubr.bf16.mxu0 0
        %7780 = vmatmul.mubr.bf16.gmra.mxu0 %v7358
        %v7781 = vpop.f32.mrf.mxu0
        %v7782 = vadd.f32 0.0, %v7781
        %v7783 = vpop.f32.mrf.mxu0
        %v7784 = vpop.f32.mrf.mxu0
        %v7785 = vadd.f32 0.0, %v7784
        %v7786 = vpop.f32.mrf.mxu0
        %7787 = vmatprep.mubr.bf16.mxu0 0
        %7788 = vmatmul.mubr.bf16.gmra.mxu0 %v7359
        %v7789 = vpop.f32.mrf.mxu0
        %v7790 = vadd.f32 0.0, %v7789
        %v7791 = vpop.f32.mrf.mxu0
        %v7792 = vpop.f32.mrf.mxu0
        %v7793 = vadd.f32 0.0, %v7792
        %v7794 = vpop.f32.mrf.mxu0
        %7795 = vmatprep.mubr.bf16.mxu0 0
        %7796 = vmatmul.mubr.bf16.gmra.mxu0 %v7360
        %v7797 = vpop.f32.mrf.mxu0
        %v7798 = vadd.f32 0.0, %v7797
        %v7799 = vpop.f32.mrf.mxu0
        %v7800 = vpop.f32.mrf.mxu0
        %v7801 = vadd.f32 0.0, %v7800
        %v7802 = vpop.f32.mrf.mxu0
        %7803 = vmatprep.mubr.bf16.mxu0 0
        %7804 = vmatmul.mubr.bf16.gmra.mxu0 %v7361
        %v7805 = vpop.f32.mrf.mxu0
        %v7806 = vadd.f32 0.0, %v7805
        %v7807 = vpop.f32.mrf.mxu0
        %v7808 = vpop.f32.mrf.mxu0
        %v7809 = vadd.f32 0.0, %v7808
        %v7810 = vpop.f32.mrf.mxu0
        %7811 = vmatprep.mubr.bf16.mxu0 0
        %7812 = vmatmul.mubr.bf16.gmra.mxu0 %v7362
        %v7813 = vpop.f32.mrf.mxu0
        %v7814 = vadd.f32 0.0, %v7813
        %v7815 = vpop.f32.mrf.mxu0
        %v7816 = vpop.f32.mrf.mxu0
        %v7817 = vadd.f32 0.0, %v7816
        %v7818 = vpop.f32.mrf.mxu0
        %7819 = vmatprep.mubr.bf16.mxu0 0
        %7820 = vmatmul.mubr.bf16.gmra.mxu0 %v7363
        %v7821 = vpop.f32.mrf.mxu0
        %v7822 = vadd.f32 0.0, %v7821
        %v7823 = vpop.f32.mrf.mxu0
        %v7824 = vpop.f32.mrf.mxu0
        %v7825 = vadd.f32 0.0, %v7824
        %v7826 = vpop.f32.mrf.mxu0
        %7827 = vmatprep.mubr.bf16.mxu0 0
        %7828 = vmatmul.mubr.bf16.gmra.mxu0 %v7364
        %v7829 = vpop.f32.mrf.mxu0
        %v7830 = vadd.f32 0.0, %v7829
        %v7831 = vpop.f32.mrf.mxu0
        %v7832 = vpop.f32.mrf.mxu0
        %v7833 = vadd.f32 0.0, %v7832
        %v7834 = vpop.f32.mrf.mxu0
        %7835 = vmatprep.mubr.bf16.mxu0 0
        %7836 = vmatmul.mubr.bf16.gmra.mxu0 %v7365
        %v7837 = vpop.f32.mrf.mxu0
        %v7838 = vadd.f32 0.0, %v7837
        %v7839 = vpop.f32.mrf.mxu0
        %v7840 = vpop.f32.mrf.mxu0
        %v7841 = vadd.f32 0.0, %v7840
        %v7842 = vpop.f32.mrf.mxu0
        %7843 = vmatprep.mubr.bf16.mxu0 0
        %7844 = vmatmul.mubr.bf16.gmra.mxu0 %v7366
        %v7845 = vpop.f32.mrf.mxu0
        %v7846 = vadd.f32 0.0, %v7845
        %v7847 = vpop.f32.mrf.mxu0
        %v7848 = vpop.f32.mrf.mxu0
        %v7849 = vadd.f32 0.0, %v7848
        %v7850 = vpop.f32.mrf.mxu0
        %7851 = vdwg.mxu0
        %v7852 = vadd.f32 %v7594, %v7726
        %v7853 = vadd.f32 %v7595, %v7729
        %v7854 = vadd.f32 %v7596, %v7734
        %v7855 = vadd.f32 %v7597, %v7737
        %v7856 = vadd.f32 %v7598, %v7742
        %v7857 = vadd.f32 %v7599, %v7745
        %v7858 = vadd.f32 %v7600, %v7750
        %v7859 = vadd.f32 %v7601, %v7753
        %v7860 = vadd.f32 %v7602, %v7758
        %v7861 = vadd.f32 %v7603, %v7761
        %v7862 = vadd.f32 %v7604, %v7766
        %v7863 = vadd.f32 %v7605, %v7769
        %v7864 = vadd.f32 %v7606, %v7774
        %v7865 = vadd.f32 %v7607, %v7777
        %v7866 = vadd.f32 %v7608, %v7782
        %v7867 = vadd.f32 %v7609, %v7785
        %v7868 = vadd.f32 %v7610, %v7790
        %v7869 = vadd.f32 %v7611, %v7793
        %v7870 = vadd.f32 %v7612, %v7798
        %v7871 = vadd.f32 %v7613, %v7801
        %v7872 = vadd.f32 %v7614, %v7806
        %v7873 = vadd.f32 %v7615, %v7809
        %v7874 = vadd.f32 %v7616, %v7814
        %v7875 = vadd.f32 %v7617, %v7817
        %v7876 = vadd.f32 %v7618, %v7822
        %v7877 = vadd.f32 %v7619, %v7825
        %v7878 = vadd.f32 %v7620, %v7830
        %v7879 = vadd.f32 %v7621, %v7833
        %v7880 = vadd.f32 %v7622, %v7838
        %v7881 = vadd.f32 %v7623, %v7841
        %v7882 = vadd.f32 %v7624, %v7846
        %v7883 = vadd.f32 %v7625, %v7849
        %s7884 = scalar_lea.vmem [#allocation10], 448
        %v7885 = vld [vmem:[%s7884] sm:$0xf]
        %v7886 = vld [vmem:[%s7884 + $0x4] sm:$0xf]
        %v7887 = vld [vmem:[%s7884 + $0x8] sm:$0xf]
        %v7888 = vld [vmem:[%s7884 + $0xc] sm:$0xf]
        %v7889 = vld [vmem:[%s7884 + $0x10] sm:$0xf]
        %v7890 = vld [vmem:[%s7884 + $0x14] sm:$0xf]
        %v7891 = vld [vmem:[%s7884 + $0x18] sm:$0xf]
        %v7892 = vld [vmem:[%s7884 + $0x1c] sm:$0xf]
        %v7893 = vld [vmem:[%s7884 + $0x20] sm:$0xf]
        %v7894 = vld [vmem:[%s7884 + $0x24] sm:$0xf]
        %v7895 = vld [vmem:[%s7884 + $0x28] sm:$0xf]
        %v7896 = vld [vmem:[%s7884 + $0x2c] sm:$0xf]
        %v7897 = vld [vmem:[%s7884 + $0x30] sm:$0xf]
        %v7898 = vld [vmem:[%s7884 + $0x34] sm:$0xf]
        %v7899 = vld [vmem:[%s7884 + $0x38] sm:$0xf]
        %v7900 = vld [vmem:[%s7884 + $0x3c] sm:$0xf]
        %v7917 = vunpack.c.l.b16 %v7885
        %v7918 = vunpack.c.l.b16 %v7886
        %v7919 = vunpack.c.l.b16 %v7887
        %v7920 = vunpack.c.l.b16 %v7888
        %v7921 = vunpack.c.l.b16 %v7889
        %v7922 = vunpack.c.l.b16 %v7890
        %v7923 = vunpack.c.l.b16 %v7891
        %v7924 = vunpack.c.l.b16 %v7892
        %v7925 = vunpack.c.l.b16 %v7893
        %v7926 = vunpack.c.l.b16 %v7894
        %v7927 = vunpack.c.l.b16 %v7895
        %v7928 = vunpack.c.l.b16 %v7896
        %v7929 = vunpack.c.l.b16 %v7897
        %v7930 = vunpack.c.l.b16 %v7898
        %v7931 = vunpack.c.l.b16 %v7899
        %v7932 = vunpack.c.l.b16 %v7900
        %v7933 = vpack.c.b16 %v7918, %v7917
        %v7934 = vpack.c.b16 %v7920, %v7919
        %v7935 = vpack.c.b16 %v7922, %v7921
        %v7936 = vpack.c.b16 %v7924, %v7923
        %v7937 = vpack.c.b16 %v7926, %v7925
        %v7938 = vpack.c.b16 %v7928, %v7927
        %v7939 = vpack.c.b16 %v7930, %v7929
        %v7940 = vpack.c.b16 %v7932, %v7931
        %7949 = vmatprep.subr.bf16.mxu0 0
        %7950 = vmatpush1.bf16.msra.mxu0 %v7940
        %7951 = vmatprep.subr.bf16.mxu0 0
        %7952 = vmatpush1.bf16.msra.mxu0 %v7939
        %7953 = vmatprep.subr.bf16.mxu0 0
        %7954 = vmatpush1.bf16.msra.mxu0 %v7938
        %7955 = vmatprep.subr.bf16.mxu0 0
        %7956 = vmatpush1.bf16.msra.mxu0 %v7937
        %7957 = vmatprep.subr.bf16.mxu0 0
        %7958 = vmatpush1.bf16.msra.mxu0 %v7936
        %7959 = vmatprep.subr.bf16.mxu0 0
        %7960 = vmatpush1.bf16.msra.mxu0 %v7935
        %7961 = vmatprep.subr.bf16.mxu0 0
        %7962 = vmatpush1.bf16.msra.mxu0 %v7934
        %7963 = vmatprep.subr.bf16.mxu0 0
        %7964 = vmatpush1.bf16.msra.mxu0 %v7933
        %7965 = vmatprep.subr.bf16.mxu0 0
        %7966 = vmatpush2.bf16.msra.mxu0 0
        %7967 = vmatprep.subr.bf16.mxu0 0
        %7968 = vmatpush2.bf16.msra.mxu0 0
        %7969 = vmatprep.subr.bf16.mxu0 0
        %7970 = vmatpush2.bf16.msra.mxu0 0
        %7971 = vmatprep.subr.bf16.mxu0 0
        %7972 = vmatpush2.bf16.msra.mxu0 0
        %7973 = vmatprep.subr.bf16.mxu0 0
        %7974 = vmatpush2.bf16.msra.mxu0 0
        %7975 = vmatprep.subr.bf16.mxu0 0
        %7976 = vmatpush2.bf16.msra.mxu0 0
        %7977 = vmatprep.subr.bf16.mxu0 0
        %7978 = vmatpush2.bf16.msra.mxu0 0
        %7979 = vmatprep.subr.bf16.mxu0 0
        %7980 = vmatpush2.bf16.msra.mxu0 0
        %7981 = vmatprep.mubr.bf16.mxu0 0
        %7982 = vmatmul.mubr.bf16.gmra.mxu0 %v7352
        %v7983 = vpop.f32.mrf.mxu0
        %v7984 = vadd.f32 0.0, %v7983
        %v7985 = vpop.f32.mrf.mxu0
        %v7986 = vpop.f32.mrf.mxu0
        %v7987 = vadd.f32 0.0, %v7986
        %v7988 = vpop.f32.mrf.mxu0
        %7989 = vmatprep.mubr.bf16.mxu0 0
        %7990 = vmatmul.mubr.bf16.gmra.mxu0 %v7353
        %v7991 = vpop.f32.mrf.mxu0
        %v7992 = vadd.f32 0.0, %v7991
        %v7993 = vpop.f32.mrf.mxu0
        %v7994 = vpop.f32.mrf.mxu0
        %v7995 = vadd.f32 0.0, %v7994
        %v7996 = vpop.f32.mrf.mxu0
        %7997 = vmatprep.mubr.bf16.mxu0 0
        %7998 = vmatmul.mubr.bf16.gmra.mxu0 %v7354
        %v7999 = vpop.f32.mrf.mxu0
        %v8000 = vadd.f32 0.0, %v7999
        %v8001 = vpop.f32.mrf.mxu0
        %v8002 = vpop.f32.mrf.mxu0
        %v8003 = vadd.f32 0.0, %v8002
        %v8004 = vpop.f32.mrf.mxu0
        %8005 = vmatprep.mubr.bf16.mxu0 0
        %8006 = vmatmul.mubr.bf16.gmra.mxu0 %v7355
        %v8007 = vpop.f32.mrf.mxu0
        %v8008 = vadd.f32 0.0, %v8007
        %v8009 = vpop.f32.mrf.mxu0
        %v8010 = vpop.f32.mrf.mxu0
        %v8011 = vadd.f32 0.0, %v8010
        %v8012 = vpop.f32.mrf.mxu0
        %8013 = vmatprep.mubr.bf16.mxu0 0
        %8014 = vmatmul.mubr.bf16.gmra.mxu0 %v7356
        %v8015 = vpop.f32.mrf.mxu0
        %v8016 = vadd.f32 0.0, %v8015
        %v8017 = vpop.f32.mrf.mxu0
        %v8018 = vpop.f32.mrf.mxu0
        %v8019 = vadd.f32 0.0, %v8018
        %v8020 = vpop.f32.mrf.mxu0
        %8021 = vmatprep.mubr.bf16.mxu0 0
        %8022 = vmatmul.mubr.bf16.gmra.mxu0 %v7357
        %v8023 = vpop.f32.mrf.mxu0
        %v8024 = vadd.f32 0.0, %v8023
        %v8025 = vpop.f32.mrf.mxu0
        %v8026 = vpop.f32.mrf.mxu0
        %v8027 = vadd.f32 0.0, %v8026
        %v8028 = vpop.f32.mrf.mxu0
        %8029 = vmatprep.mubr.bf16.mxu0 0
        %8030 = vmatmul.mubr.bf16.gmra.mxu0 %v7358
        %v8031 = vpop.f32.mrf.mxu0
        %v8032 = vadd.f32 0.0, %v8031
        %v8033 = vpop.f32.mrf.mxu0
        %v8034 = vpop.f32.mrf.mxu0
        %v8035 = vadd.f32 0.0, %v8034
        %v8036 = vpop.f32.mrf.mxu0
        %8037 = vmatprep.mubr.bf16.mxu0 0
        %8038 = vmatmul.mubr.bf16.gmra.mxu0 %v7359
        %v8039 = vpop.f32.mrf.mxu0
        %v8040 = vadd.f32 0.0, %v8039
        %v8041 = vpop.f32.mrf.mxu0
        %v8042 = vpop.f32.mrf.mxu0
        %v8043 = vadd.f32 0.0, %v8042
        %v8044 = vpop.f32.mrf.mxu0
        %8045 = vmatprep.mubr.bf16.mxu0 0
        %8046 = vmatmul.mubr.bf16.gmra.mxu0 %v7360
        %v8047 = vpop.f32.mrf.mxu0
        %v8048 = vadd.f32 0.0, %v8047
        %v8049 = vpop.f32.mrf.mxu0
        %v8050 = vpop.f32.mrf.mxu0
        %v8051 = vadd.f32 0.0, %v8050
        %v8052 = vpop.f32.mrf.mxu0
        %8053 = vmatprep.mubr.bf16.mxu0 0
        %8054 = vmatmul.mubr.bf16.gmra.mxu0 %v7361
        %v8055 = vpop.f32.mrf.mxu0
        %v8056 = vadd.f32 0.0, %v8055
        %v8057 = vpop.f32.mrf.mxu0
        %v8058 = vpop.f32.mrf.mxu0
        %v8059 = vadd.f32 0.0, %v8058
        %v8060 = vpop.f32.mrf.mxu0
        %8061 = vmatprep.mubr.bf16.mxu0 0
        %8062 = vmatmul.mubr.bf16.gmra.mxu0 %v7362
        %v8063 = vpop.f32.mrf.mxu0
        %v8064 = vadd.f32 0.0, %v8063
        %v8065 = vpop.f32.mrf.mxu0
        %v8066 = vpop.f32.mrf.mxu0
        %v8067 = vadd.f32 0.0, %v8066
        %v8068 = vpop.f32.mrf.mxu0
        %8069 = vmatprep.mubr.bf16.mxu0 0
        %8070 = vmatmul.mubr.bf16.gmra.mxu0 %v7363
        %v8071 = vpop.f32.mrf.mxu0
        %v8072 = vadd.f32 0.0, %v8071
        %v8073 = vpop.f32.mrf.mxu0
        %v8074 = vpop.f32.mrf.mxu0
        %v8075 = vadd.f32 0.0, %v8074
        %v8076 = vpop.f32.mrf.mxu0
        %8077 = vmatprep.mubr.bf16.mxu0 0
        %8078 = vmatmul.mubr.bf16.gmra.mxu0 %v7364
        %v8079 = vpop.f32.mrf.mxu0
        %v8080 = vadd.f32 0.0, %v8079
        %v8081 = vpop.f32.mrf.mxu0
        %v8082 = vpop.f32.mrf.mxu0
        %v8083 = vadd.f32 0.0, %v8082
        %v8084 = vpop.f32.mrf.mxu0
        %8085 = vmatprep.mubr.bf16.mxu0 0
        %8086 = vmatmul.mubr.bf16.gmra.mxu0 %v7365
        %v8087 = vpop.f32.mrf.mxu0
        %v8088 = vadd.f32 0.0, %v8087
        %v8089 = vpop.f32.mrf.mxu0
        %v8090 = vpop.f32.mrf.mxu0
        %v8091 = vadd.f32 0.0, %v8090
        %v8092 = vpop.f32.mrf.mxu0
        %8093 = vmatprep.mubr.bf16.mxu0 0
        %8094 = vmatmul.mubr.bf16.gmra.mxu0 %v7366
        %v8095 = vpop.f32.mrf.mxu0
        %v8096 = vadd.f32 0.0, %v8095
        %v8097 = vpop.f32.mrf.mxu0
        %v8098 = vpop.f32.mrf.mxu0
        %v8099 = vadd.f32 0.0, %v8098
        %v8100 = vpop.f32.mrf.mxu0
        %8101 = vmatprep.mubr.bf16.mxu0 0
        %8102 = vmatmul.mubr.bf16.gmra.mxu0 %v7367
        %v8103 = vpop.f32.mrf.mxu0
        %v8104 = vadd.f32 0.0, %v8103
        %v8105 = vpop.f32.mrf.mxu0
        %v8106 = vpop.f32.mrf.mxu0
        %v8107 = vadd.f32 0.0, %v8106
        %v8108 = vpop.f32.mrf.mxu0
        %8109 = vdwg.mxu0
        %v8110 = vadd.f32 %v7852, %v7984
        %v8111 = vadd.f32 %v7853, %v7987
        %v8112 = vadd.f32 %v7854, %v7992
        %v8113 = vadd.f32 %v7855, %v7995
        %v8114 = vadd.f32 %v7856, %v8000
        %v8115 = vadd.f32 %v7857, %v8003
        %v8116 = vadd.f32 %v7858, %v8008
        %v8117 = vadd.f32 %v7859, %v8011
        %v8118 = vadd.f32 %v7860, %v8016
        %v8119 = vadd.f32 %v7861, %v8019
        %v8120 = vadd.f32 %v7862, %v8024
        %v8121 = vadd.f32 %v7863, %v8027
        %v8122 = vadd.f32 %v7864, %v8032
        %v8123 = vadd.f32 %v7865, %v8035
        %v8124 = vadd.f32 %v7866, %v8040
        %v8125 = vadd.f32 %v7867, %v8043
        %v8126 = vadd.f32 %v7868, %v8048
        %v8127 = vadd.f32 %v7869, %v8051
        %v8128 = vadd.f32 %v7870, %v8056
        %v8129 = vadd.f32 %v7871, %v8059
        %v8130 = vadd.f32 %v7872, %v8064
        %v8131 = vadd.f32 %v7873, %v8067
        %v8132 = vadd.f32 %v7874, %v8072
        %v8133 = vadd.f32 %v7875, %v8075
        %v8134 = vadd.f32 %v7876, %v8080
        %v8135 = vadd.f32 %v7877, %v8083
        %v8136 = vadd.f32 %v7878, %v8088
        %v8137 = vadd.f32 %v7879, %v8091
        %v8138 = vadd.f32 %v7880, %v8096
        %v8139 = vadd.f32 %v7881, %v8099
        %v8140 = vadd.f32 %v7882, %v8104
        %v8141 = vadd.f32 %v7883, %v8107
        %v8142 = vld [vmem:[#allocation3 + $0x2] sm:$0xff]
        %v8143 = vld [vmem:[#allocation3 + $0xa] sm:$0xff]
        %v8144 = vld [vmem:[#allocation3 + $0x1a] sm:$0xff]
        %v8145 = vld [vmem:[#allocation3 + $0x22] sm:$0xff]
        %v8146 = vld [vmem:[#allocation3 + $0x32] sm:$0xff]
        %v8147 = vld [vmem:[#allocation3 + $0x3a] sm:$0xff]
        %v8148 = vld [vmem:[#allocation3 + $0x4a] sm:$0xff]
        %v8149 = vld [vmem:[#allocation3 + $0x52] sm:$0xff]
        %v8150 = vld [vmem:[#allocation3 + $0x62] sm:$0xff]
        %v8151 = vld [vmem:[#allocation3 + $0x6a] sm:$0xff]
        %v8152 = vld [vmem:[#allocation3 + $0x7a] sm:$0xff]
        %v8153 = vld [vmem:[#allocation3 + $0x82] sm:$0xff]
        %v8154 = vld [vmem:[#allocation3 + $0x92] sm:$0xff]
        %v8155 = vld [vmem:[#allocation3 + $0x9a] sm:$0xff]
        %v8156 = vld [vmem:[#allocation3 + $0xaa] sm:$0xff]
        %v8157 = vld [vmem:[#allocation3 + $0xb2] sm:$0xff]
        %v8158 = vld [vmem:[#allocation3 + $0xc2] sm:$0xff]
        %v8159 = vld [vmem:[#allocation3 + $0xca] sm:$0xff]
        %v8160 = vld [vmem:[#allocation3 + $0xda] sm:$0xff]
        %v8161 = vld [vmem:[#allocation3 + $0xe2] sm:$0xff]
        %v8162 = vld [vmem:[#allocation3 + $0xf2] sm:$0xff]
        %v8163 = vld [vmem:[#allocation3 + $0xfa] sm:$0xff]
        %v8164 = vld [vmem:[#allocation3 + $0x10a] sm:$0xff]
        %v8165 = vld [vmem:[#allocation3 + $0x112] sm:$0xff]
        %v8166 = vld [vmem:[#allocation3 + $0x122] sm:$0xff]
        %v8167 = vld [vmem:[#allocation3 + $0x12a] sm:$0xff]
        %v8168 = vld [vmem:[#allocation3 + $0x13a] sm:$0xff]
        %v8169 = vld [vmem:[#allocation3 + $0x142] sm:$0xff]
        %v8170 = vld [vmem:[#allocation3 + $0x152] sm:$0xff]
        %v8171 = vld [vmem:[#allocation3 + $0x15a] sm:$0xff]
        %v8172 = vld [vmem:[#allocation3 + $0x16a] sm:$0xff]
        %v8173 = vld [vmem:[#allocation3 + $0x172] sm:$0xff]
        %v8174 = vld [vmem:[#allocation3 + $0x182] sm:$0xff]
        %v8175 = vld [vmem:[#allocation3 + $0x18a] sm:$0xff]
        %v8176 = vld [vmem:[#allocation3 + $0x19a] sm:$0xff]
        %v8177 = vld [vmem:[#allocation3 + $0x1a2] sm:$0xff]
        %v8178 = vpack.c.bf16 %v8143, %v8142
        %v8179 = vpack.c.bf16 %v8145, %v8144
        %v8180 = vpack.c.bf16 %v8147, %v8146
        %v8181 = vpack.c.bf16 %v8149, %v8148
        %v8182 = vpack.c.bf16 %v8151, %v8150
        %v8183 = vpack.c.bf16 %v8153, %v8152
        %v8184 = vpack.c.bf16 %v8155, %v8154
        %v8185 = vpack.c.bf16 %v8157, %v8156
        %v8186 = vpack.c.bf16 %v8159, %v8158
        %v8187 = vpack.c.bf16 %v8161, %v8160
        %v8188 = vpack.c.bf16 %v8163, %v8162
        %v8189 = vpack.c.bf16 %v8165, %v8164
        %v8190 = vpack.c.bf16 %v8167, %v8166
        %v8191 = vpack.c.bf16 %v8169, %v8168
        %v8192 = vpack.c.bf16 %v8171, %v8170
        %v8193 = vpack.c.bf16 %v8173, %v8172
        %v8194 = vpack.c.bf16 %v8175, %v8174
        %v8195 = vpack.c.bf16 %v8177, %v8176
        %s8196 = scalar_lea.vmem [#allocation10], 128
        %v8197 = vld [vmem:[%s8196] sm:$0xf]
        %v8198 = vld [vmem:[%s8196 + $0x4] sm:$0xf]
        %v8199 = vld [vmem:[%s8196 + $0x8] sm:$0xf]
        %v8200 = vld [vmem:[%s8196 + $0xc] sm:$0xf]
        %v8201 = vld [vmem:[%s8196 + $0x10] sm:$0xf]
        %v8202 = vld [vmem:[%s8196 + $0x14] sm:$0xf]
        %v8203 = vld [vmem:[%s8196 + $0x18] sm:$0xf]
        %v8204 = vld [vmem:[%s8196 + $0x1c] sm:$0xf]
        %v8205 = vld [vmem:[%s8196 + $0x20] sm:$0xf]
        %v8206 = vld [vmem:[%s8196 + $0x24] sm:$0xf]
        %v8207 = vld [vmem:[%s8196 + $0x28] sm:$0xf]
        %v8208 = vld [vmem:[%s8196 + $0x2c] sm:$0xf]
        %v8209 = vld [vmem:[%s8196 + $0x30] sm:$0xf]
        %v8210 = vld [vmem:[%s8196 + $0x34] sm:$0xf]
        %v8211 = vld [vmem:[%s8196 + $0x38] sm:$0xf]
        %v8212 = vld [vmem:[%s8196 + $0x3c] sm:$0xf]
        %v8229 = vunpack.c.l.b16 %v8197
        %v8230 = vunpack.c.l.b16 %v8198
        %v8231 = vunpack.c.l.b16 %v8199
        %v8232 = vunpack.c.l.b16 %v8200
        %v8233 = vunpack.c.l.b16 %v8201
        %v8234 = vunpack.c.l.b16 %v8202
        %v8235 = vunpack.c.l.b16 %v8203
        %v8236 = vunpack.c.l.b16 %v8204
        %v8237 = vunpack.c.l.b16 %v8205
        %v8238 = vunpack.c.l.b16 %v8206
        %v8239 = vunpack.c.l.b16 %v8207
        %v8240 = vunpack.c.l.b16 %v8208
        %v8241 = vunpack.c.l.b16 %v8209
        %v8242 = vunpack.c.l.b16 %v8210
        %v8243 = vunpack.c.l.b16 %v8211
        %v8244 = vunpack.c.l.b16 %v8212
        %v8245 = vpack.c.b16 %v8230, %v8229
        %v8246 = vpack.c.b16 %v8232, %v8231
        %v8247 = vpack.c.b16 %v8234, %v8233
        %v8248 = vpack.c.b16 %v8236, %v8235
        %v8249 = vpack.c.b16 %v8238, %v8237
        %v8250 = vpack.c.b16 %v8240, %v8239
        %v8251 = vpack.c.b16 %v8242, %v8241
        %v8252 = vpack.c.b16 %v8244, %v8243
        %8261 = vmatprep.subr.bf16.mxu0 0
        %8262 = vmatpush1.bf16.msra.mxu0 %v8252
        %8263 = vmatprep.subr.bf16.mxu0 0
        %8264 = vmatpush1.bf16.msra.mxu0 %v8251
        %8265 = vmatprep.subr.bf16.mxu0 0
        %8266 = vmatpush1.bf16.msra.mxu0 %v8250
        %8267 = vmatprep.subr.bf16.mxu0 0
        %8268 = vmatpush1.bf16.msra.mxu0 %v8249
        %8269 = vmatprep.subr.bf16.mxu0 0
        %8270 = vmatpush1.bf16.msra.mxu0 %v8248
        %8271 = vmatprep.subr.bf16.mxu0 0
        %8272 = vmatpush1.bf16.msra.mxu0 %v8247
        %8273 = vmatprep.subr.bf16.mxu0 0
        %8274 = vmatpush1.bf16.msra.mxu0 %v8246
        %8275 = vmatprep.subr.bf16.mxu0 0
        %8276 = vmatpush1.bf16.msra.mxu0 %v8245
        %8277 = vmatprep.subr.bf16.mxu0 0
        %8278 = vmatpush2.bf16.msra.mxu0 0
        %8279 = vmatprep.subr.bf16.mxu0 0
        %8280 = vmatpush2.bf16.msra.mxu0 0
        %8281 = vmatprep.subr.bf16.mxu0 0
        %8282 = vmatpush2.bf16.msra.mxu0 0
        %8283 = vmatprep.subr.bf16.mxu0 0
        %8284 = vmatpush2.bf16.msra.mxu0 0
        %8285 = vmatprep.subr.bf16.mxu0 0
        %8286 = vmatpush2.bf16.msra.mxu0 0
        %8287 = vmatprep.subr.bf16.mxu0 0
        %8288 = vmatpush2.bf16.msra.mxu0 0
        %8289 = vmatprep.subr.bf16.mxu0 0
        %8290 = vmatpush2.bf16.msra.mxu0 0
        %8291 = vmatprep.subr.bf16.mxu0 0
        %8292 = vmatpush2.bf16.msra.mxu0 0
        %8293 = vmatprep.mubr.bf16.mxu0 0
        %8294 = vmatmul.mubr.bf16.gmra.mxu0 %v8178
        %v8295 = vpop.f32.mrf.mxu0
        %v8296 = vadd.f32 0.0, %v8295
        %v8297 = vpop.f32.mrf.mxu0
        %v8298 = vpop.f32.mrf.mxu0
        %v8299 = vadd.f32 0.0, %v8298
        %v8300 = vpop.f32.mrf.mxu0
        %8301 = vmatprep.mubr.bf16.mxu0 0
        %8302 = vmatmul.mubr.bf16.gmra.mxu0 %v8179
        %v8303 = vpop.f32.mrf.mxu0
        %v8304 = vadd.f32 0.0, %v8303
        %v8305 = vpop.f32.mrf.mxu0
        %v8306 = vpop.f32.mrf.mxu0
        %v8307 = vadd.f32 0.0, %v8306
        %v8308 = vpop.f32.mrf.mxu0
        %8309 = vmatprep.mubr.bf16.mxu0 0
        %8310 = vmatmul.mubr.bf16.gmra.mxu0 %v8180
        %v8311 = vpop.f32.mrf.mxu0
        %v8312 = vadd.f32 0.0, %v8311
        %v8313 = vpop.f32.mrf.mxu0
        %v8314 = vpop.f32.mrf.mxu0
        %v8315 = vadd.f32 0.0, %v8314
        %v8316 = vpop.f32.mrf.mxu0
        %8317 = vmatprep.mubr.bf16.mxu0 0
        %8318 = vmatmul.mubr.bf16.gmra.mxu0 %v8181
        %v8319 = vpop.f32.mrf.mxu0
        %v8320 = vadd.f32 0.0, %v8319
        %v8321 = vpop.f32.mrf.mxu0
        %v8322 = vpop.f32.mrf.mxu0
        %v8323 = vadd.f32 0.0, %v8322
        %v8324 = vpop.f32.mrf.mxu0
        %8325 = vmatprep.mubr.bf16.mxu0 0
        %8326 = vmatmul.mubr.bf16.gmra.mxu0 %v8182
        %v8327 = vpop.f32.mrf.mxu0
        %v8328 = vadd.f32 0.0, %v8327
        %v8329 = vpop.f32.mrf.mxu0
        %v8330 = vpop.f32.mrf.mxu0
        %v8331 = vadd.f32 0.0, %v8330
        %v8332 = vpop.f32.mrf.mxu0
        %8333 = vmatprep.mubr.bf16.mxu0 0
        %8334 = vmatmul.mubr.bf16.gmra.mxu0 %v8183
        %v8335 = vpop.f32.mrf.mxu0
        %v8336 = vadd.f32 0.0, %v8335
        %v8337 = vpop.f32.mrf.mxu0
        %v8338 = vpop.f32.mrf.mxu0
        %v8339 = vadd.f32 0.0, %v8338
        %v8340 = vpop.f32.mrf.mxu0
        %8341 = vmatprep.mubr.bf16.mxu0 0
        %8342 = vmatmul.mubr.bf16.gmra.mxu0 %v8184
        %v8343 = vpop.f32.mrf.mxu0
        %v8344 = vadd.f32 0.0, %v8343
        %v8345 = vpop.f32.mrf.mxu0
        %v8346 = vpop.f32.mrf.mxu0
        %v8347 = vadd.f32 0.0, %v8346
        %v8348 = vpop.f32.mrf.mxu0
        %8349 = vmatprep.mubr.bf16.mxu0 0
        %8350 = vmatmul.mubr.bf16.gmra.mxu0 %v8185
        %v8351 = vpop.f32.mrf.mxu0
        %v8352 = vadd.f32 0.0, %v8351
        %v8353 = vpop.f32.mrf.mxu0
        %v8354 = vpop.f32.mrf.mxu0
        %v8355 = vadd.f32 0.0, %v8354
        %v8356 = vpop.f32.mrf.mxu0
        %8357 = vmatprep.mubr.bf16.mxu0 0
        %8358 = vmatmul.mubr.bf16.gmra.mxu0 %v8186
        %v8359 = vpop.f32.mrf.mxu0
        %v8360 = vadd.f32 0.0, %v8359
        %v8361 = vpop.f32.mrf.mxu0
        %v8362 = vpop.f32.mrf.mxu0
        %v8363 = vadd.f32 0.0, %v8362
        %v8364 = vpop.f32.mrf.mxu0
        %8365 = vmatprep.mubr.bf16.mxu0 0
        %8366 = vmatmul.mubr.bf16.gmra.mxu0 %v8187
        %v8367 = vpop.f32.mrf.mxu0
        %v8368 = vadd.f32 0.0, %v8367
        %v8369 = vpop.f32.mrf.mxu0
        %v8370 = vpop.f32.mrf.mxu0
        %v8371 = vadd.f32 0.0, %v8370
        %v8372 = vpop.f32.mrf.mxu0
        %8373 = vmatprep.mubr.bf16.mxu0 0
        %8374 = vmatmul.mubr.bf16.gmra.mxu0 %v8188
        %v8375 = vpop.f32.mrf.mxu0
        %v8376 = vadd.f32 0.0, %v8375
        %v8377 = vpop.f32.mrf.mxu0
        %v8378 = vpop.f32.mrf.mxu0
        %v8379 = vadd.f32 0.0, %v8378
        %v8380 = vpop.f32.mrf.mxu0
        %8381 = vmatprep.mubr.bf16.mxu0 0
        %8382 = vmatmul.mubr.bf16.gmra.mxu0 %v8189
        %v8383 = vpop.f32.mrf.mxu0
        %v8384 = vadd.f32 0.0, %v8383
        %v8385 = vpop.f32.mrf.mxu0
        %v8386 = vpop.f32.mrf.mxu0
        %v8387 = vadd.f32 0.0, %v8386
        %v8388 = vpop.f32.mrf.mxu0
        %8389 = vmatprep.mubr.bf16.mxu0 0
        %8390 = vmatmul.mubr.bf16.gmra.mxu0 %v8190
        %v8391 = vpop.f32.mrf.mxu0
        %v8392 = vadd.f32 0.0, %v8391
        %v8393 = vpop.f32.mrf.mxu0
        %v8394 = vpop.f32.mrf.mxu0
        %v8395 = vadd.f32 0.0, %v8394
        %v8396 = vpop.f32.mrf.mxu0
        %8397 = vmatprep.mubr.bf16.mxu0 0
        %8398 = vmatmul.mubr.bf16.gmra.mxu0 %v8191
        %v8399 = vpop.f32.mrf.mxu0
        %v8400 = vadd.f32 0.0, %v8399
        %v8401 = vpop.f32.mrf.mxu0
        %v8402 = vpop.f32.mrf.mxu0
        %v8403 = vadd.f32 0.0, %v8402
        %v8404 = vpop.f32.mrf.mxu0
        %8405 = vmatprep.mubr.bf16.mxu0 0
        %8406 = vmatmul.mubr.bf16.gmra.mxu0 %v8192
        %v8407 = vpop.f32.mrf.mxu0
        %v8408 = vadd.f32 0.0, %v8407
        %v8409 = vpop.f32.mrf.mxu0
        %v8410 = vpop.f32.mrf.mxu0
        %v8411 = vadd.f32 0.0, %v8410
        %v8412 = vpop.f32.mrf.mxu0
        %8413 = vmatprep.mubr.bf16.mxu0 0
        %8414 = vmatmul.mubr.bf16.gmra.mxu0 %v8193
        %v8415 = vpop.f32.mrf.mxu0
        %v8416 = vadd.f32 0.0, %v8415
        %v8417 = vpop.f32.mrf.mxu0
        %v8418 = vpop.f32.mrf.mxu0
        %v8419 = vadd.f32 0.0, %v8418
        %v8420 = vpop.f32.mrf.mxu0
        %8421 = vdwg.mxu0
        %v8422 = vadd.f32 %v8110, %v8296
        %v8423 = vadd.f32 %v8111, %v8299
        %v8424 = vadd.f32 %v8112, %v8304
        %v8425 = vadd.f32 %v8113, %v8307
        %v8426 = vadd.f32 %v8114, %v8312
        %v8427 = vadd.f32 %v8115, %v8315
        %v8428 = vadd.f32 %v8116, %v8320
        %v8429 = vadd.f32 %v8117, %v8323
        %v8430 = vadd.f32 %v8118, %v8328
        %v8431 = vadd.f32 %v8119, %v8331
        %v8432 = vadd.f32 %v8120, %v8336
        %v8433 = vadd.f32 %v8121, %v8339
        %v8434 = vadd.f32 %v8122, %v8344
        %v8435 = vadd.f32 %v8123, %v8347
        %v8436 = vadd.f32 %v8124, %v8352
        %v8437 = vadd.f32 %v8125, %v8355
        %v8438 = vadd.f32 %v8126, %v8360
        %v8439 = vadd.f32 %v8127, %v8363
        %v8440 = vadd.f32 %v8128, %v8368
        %v8441 = vadd.f32 %v8129, %v8371
        %v8442 = vadd.f32 %v8130, %v8376
        %v8443 = vadd.f32 %v8131, %v8379
        %v8444 = vadd.f32 %v8132, %v8384
        %v8445 = vadd.f32 %v8133, %v8387
        %v8446 = vadd.f32 %v8134, %v8392
        %v8447 = vadd.f32 %v8135, %v8395
        %v8448 = vadd.f32 %v8136, %v8400
        %v8449 = vadd.f32 %v8137, %v8403
        %v8450 = vadd.f32 %v8138, %v8408
        %v8451 = vadd.f32 %v8139, %v8411
        %v8452 = vadd.f32 %v8140, %v8416
        %v8453 = vadd.f32 %v8141, %v8419
        %s8454 = scalar_lea.vmem [#allocation10], 320
        %v8455 = vld [vmem:[%s8454] sm:$0xf]
        %v8456 = vld [vmem:[%s8454 + $0x4] sm:$0xf]
        %v8457 = vld [vmem:[%s8454 + $0x8] sm:$0xf]
        %v8458 = vld [vmem:[%s8454 + $0xc] sm:$0xf]
        %v8459 = vld [vmem:[%s8454 + $0x10] sm:$0xf]
        %v8460 = vld [vmem:[%s8454 + $0x14] sm:$0xf]
        %v8461 = vld [vmem:[%s8454 + $0x18] sm:$0xf]
        %v8462 = vld [vmem:[%s8454 + $0x1c] sm:$0xf]
        %v8463 = vld [vmem:[%s8454 + $0x20] sm:$0xf]
        %v8464 = vld [vmem:[%s8454 + $0x24] sm:$0xf]
        %v8465 = vld [vmem:[%s8454 + $0x28] sm:$0xf]
        %v8466 = vld [vmem:[%s8454 + $0x2c] sm:$0xf]
        %v8467 = vld [vmem:[%s8454 + $0x30] sm:$0xf]
        %v8468 = vld [vmem:[%s8454 + $0x34] sm:$0xf]
        %v8469 = vld [vmem:[%s8454 + $0x38] sm:$0xf]
        %v8470 = vld [vmem:[%s8454 + $0x3c] sm:$0xf]
        %v8487 = vunpack.c.l.b16 %v8455
        %v8488 = vunpack.c.l.b16 %v8456
        %v8489 = vunpack.c.l.b16 %v8457
        %v8490 = vunpack.c.l.b16 %v8458
        %v8491 = vunpack.c.l.b16 %v8459
        %v8492 = vunpack.c.l.b16 %v8460
        %v8493 = vunpack.c.l.b16 %v8461
        %v8494 = vunpack.c.l.b16 %v8462
        %v8495 = vunpack.c.l.b16 %v8463
        %v8496 = vunpack.c.l.b16 %v8464
        %v8497 = vunpack.c.l.b16 %v8465
        %v8498 = vunpack.c.l.b16 %v8466
        %v8499 = vunpack.c.l.b16 %v8467
        %v8500 = vunpack.c.l.b16 %v8468
        %v8501 = vunpack.c.l.b16 %v8469
        %v8502 = vunpack.c.l.b16 %v8470
        %v8503 = vpack.c.b16 %v8488, %v8487
        %v8504 = vpack.c.b16 %v8490, %v8489
        %v8505 = vpack.c.b16 %v8492, %v8491
        %v8506 = vpack.c.b16 %v8494, %v8493
        %v8507 = vpack.c.b16 %v8496, %v8495
        %v8508 = vpack.c.b16 %v8498, %v8497
        %v8509 = vpack.c.b16 %v8500, %v8499
        %v8510 = vpack.c.b16 %v8502, %v8501
        %8519 = vmatprep.subr.bf16.mxu0 0
        %8520 = vmatpush1.bf16.msra.mxu0 %v8510
        %8521 = vmatprep.subr.bf16.mxu0 0
        %8522 = vmatpush1.bf16.msra.mxu0 %v8509
        %8523 = vmatprep.subr.bf16.mxu0 0
        %8524 = vmatpush1.bf16.msra.mxu0 %v8508
        %8525 = vmatprep.subr.bf16.mxu0 0
        %8526 = vmatpush1.bf16.msra.mxu0 %v8507
        %8527 = vmatprep.subr.bf16.mxu0 0
        %8528 = vmatpush1.bf16.msra.mxu0 %v8506
        %8529 = vmatprep.subr.bf16.mxu0 0
        %8530 = vmatpush1.bf16.msra.mxu0 %v8505
        %8531 = vmatprep.subr.bf16.mxu0 0
        %8532 = vmatpush1.bf16.msra.mxu0 %v8504
        %8533 = vmatprep.subr.bf16.mxu0 0
        %8534 = vmatpush1.bf16.msra.mxu0 %v8503
        %8535 = vmatprep.subr.bf16.mxu0 0
        %8536 = vmatpush2.bf16.msra.mxu0 0
        %8537 = vmatprep.subr.bf16.mxu0 0
        %8538 = vmatpush2.bf16.msra.mxu0 0
        %8539 = vmatprep.subr.bf16.mxu0 0
        %8540 = vmatpush2.bf16.msra.mxu0 0
        %8541 = vmatprep.subr.bf16.mxu0 0
        %8542 = vmatpush2.bf16.msra.mxu0 0
        %8543 = vmatprep.subr.bf16.mxu0 0
        %8544 = vmatpush2.bf16.msra.mxu0 0
        %8545 = vmatprep.subr.bf16.mxu0 0
        %8546 = vmatpush2.bf16.msra.mxu0 0
        %8547 = vmatprep.subr.bf16.mxu0 0
        %8548 = vmatpush2.bf16.msra.mxu0 0
        %8549 = vmatprep.subr.bf16.mxu0 0
        %8550 = vmatpush2.bf16.msra.mxu0 0
        %8551 = vmatprep.mubr.bf16.mxu0 0
        %8552 = vmatmul.mubr.bf16.gmra.mxu0 %v8179
        %v8553 = vpop.f32.mrf.mxu0
        %v8554 = vadd.f32 0.0, %v8553
        %v8555 = vpop.f32.mrf.mxu0
        %v8556 = vpop.f32.mrf.mxu0
        %v8557 = vadd.f32 0.0, %v8556
        %v8558 = vpop.f32.mrf.mxu0
        %8559 = vmatprep.mubr.bf16.mxu0 0
        %8560 = vmatmul.mubr.bf16.gmra.mxu0 %v8180
        %v8561 = vpop.f32.mrf.mxu0
        %v8562 = vadd.f32 0.0, %v8561
        %v8563 = vpop.f32.mrf.mxu0
        %v8564 = vpop.f32.mrf.mxu0
        %v8565 = vadd.f32 0.0, %v8564
        %v8566 = vpop.f32.mrf.mxu0
        %8567 = vmatprep.mubr.bf16.mxu0 0
        %8568 = vmatmul.mubr.bf16.gmra.mxu0 %v8181
        %v8569 = vpop.f32.mrf.mxu0
        %v8570 = vadd.f32 0.0, %v8569
        %v8571 = vpop.f32.mrf.mxu0
        %v8572 = vpop.f32.mrf.mxu0
        %v8573 = vadd.f32 0.0, %v8572
        %v8574 = vpop.f32.mrf.mxu0
        %8575 = vmatprep.mubr.bf16.mxu0 0
        %8576 = vmatmul.mubr.bf16.gmra.mxu0 %v8182
        %v8577 = vpop.f32.mrf.mxu0
        %v8578 = vadd.f32 0.0, %v8577
        %v8579 = vpop.f32.mrf.mxu0
        %v8580 = vpop.f32.mrf.mxu0
        %v8581 = vadd.f32 0.0, %v8580
        %v8582 = vpop.f32.mrf.mxu0
        %8583 = vmatprep.mubr.bf16.mxu0 0
        %8584 = vmatmul.mubr.bf16.gmra.mxu0 %v8183
        %v8585 = vpop.f32.mrf.mxu0
        %v8586 = vadd.f32 0.0, %v8585
        %v8587 = vpop.f32.mrf.mxu0
        %v8588 = vpop.f32.mrf.mxu0
        %v8589 = vadd.f32 0.0, %v8588
        %v8590 = vpop.f32.mrf.mxu0
        %8591 = vmatprep.mubr.bf16.mxu0 0
        %8592 = vmatmul.mubr.bf16.gmra.mxu0 %v8184
        %v8593 = vpop.f32.mrf.mxu0
        %v8594 = vadd.f32 0.0, %v8593
        %v8595 = vpop.f32.mrf.mxu0
        %v8596 = vpop.f32.mrf.mxu0
        %v8597 = vadd.f32 0.0, %v8596
        %v8598 = vpop.f32.mrf.mxu0
        %8599 = vmatprep.mubr.bf16.mxu0 0
        %8600 = vmatmul.mubr.bf16.gmra.mxu0 %v8185
        %v8601 = vpop.f32.mrf.mxu0
        %v8602 = vadd.f32 0.0, %v8601
        %v8603 = vpop.f32.mrf.mxu0
        %v8604 = vpop.f32.mrf.mxu0
        %v8605 = vadd.f32 0.0, %v8604
        %v8606 = vpop.f32.mrf.mxu0
        %8607 = vmatprep.mubr.bf16.mxu0 0
        %8608 = vmatmul.mubr.bf16.gmra.mxu0 %v8186
        %v8609 = vpop.f32.mrf.mxu0
        %v8610 = vadd.f32 0.0, %v8609
        %v8611 = vpop.f32.mrf.mxu0
        %v8612 = vpop.f32.mrf.mxu0
        %v8613 = vadd.f32 0.0, %v8612
        %v8614 = vpop.f32.mrf.mxu0
        %8615 = vmatprep.mubr.bf16.mxu0 0
        %8616 = vmatmul.mubr.bf16.gmra.mxu0 %v8187
        %v8617 = vpop.f32.mrf.mxu0
        %v8618 = vadd.f32 0.0, %v8617
        %v8619 = vpop.f32.mrf.mxu0
        %v8620 = vpop.f32.mrf.mxu0
        %v8621 = vadd.f32 0.0, %v8620
        %v8622 = vpop.f32.mrf.mxu0
        %8623 = vmatprep.mubr.bf16.mxu0 0
        %8624 = vmatmul.mubr.bf16.gmra.mxu0 %v8188
        %v8625 = vpop.f32.mrf.mxu0
        %v8626 = vadd.f32 0.0, %v8625
        %v8627 = vpop.f32.mrf.mxu0
        %v8628 = vpop.f32.mrf.mxu0
        %v8629 = vadd.f32 0.0, %v8628
        %v8630 = vpop.f32.mrf.mxu0
        %8631 = vmatprep.mubr.bf16.mxu0 0
        %8632 = vmatmul.mubr.bf16.gmra.mxu0 %v8189
        %v8633 = vpop.f32.mrf.mxu0
        %v8634 = vadd.f32 0.0, %v8633
        %v8635 = vpop.f32.mrf.mxu0
        %v8636 = vpop.f32.mrf.mxu0
        %v8637 = vadd.f32 0.0, %v8636
        %v8638 = vpop.f32.mrf.mxu0
        %8639 = vmatprep.mubr.bf16.mxu0 0
        %8640 = vmatmul.mubr.bf16.gmra.mxu0 %v8190
        %v8641 = vpop.f32.mrf.mxu0
        %v8642 = vadd.f32 0.0, %v8641
        %v8643 = vpop.f32.mrf.mxu0
        %v8644 = vpop.f32.mrf.mxu0
        %v8645 = vadd.f32 0.0, %v8644
        %v8646 = vpop.f32.mrf.mxu0
        %8647 = vmatprep.mubr.bf16.mxu0 0
        %8648 = vmatmul.mubr.bf16.gmra.mxu0 %v8191
        %v8649 = vpop.f32.mrf.mxu0
        %v8650 = vadd.f32 0.0, %v8649
        %v8651 = vpop.f32.mrf.mxu0
        %v8652 = vpop.f32.mrf.mxu0
        %v8653 = vadd.f32 0.0, %v8652
        %v8654 = vpop.f32.mrf.mxu0
        %8655 = vmatprep.mubr.bf16.mxu0 0
        %8656 = vmatmul.mubr.bf16.gmra.mxu0 %v8192
        %v8657 = vpop.f32.mrf.mxu0
        %v8658 = vadd.f32 0.0, %v8657
        %v8659 = vpop.f32.mrf.mxu0
        %v8660 = vpop.f32.mrf.mxu0
        %v8661 = vadd.f32 0.0, %v8660
        %v8662 = vpop.f32.mrf.mxu0
        %8663 = vmatprep.mubr.bf16.mxu0 0
        %8664 = vmatmul.mubr.bf16.gmra.mxu0 %v8193
        %v8665 = vpop.f32.mrf.mxu0
        %v8666 = vadd.f32 0.0, %v8665
        %v8667 = vpop.f32.mrf.mxu0
        %v8668 = vpop.f32.mrf.mxu0
        %v8669 = vadd.f32 0.0, %v8668
        %v8670 = vpop.f32.mrf.mxu0
        %8671 = vmatprep.mubr.bf16.mxu0 0
        %8672 = vmatmul.mubr.bf16.gmra.mxu0 %v8194
        %v8673 = vpop.f32.mrf.mxu0
        %v8674 = vadd.f32 0.0, %v8673
        %v8675 = vpop.f32.mrf.mxu0
        %v8676 = vpop.f32.mrf.mxu0
        %v8677 = vadd.f32 0.0, %v8676
        %v8678 = vpop.f32.mrf.mxu0
        %8679 = vdwg.mxu0
        %v8680 = vadd.f32 %v8422, %v8554
        %v8681 = vadd.f32 %v8423, %v8557
        %v8682 = vadd.f32 %v8424, %v8562
        %v8683 = vadd.f32 %v8425, %v8565
        %v8684 = vadd.f32 %v8426, %v8570
        %v8685 = vadd.f32 %v8427, %v8573
        %v8686 = vadd.f32 %v8428, %v8578
        %v8687 = vadd.f32 %v8429, %v8581
        %v8688 = vadd.f32 %v8430, %v8586
        %v8689 = vadd.f32 %v8431, %v8589
        %v8690 = vadd.f32 %v8432, %v8594
        %v8691 = vadd.f32 %v8433, %v8597
        %v8692 = vadd.f32 %v8434, %v8602
        %v8693 = vadd.f32 %v8435, %v8605
        %v8694 = vadd.f32 %v8436, %v8610
        %v8695 = vadd.f32 %v8437, %v8613
        %v8696 = vadd.f32 %v8438, %v8618
        %v8697 = vadd.f32 %v8439, %v8621
        %v8698 = vadd.f32 %v8440, %v8626
        %v8699 = vadd.f32 %v8441, %v8629
        %v8700 = vadd.f32 %v8442, %v8634
        %v8701 = vadd.f32 %v8443, %v8637
        %v8702 = vadd.f32 %v8444, %v8642
        %v8703 = vadd.f32 %v8445, %v8645
        %v8704 = vadd.f32 %v8446, %v8650
        %v8705 = vadd.f32 %v8447, %v8653
        %v8706 = vadd.f32 %v8448, %v8658
        %v8707 = vadd.f32 %v8449, %v8661
        %v8708 = vadd.f32 %v8450, %v8666
        %v8709 = vadd.f32 %v8451, %v8669
        %v8710 = vadd.f32 %v8452, %v8674
        %v8711 = vadd.f32 %v8453, %v8677
        %s8712 = scalar_lea.vmem [#allocation10], 512
        %v8713 = vld [vmem:[%s8712] sm:$0xf]
        %v8714 = vld [vmem:[%s8712 + $0x4] sm:$0xf]
        %v8715 = vld [vmem:[%s8712 + $0x8] sm:$0xf]
        %v8716 = vld [vmem:[%s8712 + $0xc] sm:$0xf]
        %v8717 = vld [vmem:[%s8712 + $0x10] sm:$0xf]
        %v8718 = vld [vmem:[%s8712 + $0x14] sm:$0xf]
        %v8719 = vld [vmem:[%s8712 + $0x18] sm:$0xf]
        %v8720 = vld [vmem:[%s8712 + $0x1c] sm:$0xf]
        %v8721 = vld [vmem:[%s8712 + $0x20] sm:$0xf]
        %v8722 = vld [vmem:[%s8712 + $0x24] sm:$0xf]
        %v8723 = vld [vmem:[%s8712 + $0x28] sm:$0xf]
        %v8724 = vld [vmem:[%s8712 + $0x2c] sm:$0xf]
        %v8725 = vld [vmem:[%s8712 + $0x30] sm:$0xf]
        %v8726 = vld [vmem:[%s8712 + $0x34] sm:$0xf]
        %v8727 = vld [vmem:[%s8712 + $0x38] sm:$0xf]
        %v8728 = vld [vmem:[%s8712 + $0x3c] sm:$0xf]
        %v8745 = vunpack.c.l.b16 %v8713
        %v8746 = vunpack.c.l.b16 %v8714
        %v8747 = vunpack.c.l.b16 %v8715
        %v8748 = vunpack.c.l.b16 %v8716
        %v8749 = vunpack.c.l.b16 %v8717
        %v8750 = vunpack.c.l.b16 %v8718
        %v8751 = vunpack.c.l.b16 %v8719
        %v8752 = vunpack.c.l.b16 %v8720
        %v8753 = vunpack.c.l.b16 %v8721
        %v8754 = vunpack.c.l.b16 %v8722
        %v8755 = vunpack.c.l.b16 %v8723
        %v8756 = vunpack.c.l.b16 %v8724
        %v8757 = vunpack.c.l.b16 %v8725
        %v8758 = vunpack.c.l.b16 %v8726
        %v8759 = vunpack.c.l.b16 %v8727
        %v8760 = vunpack.c.l.b16 %v8728
        %v8761 = vpack.c.b16 %v8746, %v8745
        %v8762 = vpack.c.b16 %v8748, %v8747
        %v8763 = vpack.c.b16 %v8750, %v8749
        %v8764 = vpack.c.b16 %v8752, %v8751
        %v8765 = vpack.c.b16 %v8754, %v8753
        %v8766 = vpack.c.b16 %v8756, %v8755
        %v8767 = vpack.c.b16 %v8758, %v8757
        %v8768 = vpack.c.b16 %v8760, %v8759
        %8777 = vmatprep.subr.bf16.mxu0 0
        %8778 = vmatpush1.bf16.msra.mxu0 %v8768
        %8779 = vmatprep.subr.bf16.mxu0 0
        %8780 = vmatpush1.bf16.msra.mxu0 %v8767
        %8781 = vmatprep.subr.bf16.mxu0 0
        %8782 = vmatpush1.bf16.msra.mxu0 %v8766
        %8783 = vmatprep.subr.bf16.mxu0 0
        %8784 = vmatpush1.bf16.msra.mxu0 %v8765
        %8785 = vmatprep.subr.bf16.mxu0 0
        %8786 = vmatpush1.bf16.msra.mxu0 %v8764
        %8787 = vmatprep.subr.bf16.mxu0 0
        %8788 = vmatpush1.bf16.msra.mxu0 %v8763
        %8789 = vmatprep.subr.bf16.mxu0 0
        %8790 = vmatpush1.bf16.msra.mxu0 %v8762
        %8791 = vmatprep.subr.bf16.mxu0 0
        %8792 = vmatpush1.bf16.msra.mxu0 %v8761
        %8793 = vmatprep.subr.bf16.mxu0 0
        %8794 = vmatpush2.bf16.msra.mxu0 0
        %8795 = vmatprep.subr.bf16.mxu0 0
        %8796 = vmatpush2.bf16.msra.mxu0 0
        %8797 = vmatprep.subr.bf16.mxu0 0
        %8798 = vmatpush2.bf16.msra.mxu0 0
        %8799 = vmatprep.subr.bf16.mxu0 0
        %8800 = vmatpush2.bf16.msra.mxu0 0
        %8801 = vmatprep.subr.bf16.mxu0 0
        %8802 = vmatpush2.bf16.msra.mxu0 0
        %8803 = vmatprep.subr.bf16.mxu0 0
        %8804 = vmatpush2.bf16.msra.mxu0 0
        %8805 = vmatprep.subr.bf16.mxu0 0
        %8806 = vmatpush2.bf16.msra.mxu0 0
        %8807 = vmatprep.subr.bf16.mxu0 0
        %8808 = vmatpush2.bf16.msra.mxu0 0
        %8809 = vmatprep.mubr.bf16.mxu0 0
        %8810 = vmatmul.mubr.bf16.gmra.mxu0 %v8180
        %v8811 = vpop.f32.mrf.mxu0
        %v8812 = vadd.f32 0.0, %v8811
        %v8813 = vpop.f32.mrf.mxu0
        %v8814 = vpop.f32.mrf.mxu0
        %v8815 = vadd.f32 0.0, %v8814
        %v8816 = vpop.f32.mrf.mxu0
        %8817 = vmatprep.mubr.bf16.mxu0 0
        %8818 = vmatmul.mubr.bf16.gmra.mxu0 %v8181
        %v8819 = vpop.f32.mrf.mxu0
        %v8820 = vadd.f32 0.0, %v8819
        %v8821 = vpop.f32.mrf.mxu0
        %v8822 = vpop.f32.mrf.mxu0
        %v8823 = vadd.f32 0.0, %v8822
        %v8824 = vpop.f32.mrf.mxu0
        %8825 = vmatprep.mubr.bf16.mxu0 0
        %8826 = vmatmul.mubr.bf16.gmra.mxu0 %v8182
        %v8827 = vpop.f32.mrf.mxu0
        %v8828 = vadd.f32 0.0, %v8827
        %v8829 = vpop.f32.mrf.mxu0
        %v8830 = vpop.f32.mrf.mxu0
        %v8831 = vadd.f32 0.0, %v8830
        %v8832 = vpop.f32.mrf.mxu0
        %8833 = vmatprep.mubr.bf16.mxu0 0
        %8834 = vmatmul.mubr.bf16.gmra.mxu0 %v8183
        %v8835 = vpop.f32.mrf.mxu0
        %v8836 = vadd.f32 0.0, %v8835
        %v8837 = vpop.f32.mrf.mxu0
        %v8838 = vpop.f32.mrf.mxu0
        %v8839 = vadd.f32 0.0, %v8838
        %v8840 = vpop.f32.mrf.mxu0
        %8841 = vmatprep.mubr.bf16.mxu0 0
        %8842 = vmatmul.mubr.bf16.gmra.mxu0 %v8184
        %v8843 = vpop.f32.mrf.mxu0
        %v8844 = vadd.f32 0.0, %v8843
        %v8845 = vpop.f32.mrf.mxu0
        %v8846 = vpop.f32.mrf.mxu0
        %v8847 = vadd.f32 0.0, %v8846
        %v8848 = vpop.f32.mrf.mxu0
        %8849 = vmatprep.mubr.bf16.mxu0 0
        %8850 = vmatmul.mubr.bf16.gmra.mxu0 %v8185
        %v8851 = vpop.f32.mrf.mxu0
        %v8852 = vadd.f32 0.0, %v8851
        %v8853 = vpop.f32.mrf.mxu0
        %v8854 = vpop.f32.mrf.mxu0
        %v8855 = vadd.f32 0.0, %v8854
        %v8856 = vpop.f32.mrf.mxu0
        %8857 = vmatprep.mubr.bf16.mxu0 0
        %8858 = vmatmul.mubr.bf16.gmra.mxu0 %v8186
        %v8859 = vpop.f32.mrf.mxu0
        %v8860 = vadd.f32 0.0, %v8859
        %v8861 = vpop.f32.mrf.mxu0
        %v8862 = vpop.f32.mrf.mxu0
        %v8863 = vadd.f32 0.0, %v8862
        %v8864 = vpop.f32.mrf.mxu0
        %8865 = vmatprep.mubr.bf16.mxu0 0
        %8866 = vmatmul.mubr.bf16.gmra.mxu0 %v8187
        %v8867 = vpop.f32.mrf.mxu0
        %v8868 = vadd.f32 0.0, %v8867
        %v8869 = vpop.f32.mrf.mxu0
        %v8870 = vpop.f32.mrf.mxu0
        %v8871 = vadd.f32 0.0, %v8870
        %v8872 = vpop.f32.mrf.mxu0
        %8873 = vmatprep.mubr.bf16.mxu0 0
        %8874 = vmatmul.mubr.bf16.gmra.mxu0 %v8188
        %v8875 = vpop.f32.mrf.mxu0
        %v8876 = vadd.f32 0.0, %v8875
        %v8877 = vpop.f32.mrf.mxu0
        %v8878 = vpop.f32.mrf.mxu0
        %v8879 = vadd.f32 0.0, %v8878
        %v8880 = vpop.f32.mrf.mxu0
        %8881 = vmatprep.mubr.bf16.mxu0 0
        %8882 = vmatmul.mubr.bf16.gmra.mxu0 %v8189
        %v8883 = vpop.f32.mrf.mxu0
        %v8884 = vadd.f32 0.0, %v8883
        %v8885 = vpop.f32.mrf.mxu0
        %v8886 = vpop.f32.mrf.mxu0
        %v8887 = vadd.f32 0.0, %v8886
        %v8888 = vpop.f32.mrf.mxu0
        %8889 = vmatprep.mubr.bf16.mxu0 0
        %8890 = vmatmul.mubr.bf16.gmra.mxu0 %v8190
        %v8891 = vpop.f32.mrf.mxu0
        %v8892 = vadd.f32 0.0, %v8891
        %v8893 = vpop.f32.mrf.mxu0
        %v8894 = vpop.f32.mrf.mxu0
        %v8895 = vadd.f32 0.0, %v8894
        %v8896 = vpop.f32.mrf.mxu0
        %8897 = vmatprep.mubr.bf16.mxu0 0
        %8898 = vmatmul.mubr.bf16.gmra.mxu0 %v8191
        %v8899 = vpop.f32.mrf.mxu0
        %v8900 = vadd.f32 0.0, %v8899
        %v8901 = vpop.f32.mrf.mxu0
        %v8902 = vpop.f32.mrf.mxu0
        %v8903 = vadd.f32 0.0, %v8902
        %v8904 = vpop.f32.mrf.mxu0
        %8905 = vmatprep.mubr.bf16.mxu0 0
        %8906 = vmatmul.mubr.bf16.gmra.mxu0 %v8192
        %v8907 = vpop.f32.mrf.mxu0
        %v8908 = vadd.f32 0.0, %v8907
        %v8909 = vpop.f32.mrf.mxu0
        %v8910 = vpop.f32.mrf.mxu0
        %v8911 = vadd.f32 0.0, %v8910
        %v8912 = vpop.f32.mrf.mxu0
        %8913 = vmatprep.mubr.bf16.mxu0 0
        %8914 = vmatmul.mubr.bf16.gmra.mxu0 %v8193
        %v8915 = vpop.f32.mrf.mxu0
        %v8916 = vadd.f32 0.0, %v8915
        %v8917 = vpop.f32.mrf.mxu0
        %v8918 = vpop.f32.mrf.mxu0
        %v8919 = vadd.f32 0.0, %v8918
        %v8920 = vpop.f32.mrf.mxu0
        %8921 = vmatprep.mubr.bf16.mxu0 0
        %8922 = vmatmul.mubr.bf16.gmra.mxu0 %v8194
        %v8923 = vpop.f32.mrf.mxu0
        %v8924 = vadd.f32 0.0, %v8923
        %v8925 = vpop.f32.mrf.mxu0
        %v8926 = vpop.f32.mrf.mxu0
        %v8927 = vadd.f32 0.0, %v8926
        %v8928 = vpop.f32.mrf.mxu0
        %8929 = vmatprep.mubr.bf16.mxu0 0
        %8930 = vmatmul.mubr.bf16.gmra.mxu0 %v8195
        %v8931 = vpop.f32.mrf.mxu0
        %v8932 = vadd.f32 0.0, %v8931
        %v8933 = vpop.f32.mrf.mxu0
        %v8934 = vpop.f32.mrf.mxu0
        %v8935 = vadd.f32 0.0, %v8934
        %v8936 = vpop.f32.mrf.mxu0
        %8937 = vdwg.mxu0
        %v8938 = vadd.f32 %v8680, %v8812
        %v8939 = vadd.f32 %v8681, %v8815
        %v8940 = vadd.f32 %v8682, %v8820
        %v8941 = vadd.f32 %v8683, %v8823
        %v8942 = vadd.f32 %v8684, %v8828
        %v8943 = vadd.f32 %v8685, %v8831
        %v8944 = vadd.f32 %v8686, %v8836
        %v8945 = vadd.f32 %v8687, %v8839
        %v8946 = vadd.f32 %v8688, %v8844
        %v8947 = vadd.f32 %v8689, %v8847
        %v8948 = vadd.f32 %v8690, %v8852
        %v8949 = vadd.f32 %v8691, %v8855
        %v8950 = vadd.f32 %v8692, %v8860
        %v8951 = vadd.f32 %v8693, %v8863
        %v8952 = vadd.f32 %v8694, %v8868
        %v8953 = vadd.f32 %v8695, %v8871
        %v8954 = vadd.f32 %v8696, %v8876
        %v8955 = vadd.f32 %v8697, %v8879
        %v8956 = vadd.f32 %v8698, %v8884
        %v8957 = vadd.f32 %v8699, %v8887
        %v8958 = vadd.f32 %v8700, %v8892
        %v8959 = vadd.f32 %v8701, %v8895
        %v8960 = vadd.f32 %v8702, %v8900
        %v8961 = vadd.f32 %v8703, %v8903
        %v8962 = vadd.f32 %v8704, %v8908
        %v8963 = vadd.f32 %v8705, %v8911
        %v8964 = vadd.f32 %v8706, %v8916
        %v8965 = vadd.f32 %v8707, %v8919
        %v8966 = vadd.f32 %v8708, %v8924
        %v8967 = vadd.f32 %v8709, %v8927
        %v8968 = vadd.f32 %v8710, %v8932
        %v8969 = vadd.f32 %v8711, %v8935
        %v8970 = vld [vmem:[%s551 + $0x1] sm:$0xff]
        %v8971 = vld [vmem:[%s551 + $0x9] sm:$0xff]
        %v8972 = vld [vmem:[%s551 + $0x19] sm:$0xff]
        %v8973 = vld [vmem:[%s551 + $0x21] sm:$0xff]
        %v8974 = vld [vmem:[%s551 + $0x31] sm:$0xff]
        %v8975 = vld [vmem:[%s551 + $0x39] sm:$0xff]
        %v8976 = vld [vmem:[%s551 + $0x49] sm:$0xff]
        %v8977 = vld [vmem:[%s551 + $0x51] sm:$0xff]
        %v8978 = vld [vmem:[%s551 + $0x61] sm:$0xff]
        %v8979 = vld [vmem:[%s551 + $0x69] sm:$0xff]
        %v8980 = vld [vmem:[%s551 + $0x79] sm:$0xff]
        %v8981 = vld [vmem:[%s551 + $0x81] sm:$0xff]
        %v8982 = vld [vmem:[%s551 + $0x91] sm:$0xff]
        %v8983 = vld [vmem:[%s551 + $0x99] sm:$0xff]
        %v8984 = vld [vmem:[%s551 + $0xa9] sm:$0xff]
        %v8985 = vld [vmem:[%s551 + $0xb1] sm:$0xff]
        %v8986 = vld [vmem:[%s551 + $0xc1] sm:$0xff]
        %v8987 = vld [vmem:[%s551 + $0xc9] sm:$0xff]
        %v8988 = vld [vmem:[%s551 + $0xd9] sm:$0xff]
        %v8989 = vld [vmem:[%s551 + $0xe1] sm:$0xff]
        %v8990 = vld [vmem:[%s551 + $0xf1] sm:$0xff]
        %v8991 = vld [vmem:[%s551 + $0xf9] sm:$0xff]
        %v8992 = vld [vmem:[%s551 + $0x109] sm:$0xff]
        %v8993 = vld [vmem:[%s551 + $0x111] sm:$0xff]
        %v8994 = vld [vmem:[%s551 + $0x121] sm:$0xff]
        %v8995 = vld [vmem:[%s551 + $0x129] sm:$0xff]
        %v8996 = vld [vmem:[%s551 + $0x139] sm:$0xff]
        %v8997 = vld [vmem:[%s551 + $0x141] sm:$0xff]
        %v8998 = vld [vmem:[%s551 + $0x151] sm:$0xff]
        %v8999 = vld [vmem:[%s551 + $0x159] sm:$0xff]
        %v9000 = vld [vmem:[%s551 + $0x169] sm:$0xff]
        %v9001 = vld [vmem:[%s551 + $0x171] sm:$0xff]
        %v9002 = vpack.c.bf16 %v8971, %v8970
        %v9003 = vpack.c.bf16 %v8973, %v8972
        %v9004 = vpack.c.bf16 %v8975, %v8974
        %v9005 = vpack.c.bf16 %v8977, %v8976
        %v9006 = vpack.c.bf16 %v8979, %v8978
        %v9007 = vpack.c.bf16 %v8981, %v8980
        %v9008 = vpack.c.bf16 %v8983, %v8982
        %v9009 = vpack.c.bf16 %v8985, %v8984
        %v9010 = vpack.c.bf16 %v8987, %v8986
        %v9011 = vpack.c.bf16 %v8989, %v8988
        %v9012 = vpack.c.bf16 %v8991, %v8990
        %v9013 = vpack.c.bf16 %v8993, %v8992
        %v9014 = vpack.c.bf16 %v8995, %v8994
        %v9015 = vpack.c.bf16 %v8997, %v8996
        %v9016 = vpack.c.bf16 %v8999, %v8998
        %v9017 = vpack.c.bf16 %v9001, %v9000
        %v9018 = vld [vmem:[#allocation12] sm:$0xf]
        %v9019 = vld [vmem:[#allocation12 + $0x4] sm:$0xf]
        %v9020 = vld [vmem:[#allocation12 + $0x8] sm:$0xf]
        %v9021 = vld [vmem:[#allocation12 + $0xc] sm:$0xf]
        %v9022 = vld [vmem:[#allocation12 + $0x10] sm:$0xf]
        %v9023 = vld [vmem:[#allocation12 + $0x14] sm:$0xf]
        %v9024 = vld [vmem:[#allocation12 + $0x18] sm:$0xf]
        %v9025 = vld [vmem:[#allocation12 + $0x1c] sm:$0xf]
        %v9026 = vld [vmem:[#allocation12 + $0x20] sm:$0xf]
        %v9027 = vld [vmem:[#allocation12 + $0x24] sm:$0xf]
        %v9028 = vld [vmem:[#allocation12 + $0x28] sm:$0xf]
        %v9029 = vld [vmem:[#allocation12 + $0x2c] sm:$0xf]
        %v9030 = vld [vmem:[#allocation12 + $0x30] sm:$0xf]
        %v9031 = vld [vmem:[#allocation12 + $0x34] sm:$0xf]
        %v9032 = vld [vmem:[#allocation12 + $0x38] sm:$0xf]
        %v9033 = vld [vmem:[#allocation12 + $0x3c] sm:$0xf]
        %v9034 = vld [vmem:[%s8] sm:$0x1]
        %v9036 = vlaneseq
        %v9037 = vshrl.u32 %v9036, 7
        %v9038 = vsub.s32 0, %v9037
        %v9039 = vrot.slane %v9034, %v9038
        %v9057 = vunpack.c.l.b16 %v9018
        %v9058 = vunpack.c.l.b16 %v9019
        %v9059 = vunpack.c.l.b16 %v9020
        %v9060 = vunpack.c.l.b16 %v9021
        %v9061 = vunpack.c.l.b16 %v9022
        %v9062 = vunpack.c.l.b16 %v9023
        %v9063 = vunpack.c.l.b16 %v9024
        %v9064 = vunpack.c.l.b16 %v9025
        %v9065 = vunpack.c.l.b16 %v9026
        %v9066 = vunpack.c.l.b16 %v9027
        %v9067 = vunpack.c.l.b16 %v9028
        %v9068 = vunpack.c.l.b16 %v9029
        %v9069 = vunpack.c.l.b16 %v9030
        %v9070 = vunpack.c.l.b16 %v9031
        %v9071 = vunpack.c.l.b16 %v9032
        %v9072 = vunpack.c.l.b16 %v9033
        %v9073 = vpack.c.b16 %v9058, %v9057
        %v9074 = vpack.c.b16 %v9060, %v9059
        %v9075 = vpack.c.b16 %v9062, %v9061
        %v9076 = vpack.c.b16 %v9064, %v9063
        %v9077 = vpack.c.b16 %v9066, %v9065
        %v9078 = vpack.c.b16 %v9068, %v9067
        %v9079 = vpack.c.b16 %v9070, %v9069
        %v9080 = vpack.c.b16 %v9072, %v9071
        %9089 = vmatprep.subr.bf16.mxu0 0
        %9090 = vmatpush1.bf16.msra.mxu0 %v9080
        %9091 = vmatprep.subr.bf16.mxu0 0
        %9092 = vmatpush1.bf16.msra.mxu0 %v9079
        %9093 = vmatprep.subr.bf16.mxu0 0
        %9094 = vmatpush1.bf16.msra.mxu0 %v9078
        %9095 = vmatprep.subr.bf16.mxu0 0
        %9096 = vmatpush1.bf16.msra.mxu0 %v9077
        %9097 = vmatprep.subr.bf16.mxu0 0
        %9098 = vmatpush1.bf16.msra.mxu0 %v9076
        %9099 = vmatprep.subr.bf16.mxu0 0
        %9100 = vmatpush1.bf16.msra.mxu0 %v9075
        %9101 = vmatprep.subr.bf16.mxu0 0
        %9102 = vmatpush1.bf16.msra.mxu0 %v9074
        %9103 = vmatprep.subr.bf16.mxu0 0
        %9104 = vmatpush1.bf16.msra.mxu0 %v9073
        %9105 = vmatprep.subr.bf16.mxu0 0
        %9106 = vmatpush2.bf16.msra.mxu0 0
        %9107 = vmatprep.subr.bf16.mxu0 0
        %9108 = vmatpush2.bf16.msra.mxu0 0
        %9109 = vmatprep.subr.bf16.mxu0 0
        %9110 = vmatpush2.bf16.msra.mxu0 0
        %9111 = vmatprep.subr.bf16.mxu0 0
        %9112 = vmatpush2.bf16.msra.mxu0 0
        %9113 = vmatprep.subr.bf16.mxu0 0
        %9114 = vmatpush2.bf16.msra.mxu0 0
        %9115 = vmatprep.subr.bf16.mxu0 0
        %9116 = vmatpush2.bf16.msra.mxu0 0
        %9117 = vmatprep.subr.bf16.mxu0 0
        %9118 = vmatpush2.bf16.msra.mxu0 0
        %9119 = vmatprep.subr.bf16.mxu0 0
        %9120 = vmatpush2.bf16.msra.mxu0 0
        %9121 = vmatprep.mubr.bf16.mxu0 0
        %9122 = vmatmul.mubr.bf16.gmra.mxu0 %v9002
        %v9123 = vpop.f32.mrf.mxu0
        %v9124 = vadd.f32 %v9039, %v9123
        %v9125 = vpop.f32.mrf.mxu0
        %v9126 = vpop.f32.mrf.mxu0
        %v9127 = vadd.f32 %v9039, %v9126
        %v9128 = vpop.f32.mrf.mxu0
        %9129 = vmatprep.mubr.bf16.mxu0 0
        %9130 = vmatmul.mubr.bf16.gmra.mxu0 %v9003
        %v9131 = vpop.f32.mrf.mxu0
        %v9132 = vadd.f32 %v9039, %v9131
        %v9133 = vpop.f32.mrf.mxu0
        %v9134 = vpop.f32.mrf.mxu0
        %v9135 = vadd.f32 %v9039, %v9134
        %v9136 = vpop.f32.mrf.mxu0
        %9137 = vmatprep.mubr.bf16.mxu0 0
        %9138 = vmatmul.mubr.bf16.gmra.mxu0 %v9004
        %v9139 = vpop.f32.mrf.mxu0
        %v9140 = vadd.f32 %v9039, %v9139
        %v9141 = vpop.f32.mrf.mxu0
        %v9142 = vpop.f32.mrf.mxu0
        %v9143 = vadd.f32 %v9039, %v9142
        %v9144 = vpop.f32.mrf.mxu0
        %9145 = vmatprep.mubr.bf16.mxu0 0
        %9146 = vmatmul.mubr.bf16.gmra.mxu0 %v9005
        %v9147 = vpop.f32.mrf.mxu0
        %v9148 = vadd.f32 %v9039, %v9147
        %v9149 = vpop.f32.mrf.mxu0
        %v9150 = vpop.f32.mrf.mxu0
        %v9151 = vadd.f32 %v9039, %v9150
        %v9152 = vpop.f32.mrf.mxu0
        %9153 = vmatprep.mubr.bf16.mxu0 0
        %9154 = vmatmul.mubr.bf16.gmra.mxu0 %v9006
        %v9155 = vpop.f32.mrf.mxu0
        %v9156 = vadd.f32 %v9039, %v9155
        %v9157 = vpop.f32.mrf.mxu0
        %v9158 = vpop.f32.mrf.mxu0
        %v9159 = vadd.f32 %v9039, %v9158
        %v9160 = vpop.f32.mrf.mxu0
        %9161 = vmatprep.mubr.bf16.mxu0 0
        %9162 = vmatmul.mubr.bf16.gmra.mxu0 %v9007
        %v9163 = vpop.f32.mrf.mxu0
        %v9164 = vadd.f32 %v9039, %v9163
        %v9165 = vpop.f32.mrf.mxu0
        %v9166 = vpop.f32.mrf.mxu0
        %v9167 = vadd.f32 %v9039, %v9166
        %v9168 = vpop.f32.mrf.mxu0
        %9169 = vmatprep.mubr.bf16.mxu0 0
        %9170 = vmatmul.mubr.bf16.gmra.mxu0 %v9008
        %v9171 = vpop.f32.mrf.mxu0
        %v9172 = vadd.f32 %v9039, %v9171
        %v9173 = vpop.f32.mrf.mxu0
        %v9174 = vpop.f32.mrf.mxu0
        %v9175 = vadd.f32 %v9039, %v9174
        %v9176 = vpop.f32.mrf.mxu0
        %9177 = vmatprep.mubr.bf16.mxu0 0
        %9178 = vmatmul.mubr.bf16.gmra.mxu0 %v9009
        %v9179 = vpop.f32.mrf.mxu0
        %v9180 = vadd.f32 %v9039, %v9179
        %v9181 = vpop.f32.mrf.mxu0
        %v9182 = vpop.f32.mrf.mxu0
        %v9183 = vadd.f32 %v9039, %v9182
        %v9184 = vpop.f32.mrf.mxu0
        %9185 = vmatprep.mubr.bf16.mxu0 0
        %9186 = vmatmul.mubr.bf16.gmra.mxu0 %v9010
        %v9187 = vpop.f32.mrf.mxu0
        %v9188 = vadd.f32 %v9039, %v9187
        %v9189 = vpop.f32.mrf.mxu0
        %v9190 = vpop.f32.mrf.mxu0
        %v9191 = vadd.f32 %v9039, %v9190
        %v9192 = vpop.f32.mrf.mxu0
        %9193 = vmatprep.mubr.bf16.mxu0 0
        %9194 = vmatmul.mubr.bf16.gmra.mxu0 %v9011
        %v9195 = vpop.f32.mrf.mxu0
        %v9196 = vadd.f32 %v9039, %v9195
        %v9197 = vpop.f32.mrf.mxu0
        %v9198 = vpop.f32.mrf.mxu0
        %v9199 = vadd.f32 %v9039, %v9198
        %v9200 = vpop.f32.mrf.mxu0
        %9201 = vmatprep.mubr.bf16.mxu0 0
        %9202 = vmatmul.mubr.bf16.gmra.mxu0 %v9012
        %v9203 = vpop.f32.mrf.mxu0
        %v9204 = vadd.f32 %v9039, %v9203
        %v9205 = vpop.f32.mrf.mxu0
        %v9206 = vpop.f32.mrf.mxu0
        %v9207 = vadd.f32 %v9039, %v9206
        %v9208 = vpop.f32.mrf.mxu0
        %9209 = vmatprep.mubr.bf16.mxu0 0
        %9210 = vmatmul.mubr.bf16.gmra.mxu0 %v9013
        %v9211 = vpop.f32.mrf.mxu0
        %v9212 = vadd.f32 %v9039, %v9211
        %v9213 = vpop.f32.mrf.mxu0
        %v9214 = vpop.f32.mrf.mxu0
        %v9215 = vadd.f32 %v9039, %v9214
        %v9216 = vpop.f32.mrf.mxu0
        %9217 = vmatprep.mubr.bf16.mxu0 0
        %9218 = vmatmul.mubr.bf16.gmra.mxu0 %v9014
        %v9219 = vpop.f32.mrf.mxu0
        %v9220 = vadd.f32 %v9039, %v9219
        %v9221 = vpop.f32.mrf.mxu0
        %v9222 = vpop.f32.mrf.mxu0
        %v9223 = vadd.f32 %v9039, %v9222
        %v9224 = vpop.f32.mrf.mxu0
        %9225 = vmatprep.mubr.bf16.mxu0 0
        %9226 = vmatmul.mubr.bf16.gmra.mxu0 %v9015
        %v9227 = vpop.f32.mrf.mxu0
        %v9228 = vadd.f32 %v9039, %v9227
        %v9229 = vpop.f32.mrf.mxu0
        %v9230 = vpop.f32.mrf.mxu0
        %v9231 = vadd.f32 %v9039, %v9230
        %v9232 = vpop.f32.mrf.mxu0
        %9233 = vmatprep.mubr.bf16.mxu0 0
        %9234 = vmatmul.mubr.bf16.gmra.mxu0 %v9016
        %v9235 = vpop.f32.mrf.mxu0
        %v9236 = vadd.f32 %v9039, %v9235
        %v9237 = vpop.f32.mrf.mxu0
        %v9238 = vpop.f32.mrf.mxu0
        %v9239 = vadd.f32 %v9039, %v9238
        %v9240 = vpop.f32.mrf.mxu0
        %9241 = vmatprep.mubr.bf16.mxu0 0
        %9242 = vmatmul.mubr.bf16.gmra.mxu0 %v9017
        %v9243 = vpop.f32.mrf.mxu0
        %v9244 = vadd.f32 %v9039, %v9243
        %v9245 = vpop.f32.mrf.mxu0
        %v9246 = vpop.f32.mrf.mxu0
        %v9247 = vadd.f32 %v9039, %v9246
        %v9248 = vpop.f32.mrf.mxu0
        %9249 = vdwg.mxu0
        %v9250 = vadd.f32 %v8938, %v9124
        %v9251 = vadd.f32 %v8939, %v9127
        %v9252 = vadd.f32 %v8940, %v9132
        %v9253 = vadd.f32 %v8941, %v9135
        %v9254 = vadd.f32 %v8942, %v9140
        %v9255 = vadd.f32 %v8943, %v9143
        %v9256 = vadd.f32 %v8944, %v9148
        %v9257 = vadd.f32 %v8945, %v9151
        %v9258 = vadd.f32 %v8946, %v9156
        %v9259 = vadd.f32 %v8947, %v9159
        %v9260 = vadd.f32 %v8948, %v9164
        %v9261 = vadd.f32 %v8949, %v9167
        %v9262 = vadd.f32 %v8950, %v9172
        %v9263 = vadd.f32 %v8951, %v9175
        %v9264 = vadd.f32 %v8952, %v9180
        %v9265 = vadd.f32 %v8953, %v9183
        %v9266 = vadd.f32 %v8954, %v9188
        %v9267 = vadd.f32 %v8955, %v9191
        %v9268 = vadd.f32 %v8956, %v9196
        %v9269 = vadd.f32 %v8957, %v9199
        %v9270 = vadd.f32 %v8958, %v9204
        %v9271 = vadd.f32 %v8959, %v9207
        %v9272 = vadd.f32 %v8960, %v9212
        %v9273 = vadd.f32 %v8961, %v9215
        %v9274 = vadd.f32 %v8962, %v9220
        %v9275 = vadd.f32 %v8963, %v9223
        %v9276 = vadd.f32 %v8964, %v9228
        %v9277 = vadd.f32 %v8965, %v9231
        %v9278 = vadd.f32 %v8966, %v9236
        %v9279 = vadd.f32 %v8967, %v9239
        %v9280 = vadd.f32 %v8968, %v9244
        %v9281 = vadd.f32 %v8969, %v9247
        %v9282 = vmax.f32 %v9250, 0.0
        %v9283 = vmax.f32 %v9251, 0.0
        %v9284 = vmax.f32 %v9252, 0.0
        %v9285 = vmax.f32 %v9253, 0.0
        %v9286 = vmax.f32 %v9254, 0.0
        %v9287 = vmax.f32 %v9255, 0.0
        %v9288 = vmax.f32 %v9256, 0.0
        %v9289 = vmax.f32 %v9257, 0.0
        %v9290 = vmax.f32 %v9258, 0.0
        %v9291 = vmax.f32 %v9259, 0.0
        %v9292 = vmax.f32 %v9260, 0.0
        %v9293 = vmax.f32 %v9261, 0.0
        %v9294 = vmax.f32 %v9262, 0.0
        %v9295 = vmax.f32 %v9263, 0.0
        %v9296 = vmax.f32 %v9264, 0.0
        %v9297 = vmax.f32 %v9265, 0.0
        %v9298 = vmax.f32 %v9266, 0.0
        %v9299 = vmax.f32 %v9267, 0.0
        %v9300 = vmax.f32 %v9268, 0.0
        %v9301 = vmax.f32 %v9269, 0.0
        %v9302 = vmax.f32 %v9270, 0.0
        %v9303 = vmax.f32 %v9271, 0.0
        %v9304 = vmax.f32 %v9272, 0.0
        %v9305 = vmax.f32 %v9273, 0.0
        %v9306 = vmax.f32 %v9274, 0.0
        %v9307 = vmax.f32 %v9275, 0.0
        %v9308 = vmax.f32 %v9276, 0.0
        %v9309 = vmax.f32 %v9277, 0.0
        %v9310 = vmax.f32 %v9278, 0.0
        %v9311 = vmax.f32 %v9279, 0.0
        %v9312 = vmax.f32 %v9280, 0.0
        %v9313 = vmax.f32 %v9281, 0.0
        %9314 = vst [vmem:[%s431] sm:$0xff] %v9282
        %9315 = vst [vmem:[%s431 + $0x8] sm:$0xff] %v9283
        %9316 = vst [vmem:[%s431 + $0x10] sm:$0xff] %v9284
        %9317 = vst [vmem:[%s431 + $0x18] sm:$0xff] %v9285
        %9318 = vst [vmem:[%s431 + $0x20] sm:$0xff] %v9286
        %9319 = vst [vmem:[%s431 + $0x28] sm:$0xff] %v9287
        %9320 = vst [vmem:[%s431 + $0x30] sm:$0xff] %v9288
        %9321 = vst [vmem:[%s431 + $0x38] sm:$0xff] %v9289
        %9322 = vst [vmem:[%s431 + $0x40] sm:$0xff] %v9290
        %9323 = vst [vmem:[%s431 + $0x48] sm:$0xff] %v9291
        %9324 = vst [vmem:[%s431 + $0x50] sm:$0xff] %v9292
        %9325 = vst [vmem:[%s431 + $0x58] sm:$0xff] %v9293
        %9326 = vst [vmem:[%s431 + $0x60] sm:$0xff] %v9294
        %9327 = vst [vmem:[%s431 + $0x68] sm:$0xff] %v9295
        %9328 = vst [vmem:[%s431 + $0x70] sm:$0xff] %v9296
        %9329 = vst [vmem:[%s431 + $0x78] sm:$0xff] %v9297
        %9330 = vst [vmem:[%s431 + $0x80] sm:$0xff] %v9298
        %9331 = vst [vmem:[%s431 + $0x88] sm:$0xff] %v9299
        %9332 = vst [vmem:[%s431 + $0x90] sm:$0xff] %v9300
        %9333 = vst [vmem:[%s431 + $0x98] sm:$0xff] %v9301
        %9334 = vst [vmem:[%s431 + $0xa0] sm:$0xff] %v9302
        %9335 = vst [vmem:[%s431 + $0xa8] sm:$0xff] %v9303
        %9336 = vst [vmem:[%s431 + $0xb0] sm:$0xff] %v9304
        %9337 = vst [vmem:[%s431 + $0xb8] sm:$0xff] %v9305
        %9338 = vst [vmem:[%s431 + $0xc0] sm:$0xff] %v9306
        %9339 = vst [vmem:[%s431 + $0xc8] sm:$0xff] %v9307
        %9340 = vst [vmem:[%s431 + $0xd0] sm:$0xff] %v9308
        %9341 = vst [vmem:[%s431 + $0xd8] sm:$0xff] %v9309
        %9342 = vst [vmem:[%s431 + $0xe0] sm:$0xff] %v9310
        %9343 = vst [vmem:[%s431 + $0xe8] sm:$0xff] %v9311
        %9344 = vst [vmem:[%s431 + $0xf0] sm:$0xff] %v9312
        %9345 = vst [vmem:[%s431 + $0xf8] sm:$0xff] %v9313
        %s9346 = sand.u32 %s237, 1
        %s9347 = scalar_lea.sflag [#allocation6], %s9346
        %s9348 = sand.u32 %s237, 1
        %s9349 = smul.addr %s9348, 256
        %s9350 = scalar_lea.vmem [#allocation13], %s9349
        // Predicated region
        $region77: #{tpu_custom_call.1} parent=55 // pred_check
          %p9351 = pneg %p247
        $region78: #{tpu_custom_call.1} parent=55 // pred_check_branch
          %9353 = sbr.rel (%p9351) target = $region80
        $region79: #{tpu_custom_call.1} parent=55 // pred_region
          %s9355 = ssub.s32 4096, 4096
          %9356 = vsyncadd %s9347, %s9355
          %s9357 = smul.addr %s30, 32
          %s9358 = smul.addr %s9357, 128
          %s9359 = scalar_lea.hbm %s9, %s9358
          %s9360 = sshll.u32 %s9350, 4
          %s9361 = int_to_ptr.vmem [resolvable:$true] %s9360
          %9366 = dma.vmem_to_hbm [thread:$0]  %s9361, 4096, %s9359, %s9347, 128, 128, 8
        $region80: #{tpu_custom_call.1} parent=55 // pred_fallthru
          _
      $region56: #{tpu_custom_call.1} parent=5 // pred_fallthru
        _
      %p9367 = scmp.le.s32.totalorder 2, %s25
      // Predicated region
      $region81: #{tpu_custom_call.1} parent=5 // pred_check
        %p9368 = pneg %p9367
      $region82: #{tpu_custom_call.1} parent=5 // pred_check_branch
        %9370 = sbr.rel (%p9368) target = $region84
      $region83: #{tpu_custom_call.1} parent=5 // pred_region
        %s9371 = ssub.s32 %s25, 2
        // Predicated region
        $region85: #{tpu_custom_call.1} parent=83 // pred_check
          %p9372 = pneg %p253
        $region86: #{tpu_custom_call.1} parent=83 // pred_check_branch
          %9374 = sbr.rel (%p9372) target = $region88
        $region87: #{tpu_custom_call.1} parent=83 // pred_region
          %s9375 = sand.u32 %s238, 1
          %s9376 = scalar_lea.sflag [#allocation6], %s9375
          %s9377 = sand.u32 %s238, 1
          %s9378 = smul.addr %s9377, 256
          %s9379 = scalar_lea.vmem [#allocation13], %s9378
          %9380 = dma.done %s9376, 4096
        $region88: #{tpu_custom_call.1} parent=83 // pred_fallthru
          _
      $region84: #{tpu_custom_call.1} parent=5 // pred_fallthru
        _
    $region6: #{tpu_custom_call.1} parent=1 // loop_footer
      %s29 = sadd.s32 1, %s25
    $region7: #{tpu_custom_call.1} parent=1 // loop_footer_branch
      %24 = sbr.rel target = $region3
    $region8: #{tpu_custom_call.1} parent=1 // loop_exit
      _
    %9381 = vsyncpa [#allocation5], 1
    %s9382 = scalar_lea.sflag [#allocation5], 1
    %9383 = vsyncpa %s9382, 1
    %9384 = vsyncpa [#allocation8], 1
    %s9385 = scalar_lea.sflag [#allocation8], 1
    %9386 = vsyncpa %s9385, 1
    %9387 = vsyncpa [#allocation11], 1
    %9388 = vsyncpa [#allocation6], 1
    %s9389 = scalar_lea.sflag [#allocation6], 1
    %9390 = vsyncpa %s9389, 1

</llo_original>
